<compile_context>
chip_gen: v5e
topology: v5e:2x2
jax: 0.10.0
libtpu: 0.0.40
codegen_flags: <defaults>
</compile_context>

<pallas_src>
import functools

import jax
import jax.numpy as jnp
from jax.experimental import pallas as pl
from jax.experimental.pallas import tpu as pltpu

_VMEM_LIMIT = 48 * 1024 * 1024  # < v7x 64 MiB physical, > 16/32 MiB default scoped


def _round_up(x, m):
    return ((x + m - 1) // m) * m


# ----------------------------------------------------------------------------
# Pallas kernels
# ----------------------------------------------------------------------------
def _matmul_stats_kernel(x_ref, w_ref, pre_ref, stats_ref):
    """One conv tap-matrix matmul tile + BN sum/sumsq accumulation.

    x_ref:  (1, tm, K)   bf16 lane-dense patch-matrix tile
    w_ref:  (1, K, C)    bf16 weights (zero-padded rows/cols)
    pre_ref:(1, tm, C)   bf16 pre-BN activation tile (no bias; BN cancels it)
    stats_ref:(1, 2, C)  f32 [sum; sumsq] accumulated across the M grid axis
    """
    i = pl.program_id(1)
    acc = jnp.dot(x_ref[0], w_ref[0], preferred_element_type=jnp.float32)
    pre_ref[0] = acc.astype(pre_ref.dtype)

    @pl.when(i == 0)
    def _():
        stats_ref[...] = jnp.zeros_like(stats_ref)

    upd = jnp.concatenate(
        [jnp.sum(acc, axis=0, keepdims=True),
         jnp.sum(acc * acc, axis=0, keepdims=True)], axis=0)
    stats_ref[0] = stats_ref[0] + upd


def _bn_act_kernel(pre_ref, stats_ref, gamma_ref, beta_ref, bias_ref, out_ref,
                   *, inv_m, eps, slope, bn_lo, bn_hi):
    """Training-mode BN + LeakyReLU on channels [bn_lo, bn_hi); pass-through
    (+ conv bias) elsewhere.  Per-channel scale/shift derived from the
    pre-accumulated sum/sumsq (second BN pass)."""
    x = pre_ref[0].astype(jnp.float32)                       # (tm, C)
    s = stats_ref[0]                                         # (2, C) f32
    mean = s[0:1] * inv_m
    var = jnp.maximum(s[1:2] * inv_m - mean * mean, 0.0)
    scale = gamma_ref[0] * jax.lax.rsqrt(var + eps)
    shift = beta_ref[0] - mean * scale
    y = x * scale + shift
    y = jnp.where(y >= 0.0, y, slope * y)
    c = out_ref.shape[-1]
    if (bn_lo, bn_hi) != (0, c):
        lane = jax.lax.broadcasted_iota(jnp.int32, (1, c), 1)
        sel = jnp.logical_and(lane >= bn_lo, lane < bn_hi)
        y = jnp.where(sel, y, x + bias_ref[0])               # raw conv (+bias)
    out_ref[0] = y.astype(out_ref.dtype)


def _bn_act_matmul_stats_kernel(pre1_ref, stats1_ref, g1_ref, b1_ref, w2_ref,
                                pre2_ref, stats2_ref,
                                *, inv_m, eps, slope, m_true, tm):
    """BN + LeakyReLU of conv3x3 output, fused 1x1 conv matmul, plus sum/sumsq
    accumulation for the following BN (net2_2d / net_obj middle stage)."""
    i = pl.program_id(1)
    x = pre1_ref[0].astype(jnp.float32)
    s = stats1_ref[0]
    mean = s[0:1] * inv_m
    var = jnp.maximum(s[1:2] * inv_m - mean * mean, 0.0)
    scale = g1_ref[0] * jax.lax.rsqrt(var + eps)
    shift = b1_ref[0] - mean * scale
    h = x * scale + shift
    h = jnp.where(h >= 0.0, h, slope * h)
    if m_true % tm != 0:
        # zero out M-padding rows so the second-stage statistics stay exact
        row = jax.lax.broadcasted_iota(jnp.int32, (tm, 1), 0) + i * tm
        h = jnp.where(row < m_true, h, 0.0)
    acc = jnp.dot(h.astype(jnp.bfloat16), w2_ref[0],
                  preferred_element_type=jnp.float32)
    pre2_ref[0] = acc.astype(pre2_ref.dtype)

    @pl.when(i == 0)
    def _():
        stats2_ref[...] = jnp.zeros_like(stats2_ref)

    upd = jnp.concatenate(
        [jnp.sum(acc, axis=0, keepdims=True),
         jnp.sum(acc * acc, axis=0, keepdims=True)], axis=0)
    stats2_ref[0] = stats2_ref[0] + upd


def _scatter_avg_kernel(ohs_ref, oho_ref, s_ref, o_ref, out_ref):
    """scatter_add of subject/object maps onto objects + 'avg' pooling as
    one-hot matmuls (f32 MXU accumulation => exact sums of bf16 features)."""
    ohs = ohs_ref[...]
    oho = oho_ref[...]
    pooled = jnp.dot(ohs, s_ref[...], preferred_element_type=jnp.float32)
    pooled = pooled + jnp.dot(oho, o_ref[...], preferred_element_type=jnp.float32)
    cnt = (jnp.sum(ohs.astype(jnp.float32), axis=1, keepdims=True) +
           jnp.sum(oho.astype(jnp.float32), axis=1, keepdims=True))
    cnt = jnp.maximum(cnt, 1.0)                              # clamp(min=1)
    out_ref[...] = (pooled / cnt).astype(out_ref.dtype)


# ----------------------------------------------------------------------------
# pallas_call wrappers (grids, BlockSpecs, compiler params)
# ----------------------------------------------------------------------------
def matmul_stats(x, w, *, tm):
    """x: (G, Mp, K) bf16, w: (G, K, C) bf16 -> (pre (G,Mp,C) bf16, stats (G,2,C) f32)."""
    g_n, mp, k = x.shape
    c = w.shape[-1]
    grid = (g_n, mp // tm)
    return pl.pallas_call(
        _matmul_stats_kernel,
        grid_spec=pltpu.PrefetchScalarGridSpec(
            num_scalar_prefetch=0, grid=grid,
            in_specs=[pl.BlockSpec((1, tm, k), lambda g, i: (g, i, 0)),
                      pl.BlockSpec((1, k, c), lambda g, i: (g, 0, 0))],
            out_specs=[pl.BlockSpec((1, tm, c), lambda g, i: (g, i, 0)),
                       pl.BlockSpec((1, 2, c), lambda g, i: (g, 0, 0))]),
        out_shape=(jax.ShapeDtypeStruct((g_n, mp, c), jnp.bfloat16),
                   jax.ShapeDtypeStruct((g_n, 2, c), jnp.float32)),
        compiler_params=pltpu.CompilerParams(
            dimension_semantics=("parallel", "arbitrary"),
            vmem_limit_bytes=_VMEM_LIMIT),
    )(x, w)


def bn_act(pre, stats, gamma, beta, bias, *, m_true, tm, bn_lo=None, bn_hi=None,
           eps=1e-5, slope=0.1, out_dtype=jnp.bfloat16):
    g_n, mp, c = pre.shape
    if bn_lo is None:
        bn_lo, bn_hi = 0, c
    grid = (g_n, mp // tm)
    kern = functools.partial(_bn_act_kernel, inv_m=1.0 / m_true, eps=eps,
                             slope=slope, bn_lo=bn_lo, bn_hi=bn_hi)
    return pl.pallas_call(
        kern,
        grid_spec=pltpu.PrefetchScalarGridSpec(
            num_scalar_prefetch=0, grid=grid,
            in_specs=[pl.BlockSpec((1, tm, c), lambda g, i: (g, i, 0)),
                      pl.BlockSpec((1, 2, c), lambda g, i: (g, 0, 0)),
                      pl.BlockSpec((1, 1, c), lambda g, i: (g, 0, 0)),
                      pl.BlockSpec((1, 1, c), lambda g, i: (g, 0, 0)),
                      pl.BlockSpec((1, 1, c), lambda g, i: (g, 0, 0))],
            out_specs=pl.BlockSpec((1, tm, c), lambda g, i: (g, i, 0))),
        out_shape=jax.ShapeDtypeStruct((g_n, mp, c), out_dtype),
        compiler_params=pltpu.CompilerParams(
            dimension_semantics=("parallel", "parallel"),
            vmem_limit_bytes=_VMEM_LIMIT),
    )(pre, stats, gamma, beta, bias)


def bn_act_matmul_stats(pre1, stats1, g1, b1, w2, *, m_true, tm,
                        eps=1e-5, slope=0.1):
    g_n, mp, c1 = pre1.shape
    c2 = w2.shape[-1]
    grid = (g_n, mp // tm)
    kern = functools.partial(_bn_act_matmul_stats_kernel, inv_m=1.0 / m_true,
                             eps=eps, slope=slope, m_true=m_true, tm=tm)
    return pl.pallas_call(
        kern,
        grid_spec=pltpu.PrefetchScalarGridSpec(
            num_scalar_prefetch=0, grid=grid,
            in_specs=[pl.BlockSpec((1, tm, c1), lambda g, i: (g, i, 0)),
                      pl.BlockSpec((1, 2, c1), lambda g, i: (g, 0, 0)),
                      pl.BlockSpec((1, 1, c1), lambda g, i: (g, 0, 0)),
                      pl.BlockSpec((1, 1, c1), lambda g, i: (g, 0, 0)),
                      pl.BlockSpec((1, c1, c2), lambda g, i: (g, 0, 0))],
            out_specs=[pl.BlockSpec((1, tm, c2), lambda g, i: (g, i, 0)),
                       pl.BlockSpec((1, 2, c2), lambda g, i: (g, 0, 0))]),
        out_shape=(jax.ShapeDtypeStruct((g_n, mp, c2), jnp.bfloat16),
                   jax.ShapeDtypeStruct((g_n, 2, c2), jnp.float32)),
        compiler_params=pltpu.CompilerParams(
            dimension_semantics=("parallel", "arbitrary"),
            vmem_limit_bytes=_VMEM_LIMIT),
    )(pre1, stats1, g1, b1, w2)


def scatter_avg_pool(onehot_s, onehot_o, s_flat, o_flat, *, dt):
    n_obj, n_tri = onehot_s.shape
    dp = s_flat.shape[1]
    grid = (dp // dt,)
    return pl.pallas_call(
        _scatter_avg_kernel,
        grid_spec=pltpu.PrefetchScalarGridSpec(
            num_scalar_prefetch=0, grid=grid,
            in_specs=[pl.BlockSpec((n_obj, n_tri), lambda i: (0, 0)),
                      pl.BlockSpec((n_obj, n_tri), lambda i: (0, 0)),
                      pl.BlockSpec((n_tri, dt), lambda i: (0, i)),
                      pl.BlockSpec((n_tri, dt), lambda i: (0, i))],
            out_specs=pl.BlockSpec((n_obj, dt), lambda i: (0, i))),
        out_shape=jax.ShapeDtypeStruct((n_obj, dp), jnp.bfloat16),
        compiler_params=pltpu.CompilerParams(
            dimension_semantics=("parallel",),
            vmem_limit_bytes=_VMEM_LIMIT),
    )(onehot_s, onehot_o, s_flat, o_flat)


# ----------------------------------------------------------------------------
# JAX-side glue: lane-dense patch matrices, zero-padding to 128-multiples
# ----------------------------------------------------------------------------
def _im2col(x):
    """(N,H,W,Cin) -> (N*H*W, 9*Cin) 'same'-padded 3x3 patch matrix (bf16).
    Built wrapper-side so the Pallas kernel gets a lane-dense operand and does
    zero in-kernel relayouts (the jnp.pad halo lives inside this XLA fusion)."""
    n, h, w, cin = x.shape
    xp = jnp.pad(x, ((0, 0), (1, 1), (1, 1), (0, 0)))
    cols = [xp[:, dy:dy + h, dx:dx + w, :] for dy in range(3) for dx in range(3)]
    return jnp.concatenate(cols, axis=-1).reshape(n * h * w, 9 * cin)


def _prep_x(x2d, tm, kpad):
    m, k = x2d.shape
    mp = _round_up(m, tm)
    return jnp.pad(x2d, ((0, mp - m), (0, kpad - k))).astype(jnp.bfloat16)


def _prep_w(w, kpad, cpad):
    w2 = w.reshape(-1, w.shape[-1])
    return jnp.pad(w2, ((0, kpad - w2.shape[0]),
                        (0, cpad - w2.shape[1]))).astype(jnp.bfloat16)


def _prep_vec(v, cpad, fill):
    v = v.astype(jnp.float32).reshape(1, -1)
    return jnp.pad(v, ((0, 0), (0, cpad - v.shape[-1])), constant_values=fill)


# ----------------------------------------------------------------------------
# One GraphTripleConv2d layer (non-last-layer path; default config)
# ----------------------------------------------------------------------------
def gconv_layer(params, obj_maps, pred_vecs, edges, *, eps=1e-5, slope=0.1):
    o_n, h, w, c = obj_maps.shape
    t_n = pred_vecs.shape[0]
    hd = params["n1_g1"].shape[0]          # hidden_dim
    co = params["n2_g2"].shape[0]          # output_dim (== output_dim_pred here)
    hdp = _round_up(hd, 128)
    cop = _round_up(co, 128)

    obj_maps = obj_maps.astype(jnp.bfloat16)
    if pred_vecs.ndim == 2:
        pred_maps = jnp.broadcast_to(
            pred_vecs.astype(jnp.bfloat16)[:, None, None, :],
            (t_n, h, w, pred_vecs.shape[-1]))
    else:
        pred_maps = pred_vecs.astype(jnp.bfloat16)

    s_idx = edges[:, 0]
    o_idx = edges[:, 1]
    # TODO(synk): fuse this gather/concat (and the spatially-constant pred
    # broadcast) into the first conv via scalar-prefetch index_maps instead of
    # materializing cur_t / its patch matrix in HBM.
    cur_t = jnp.concatenate([obj_maps[s_idx], pred_maps, obj_maps[o_idx]], axis=-1)

    m1 = t_n * h * w
    tm1 = min(512, _round_up(m1, 16))

    # --- net1_2d conv1: 3x3 -> BN -> LeakyReLU ------------------------------
    k1p = _round_up(9 * cur_t.shape[-1], 128)
    x1 = _prep_x(_im2col(cur_t), tm1, k1p)[None]
    w1 = _prep_w(params["n1_w1"], k1p, hdp)[None]
    pre1, st1 = matmul_stats(x1, w1, tm=tm1)
    g1 = _prep_vec(params["n1_g1"], hdp, 1.0)[None]
    b1 = _prep_vec(params["n1_be1"], hdp, 0.0)[None]
    zb1 = jnp.zeros((1, 1, hdp), jnp.float32)
    h1 = bn_act(pre1, st1, g1, b1, zb1, m_true=m1, tm=tm1, eps=eps, slope=slope)
    h_nhwc = h1[0, :m1, :hd].reshape(t_n, h, w, hd)

    # --- net1_2d conv2: 3x3; BN+LeakyReLU only on the predicate slice -------
    c2 = 2 * hd + co
    c2p = _round_up(c2, 128)
    k2p = _round_up(9 * hd, 128)
    x2 = _prep_x(_im2col(h_nhwc), tm1, k2p)[None]
    w2 = _prep_w(params["n1_w2"], k2p, c2p)[None]
    pre_t, st_t = matmul_stats(x2, w2, tm=tm1)
    g_full = jnp.zeros((c2p,), jnp.float32).at[hd:hd + co].set(params["act_g"])
    be_full = jnp.zeros((c2p,), jnp.float32).at[hd:hd + co].set(params["act_be"])
    bias_full = jnp.zeros((c2p,), jnp.float32).at[:c2].set(params["n1_b2"])
    new_t = bn_act(pre_t, st_t, g_full[None, None], be_full[None, None],
                   bias_full[None, None], m_true=m1, tm=tm1,
                   bn_lo=hd, bn_hi=hd + co, eps=eps, slope=slope)
    new_t2d = new_t[0, :m1]
    new_s = new_t2d[:, :hd]
    new_p = new_t2d[:, hd:hd + co].reshape(t_n, h, w, co)
    new_o = new_t2d[:, hd + co:2 * hd + co]

    # --- scatter_add + 'avg' pooling onto objects ---------------------------
    d = h * w * hd
    dt = min(2048, _round_up(d, 128))
    dp = _round_up(d, dt)
    s_flat = jnp.pad(new_s.reshape(t_n, d), ((0, 0), (0, dp - d)))
    o_flat = jnp.pad(new_o.reshape(t_n, d), ((0, 0), (0, dp - d)))
    oh_s = (s_idx[None, :] == jnp.arange(o_n)[:, None]).astype(jnp.bfloat16)
    oh_o = (o_idx[None, :] == jnp.arange(o_n)[:, None]).astype(jnp.bfloat16)
    pooled = scatter_avg_pool(oh_s, oh_o, s_flat, o_flat, dt=dt)[:, :d]
    pooled = pooled.reshape(o_n, h, w, hd)

    # --- net2_2d(pooled) and net_obj(obj_maps): stacked on a 'parallel' axis -
    m2 = o_n * h * w
    tm2 = min(512, _round_up(m2, 16))
    kp = _round_up(9 * max(hd, c), 128)
    xab = jnp.stack([_prep_x(_im2col(pooled), tm2, kp),
                     _prep_x(_im2col(obj_maps), tm2, kp)], axis=0)
    w1ab = jnp.stack([_prep_w(params["n2_w1"], kp, hdp),
                      _prep_w(params["no_w1"], kp, hdp)], axis=0)
    preab, stab = matmul_stats(xab, w1ab, tm=tm2)
    g1ab = jnp.stack([_prep_vec(params["n2_g1"], hdp, 1.0),
                      _prep_vec(params["no_g1"], hdp, 1.0)], axis=0)
    b1ab = jnp.stack([_prep_vec(params["n2_be1"], hdp, 0.0),
                      _prep_vec(params["no_be1"], hdp, 0.0)], axis=0)
    w2ab = jnp.stack([_prep_w(params["n2_w2"], hdp, cop),
                      _prep_w(params["no_w2"], hdp, cop)], axis=0)
    pre2ab, st2ab = bn_act_matmul_stats(preab, stab, g1ab, b1ab, w2ab,
                                        m_true=m2, tm=tm2, eps=eps, slope=slope)
    g2ab = jnp.stack([_prep_vec(params["n2_g2"], cop, 1.0),
                      _prep_vec(params["no_g2"], cop, 1.0)], axis=0)
    b2ab = jnp.stack([_prep_vec(params["n2_be2"], cop, 0.0),
                      _prep_vec(params["no_be2"], cop, 0.0)], axis=0)
    zb2 = jnp.zeros((2, 1, cop), jnp.float32)
    yab = bn_act(pre2ab, st2ab, g2ab, b2ab, zb2, m_true=m2, tm=tm2,
                 eps=eps, slope=slope)
    obj_out = (yab[0, :m2, :co] + yab[1, :m2, :co]).reshape(o_n, h, w, co)
    return obj_out, new_p


# ----------------------------------------------------------------------------
# GraphTripleConv2dNet forward
# ----------------------------------------------------------------------------
def graph_triple_conv2d_net(layer_params_list, obj_maps_nchw, pred_vecs, edges,
                            obj_to_img=None, transform_residual=False):
    del obj_to_img  # unused by the forward pass, kept for signature parity
    obj_maps = jnp.transpose(obj_maps_nchw, (0, 2, 3, 1)).astype(jnp.bfloat16)
    preds = pred_vecs
    for params in layer_params_list:
        original_obj_maps = obj_maps
        obj_maps, preds = gconv_layer(params, obj_maps, preds, edges)
        if transform_residual and obj_maps.shape[-1] == original_obj_maps.shape[-1]:
            obj_maps = obj_maps + original_obj_maps
    return (jnp.transpose(obj_maps, (0, 3, 1, 2)).astype(jnp.float32),
            jnp.transpose(preds, (0, 3, 1, 2)).astype(jnp.float32))


# TODO(synk): use_flow_net (affine_grid + grid_sample), use_mask_net and
# forward_last (attn_1/2/3, only reachable when last_layer=True) are not
# implemented; they are disabled under the module's default configuration.


# ----------------------------------------------------------------------------
# Deterministic synthetic parameters (matches module __init__ shapes)
# ----------------------------------------------------------------------------
def _init_conv(key, kh, kw, cin, cout):
    w = jax.random.normal(key, (kh, kw, cin, cout), jnp.float32) / jnp.sqrt(
        float(kh * kw * cin))
    b = jnp.zeros((cout,), jnp.float32)
    return w, b


def init_layer_params(key, input_dim, input_dim_pred, hidden_dim, output_dim,
                      output_dim_pred):
    ks = jax.random.split(key, 6)
    p = {}
    # net1_2d: C3-(hidden) + BN + act, C3-(2*hidden + output_dim_pred)
    p["n1_w1"], p["n1_b1"] = _init_conv(ks[0], 3, 3,
                                        2 * input_dim + input_dim_pred, hidden_dim)
    p["n1_g1"], p["n1_be1"] = jnp.ones((hidden_dim,)), jnp.zeros((hidden_dim,))
    p["n1_w2"], p["n1_b2"] = _init_conv(ks[1], 3, 3, hidden_dim,
                                        2 * hidden_dim + output_dim_pred)
    # self.activation = BN(output_dim_pred) + LeakyReLU, applied to pred slice
    p["act_g"], p["act_be"] = jnp.ones((output_dim_pred,)), jnp.zeros((output_dim_pred,))
    # net2_2d: C3-(hidden) + BN + act, C1-(output) + BN + act
    p["n2_w1"], p["n2_b1"] = _init_conv(ks[2], 3, 3, hidden_dim, hidden_dim)
    p["n2_g1"], p["n2_be1"] = jnp.ones((hidden_dim,)), jnp.zeros((hidden_dim,))
    w, b = _init_conv(ks[3], 1, 1, hidden_dim, output_dim)
    p["n2_w2"], p["n2_b2"] = w.reshape(hidden_dim, output_dim), b
    p["n2_g2"], p["n2_be2"] = jnp.ones((output_dim,)), jnp.zeros((output_dim,))
    # net_obj: C3-(hidden) + BN + act, C1-(output) + BN + act
    p["no_w1"], p["no_b1"] = _init_conv(ks[4], 3, 3, input_dim, hidden_dim)
    p["no_g1"], p["no_be1"] = jnp.ones((hidden_dim,)), jnp.zeros((hidden_dim,))
    w, b = _init_conv(ks[5], 1, 1, hidden_dim, output_dim)
    p["no_w2"], p["no_b2"] = w.reshape(hidden_dim, output_dim), b
    p["no_g2"], p["no_be2"] = jnp.ones((output_dim,)), jnp.zeros((output_dim,))
    return p


if __name__ == "__main__":
    key = jax.random.PRNGKey(0)
    O, T, C, H, W = 5, 7, 8, 8, 8          # objects, triples, channels, spatial
    hidden_dims = [16, 16]                  # two graph-conv layers

    k_obj, k_pred, k_e1, k_e2, k_par = jax.random.split(key, 5)
    obj_maps = jax.random.normal(k_obj, (O, C, H, W), jnp.float32)      # NCHW
    pred_vecs = jax.random.normal(k_pred, (T, C), jnp.float32)
    edges = jnp.stack(
        [jax.random.randint(k_e1, (T,), 0, O),
         jax.random.randint(k_e2, (T,), 0, O)], axis=1).astype(jnp.int32)

    layer_params = []
    pk = k_par
    for hd in hidden_dims:
        pk, sub = jax.random.split(pk)
        # input_dim = input_dim_pred = output_dim = output_dim_pred = C (stackable)
        layer_params.append(init_layer_params(sub, C, C, hd, C, C))

    fwd = jax.jit(functools.partial(graph_triple_conv2d_net,
                                    transform_residual=False))
    out_obj, out_pred = fwd(layer_params, obj_maps, pred_vecs, edges, None)
    jax.block_until_ready((out_obj, out_pred))

    assert out_obj.shape == (O, C, H, W)
    assert out_pred.shape == (T, C, H, W)
    print("KERNEL_OK")
</pallas_src>

<mosaic_0001>
module attributes {stable_mosaic.version = 11 : i64} {
  func.func @_matmul_stats_kernel(%arg0: i32, %arg1: i32, %arg2: memref<1x448x256xbf16, #tpu.memory_space<vmem>>, %arg3: memref<1x256x128xbf16, #tpu.memory_space<vmem>>, %arg4: memref<1x448x128xbf16, #tpu.memory_space<vmem>>, %arg5: memref<1x2x128xf32, #tpu.memory_space<vmem>>) attributes {dimension_semantics = [#tpu.dimension_semantics<parallel>, #tpu.dimension_semantics<arbitrary>], iteration_bounds = array<i64: 1, 1>, scalar_prefetch = 0 : i64, scratch_operands = 0 : i64, tpu.core_type = #tpu.core_type<tc>, window_params = [{transform_indices = @transform_0, window_bounds = array<i64: 1, 448, 256>}, {transform_indices = @transform_1, window_bounds = array<i64: 1, 256, 128>}, {transform_indices = @transform_2, window_bounds = array<i64: 1, 448, 128>}, {transform_indices = @transform_3, window_bounds = array<i64: 1, 2, 128>}]} {
    %c0 = arith.constant 0 : index
    %c0_0 = arith.constant 0 : index
    %c0_1 = arith.constant 0 : index
    %0 = vector.load %arg2[%c0, %c0_0, %c0_1] : memref<1x448x256xbf16, #tpu.memory_space<vmem>>, vector<1x448x256xbf16>
    %1 = vector.shape_cast %0 : vector<1x448x256xbf16> to vector<448x256xbf16>
    %c0_2 = arith.constant 0 : index
    %c0_3 = arith.constant 0 : index
    %c0_4 = arith.constant 0 : index
    %2 = vector.load %arg3[%c0_2, %c0_3, %c0_4] : memref<1x256x128xbf16, #tpu.memory_space<vmem>>, vector<1x256x128xbf16>
    %3 = vector.shape_cast %2 : vector<1x256x128xbf16> to vector<256x128xbf16>
    %cst = arith.constant dense<0.000000e+00> : vector<448x128xf32>
    %4 = tpu.matmul %1, %3, %cst {dimension_numbers = #tpu.dot_dimension_numbers<[1], [0], [0], [1], [0, 0, 1, 1], [], []>} : vector<448x256xbf16>, vector<256x128xbf16>, vector<448x128xf32> -> vector<448x128xf32>
    %5 = arith.truncf %4 : vector<448x128xf32> to vector<448x128xbf16>
    %c0_5 = arith.constant 0 : index
    %c0_6 = arith.constant 0 : index
    %c0_7 = arith.constant 0 : index
    %6 = vector.load %arg4[%c0_5, %c0_6, %c0_7] : memref<1x448x128xbf16, #tpu.memory_space<vmem>>, vector<1x448x128xbf16>
    %7 = vector.shape_cast %6 : vector<1x448x128xbf16> to vector<448x128xbf16>
    %8 = vector.shape_cast %5 : vector<448x128xbf16> to vector<1x448x128xbf16>
    tpu.vector_store %arg4[%c0_5, %c0_6, %c0_7], %8 {strides = array<i32>} : memref<1x448x128xbf16, #tpu.memory_space<vmem>>, vector<1x448x128xbf16>,
    %c0_i32 = arith.constant 0 : i32
    %9 = arith.cmpi eq, %arg1, %c0_i32 : i32
    %10 = arith.extui %9 : i1 to i32
    %c0_i32_8 = arith.constant 0 : i32
    %11 = arith.cmpi ne, %10, %c0_i32_8 : i32
    scf.if %11 {
      %cst_17 = arith.constant 0.000000e+00 : f32
      %24 = vector.broadcast %cst_17 : f32 to vector<1x2x128xf32>
      %c0_18 = arith.constant 0 : index
      %c0_19 = arith.constant 0 : index
      %c0_20 = arith.constant 0 : index
      %25 = vector.load %arg5[%c0_18, %c0_19, %c0_20] : memref<1x2x128xf32, #tpu.memory_space<vmem>>, vector<1x2x128xf32>
      tpu.vector_store %arg5[%c0_18, %c0_19, %c0_20], %24 {strides = array<i32>} : memref<1x2x128xf32, #tpu.memory_space<vmem>>, vector<1x2x128xf32>,
    } else {
    }
    %cst_9 = arith.constant dense<0.000000e+00> : vector<128xf32>
    %12 = vector.multi_reduction <add>, %4, %cst_9 [0] : vector<448x128xf32> to vector<128xf32>
    %13 = vector.shape_cast %12 : vector<128xf32> to vector<1x128xf32>
    %14 = arith.mulf %4, %4 : vector<448x128xf32>
    %cst_10 = arith.constant dense<0.000000e+00> : vector<128xf32>
    %15 = vector.multi_reduction <add>, %14, %cst_10 [0] : vector<448x128xf32> to vector<128xf32>
    %16 = vector.shape_cast %15 : vector<128xf32> to vector<1x128xf32>
    %17 = tpu.concatenate %13, %16 in 0 : vector<1x128xf32>, vector<1x128xf32> -> vector<2x128xf32>
    %c0_11 = arith.constant 0 : index
    %c0_12 = arith.constant 0 : index
    %c0_13 = arith.constant 0 : index
    %18 = vector.load %arg5[%c0_11, %c0_12, %c0_13] : memref<1x2x128xf32, #tpu.memory_space<vmem>>, vector<1x2x128xf32>
    %19 = vector.shape_cast %18 : vector<1x2x128xf32> to vector<2x128xf32>
    %20 = arith.addf %19, %17 : vector<2x128xf32>
    %c0_14 = arith.constant 0 : index
    %c0_15 = arith.constant 0 : index
    %c0_16 = arith.constant 0 : index
    %21 = vector.load %arg5[%c0_14, %c0_15, %c0_16] : memref<1x2x128xf32, #tpu.memory_space<vmem>>, vector<1x2x128xf32>
    %22 = vector.shape_cast %21 : vector<1x2x128xf32> to vector<2x128xf32>
    %23 = vector.shape_cast %20 : vector<2x128xf32> to vector<1x2x128xf32>
    tpu.vector_store %arg5[%c0_14, %c0_15, %c0_16], %23 {strides = array<i32>} : memref<1x2x128xf32, #tpu.memory_space<vmem>>, vector<1x2x128xf32>,
    return
  }
  func.func @transform_0(%arg0: i32, %arg1: i32) -> (i32, i32, i32) {
    %c0_i32 = arith.constant 0 : i32
    %c0_i32_0 = arith.constant 0 : i32
    return %arg0, %arg1, %c0_i32 : i32, i32, i32
  }
  func.func @transform_1(%arg0: i32, %arg1: i32) -> (i32, i32, i32) {
    %c0_i32 = arith.constant 0 : i32
    %c0_i32_0 = arith.constant 0 : i32
    %c0_i32_1 = arith.constant 0 : i32
    return %arg0, %c0_i32, %c0_i32_0 : i32, i32, i32
  }
  func.func @transform_2(%arg0: i32, %arg1: i32) -> (i32, i32, i32) {
    %c0_i32 = arith.constant 0 : i32
    %c0_i32_0 = arith.constant 0 : i32
    return %arg0, %arg1, %c0_i32 : i32, i32, i32
  }
  func.func @transform_3(%arg0: i32, %arg1: i32) -> (i32, i32, i32) {
    %c0_i32 = arith.constant 0 : i32
    %c0_i32_0 = arith.constant 0 : i32
    %c0_i32_1 = arith.constant 0 : i32
    return %arg0, %c0_i32, %c0_i32_0 : i32, i32, i32
  }
}

module attributes {stable_mosaic.version = 11 : i64} {
  func.func @_bn_act_kernel(%arg0: i32, %arg1: i32, %arg2: memref<1x448x128xbf16, #tpu.memory_space<vmem>>, %arg3: memref<1x2x128xf32, #tpu.memory_space<vmem>>, %arg4: memref<1x1x128xf32, #tpu.memory_space<vmem>>, %arg5: memref<1x1x128xf32, #tpu.memory_space<vmem>>, %arg6: memref<1x1x128xf32, #tpu.memory_space<vmem>>, %arg7: memref<1x448x128xbf16, #tpu.memory_space<vmem>>) attributes {dimension_semantics = [#tpu.dimension_semantics<parallel>, #tpu.dimension_semantics<parallel>], iteration_bounds = array<i64: 1, 1>, scalar_prefetch = 0 : i64, scratch_operands = 0 : i64, tpu.core_type = #tpu.core_type<tc>, window_params = [{transform_indices = @transform_0, window_bounds = array<i64: 1, 448, 128>}, {transform_indices = @transform_1, window_bounds = array<i64: 1, 2, 128>}, {transform_indices = @transform_2, window_bounds = array<i64: 1, 1, 128>}, {transform_indices = @transform_3, window_bounds = array<i64: 1, 1, 128>}, {transform_indices = @transform_4, window_bounds = array<i64: 1, 1, 128>}, {transform_indices = @transform_5, window_bounds = array<i64: 1, 448, 128>}]} {
    %c0 = arith.constant 0 : index
    %c0_0 = arith.constant 0 : index
    %c0_1 = arith.constant 0 : index
    %0 = vector.load %arg2[%c0, %c0_0, %c0_1] : memref<1x448x128xbf16, #tpu.memory_space<vmem>>, vector<1x448x128xbf16>
    %1 = vector.shape_cast %0 : vector<1x448x128xbf16> to vector<448x128xbf16>
    %2 = arith.extf %1 : vector<448x128xbf16> to vector<448x128xf32>
    %c0_2 = arith.constant 0 : index
    %c0_3 = arith.constant 0 : index
    %c0_4 = arith.constant 0 : index
    %3 = vector.load %arg3[%c0_2, %c0_3, %c0_4] : memref<1x2x128xf32, #tpu.memory_space<vmem>>, vector<1x2x128xf32>
    %4 = vector.shape_cast %3 : vector<1x2x128xf32> to vector<2x128xf32>
    %5 = vector.extract_strided_slice %4 {offsets = [0, 0], sizes = [1, 128], strides = [1, 1]} : vector<2x128xf32> to vector<1x128xf32>
    %cst = arith.constant 0.00223214296 : f32
    %6 = vector.broadcast %cst : f32 to vector<1x128xf32>
    %7 = arith.mulf %5, %6 : vector<1x128xf32>
    %8 = vector.extract_strided_slice %4 {offsets = [1, 0], sizes = [1, 128], strides = [1, 1]} : vector<2x128xf32> to vector<1x128xf32>
    %cst_5 = arith.constant 0.00223214296 : f32
    %9 = vector.broadcast %cst_5 : f32 to vector<1x128xf32>
    %10 = arith.mulf %8, %9 : vector<1x128xf32>
    %11 = arith.mulf %7, %7 : vector<1x128xf32>
    %12 = arith.subf %10, %11 : vector<1x128xf32>
    %cst_6 = arith.constant 0.000000e+00 : f32
    %13 = vector.broadcast %cst_6 : f32 to vector<1x128xf32>
    %14 = arith.maximumf %12, %13 : vector<1x128xf32>
    %c0_7 = arith.constant 0 : index
    %c0_8 = arith.constant 0 : index
    %c0_9 = arith.constant 0 : index
    %15 = vector.load %arg4[%c0_7, %c0_8, %c0_9] : memref<1x1x128xf32, #tpu.memory_space<vmem>>, vector<1x1x128xf32>
    %16 = vector.shape_cast %15 : vector<1x1x128xf32> to vector<1x128xf32>
    %cst_10 = arith.constant 9.99999974E-6 : f32
    %17 = vector.broadcast %cst_10 : f32 to vector<1x128xf32>
    %18 = arith.addf %14, %17 : vector<1x128xf32>
    %19 = math.rsqrt %18 : vector<1x128xf32>
    %20 = arith.mulf %16, %19 : vector<1x128xf32>
    %c0_11 = arith.constant 0 : index
    %c0_12 = arith.constant 0 : index
    %c0_13 = arith.constant 0 : index
    %21 = vector.load %arg5[%c0_11, %c0_12, %c0_13] : memref<1x1x128xf32, #tpu.memory_space<vmem>>, vector<1x1x128xf32>
    %22 = vector.shape_cast %21 : vector<1x1x128xf32> to vector<1x128xf32>
    %23 = arith.mulf %7, %20 : vector<1x128xf32>
    %24 = arith.subf %22, %23 : vector<1x128xf32>
    %25 = vector.broadcast %20 : vector<1x128xf32> to vector<448x128xf32>
    %26 = arith.mulf %2, %25 : vector<448x128xf32>
    %27 = vector.broadcast %24 : vector<1x128xf32> to vector<448x128xf32>
    %28 = arith.addf %26, %27 : vector<448x128xf32>
    %cst_14 = arith.constant 0.000000e+00 : f32
    %29 = vector.broadcast %cst_14 : f32 to vector<448x128xf32>
    %30 = arith.cmpf oge, %28, %29 : vector<448x128xf32>
    %cst_15 = arith.constant 1.000000e-01 : f32
    %31 = vector.broadcast %cst_15 : f32 to vector<448x128xf32>
    %32 = arith.mulf %31, %28 : vector<448x128xf32>
    %33 = arith.select %30, %28, %32 : vector<448x128xi1>, vector<448x128xf32>
    %34 = arith.truncf %33 : vector<448x128xf32> to vector<448x128xbf16>
    %c0_16 = arith.constant 0 : index
    %c0_17 = arith.constant 0 : index
    %c0_18 = arith.constant 0 : index
    %35 = vector.load %arg7[%c0_16, %c0_17, %c0_18] : memref<1x448x128xbf16, #tpu.memory_space<vmem>>, vector<1x448x128xbf16>
    %36 = vector.shape_cast %35 : vector<1x448x128xbf16> to vector<448x128xbf16>
    %37 = vector.shape_cast %34 : vector<448x128xbf16> to vector<1x448x128xbf16>
    tpu.vector_store %arg7[%c0_16, %c0_17, %c0_18], %37 {strides = array<i32>} : memref<1x448x128xbf16, #tpu.memory_space<vmem>>, vector<1x448x128xbf16>,
    return
  }
  func.func @transform_0(%arg0: i32, %arg1: i32) -> (i32, i32, i32) {
    %c0_i32 = arith.constant 0 : i32
    %c0_i32_0 = arith.constant 0 : i32
    return %arg0, %arg1, %c0_i32 : i32, i32, i32
  }
  func.func @transform_1(%arg0: i32, %arg1: i32) -> (i32, i32, i32) {
    %c0_i32 = arith.constant 0 : i32
    %c0_i32_0 = arith.constant 0 : i32
    %c0_i32_1 = arith.constant 0 : i32
    return %arg0, %c0_i32, %c0_i32_0 : i32, i32, i32
  }
  func.func @transform_2(%arg0: i32, %arg1: i32) -> (i32, i32, i32) {
    %c0_i32 = arith.constant 0 : i32
    %c0_i32_0 = arith.constant 0 : i32
    %c0_i32_1 = arith.constant 0 : i32
    return %arg0, %c0_i32, %c0_i32_0 : i32, i32, i32
  }
  func.func @transform_3(%arg0: i32, %arg1: i32) -> (i32, i32, i32) {
    %c0_i32 = arith.constant 0 : i32
    %c0_i32_0 = arith.constant 0 : i32
    %c0_i32_1 = arith.constant 0 : i32
    return %arg0, %c0_i32, %c0_i32_0 : i32, i32, i32
  }
  func.func @transform_4(%arg0: i32, %arg1: i32) -> (i32, i32, i32) {
    %c0_i32 = arith.constant 0 : i32
    %c0_i32_0 = arith.constant 0 : i32
    %c0_i32_1 = arith.constant 0 : i32
    return %arg0, %c0_i32, %c0_i32_0 : i32, i32, i32
  }
  func.func @transform_5(%arg0: i32, %arg1: i32) -> (i32, i32, i32) {
    %c0_i32 = arith.constant 0 : i32
    %c0_i32_0 = arith.constant 0 : i32
    return %arg0, %arg1, %c0_i32 : i32, i32, i32
  }
}

module attributes {stable_mosaic.version = 11 : i64} {
  func.func @_bn_act_kernel(%arg0: i32, %arg1: i32, %arg2: memref<1x448x128xbf16, #tpu.memory_space<vmem>>, %arg3: memref<1x2x128xf32, #tpu.memory_space<vmem>>, %arg4: memref<1x1x128xf32, #tpu.memory_space<vmem>>, %arg5: memref<1x1x128xf32, #tpu.memory_space<vmem>>, %arg6: memref<1x1x128xf32, #tpu.memory_space<vmem>>, %arg7: memref<1x448x128xbf16, #tpu.memory_space<vmem>>) attributes {dimension_semantics = [#tpu.dimension_semantics<parallel>, #tpu.dimension_semantics<parallel>], iteration_bounds = array<i64: 1, 1>, scalar_prefetch = 0 : i64, scratch_operands = 0 : i64, tpu.core_type = #tpu.core_type<tc>, window_params = [{transform_indices = @transform_0, window_bounds = array<i64: 1, 448, 128>}, {transform_indices = @transform_1, window_bounds = array<i64: 1, 2, 128>}, {transform_indices = @transform_2, window_bounds = array<i64: 1, 1, 128>}, {transform_indices = @transform_3, window_bounds = array<i64: 1, 1, 128>}, {transform_indices = @transform_4, window_bounds = array<i64: 1, 1, 128>}, {transform_indices = @transform_5, window_bounds = array<i64: 1, 448, 128>}]} {
    %c0 = arith.constant 0 : index
    %c0_0 = arith.constant 0 : index
    %c0_1 = arith.constant 0 : index
    %0 = vector.load %arg2[%c0, %c0_0, %c0_1] : memref<1x448x128xbf16, #tpu.memory_space<vmem>>, vector<1x448x128xbf16>
    %1 = vector.shape_cast %0 : vector<1x448x128xbf16> to vector<448x128xbf16>
    %2 = arith.extf %1 : vector<448x128xbf16> to vector<448x128xf32>
    %c0_2 = arith.constant 0 : index
    %c0_3 = arith.constant 0 : index
    %c0_4 = arith.constant 0 : index
    %3 = vector.load %arg3[%c0_2, %c0_3, %c0_4] : memref<1x2x128xf32, #tpu.memory_space<vmem>>, vector<1x2x128xf32>
    %4 = vector.shape_cast %3 : vector<1x2x128xf32> to vector<2x128xf32>
    %5 = vector.extract_strided_slice %4 {offsets = [0, 0], sizes = [1, 128], strides = [1, 1]} : vector<2x128xf32> to vector<1x128xf32>
    %cst = arith.constant 0.00223214296 : f32
    %6 = vector.broadcast %cst : f32 to vector<1x128xf32>
    %7 = arith.mulf %5, %6 : vector<1x128xf32>
    %8 = vector.extract_strided_slice %4 {offsets = [1, 0], sizes = [1, 128], strides = [1, 1]} : vector<2x128xf32> to vector<1x128xf32>
    %cst_5 = arith.constant 0.00223214296 : f32
    %9 = vector.broadcast %cst_5 : f32 to vector<1x128xf32>
    %10 = arith.mulf %8, %9 : vector<1x128xf32>
    %11 = arith.mulf %7, %7 : vector<1x128xf32>
    %12 = arith.subf %10, %11 : vector<1x128xf32>
    %cst_6 = arith.constant 0.000000e+00 : f32
    %13 = vector.broadcast %cst_6 : f32 to vector<1x128xf32>
    %14 = arith.maximumf %12, %13 : vector<1x128xf32>
    %c0_7 = arith.constant 0 : index
    %c0_8 = arith.constant 0 : index
    %c0_9 = arith.constant 0 : index
    %15 = vector.load %arg4[%c0_7, %c0_8, %c0_9] : memref<1x1x128xf32, #tpu.memory_space<vmem>>, vector<1x1x128xf32>
    %16 = vector.shape_cast %15 : vector<1x1x128xf32> to vector<1x128xf32>
    %cst_10 = arith.constant 9.99999974E-6 : f32
    %17 = vector.broadcast %cst_10 : f32 to vector<1x128xf32>
    %18 = arith.addf %14, %17 : vector<1x128xf32>
    %19 = math.rsqrt %18 : vector<1x128xf32>
    %20 = arith.mulf %16, %19 : vector<1x128xf32>
    %c0_11 = arith.constant 0 : index
    %c0_12 = arith.constant 0 : index
    %c0_13 = arith.constant 0 : index
    %21 = vector.load %arg5[%c0_11, %c0_12, %c0_13] : memref<1x1x128xf32, #tpu.memory_space<vmem>>, vector<1x1x128xf32>
    %22 = vector.shape_cast %21 : vector<1x1x128xf32> to vector<1x128xf32>
    %23 = arith.mulf %7, %20 : vector<1x128xf32>
    %24 = arith.subf %22, %23 : vector<1x128xf32>
    %25 = vector.broadcast %20 : vector<1x128xf32> to vector<448x128xf32>
    %26 = arith.mulf %2, %25 : vector<448x128xf32>
    %27 = vector.broadcast %24 : vector<1x128xf32> to vector<448x128xf32>
    %28 = arith.addf %26, %27 : vector<448x128xf32>
    %cst_14 = arith.constant 0.000000e+00 : f32
    %29 = vector.broadcast %cst_14 : f32 to vector<448x128xf32>
    %30 = arith.cmpf oge, %28, %29 : vector<448x128xf32>
    %cst_15 = arith.constant 1.000000e-01 : f32
    %31 = vector.broadcast %cst_15 : f32 to vector<448x128xf32>
    %32 = arith.mulf %31, %28 : vector<448x128xf32>
    %33 = arith.select %30, %28, %32 : vector<448x128xi1>, vector<448x128xf32>
    %34 = tpu.iota {dimensions = array<i32: 1>} : vector<1x128xi32>
    %c16_i32 = arith.constant 16 : i32
    %35 = vector.broadcast %c16_i32 : i32 to vector<1x128xi32>
    %36 = arith.cmpi sge, %34, %35 : vector<1x128xi32>
    %c24_i32 = arith.constant 24 : i32
    %37 = vector.broadcast %c24_i32 : i32 to vector<1x128xi32>
    %38 = arith.cmpi slt, %34, %37 : vector<1x128xi32>
    %39 = arith.andi %36, %38 : vector<1x128xi1>
    %c0_16 = arith.constant 0 : index
    %c0_17 = arith.constant 0 : index
    %c0_18 = arith.constant 0 : index
    %40 = vector.load %arg6[%c0_16, %c0_17, %c0_18] : memref<1x1x128xf32, #tpu.memory_space<vmem>>, vector<1x1x128xf32>
    %41 = vector.shape_cast %40 : vector<1x1x128xf32> to vector<1x128xf32>
    %42 = vector.broadcast %41 : vector<1x128xf32> to vector<448x128xf32>
    %43 = arith.addf %2, %42 : vector<448x128xf32>
    %44 = vector.shape_cast %39 : vector<1x128xi1> to vector<1x128xi1>
    %45 = vector.broadcast %44 : vector<1x128xi1> to vector<448x128xi1>
    %46 = arith.select %45, %33, %43 : vector<448x128xi1>, vector<448x128xf32>
    %47 = arith.truncf %46 : vector<448x128xf32> to vector<448x128xbf16>
    %c0_19 = arith.constant 0 : index
    %c0_20 = arith.constant 0 : index
    %c0_21 = arith.constant 0 : index
    %48 = vector.load %arg7[%c0_19, %c0_20, %c0_21] : memref<1x448x128xbf16, #tpu.memory_space<vmem>>, vector<1x448x128xbf16>
    %49 = vector.shape_cast %48 : vector<1x448x128xbf16> to vector<448x128xbf16>
    %50 = vector.shape_cast %47 : vector<448x128xbf16> to vector<1x448x128xbf16>
    tpu.vector_store %arg7[%c0_19, %c0_20, %c0_21], %50 {strides = array<i32>} : memref<1x448x128xbf16, #tpu.memory_space<vmem>>, vector<1x448x128xbf16>,
    return
  }
  func.func @transform_0(%arg0: i32, %arg1: i32) -> (i32, i32, i32) {
    %c0_i32 = arith.constant 0 : i32
    %c0_i32_0 = arith.constant 0 : i32
    return %arg0, %arg1, %c0_i32 : i32, i32, i32
  }
  func.func @transform_1(%arg0: i32, %arg1: i32) -> (i32, i32, i32) {
    %c0_i32 = arith.constant 0 : i32
    %c0_i32_0 = arith.constant 0 : i32
    %c0_i32_1 = arith.constant 0 : i32
    return %arg0, %c0_i32, %c0_i32_0 : i32, i32, i32
  }
  func.func @transform_2(%arg0: i32, %arg1: i32) -> (i32, i32, i32) {
    %c0_i32 = arith.constant 0 : i32
    %c0_i32_0 = arith.constant 0 : i32
    %c0_i32_1 = arith.constant 0 : i32
    return %arg0, %c0_i32, %c0_i32_0 : i32, i32, i32
  }
  func.func @transform_3(%arg0: i32, %arg1: i32) -> (i32, i32, i32) {
    %c0_i32 = arith.constant 0 : i32
    %c0_i32_0 = arith.constant 0 : i32
    %c0_i32_1 = arith.constant 0 : i32
    return %arg0, %c0_i32, %c0_i32_0 : i32, i32, i32
  }
  func.func @transform_4(%arg0: i32, %arg1: i32) -> (i32, i32, i32) {
    %c0_i32 = arith.constant 0 : i32
    %c0_i32_0 = arith.constant 0 : i32
    %c0_i32_1 = arith.constant 0 : i32
    return %arg0, %c0_i32, %c0_i32_0 : i32, i32, i32
  }
  func.func @transform_5(%arg0: i32, %arg1: i32) -> (i32, i32, i32) {
    %c0_i32 = arith.constant 0 : i32
    %c0_i32_0 = arith.constant 0 : i32
    return %arg0, %arg1, %c0_i32 : i32, i32, i32
  }
}

module attributes {stable_mosaic.version = 11 : i64} {
  func.func @_scatter_avg_kernel(%arg0: i32, %arg1: memref<5x7xbf16, #tpu.memory_space<vmem>>, %arg2: memref<5x7xbf16, #tpu.memory_space<vmem>>, %arg3: memref<7x1024xbf16, #tpu.memory_space<vmem>>, %arg4: memref<7x1024xbf16, #tpu.memory_space<vmem>>, %arg5: memref<5x1024xbf16, #tpu.memory_space<vmem>>) attributes {dimension_semantics = [#tpu.dimension_semantics<parallel>], iteration_bounds = array<i64: 1>, scalar_prefetch = 0 : i64, scratch_operands = 0 : i64, tpu.core_type = #tpu.core_type<tc>, window_params = [{pipeline_mode = #tpu.pipeline_mode<synchronous>, transform_indices = @transform_0, window_bounds = array<i64: 5, 7>}, {pipeline_mode = #tpu.pipeline_mode<synchronous>, transform_indices = @transform_1, window_bounds = array<i64: 5, 7>}, {transform_indices = @transform_2, window_bounds = array<i64: 7, 1024>}, {transform_indices = @transform_3, window_bounds = array<i64: 7, 1024>}, {transform_indices = @transform_4, window_bounds = array<i64: 5, 1024>}]} {
    %c0 = arith.constant 0 : index
    %c0_0 = arith.constant 0 : index
    %0 = vector.load %arg1[%c0, %c0_0] : memref<5x7xbf16, #tpu.memory_space<vmem>>, vector<5x7xbf16>
    %c0_1 = arith.constant 0 : index
    %c0_2 = arith.constant 0 : index
    %1 = vector.load %arg2[%c0_1, %c0_2] : memref<5x7xbf16, #tpu.memory_space<vmem>>, vector<5x7xbf16>
    %c0_3 = arith.constant 0 : index
    %c0_4 = arith.constant 0 : index
    %2 = vector.load %arg3[%c0_3, %c0_4] : memref<7x1024xbf16, #tpu.memory_space<vmem>>, vector<7x1024xbf16>
    %cst = arith.constant dense<0.000000e+00> : vector<5x1024xf32>
    %3 = tpu.matmul %0, %2, %cst {dimension_numbers = #tpu.dot_dimension_numbers<[1], [0], [0], [1], [0, 0, 1, 1], [], []>} : vector<5x7xbf16>, vector<7x1024xbf16>, vector<5x1024xf32> -> vector<5x1024xf32>
    %c0_5 = arith.constant 0 : index
    %c0_6 = arith.constant 0 : index
    %4 = vector.load %arg4[%c0_5, %c0_6] : memref<7x1024xbf16, #tpu.memory_space<vmem>>, vector<7x1024xbf16>
    %cst_7 = arith.constant dense<0.000000e+00> : vector<5x1024xf32>
    %5 = tpu.matmul %1, %4, %cst_7 {dimension_numbers = #tpu.dot_dimension_numbers<[1], [0], [0], [1], [0, 0, 1, 1], [], []>} : vector<5x7xbf16>, vector<7x1024xbf16>, vector<5x1024xf32> -> vector<5x1024xf32>
    %6 = arith.addf %3, %5 : vector<5x1024xf32>
    %7 = arith.extf %0 : vector<5x7xbf16> to vector<5x7xf32>
    %cst_8 = arith.constant dense<0.000000e+00> : vector<5xf32>
    %8 = vector.multi_reduction <add>, %7, %cst_8 [1] : vector<5x7xf32> to vector<5xf32>
    %9 = vector.shape_cast %8 : vector<5xf32> to vector<5x1xf32>
    %10 = arith.extf %1 : vector<5x7xbf16> to vector<5x7xf32>
    %cst_9 = arith.constant dense<0.000000e+00> : vector<5xf32>
    %11 = vector.multi_reduction <add>, %10, %cst_9 [1] : vector<5x7xf32> to vector<5xf32>
    %12 = vector.shape_cast %11 : vector<5xf32> to vector<5x1xf32>
    %13 = arith.addf %9, %12 : vector<5x1xf32>
    %cst_10 = arith.constant 1.000000e+00 : f32
    %14 = vector.broadcast %cst_10 : f32 to vector<5x1xf32>
    %15 = arith.maximumf %13, %14 : vector<5x1xf32>
    %16 = vector.broadcast %15 : vector<5x1xf32> to vector<5x1024xf32>
    %17 = arith.divf %6, %16 : vector<5x1024xf32>
    %18 = arith.truncf %17 : vector<5x1024xf32> to vector<5x1024xbf16>
    %c0_11 = arith.constant 0 : index
    %c0_12 = arith.constant 0 : index
    %19 = vector.load %arg5[%c0_11, %c0_12] : memref<5x1024xbf16, #tpu.memory_space<vmem>>, vector<5x1024xbf16>
    tpu.vector_store %arg5[%c0_11, %c0_12], %18 {strides = array<i32>} : memref<5x1024xbf16, #tpu.memory_space<vmem>>, vector<5x1024xbf16>,
    return
  }
  func.func @transform_0(%arg0: i32) -> (i32, i32) {
    %c0_i32 = arith.constant 0 : i32
    %c0_i32_0 = arith.constant 0 : i32
    %c0_i32_1 = arith.constant 0 : i32
    return %c0_i32, %c0_i32_0 : i32, i32
  }
  func.func @transform_1(%arg0: i32) -> (i32, i32) {
    %c0_i32 = arith.constant 0 : i32
    %c0_i32_0 = arith.constant 0 : i32
    %c0_i32_1 = arith.constant 0 : i32
    return %c0_i32, %c0_i32_0 : i32, i32
  }
  func.func @transform_2(%arg0: i32) -> (i32, i32) {
    %c0_i32 = arith.constant 0 : i32
    %c0_i32_0 = arith.constant 0 : i32
    return %c0_i32, %arg0 : i32, i32
  }
  func.func @transform_3(%arg0: i32) -> (i32, i32) {
    %c0_i32 = arith.constant 0 : i32
    %c0_i32_0 = arith.constant 0 : i32
    return %c0_i32, %arg0 : i32, i32
  }
  func.func @transform_4(%arg0: i32) -> (i32, i32) {
    %c0_i32 = arith.constant 0 : i32
    %c0_i32_0 = arith.constant 0 : i32
    return %c0_i32, %arg0 : i32, i32
  }
}

module attributes {stable_mosaic.version = 11 : i64} {
  func.func @_matmul_stats_kernel(%arg0: i32, %arg1: i32, %arg2: memref<1x320x256xbf16, #tpu.memory_space<vmem>>, %arg3: memref<1x256x128xbf16, #tpu.memory_space<vmem>>, %arg4: memref<1x320x128xbf16, #tpu.memory_space<vmem>>, %arg5: memref<1x2x128xf32, #tpu.memory_space<vmem>>) attributes {dimension_semantics = [#tpu.dimension_semantics<parallel>, #tpu.dimension_semantics<arbitrary>], iteration_bounds = array<i64: 2, 1>, scalar_prefetch = 0 : i64, scratch_operands = 0 : i64, tpu.core_type = #tpu.core_type<tc>, window_params = [{transform_indices = @transform_0, window_bounds = array<i64: 1, 320, 256>}, {transform_indices = @transform_1, window_bounds = array<i64: 1, 256, 128>}, {transform_indices = @transform_2, window_bounds = array<i64: 1, 320, 128>}, {transform_indices = @transform_3, window_bounds = array<i64: 1, 2, 128>}]} {
    %c0 = arith.constant 0 : index
    %c0_0 = arith.constant 0 : index
    %c0_1 = arith.constant 0 : index
    %0 = vector.load %arg2[%c0, %c0_0, %c0_1] : memref<1x320x256xbf16, #tpu.memory_space<vmem>>, vector<1x320x256xbf16>
    %1 = vector.shape_cast %0 : vector<1x320x256xbf16> to vector<320x256xbf16>
    %c0_2 = arith.constant 0 : index
    %c0_3 = arith.constant 0 : index
    %c0_4 = arith.constant 0 : index
    %2 = vector.load %arg3[%c0_2, %c0_3, %c0_4] : memref<1x256x128xbf16, #tpu.memory_space<vmem>>, vector<1x256x128xbf16>
    %3 = vector.shape_cast %2 : vector<1x256x128xbf16> to vector<256x128xbf16>
    %cst = arith.constant dense<0.000000e+00> : vector<320x128xf32>
    %4 = tpu.matmul %1, %3, %cst {dimension_numbers = #tpu.dot_dimension_numbers<[1], [0], [0], [1], [0, 0, 1, 1], [], []>} : vector<320x256xbf16>, vector<256x128xbf16>, vector<320x128xf32> -> vector<320x128xf32>
    %5 = arith.truncf %4 : vector<320x128xf32> to vector<320x128xbf16>
    %c0_5 = arith.constant 0 : index
    %c0_6 = arith.constant 0 : index
    %c0_7 = arith.constant 0 : index
    %6 = vector.load %arg4[%c0_5, %c0_6, %c0_7] : memref<1x320x128xbf16, #tpu.memory_space<vmem>>, vector<1x320x128xbf16>
    %7 = vector.shape_cast %6 : vector<1x320x128xbf16> to vector<320x128xbf16>
    %8 = vector.shape_cast %5 : vector<320x128xbf16> to vector<1x320x128xbf16>
    tpu.vector_store %arg4[%c0_5, %c0_6, %c0_7], %8 {strides = array<i32>} : memref<1x320x128xbf16, #tpu.memory_space<vmem>>, vector<1x320x128xbf16>,
    %c0_i32 = arith.constant 0 : i32
    %9 = arith.cmpi eq, %arg1, %c0_i32 : i32
    %10 = arith.extui %9 : i1 to i32
    %c0_i32_8 = arith.constant 0 : i32
    %11 = arith.cmpi ne, %10, %c0_i32_8 : i32
    scf.if %11 {
      %cst_17 = arith.constant 0.000000e+00 : f32
      %24 = vector.broadcast %cst_17 : f32 to vector<1x2x128xf32>
      %c0_18 = arith.constant 0 : index
      %c0_19 = arith.constant 0 : index
      %c0_20 = arith.constant 0 : index
      %25 = vector.load %arg5[%c0_18, %c0_19, %c0_20] : memref<1x2x128xf32, #tpu.memory_space<vmem>>, vector<1x2x128xf32>
      tpu.vector_store %arg5[%c0_18, %c0_19, %c0_20], %24 {strides = array<i32>} : memref<1x2x128xf32, #tpu.memory_space<vmem>>, vector<1x2x128xf32>,
    } else {
    }
    %cst_9 = arith.constant dense<0.000000e+00> : vector<128xf32>
    %12 = vector.multi_reduction <add>, %4, %cst_9 [0] : vector<320x128xf32> to vector<128xf32>
    %13 = vector.shape_cast %12 : vector<128xf32> to vector<1x128xf32>
    %14 = arith.mulf %4, %4 : vector<320x128xf32>
    %cst_10 = arith.constant dense<0.000000e+00> : vector<128xf32>
    %15 = vector.multi_reduction <add>, %14, %cst_10 [0] : vector<320x128xf32> to vector<128xf32>
    %16 = vector.shape_cast %15 : vector<128xf32> to vector<1x128xf32>
    %17 = tpu.concatenate %13, %16 in 0 : vector<1x128xf32>, vector<1x128xf32> -> vector<2x128xf32>
    %c0_11 = arith.constant 0 : index
    %c0_12 = arith.constant 0 : index
    %c0_13 = arith.constant 0 : index
    %18 = vector.load %arg5[%c0_11, %c0_12, %c0_13] : memref<1x2x128xf32, #tpu.memory_space<vmem>>, vector<1x2x128xf32>
    %19 = vector.shape_cast %18 : vector<1x2x128xf32> to vector<2x128xf32>
    %20 = arith.addf %19, %17 : vector<2x128xf32>
    %c0_14 = arith.constant 0 : index
    %c0_15 = arith.constant 0 : index
    %c0_16 = arith.constant 0 : index
    %21 = vector.load %arg5[%c0_14, %c0_15, %c0_16] : memref<1x2x128xf32, #tpu.memory_space<vmem>>, vector<1x2x128xf32>
    %22 = vector.shape_cast %21 : vector<1x2x128xf32> to vector<2x128xf32>
    %23 = vector.shape_cast %20 : vector<2x128xf32> to vector<1x2x128xf32>
    tpu.vector_store %arg5[%c0_14, %c0_15, %c0_16], %23 {strides = array<i32>} : memref<1x2x128xf32, #tpu.memory_space<vmem>>, vector<1x2x128xf32>,
    return
  }
  func.func @transform_0(%arg0: i32, %arg1: i32) -> (i32, i32, i32) {
    %c0_i32 = arith.constant 0 : i32
    %c0_i32_0 = arith.constant 0 : i32
    return %arg0, %arg1, %c0_i32 : i32, i32, i32
  }
  func.func @transform_1(%arg0: i32, %arg1: i32) -> (i32, i32, i32) {
    %c0_i32 = arith.constant 0 : i32
    %c0_i32_0 = arith.constant 0 : i32
    %c0_i32_1 = arith.constant 0 : i32
    return %arg0, %c0_i32, %c0_i32_0 : i32, i32, i32
  }
  func.func @transform_2(%arg0: i32, %arg1: i32) -> (i32, i32, i32) {
    %c0_i32 = arith.constant 0 : i32
    %c0_i32_0 = arith.constant 0 : i32
    return %arg0, %arg1, %c0_i32 : i32, i32, i32
  }
  func.func @transform_3(%arg0: i32, %arg1: i32) -> (i32, i32, i32) {
    %c0_i32 = arith.constant 0 : i32
    %c0_i32_0 = arith.constant 0 : i32
    %c0_i32_1 = arith.constant 0 : i32
    return %arg0, %c0_i32, %c0_i32_0 : i32, i32, i32
  }
}

module attributes {stable_mosaic.version = 11 : i64} {
  func.func @_bn_act_matmul_stats_kernel(%arg0: i32, %arg1: i32, %arg2: memref<1x320x128xbf16, #tpu.memory_space<vmem>>, %arg3: memref<1x2x128xf32, #tpu.memory_space<vmem>>, %arg4: memref<1x1x128xf32, #tpu.memory_space<vmem>>, %arg5: memref<1x1x128xf32, #tpu.memory_space<vmem>>, %arg6: memref<1x128x128xbf16, #tpu.memory_space<vmem>>, %arg7: memref<1x320x128xbf16, #tpu.memory_space<vmem>>, %arg8: memref<1x2x128xf32, #tpu.memory_space<vmem>>) attributes {dimension_semantics = [#tpu.dimension_semantics<parallel>, #tpu.dimension_semantics<arbitrary>], iteration_bounds = array<i64: 2, 1>, scalar_prefetch = 0 : i64, scratch_operands = 0 : i64, tpu.core_type = #tpu.core_type<tc>, window_params = [{transform_indices = @transform_0, window_bounds = array<i64: 1, 320, 128>}, {transform_indices = @transform_1, window_bounds = array<i64: 1, 2, 128>}, {transform_indices = @transform_2, window_bounds = array<i64: 1, 1, 128>}, {transform_indices = @transform_3, window_bounds = array<i64: 1, 1, 128>}, {transform_indices = @transform_4, window_bounds = array<i64: 1, 128, 128>}, {transform_indices = @transform_5, window_bounds = array<i64: 1, 320, 128>}, {transform_indices = @transform_6, window_bounds = array<i64: 1, 2, 128>}]} {
    %c0 = arith.constant 0 : index
    %c0_0 = arith.constant 0 : index
    %c0_1 = arith.constant 0 : index
    %0 = vector.load %arg2[%c0, %c0_0, %c0_1] : memref<1x320x128xbf16, #tpu.memory_space<vmem>>, vector<1x320x128xbf16>
    %1 = vector.shape_cast %0 : vector<1x320x128xbf16> to vector<320x128xbf16>
    %2 = arith.extf %1 : vector<320x128xbf16> to vector<320x128xf32>
    %c0_2 = arith.constant 0 : index
    %c0_3 = arith.constant 0 : index
    %c0_4 = arith.constant 0 : index
    %3 = vector.load %arg3[%c0_2, %c0_3, %c0_4] : memref<1x2x128xf32, #tpu.memory_space<vmem>>, vector<1x2x128xf32>
    %4 = vector.shape_cast %3 : vector<1x2x128xf32> to vector<2x128xf32>
    %5 = vector.extract_strided_slice %4 {offsets = [0, 0], sizes = [1, 128], strides = [1, 1]} : vector<2x128xf32> to vector<1x128xf32>
    %cst = arith.constant 3.125000e-03 : f32
    %6 = vector.broadcast %cst : f32 to vector<1x128xf32>
    %7 = arith.mulf %5, %6 : vector<1x128xf32>
    %8 = vector.extract_strided_slice %4 {offsets = [1, 0], sizes = [1, 128], strides = [1, 1]} : vector<2x128xf32> to vector<1x128xf32>
    %cst_5 = arith.constant 3.125000e-03 : f32
    %9 = vector.broadcast %cst_5 : f32 to vector<1x128xf32>
    %10 = arith.mulf %8, %9 : vector<1x128xf32>
    %11 = arith.mulf %7, %7 : vector<1x128xf32>
    %12 = arith.subf %10, %11 : vector<1x128xf32>
    %cst_6 = arith.constant 0.000000e+00 : f32
    %13 = vector.broadcast %cst_6 : f32 to vector<1x128xf32>
    %14 = arith.maximumf %12, %13 : vector<1x128xf32>
    %c0_7 = arith.constant 0 : index
    %c0_8 = arith.constant 0 : index
    %c0_9 = arith.constant 0 : index
    %15 = vector.load %arg4[%c0_7, %c0_8, %c0_9] : memref<1x1x128xf32, #tpu.memory_space<vmem>>, vector<1x1x128xf32>
    %16 = vector.shape_cast %15 : vector<1x1x128xf32> to vector<1x128xf32>
    %cst_10 = arith.constant 9.99999974E-6 : f32
    %17 = vector.broadcast %cst_10 : f32 to vector<1x128xf32>
    %18 = arith.addf %14, %17 : vector<1x128xf32>
    %19 = math.rsqrt %18 : vector<1x128xf32>
    %20 = arith.mulf %16, %19 : vector<1x128xf32>
    %c0_11 = arith.constant 0 : index
    %c0_12 = arith.constant 0 : index
    %c0_13 = arith.constant 0 : index
    %21 = vector.load %arg5[%c0_11, %c0_12, %c0_13] : memref<1x1x128xf32, #tpu.memory_space<vmem>>, vector<1x1x128xf32>
    %22 = vector.shape_cast %21 : vector<1x1x128xf32> to vector<1x128xf32>
    %23 = arith.mulf %7, %20 : vector<1x128xf32>
    %24 = arith.subf %22, %23 : vector<1x128xf32>
    %25 = vector.broadcast %20 : vector<1x128xf32> to vector<320x128xf32>
    %26 = arith.mulf %2, %25 : vector<320x128xf32>
    %27 = vector.broadcast %24 : vector<1x128xf32> to vector<320x128xf32>
    %28 = arith.addf %26, %27 : vector<320x128xf32>
    %cst_14 = arith.constant 0.000000e+00 : f32
    %29 = vector.broadcast %cst_14 : f32 to vector<320x128xf32>
    %30 = arith.cmpf oge, %28, %29 : vector<320x128xf32>
    %cst_15 = arith.constant 1.000000e-01 : f32
    %31 = vector.broadcast %cst_15 : f32 to vector<320x128xf32>
    %32 = arith.mulf %31, %28 : vector<320x128xf32>
    %33 = arith.select %30, %28, %32 : vector<320x128xi1>, vector<320x128xf32>
    %34 = arith.truncf %33 : vector<320x128xf32> to vector<320x128xbf16>
    %c0_16 = arith.constant 0 : index
    %c0_17 = arith.constant 0 : index
    %c0_18 = arith.constant 0 : index
    %35 = vector.load %arg6[%c0_16, %c0_17, %c0_18] : memref<1x128x128xbf16, #tpu.memory_space<vmem>>, vector<1x128x128xbf16>
    %36 = vector.shape_cast %35 : vector<1x128x128xbf16> to vector<128x128xbf16>
    %cst_19 = arith.constant dense<0.000000e+00> : vector<320x128xf32>
    %37 = tpu.matmul %34, %36, %cst_19 {dimension_numbers = #tpu.dot_dimension_numbers<[1], [0], [0], [1], [0, 0, 1, 1], [], []>} : vector<320x128xbf16>, vector<128x128xbf16>, vector<320x128xf32> -> vector<320x128xf32>
    %38 = arith.truncf %37 : vector<320x128xf32> to vector<320x128xbf16>
    %c0_20 = arith.constant 0 : index
    %c0_21 = arith.constant 0 : index
    %c0_22 = arith.constant 0 : index
    %39 = vector.load %arg7[%c0_20, %c0_21, %c0_22] : memref<1x320x128xbf16, #tpu.memory_space<vmem>>, vector<1x320x128xbf16>
    %40 = vector.shape_cast %39 : vector<1x320x128xbf16> to vector<320x128xbf16>
    %41 = vector.shape_cast %38 : vector<320x128xbf16> to vector<1x320x128xbf16>
    tpu.vector_store %arg7[%c0_20, %c0_21, %c0_22], %41 {strides = array<i32>} : memref<1x320x128xbf16, #tpu.memory_space<vmem>>, vector<1x320x128xbf16>,
    %c0_i32 = arith.constant 0 : i32
    %42 = arith.cmpi eq, %arg1, %c0_i32 : i32
    %43 = arith.extui %42 : i1 to i32
    %c0_i32_23 = arith.constant 0 : i32
    %44 = arith.cmpi ne, %43, %c0_i32_23 : i32
    scf.if %44 {
      %cst_32 = arith.constant 0.000000e+00 : f32
      %57 = vector.broadcast %cst_32 : f32 to vector<1x2x128xf32>
      %c0_33 = arith.constant 0 : index
      %c0_34 = arith.constant 0 : index
      %c0_35 = arith.constant 0 : index
      %58 = vector.load %arg8[%c0_33, %c0_34, %c0_35] : memref<1x2x128xf32, #tpu.memory_space<vmem>>, vector<1x2x128xf32>
      tpu.vector_store %arg8[%c0_33, %c0_34, %c0_35], %57 {strides = array<i32>} : memref<1x2x128xf32, #tpu.memory_space<vmem>>, vector<1x2x128xf32>,
    } else {
    }
    %cst_24 = arith.constant dense<0.000000e+00> : vector<128xf32>
    %45 = vector.multi_reduction <add>, %37, %cst_24 [0] : vector<320x128xf32> to vector<128xf32>
    %46 = vector.shape_cast %45 : vector<128xf32> to vector<1x128xf32>
    %47 = arith.mulf %37, %37 : vector<320x128xf32>
    %cst_25 = arith.constant dense<0.000000e+00> : vector<128xf32>
    %48 = vector.multi_reduction <add>, %47, %cst_25 [0] : vector<320x128xf32> to vector<128xf32>
    %49 = vector.shape_cast %48 : vector<128xf32> to vector<1x128xf32>
    %50 = tpu.concatenate %46, %49 in 0 : vector<1x128xf32>, vector<1x128xf32> -> vector<2x128xf32>
    %c0_26 = arith.constant 0 : index
    %c0_27 = arith.constant 0 : index
    %c0_28 = arith.constant 0 : index
    %51 = vector.load %arg8[%c0_26, %c0_27, %c0_28] : memref<1x2x128xf32, #tpu.memory_space<vmem>>, vector<1x2x128xf32>
    %52 = vector.shape_cast %51 : vector<1x2x128xf32> to vector<2x128xf32>
    %53 = arith.addf %52, %50 : vector<2x128xf32>
    %c0_29 = arith.constant 0 : index
    %c0_30 = arith.constant 0 : index
    %c0_31 = arith.constant 0 : index
    %54 = vector.load %arg8[%c0_29, %c0_30, %c0_31] : memref<1x2x128xf32, #tpu.memory_space<vmem>>, vector<1x2x128xf32>
    %55 = vector.shape_cast %54 : vector<1x2x128xf32> to vector<2x128xf32>
    %56 = vector.shape_cast %53 : vector<2x128xf32> to vector<1x2x128xf32>
    tpu.vector_store %arg8[%c0_29, %c0_30, %c0_31], %56 {strides = array<i32>} : memref<1x2x128xf32, #tpu.memory_space<vmem>>, vector<1x2x128xf32>,
    return
  }
  func.func @transform_0(%arg0: i32, %arg1: i32) -> (i32, i32, i32) {
    %c0_i32 = arith.constant 0 : i32
    %c0_i32_0 = arith.constant 0 : i32
    return %arg0, %arg1, %c0_i32 : i32, i32, i32
  }
  func.func @transform_1(%arg0: i32, %arg1: i32) -> (i32, i32, i32) {
    %c0_i32 = arith.constant 0 : i32
    %c0_i32_0 = arith.constant 0 : i32
    %c0_i32_1 = arith.constant 0 : i32
    return %arg0, %c0_i32, %c0_i32_0 : i32, i32, i32
  }
  func.func @transform_2(%arg0: i32, %arg1: i32) -> (i32, i32, i32) {
    %c0_i32 = arith.constant 0 : i32
    %c0_i32_0 = arith.constant 0 : i32
    %c0_i32_1 = arith.constant 0 : i32
    return %arg0, %c0_i32, %c0_i32_0 : i32, i32, i32
  }
  func.func @transform_3(%arg0: i32, %arg1: i32) -> (i32, i32, i32) {
    %c0_i32 = arith.constant 0 : i32
    %c0_i32_0 = arith.constant 0 : i32
    %c0_i32_1 = arith.constant 0 : i32
    return %arg0, %c0_i32, %c0_i32_0 : i32, i32, i32
  }
  func.func @transform_4(%arg0: i32, %arg1: i32) -> (i32, i32, i32) {
    %c0_i32 = arith.constant 0 : i32
    %c0_i32_0 = arith.constant 0 : i32
    %c0_i32_1 = arith.constant 0 : i32
    return %arg0, %c0_i32, %c0_i32_0 : i32, i32, i32
  }
  func.func @transform_5(%arg0: i32, %arg1: i32) -> (i32, i32, i32) {
    %c0_i32 = arith.constant 0 : i32
    %c0_i32_0 = arith.constant 0 : i32
    return %arg0, %arg1, %c0_i32 : i32, i32, i32
  }
  func.func @transform_6(%arg0: i32, %arg1: i32) -> (i32, i32, i32) {
    %c0_i32 = arith.constant 0 : i32
    %c0_i32_0 = arith.constant 0 : i32
    %c0_i32_1 = arith.constant 0 : i32
    return %arg0, %c0_i32, %c0_i32_0 : i32, i32, i32
  }
}

module attributes {stable_mosaic.version = 11 : i64} {
  func.func @_bn_act_kernel(%arg0: i32, %arg1: i32, %arg2: memref<1x320x128xbf16, #tpu.memory_space<vmem>>, %arg3: memref<1x2x128xf32, #tpu.memory_space<vmem>>, %arg4: memref<1x1x128xf32, #tpu.memory_space<vmem>>, %arg5: memref<1x1x128xf32, #tpu.memory_space<vmem>>, %arg6: memref<1x1x128xf32, #tpu.memory_space<vmem>>, %arg7: memref<1x320x128xbf16, #tpu.memory_space<vmem>>) attributes {dimension_semantics = [#tpu.dimension_semantics<parallel>, #tpu.dimension_semantics<parallel>], iteration_bounds = array<i64: 2, 1>, scalar_prefetch = 0 : i64, scratch_operands = 0 : i64, tpu.core_type = #tpu.core_type<tc>, window_params = [{transform_indices = @transform_0, window_bounds = array<i64: 1, 320, 128>}, {transform_indices = @transform_1, window_bounds = array<i64: 1, 2, 128>}, {transform_indices = @transform_2, window_bounds = array<i64: 1, 1, 128>}, {transform_indices = @transform_3, window_bounds = array<i64: 1, 1, 128>}, {transform_indices = @transform_4, window_bounds = array<i64: 1, 1, 128>}, {transform_indices = @transform_5, window_bounds = array<i64: 1, 320, 128>}]} {
    %c0 = arith.constant 0 : index
    %c0_0 = arith.constant 0 : index
    %c0_1 = arith.constant 0 : index
    %0 = vector.load %arg2[%c0, %c0_0, %c0_1] : memref<1x320x128xbf16, #tpu.memory_space<vmem>>, vector<1x320x128xbf16>
    %1 = vector.shape_cast %0 : vector<1x320x128xbf16> to vector<320x128xbf16>
    %2 = arith.extf %1 : vector<320x128xbf16> to vector<320x128xf32>
    %c0_2 = arith.constant 0 : index
    %c0_3 = arith.constant 0 : index
    %c0_4 = arith.constant 0 : index
    %3 = vector.load %arg3[%c0_2, %c0_3, %c0_4] : memref<1x2x128xf32, #tpu.memory_space<vmem>>, vector<1x2x128xf32>
    %4 = vector.shape_cast %3 : vector<1x2x128xf32> to vector<2x128xf32>
    %5 = vector.extract_strided_slice %4 {offsets = [0, 0], sizes = [1, 128], strides = [1, 1]} : vector<2x128xf32> to vector<1x128xf32>
    %cst = arith.constant 3.125000e-03 : f32
    %6 = vector.broadcast %cst : f32 to vector<1x128xf32>
    %7 = arith.mulf %5, %6 : vector<1x128xf32>
    %8 = vector.extract_strided_slice %4 {offsets = [1, 0], sizes = [1, 128], strides = [1, 1]} : vector<2x128xf32> to vector<1x128xf32>
    %cst_5 = arith.constant 3.125000e-03 : f32
    %9 = vector.broadcast %cst_5 : f32 to vector<1x128xf32>
    %10 = arith.mulf %8, %9 : vector<1x128xf32>
    %11 = arith.mulf %7, %7 : vector<1x128xf32>
    %12 = arith.subf %10, %11 : vector<1x128xf32>
    %cst_6 = arith.constant 0.000000e+00 : f32
    %13 = vector.broadcast %cst_6 : f32 to vector<1x128xf32>
    %14 = arith.maximumf %12, %13 : vector<1x128xf32>
    %c0_7 = arith.constant 0 : index
    %c0_8 = arith.constant 0 : index
    %c0_9 = arith.constant 0 : index
    %15 = vector.load %arg4[%c0_7, %c0_8, %c0_9] : memref<1x1x128xf32, #tpu.memory_space<vmem>>, vector<1x1x128xf32>
    %16 = vector.shape_cast %15 : vector<1x1x128xf32> to vector<1x128xf32>
    %cst_10 = arith.constant 9.99999974E-6 : f32
    %17 = vector.broadcast %cst_10 : f32 to vector<1x128xf32>
    %18 = arith.addf %14, %17 : vector<1x128xf32>
    %19 = math.rsqrt %18 : vector<1x128xf32>
    %20 = arith.mulf %16, %19 : vector<1x128xf32>
    %c0_11 = arith.constant 0 : index
    %c0_12 = arith.constant 0 : index
    %c0_13 = arith.constant 0 : index
    %21 = vector.load %arg5[%c0_11, %c0_12, %c0_13] : memref<1x1x128xf32, #tpu.memory_space<vmem>>, vector<1x1x128xf32>
    %22 = vector.shape_cast %21 : vector<1x1x128xf32> to vector<1x128xf32>
    %23 = arith.mulf %7, %20 : vector<1x128xf32>
    %24 = arith.subf %22, %23 : vector<1x128xf32>
    %25 = vector.broadcast %20 : vector<1x128xf32> to vector<320x128xf32>
    %26 = arith.mulf %2, %25 : vector<320x128xf32>
    %27 = vector.broadcast %24 : vector<1x128xf32> to vector<320x128xf32>
    %28 = arith.addf %26, %27 : vector<320x128xf32>
    %cst_14 = arith.constant 0.000000e+00 : f32
    %29 = vector.broadcast %cst_14 : f32 to vector<320x128xf32>
    %30 = arith.cmpf oge, %28, %29 : vector<320x128xf32>
    %cst_15 = arith.constant 1.000000e-01 : f32
    %31 = vector.broadcast %cst_15 : f32 to vector<320x128xf32>
    %32 = arith.mulf %31, %28 : vector<320x128xf32>
    %33 = arith.select %30, %28, %32 : vector<320x128xi1>, vector<320x128xf32>
    %34 = arith.truncf %33 : vector<320x128xf32> to vector<320x128xbf16>
    %c0_16 = arith.constant 0 : index
    %c0_17 = arith.constant 0 : index
    %c0_18 = arith.constant 0 : index
    %35 = vector.load %arg7[%c0_16, %c0_17, %c0_18] : memref<1x320x128xbf16, #tpu.memory_space<vmem>>, vector<1x320x128xbf16>
    %36 = vector.shape_cast %35 : vector<1x320x128xbf16> to vector<320x128xbf16>
    %37 = vector.shape_cast %34 : vector<320x128xbf16> to vector<1x320x128xbf16>
    tpu.vector_store %arg7[%c0_16, %c0_17, %c0_18], %37 {strides = array<i32>} : memref<1x320x128xbf16, #tpu.memory_space<vmem>>, vector<1x320x128xbf16>,
    return
  }
  func.func @transform_0(%arg0: i32, %arg1: i32) -> (i32, i32, i32) {
    %c0_i32 = arith.constant 0 : i32
    %c0_i32_0 = arith.constant 0 : i32
    return %arg0, %arg1, %c0_i32 : i32, i32, i32
  }
  func.func @transform_1(%arg0: i32, %arg1: i32) -> (i32, i32, i32) {
    %c0_i32 = arith.constant 0 : i32
    %c0_i32_0 = arith.constant 0 : i32
    %c0_i32_1 = arith.constant 0 : i32
    return %arg0, %c0_i32, %c0_i32_0 : i32, i32, i32
  }
  func.func @transform_2(%arg0: i32, %arg1: i32) -> (i32, i32, i32) {
    %c0_i32 = arith.constant 0 : i32
    %c0_i32_0 = arith.constant 0 : i32
    %c0_i32_1 = arith.constant 0 : i32
    return %arg0, %c0_i32, %c0_i32_0 : i32, i32, i32
  }
  func.func @transform_3(%arg0: i32, %arg1: i32) -> (i32, i32, i32) {
    %c0_i32 = arith.constant 0 : i32
    %c0_i32_0 = arith.constant 0 : i32
    %c0_i32_1 = arith.constant 0 : i32
    return %arg0, %c0_i32, %c0_i32_0 : i32, i32, i32
  }
  func.func @transform_4(%arg0: i32, %arg1: i32) -> (i32, i32, i32) {
    %c0_i32 = arith.constant 0 : i32
    %c0_i32_0 = arith.constant 0 : i32
    %c0_i32_1 = arith.constant 0 : i32
    return %arg0, %c0_i32, %c0_i32_0 : i32, i32, i32
  }
  func.func @transform_5(%arg0: i32, %arg1: i32) -> (i32, i32, i32) {
    %c0_i32 = arith.constant 0 : i32
    %c0_i32_0 = arith.constant 0 : i32
    return %arg0, %arg1, %c0_i32 : i32, i32, i32
  }
}

</mosaic_0001>

<llo_original>
// kernel: graph_triple_conv2d_net.17
$region0: #{graph_triple_conv2d_net.17}
  #allocation0 [shape = 'u32[]', space=smem, size = 0x4, offset = 0x4, fixed_abs, tag = 'smem constant byte address 0x4 - core index']
  #allocation1 [shape = 'u32[72,128]{1,0:T(1,128)}', space=vmem, size = 0x9000, scoped, tag = 'internal scratch']
  %s0 = inlined_call_operand.vmem [shape: bf16[1,448,128], index: 0, kind: input, shape index: {}]
  %s1 = inlined_call_operand.vmem [shape: f32[1,2,128], index: 1, kind: input, shape index: {}]
  %s2 = inlined_call_operand.vmem [shape: f32[1,1,128], index: 2, kind: input, shape index: {}]
  %s3 = inlined_call_operand.vmem [shape: f32[1,1,128], index: 3, kind: input, shape index: {}]
  %s4 = inlined_call_operand.vmem [shape: f32[1,1,128], index: 4, kind: input, shape index: {}]
  %s5 = inlined_call_operand.vmem [shape: bf16[1,448,128], index: 5, kind: output, shape index: {}]
  %s6 = sld [smem:[#allocation0]]
  $region30: #{graph_triple_conv2d_net.17} parent=0
    _
  %s8 = ssub.s32 1, %s6
  %s9 = scalar_select 0, %s8, %s6
  // Predicated region
  $region2: #{graph_triple_conv2d_net.17} parent=0 // pred_check
    _
  $region3: #{graph_triple_conv2d_net.17} parent=0 // pred_check_branch
    %11 = sbr.rel (0) target = $region5
  $region4: #{graph_triple_conv2d_net.17} parent=0 // pred_region
    _
  $region5: #{graph_triple_conv2d_net.17} parent=0 // pred_fallthru
    _
  // Predicated region
  $region6: #{graph_triple_conv2d_net.17} parent=0 // pred_check
    _
  $region7: #{graph_triple_conv2d_net.17} parent=0 // pred_check_branch
    %13 = sbr.rel (0) target = $region9
  $region8: #{graph_triple_conv2d_net.17} parent=0 // pred_region
    _
  $region9: #{graph_triple_conv2d_net.17} parent=0 // pred_fallthru
    _
  // Predicated region
  $region10: #{graph_triple_conv2d_net.17} parent=0 // pred_check
    _
  $region11: #{graph_triple_conv2d_net.17} parent=0 // pred_check_branch
    %15 = sbr.rel (0) target = $region13
  $region12: #{graph_triple_conv2d_net.17} parent=0 // pred_region
    _
  $region13: #{graph_triple_conv2d_net.17} parent=0 // pred_fallthru
    _
  // Predicated region
  $region14: #{graph_triple_conv2d_net.17} parent=0 // pred_check
    _
  $region15: #{graph_triple_conv2d_net.17} parent=0 // pred_check_branch
    %17 = sbr.rel (0) target = $region17
  $region16: #{graph_triple_conv2d_net.17} parent=0 // pred_region
    _
  $region17: #{graph_triple_conv2d_net.17} parent=0 // pred_fallthru
    _
  // Predicated region
  $region18: #{graph_triple_conv2d_net.17} parent=0 // pred_check
    _
  $region19: #{graph_triple_conv2d_net.17} parent=0 // pred_check_branch
    %19 = sbr.rel (0) target = $region21
  $region20: #{graph_triple_conv2d_net.17} parent=0 // pred_region
    _
  $region21: #{graph_triple_conv2d_net.17} parent=0 // pred_fallthru
    _
  %v20 = vld [vmem:[%s0] sm:$0xf]
  %v21 = vld [vmem:[%s0 + $0x4] sm:$0xf]
  %v22 = vld [vmem:[%s0 + $0x8] sm:$0xf]
  %v23 = vld [vmem:[%s0 + $0xc] sm:$0xf]
  %v24 = vld [vmem:[%s0 + $0x10] sm:$0xf]
  %v25 = vld [vmem:[%s0 + $0x14] sm:$0xf]
  %v26 = vld [vmem:[%s0 + $0x18] sm:$0xf]
  %v27 = vld [vmem:[%s0 + $0x1c] sm:$0xf]
  %v28 = vld [vmem:[%s0 + $0x20] sm:$0xf]
  %v29 = vld [vmem:[%s0 + $0x24] sm:$0xf]
  %v30 = vld [vmem:[%s0 + $0x28] sm:$0xf]
  %v31 = vld [vmem:[%s0 + $0x2c] sm:$0xf]
  %v32 = vld [vmem:[%s0 + $0x30] sm:$0xf]
  %v33 = vld [vmem:[%s0 + $0x34] sm:$0xf]
  %v34 = vld [vmem:[%s0 + $0x38] sm:$0xf]
  %v35 = vld [vmem:[%s0 + $0x3c] sm:$0xf]
  %v36 = vld [vmem:[%s0 + $0x40] sm:$0xf]
  %v37 = vld [vmem:[%s0 + $0x44] sm:$0xf]
  %v38 = vld [vmem:[%s0 + $0x48] sm:$0xf]
  %v39 = vld [vmem:[%s0 + $0x4c] sm:$0xf]
  %v40 = vld [vmem:[%s0 + $0x50] sm:$0xf]
  %v41 = vld [vmem:[%s0 + $0x54] sm:$0xf]
  %v42 = vld [vmem:[%s0 + $0x58] sm:$0xf]
  %v43 = vld [vmem:[%s0 + $0x5c] sm:$0xf]
  %v44 = vld [vmem:[%s0 + $0x60] sm:$0xf]
  %v45 = vld [vmem:[%s0 + $0x64] sm:$0xf]
  %v46 = vld [vmem:[%s0 + $0x68] sm:$0xf]
  %v47 = vld [vmem:[%s0 + $0x6c] sm:$0xf]
  %v48 = vld [vmem:[%s0 + $0x70] sm:$0xf]
  %v49 = vld [vmem:[%s0 + $0x74] sm:$0xf]
  %v50 = vld [vmem:[%s0 + $0x78] sm:$0xf]
  %v51 = vld [vmem:[%s0 + $0x7c] sm:$0xf]
  %v52 = vld [vmem:[%s0 + $0x80] sm:$0xf]
  %v53 = vld [vmem:[%s0 + $0x84] sm:$0xf]
  %v54 = vld [vmem:[%s0 + $0x88] sm:$0xf]
  %v55 = vld [vmem:[%s0 + $0x8c] sm:$0xf]
  %v56 = vld [vmem:[%s0 + $0x90] sm:$0xf]
  %v57 = vld [vmem:[%s0 + $0x94] sm:$0xf]
  %v58 = vld [vmem:[%s0 + $0x98] sm:$0xf]
  %v59 = vld [vmem:[%s0 + $0x9c] sm:$0xf]
  %v60 = vld [vmem:[%s0 + $0xa0] sm:$0xf]
  %v61 = vld [vmem:[%s0 + $0xa4] sm:$0xf]
  %v62 = vld [vmem:[%s0 + $0xa8] sm:$0xf]
  %v63 = vld [vmem:[%s0 + $0xac] sm:$0xf]
  %v64 = vld [vmem:[%s0 + $0xb0] sm:$0xf]
  %v65 = vld [vmem:[%s0 + $0xb4] sm:$0xf]
  %v66 = vld [vmem:[%s0 + $0xb8] sm:$0xf]
  %v67 = vld [vmem:[%s0 + $0xbc] sm:$0xf]
  %v68 = vld [vmem:[%s0 + $0xc0] sm:$0xf]
  %v69 = vld [vmem:[%s0 + $0xc4] sm:$0xf]
  %v70 = vld [vmem:[%s0 + $0xc8] sm:$0xf]
  %v71 = vld [vmem:[%s0 + $0xcc] sm:$0xf]
  %v72 = vld [vmem:[%s0 + $0xd0] sm:$0xf]
  %v73 = vld [vmem:[%s0 + $0xd4] sm:$0xf]
  %v74 = vld [vmem:[%s0 + $0xd8] sm:$0xf]
  %v75 = vld [vmem:[%s0 + $0xdc] sm:$0xf]
  %v76 = vunpack.c.l.bf16 %v20
  %v77 = vunpack.c.l.bf16 %v21
  %v78 = vunpack.c.l.bf16 %v22
  %v79 = vunpack.c.l.bf16 %v23
  %v80 = vunpack.c.l.bf16 %v24
  %v81 = vunpack.c.l.bf16 %v25
  %v82 = vunpack.c.l.bf16 %v26
  %v83 = vunpack.c.l.bf16 %v27
  %v84 = vunpack.c.l.bf16 %v28
  %v85 = vunpack.c.l.bf16 %v29
  %v86 = vunpack.c.l.bf16 %v30
  %v87 = vunpack.c.l.bf16 %v31
  %v88 = vunpack.c.l.bf16 %v32
  %v89 = vunpack.c.l.bf16 %v33
  %v90 = vunpack.c.l.bf16 %v34
  %v91 = vunpack.c.l.bf16 %v35
  %v92 = vunpack.c.l.bf16 %v36
  %v93 = vunpack.c.l.bf16 %v37
  %v94 = vunpack.c.l.bf16 %v38
  %v95 = vunpack.c.l.bf16 %v39
  %v96 = vunpack.c.l.bf16 %v40
  %v97 = vunpack.c.l.bf16 %v41
  %v98 = vunpack.c.l.bf16 %v42
  %v99 = vunpack.c.l.bf16 %v43
  %v100 = vunpack.c.l.bf16 %v44
  %v101 = vunpack.c.l.bf16 %v45
  %v102 = vunpack.c.l.bf16 %v46
  %v103 = vunpack.c.l.bf16 %v47
  %v104 = vunpack.c.l.bf16 %v48
  %v105 = vunpack.c.l.bf16 %v49
  %v106 = vunpack.c.l.bf16 %v50
  %v107 = vunpack.c.l.bf16 %v51
  %v108 = vunpack.c.l.bf16 %v52
  %v109 = vunpack.c.l.bf16 %v53
  %v110 = vunpack.c.l.bf16 %v54
  %v111 = vunpack.c.l.bf16 %v55
  %v112 = vunpack.c.l.bf16 %v56
  %v113 = vunpack.c.l.bf16 %v57
  %v114 = vunpack.c.l.bf16 %v58
  %v115 = vunpack.c.l.bf16 %v59
  %v116 = vunpack.c.l.bf16 %v60
  %v117 = vunpack.c.l.bf16 %v61
  %v118 = vunpack.c.l.bf16 %v62
  %v119 = vunpack.c.l.bf16 %v63
  %v120 = vunpack.c.l.bf16 %v64
  %v121 = vunpack.c.l.bf16 %v65
  %v122 = vunpack.c.l.bf16 %v66
  %v123 = vunpack.c.l.bf16 %v67
  %v124 = vunpack.c.l.bf16 %v68
  %v125 = vunpack.c.l.bf16 %v69
  %v126 = vunpack.c.l.bf16 %v70
  %v127 = vunpack.c.l.bf16 %v71
  %v128 = vunpack.c.l.bf16 %v72
  %v129 = vunpack.c.l.bf16 %v73
  %v130 = vunpack.c.l.bf16 %v74
  %v131 = vunpack.c.l.bf16 %v75
  %v132 = vld [vmem:[%s1] sm:$0x3]
  %v133 = vmul.f32 %v132, 0.002232143
  %v134 = vmul.f32 %v133, %v133
  %v136 = vrot.slane %v134, 7
  %v138 = vsub.f32 %v133, %v136
  %v139 = vmax.f32 %v138, 0.0
  %v140 = vld [vmem:[%s2] sm:$0x1]
  %v141 = vadd.f32 %v139, 1e-05
  %v142 = vrsqrt.pop %v141
  %v143 = vmul.f32 %v142, %v141
  %v144 = vmul.f32 %v143, %v142
  %v145 = vmul.f32 0.5, %v144
  %v146 = vsub.f32 1.5, %v145
  %v147 = vmul.f32 %v142, %v146
  %vm148 = vweird.f32 %v141
  %vm149 = vweird.f32 %v142
  %vm150 = vmor %vm148, %vm149
  %v151 = vsel %vm150, %v142, %v147
  %153 = vst [vmem:[#allocation1] sm:$0xff] %v151
  %s154 = scalar_lea.vmem [#allocation1], 1
  %v155 = vld [vmem:[%s154] ss:$9 sm:$0xff]
  %v157 = vmul.f32 %v140, %v155
  %v158 = vld [vmem:[%s3] sm:$0x1]
  %v159 = vmul.f32 %v133, %v157
  %v160 = vsub.f32 %v158, %v159
  %v162 = vperm.slane %v157, 0
  %v164 = vmul.f32 %v76, %v162
  %v165 = vmul.f32 %v77, %v162
  %v166 = vmul.f32 %v78, %v162
  %v167 = vmul.f32 %v79, %v162
  %v168 = vmul.f32 %v80, %v162
  %v169 = vmul.f32 %v81, %v162
  %v170 = vmul.f32 %v82, %v162
  %v171 = vmul.f32 %v83, %v162
  %v172 = vmul.f32 %v84, %v162
  %v173 = vmul.f32 %v85, %v162
  %v174 = vmul.f32 %v86, %v162
  %v175 = vmul.f32 %v87, %v162
  %v176 = vmul.f32 %v88, %v162
  %v177 = vmul.f32 %v89, %v162
  %v178 = vmul.f32 %v90, %v162
  %v179 = vmul.f32 %v91, %v162
  %v180 = vmul.f32 %v92, %v162
  %v181 = vmul.f32 %v93, %v162
  %v182 = vmul.f32 %v94, %v162
  %v183 = vmul.f32 %v95, %v162
  %v184 = vmul.f32 %v96, %v162
  %v185 = vmul.f32 %v97, %v162
  %v186 = vmul.f32 %v98, %v162
  %v187 = vmul.f32 %v99, %v162
  %v188 = vmul.f32 %v100, %v162
  %v189 = vmul.f32 %v101, %v162
  %v190 = vmul.f32 %v102, %v162
  %v191 = vmul.f32 %v103, %v162
  %v192 = vmul.f32 %v104, %v162
  %v193 = vmul.f32 %v105, %v162
  %v194 = vmul.f32 %v106, %v162
  %v195 = vmul.f32 %v107, %v162
  %v196 = vmul.f32 %v108, %v162
  %v197 = vmul.f32 %v109, %v162
  %v198 = vmul.f32 %v110, %v162
  %v199 = vmul.f32 %v111, %v162
  %v200 = vmul.f32 %v112, %v162
  %v201 = vmul.f32 %v113, %v162
  %v202 = vmul.f32 %v114, %v162
  %v203 = vmul.f32 %v115, %v162
  %v204 = vmul.f32 %v116, %v162
  %v205 = vmul.f32 %v117, %v162
  %v206 = vmul.f32 %v118, %v162
  %v207 = vmul.f32 %v119, %v162
  %v208 = vmul.f32 %v120, %v162
  %v209 = vmul.f32 %v121, %v162
  %v210 = vmul.f32 %v122, %v162
  %v211 = vmul.f32 %v123, %v162
  %v212 = vmul.f32 %v124, %v162
  %v213 = vmul.f32 %v125, %v162
  %v214 = vmul.f32 %v126, %v162
  %v215 = vmul.f32 %v127, %v162
  %v216 = vmul.f32 %v128, %v162
  %v217 = vmul.f32 %v129, %v162
  %v218 = vmul.f32 %v130, %v162
  %v219 = vmul.f32 %v131, %v162
  %v221 = vperm.slane %v160, 0
  %v223 = vadd.f32 %v164, %v221
  %v224 = vadd.f32 %v165, %v221
  %v225 = vadd.f32 %v166, %v221
  %v226 = vadd.f32 %v167, %v221
  %v227 = vadd.f32 %v168, %v221
  %v228 = vadd.f32 %v169, %v221
  %v229 = vadd.f32 %v170, %v221
  %v230 = vadd.f32 %v171, %v221
  %v231 = vadd.f32 %v172, %v221
  %v232 = vadd.f32 %v173, %v221
  %v233 = vadd.f32 %v174, %v221
  %v234 = vadd.f32 %v175, %v221
  %v235 = vadd.f32 %v176, %v221
  %v236 = vadd.f32 %v177, %v221
  %v237 = vadd.f32 %v178, %v221
  %v238 = vadd.f32 %v179, %v221
  %v239 = vadd.f32 %v180, %v221
  %v240 = vadd.f32 %v181, %v221
  %v241 = vadd.f32 %v182, %v221
  %v242 = vadd.f32 %v183, %v221
  %v243 = vadd.f32 %v184, %v221
  %v244 = vadd.f32 %v185, %v221
  %v245 = vadd.f32 %v186, %v221
  %v246 = vadd.f32 %v187, %v221
  %v247 = vadd.f32 %v188, %v221
  %v248 = vadd.f32 %v189, %v221
  %v249 = vadd.f32 %v190, %v221
  %v250 = vadd.f32 %v191, %v221
  %v251 = vadd.f32 %v192, %v221
  %v252 = vadd.f32 %v193, %v221
  %v253 = vadd.f32 %v194, %v221
  %v254 = vadd.f32 %v195, %v221
  %v255 = vadd.f32 %v196, %v221
  %v256 = vadd.f32 %v197, %v221
  %v257 = vadd.f32 %v198, %v221
  %v258 = vadd.f32 %v199, %v221
  %v259 = vadd.f32 %v200, %v221
  %v260 = vadd.f32 %v201, %v221
  %v261 = vadd.f32 %v202, %v221
  %v262 = vadd.f32 %v203, %v221
  %v263 = vadd.f32 %v204, %v221
  %v264 = vadd.f32 %v205, %v221
  %v265 = vadd.f32 %v206, %v221
  %v266 = vadd.f32 %v207, %v221
  %v267 = vadd.f32 %v208, %v221
  %v268 = vadd.f32 %v209, %v221
  %v269 = vadd.f32 %v210, %v221
  %v270 = vadd.f32 %v211, %v221
  %v271 = vadd.f32 %v212, %v221
  %v272 = vadd.f32 %v213, %v221
  %v273 = vadd.f32 %v214, %v221
  %v274 = vadd.f32 %v215, %v221
  %v275 = vadd.f32 %v216, %v221
  %v276 = vadd.f32 %v217, %v221
  %v277 = vadd.f32 %v218, %v221
  %v278 = vadd.f32 %v219, %v221
  %vm279 = vcmp.ge.f32.partialorder %v223, 0.0
  %vm280 = vcmp.ge.f32.partialorder %v224, 0.0
  %vm281 = vcmp.ge.f32.partialorder %v225, 0.0
  %vm282 = vcmp.ge.f32.partialorder %v226, 0.0
  %vm283 = vcmp.ge.f32.partialorder %v227, 0.0
  %vm284 = vcmp.ge.f32.partialorder %v228, 0.0
  %vm285 = vcmp.ge.f32.partialorder %v229, 0.0
  %vm286 = vcmp.ge.f32.partialorder %v230, 0.0
  %vm287 = vcmp.ge.f32.partialorder %v231, 0.0
  %vm288 = vcmp.ge.f32.partialorder %v232, 0.0
  %vm289 = vcmp.ge.f32.partialorder %v233, 0.0
  %vm290 = vcmp.ge.f32.partialorder %v234, 0.0
  %vm291 = vcmp.ge.f32.partialorder %v235, 0.0
  %vm292 = vcmp.ge.f32.partialorder %v236, 0.0
  %vm293 = vcmp.ge.f32.partialorder %v237, 0.0
  %vm294 = vcmp.ge.f32.partialorder %v238, 0.0
  %vm295 = vcmp.ge.f32.partialorder %v239, 0.0
  %vm296 = vcmp.ge.f32.partialorder %v240, 0.0
  %vm297 = vcmp.ge.f32.partialorder %v241, 0.0
  %vm298 = vcmp.ge.f32.partialorder %v242, 0.0
  %vm299 = vcmp.ge.f32.partialorder %v243, 0.0
  %vm300 = vcmp.ge.f32.partialorder %v244, 0.0
  %vm301 = vcmp.ge.f32.partialorder %v245, 0.0
  %vm302 = vcmp.ge.f32.partialorder %v246, 0.0
  %vm303 = vcmp.ge.f32.partialorder %v247, 0.0
  %vm304 = vcmp.ge.f32.partialorder %v248, 0.0
  %vm305 = vcmp.ge.f32.partialorder %v249, 0.0
  %vm306 = vcmp.ge.f32.partialorder %v250, 0.0
  %vm307 = vcmp.ge.f32.partialorder %v251, 0.0
  %vm308 = vcmp.ge.f32.partialorder %v252, 0.0
  %vm309 = vcmp.ge.f32.partialorder %v253, 0.0
  %vm310 = vcmp.ge.f32.partialorder %v254, 0.0
  %vm311 = vcmp.ge.f32.partialorder %v255, 0.0
  %vm312 = vcmp.ge.f32.partialorder %v256, 0.0
  %vm313 = vcmp.ge.f32.partialorder %v257, 0.0
  %vm314 = vcmp.ge.f32.partialorder %v258, 0.0
  %vm315 = vcmp.ge.f32.partialorder %v259, 0.0
  %vm316 = vcmp.ge.f32.partialorder %v260, 0.0
  %vm317 = vcmp.ge.f32.partialorder %v261, 0.0
  %vm318 = vcmp.ge.f32.partialorder %v262, 0.0
  %vm319 = vcmp.ge.f32.partialorder %v263, 0.0
  %vm320 = vcmp.ge.f32.partialorder %v264, 0.0
  %vm321 = vcmp.ge.f32.partialorder %v265, 0.0
  %vm322 = vcmp.ge.f32.partialorder %v266, 0.0
  %vm323 = vcmp.ge.f32.partialorder %v267, 0.0
  %vm324 = vcmp.ge.f32.partialorder %v268, 0.0
  %vm325 = vcmp.ge.f32.partialorder %v269, 0.0
  %vm326 = vcmp.ge.f32.partialorder %v270, 0.0
  %vm327 = vcmp.ge.f32.partialorder %v271, 0.0
  %vm328 = vcmp.ge.f32.partialorder %v272, 0.0
  %vm329 = vcmp.ge.f32.partialorder %v273, 0.0
  %vm330 = vcmp.ge.f32.partialorder %v274, 0.0
  %vm331 = vcmp.ge.f32.partialorder %v275, 0.0
  %vm332 = vcmp.ge.f32.partialorder %v276, 0.0
  %vm333 = vcmp.ge.f32.partialorder %v277, 0.0
  %vm334 = vcmp.ge.f32.partialorder %v278, 0.0
  %v335 = vmul.f32 %v223, 0.1
  %v336 = vmul.f32 %v224, 0.1
  %v337 = vmul.f32 %v225, 0.1
  %v338 = vmul.f32 %v226, 0.1
  %v339 = vmul.f32 %v227, 0.1
  %v340 = vmul.f32 %v228, 0.1
  %v341 = vmul.f32 %v229, 0.1
  %v342 = vmul.f32 %v230, 0.1
  %v343 = vmul.f32 %v231, 0.1
  %v344 = vmul.f32 %v232, 0.1
  %v345 = vmul.f32 %v233, 0.1
  %v346 = vmul.f32 %v234, 0.1
  %v347 = vmul.f32 %v235, 0.1
  %v348 = vmul.f32 %v236, 0.1
  %v349 = vmul.f32 %v237, 0.1
  %v350 = vmul.f32 %v238, 0.1
  %v351 = vmul.f32 %v239, 0.1
  %v352 = vmul.f32 %v240, 0.1
  %v353 = vmul.f32 %v241, 0.1
  %v354 = vmul.f32 %v242, 0.1
  %v355 = vmul.f32 %v243, 0.1
  %v356 = vmul.f32 %v244, 0.1
  %v357 = vmul.f32 %v245, 0.1
  %v358 = vmul.f32 %v246, 0.1
  %v359 = vmul.f32 %v247, 0.1
  %v360 = vmul.f32 %v248, 0.1
  %v361 = vmul.f32 %v249, 0.1
  %v362 = vmul.f32 %v250, 0.1
  %v363 = vmul.f32 %v251, 0.1
  %v364 = vmul.f32 %v252, 0.1
  %v365 = vmul.f32 %v253, 0.1
  %v366 = vmul.f32 %v254, 0.1
  %v367 = vmul.f32 %v255, 0.1
  %v368 = vmul.f32 %v256, 0.1
  %v369 = vmul.f32 %v257, 0.1
  %v370 = vmul.f32 %v258, 0.1
  %v371 = vmul.f32 %v259, 0.1
  %v372 = vmul.f32 %v260, 0.1
  %v373 = vmul.f32 %v261, 0.1
  %v374 = vmul.f32 %v262, 0.1
  %v375 = vmul.f32 %v263, 0.1
  %v376 = vmul.f32 %v264, 0.1
  %v377 = vmul.f32 %v265, 0.1
  %v378 = vmul.f32 %v266, 0.1
  %v379 = vmul.f32 %v267, 0.1
  %v380 = vmul.f32 %v268, 0.1
  %v381 = vmul.f32 %v269, 0.1
  %v382 = vmul.f32 %v270, 0.1
  %v383 = vmul.f32 %v271, 0.1
  %v384 = vmul.f32 %v272, 0.1
  %v385 = vmul.f32 %v273, 0.1
  %v386 = vmul.f32 %v274, 0.1
  %v387 = vmul.f32 %v275, 0.1
  %v388 = vmul.f32 %v276, 0.1
  %v389 = vmul.f32 %v277, 0.1
  %v390 = vmul.f32 %v278, 0.1
  %v391 = vsel %vm279, %v223, %v335
  %v392 = vsel %vm280, %v224, %v336
  %v393 = vsel %vm281, %v225, %v337
  %v394 = vsel %vm282, %v226, %v338
  %v395 = vsel %vm283, %v227, %v339
  %v396 = vsel %vm284, %v228, %v340
  %v397 = vsel %vm285, %v229, %v341
  %v398 = vsel %vm286, %v230, %v342
  %v399 = vsel %vm287, %v231, %v343
  %v400 = vsel %vm288, %v232, %v344
  %v401 = vsel %vm289, %v233, %v345
  %v402 = vsel %vm290, %v234, %v346
  %v403 = vsel %vm291, %v235, %v347
  %v404 = vsel %vm292, %v236, %v348
  %v405 = vsel %vm293, %v237, %v349
  %v406 = vsel %vm294, %v238, %v350
  %v407 = vsel %vm295, %v239, %v351
  %v408 = vsel %vm296, %v240, %v352
  %v409 = vsel %vm297, %v241, %v353
  %v410 = vsel %vm298, %v242, %v354
  %v411 = vsel %vm299, %v243, %v355
  %v412 = vsel %vm300, %v244, %v356
  %v413 = vsel %vm301, %v245, %v357
  %v414 = vsel %vm302, %v246, %v358
  %v415 = vsel %vm303, %v247, %v359
  %v416 = vsel %vm304, %v248, %v360
  %v417 = vsel %vm305, %v249, %v361
  %v418 = vsel %vm306, %v250, %v362
  %v419 = vsel %vm307, %v251, %v363
  %v420 = vsel %vm308, %v252, %v364
  %v421 = vsel %vm309, %v253, %v365
  %v422 = vsel %vm310, %v254, %v366
  %v423 = vsel %vm311, %v255, %v367
  %v424 = vsel %vm312, %v256, %v368
  %v425 = vsel %vm313, %v257, %v369
  %v426 = vsel %vm314, %v258, %v370
  %v427 = vsel %vm315, %v259, %v371
  %v428 = vsel %vm316, %v260, %v372
  %v429 = vsel %vm317, %v261, %v373
  %v430 = vsel %vm318, %v262, %v374
  %v431 = vsel %vm319, %v263, %v375
  %v432 = vsel %vm320, %v264, %v376
  %v433 = vsel %vm321, %v265, %v377
  %v434 = vsel %vm322, %v266, %v378
  %v435 = vsel %vm323, %v267, %v379
  %v436 = vsel %vm324, %v268, %v380
  %v437 = vsel %vm325, %v269, %v381
  %v438 = vsel %vm326, %v270, %v382
  %v439 = vsel %vm327, %v271, %v383
  %v440 = vsel %vm328, %v272, %v384
  %v441 = vsel %vm329, %v273, %v385
  %v442 = vsel %vm330, %v274, %v386
  %v443 = vsel %vm331, %v275, %v387
  %v444 = vsel %vm332, %v276, %v388
  %v445 = vsel %vm333, %v277, %v389
  %v446 = vsel %vm334, %v278, %v390
  %v447 = vpack.c.bf16 %v391, %v391
  %v448 = vpack.c.bf16 %v392, %v392
  %v449 = vpack.c.bf16 %v393, %v393
  %v450 = vpack.c.bf16 %v394, %v394
  %v451 = vpack.c.bf16 %v395, %v395
  %v452 = vpack.c.bf16 %v396, %v396
  %v453 = vpack.c.bf16 %v397, %v397
  %v454 = vpack.c.bf16 %v398, %v398
  %v455 = vpack.c.bf16 %v399, %v399
  %v456 = vpack.c.bf16 %v400, %v400
  %v457 = vpack.c.bf16 %v401, %v401
  %v458 = vpack.c.bf16 %v402, %v402
  %v459 = vpack.c.bf16 %v403, %v403
  %v460 = vpack.c.bf16 %v404, %v404
  %v461 = vpack.c.bf16 %v405, %v405
  %v462 = vpack.c.bf16 %v406, %v406
  %v463 = vpack.c.bf16 %v407, %v407
  %v464 = vpack.c.bf16 %v408, %v408
  %v465 = vpack.c.bf16 %v409, %v409
  %v466 = vpack.c.bf16 %v410, %v410
  %v467 = vpack.c.bf16 %v411, %v411
  %v468 = vpack.c.bf16 %v412, %v412
  %v469 = vpack.c.bf16 %v413, %v413
  %v470 = vpack.c.bf16 %v414, %v414
  %v471 = vpack.c.bf16 %v415, %v415
  %v472 = vpack.c.bf16 %v416, %v416
  %v473 = vpack.c.bf16 %v417, %v417
  %v474 = vpack.c.bf16 %v418, %v418
  %v475 = vpack.c.bf16 %v419, %v419
  %v476 = vpack.c.bf16 %v420, %v420
  %v477 = vpack.c.bf16 %v421, %v421
  %v478 = vpack.c.bf16 %v422, %v422
  %v479 = vpack.c.bf16 %v423, %v423
  %v480 = vpack.c.bf16 %v424, %v424
  %v481 = vpack.c.bf16 %v425, %v425
  %v482 = vpack.c.bf16 %v426, %v426
  %v483 = vpack.c.bf16 %v427, %v427
  %v484 = vpack.c.bf16 %v428, %v428
  %v485 = vpack.c.bf16 %v429, %v429
  %v486 = vpack.c.bf16 %v430, %v430
  %v487 = vpack.c.bf16 %v431, %v431
  %v488 = vpack.c.bf16 %v432, %v432
  %v489 = vpack.c.bf16 %v433, %v433
  %v490 = vpack.c.bf16 %v434, %v434
  %v491 = vpack.c.bf16 %v435, %v435
  %v492 = vpack.c.bf16 %v436, %v436
  %v493 = vpack.c.bf16 %v437, %v437
  %v494 = vpack.c.bf16 %v438, %v438
  %v495 = vpack.c.bf16 %v439, %v439
  %v496 = vpack.c.bf16 %v440, %v440
  %v497 = vpack.c.bf16 %v441, %v441
  %v498 = vpack.c.bf16 %v442, %v442
  %v499 = vpack.c.bf16 %v443, %v443
  %v500 = vpack.c.bf16 %v444, %v444
  %v501 = vpack.c.bf16 %v445, %v445
  %v502 = vpack.c.bf16 %v446, %v446
  %503 = vst [vmem:[%s5] sm:$0xf] %v447
  %504 = vst [vmem:[%s5 + $0x4] sm:$0xf] %v448
  %505 = vst [vmem:[%s5 + $0x8] sm:$0xf] %v449
  %506 = vst [vmem:[%s5 + $0xc] sm:$0xf] %v450
  %507 = vst [vmem:[%s5 + $0x10] sm:$0xf] %v451
  %508 = vst [vmem:[%s5 + $0x14] sm:$0xf] %v452
  %509 = vst [vmem:[%s5 + $0x18] sm:$0xf] %v453
  %510 = vst [vmem:[%s5 + $0x1c] sm:$0xf] %v454
  %511 = vst [vmem:[%s5 + $0x20] sm:$0xf] %v455
  %512 = vst [vmem:[%s5 + $0x24] sm:$0xf] %v456
  %513 = vst [vmem:[%s5 + $0x28] sm:$0xf] %v457
  %514 = vst [vmem:[%s5 + $0x2c] sm:$0xf] %v458
  %515 = vst [vmem:[%s5 + $0x30] sm:$0xf] %v459
  %516 = vst [vmem:[%s5 + $0x34] sm:$0xf] %v460
  %517 = vst [vmem:[%s5 + $0x38] sm:$0xf] %v461
  %518 = vst [vmem:[%s5 + $0x3c] sm:$0xf] %v462
  %519 = vst [vmem:[%s5 + $0x40] sm:$0xf] %v463
  %520 = vst [vmem:[%s5 + $0x44] sm:$0xf] %v464
  %521 = vst [vmem:[%s5 + $0x48] sm:$0xf] %v465
  %522 = vst [vmem:[%s5 + $0x4c] sm:$0xf] %v466
  %523 = vst [vmem:[%s5 + $0x50] sm:$0xf] %v467
  %524 = vst [vmem:[%s5 + $0x54] sm:$0xf] %v468
  %525 = vst [vmem:[%s5 + $0x58] sm:$0xf] %v469
  %526 = vst [vmem:[%s5 + $0x5c] sm:$0xf] %v470
  %527 = vst [vmem:[%s5 + $0x60] sm:$0xf] %v471
  %528 = vst [vmem:[%s5 + $0x64] sm:$0xf] %v472
  %529 = vst [vmem:[%s5 + $0x68] sm:$0xf] %v473
  %530 = vst [vmem:[%s5 + $0x6c] sm:$0xf] %v474
  %531 = vst [vmem:[%s5 + $0x70] sm:$0xf] %v475
  %532 = vst [vmem:[%s5 + $0x74] sm:$0xf] %v476
  %533 = vst [vmem:[%s5 + $0x78] sm:$0xf] %v477
  %534 = vst [vmem:[%s5 + $0x7c] sm:$0xf] %v478
  %535 = vst [vmem:[%s5 + $0x80] sm:$0xf] %v479
  %536 = vst [vmem:[%s5 + $0x84] sm:$0xf] %v480
  %537 = vst [vmem:[%s5 + $0x88] sm:$0xf] %v481
  %538 = vst [vmem:[%s5 + $0x8c] sm:$0xf] %v482
  %539 = vst [vmem:[%s5 + $0x90] sm:$0xf] %v483
  %540 = vst [vmem:[%s5 + $0x94] sm:$0xf] %v484
  %541 = vst [vmem:[%s5 + $0x98] sm:$0xf] %v485
  %542 = vst [vmem:[%s5 + $0x9c] sm:$0xf] %v486
  %543 = vst [vmem:[%s5 + $0xa0] sm:$0xf] %v487
  %544 = vst [vmem:[%s5 + $0xa4] sm:$0xf] %v488
  %545 = vst [vmem:[%s5 + $0xa8] sm:$0xf] %v489
  %546 = vst [vmem:[%s5 + $0xac] sm:$0xf] %v490
  %547 = vst [vmem:[%s5 + $0xb0] sm:$0xf] %v491
  %548 = vst [vmem:[%s5 + $0xb4] sm:$0xf] %v492
  %549 = vst [vmem:[%s5 + $0xb8] sm:$0xf] %v493
  %550 = vst [vmem:[%s5 + $0xbc] sm:$0xf] %v494
  %551 = vst [vmem:[%s5 + $0xc0] sm:$0xf] %v495
  %552 = vst [vmem:[%s5 + $0xc4] sm:$0xf] %v496
  %553 = vst [vmem:[%s5 + $0xc8] sm:$0xf] %v497
  %554 = vst [vmem:[%s5 + $0xcc] sm:$0xf] %v498
  %555 = vst [vmem:[%s5 + $0xd0] sm:$0xf] %v499
  %556 = vst [vmem:[%s5 + $0xd4] sm:$0xf] %v500
  %557 = vst [vmem:[%s5 + $0xd8] sm:$0xf] %v501
  %558 = vst [vmem:[%s5 + $0xdc] sm:$0xf] %v502
  // Predicated region
  $region22: #{graph_triple_conv2d_net.17} parent=0 // pred_check
    _
  $region23: #{graph_triple_conv2d_net.17} parent=0 // pred_check_branch
    %560 = sbr.rel (0) target = $region25
  $region24: #{graph_triple_conv2d_net.17} parent=0 // pred_region
    _
  $region25: #{graph_triple_conv2d_net.17} parent=0 // pred_fallthru
    _
  // Predicated region
  $region26: #{graph_triple_conv2d_net.17} parent=0 // pred_check
    _
  $region27: #{graph_triple_conv2d_net.17} parent=0 // pred_check_branch
    %562 = sbr.rel (0) target = $region29
  $region28: #{graph_triple_conv2d_net.17} parent=0 // pred_region
    _
  $region29: #{graph_triple_conv2d_net.17} parent=0 // pred_fallthru
    _

// kernel: graph_triple_conv2d_net.16
$region0: #{graph_triple_conv2d_net.16}
  #allocation0 [shape = 'u32[]', space=smem, size = 0x4, offset = 0x4, fixed_abs, tag = 'smem constant byte address 0x4 - core index']
  #allocation1 [shape = 'u32[72,128]{1,0:T(1,128)}', space=vmem, size = 0x9000, scoped, tag = 'internal scratch']
  %s0 = inlined_call_operand.vmem [shape: bf16[1,448,256], index: 0, kind: input, shape index: {}]
  %s1 = inlined_call_operand.vmem [shape: bf16[1,256,128], index: 1, kind: input, shape index: {}]
  %s2 = inlined_call_operand.vmem [shape: bf16[1,448,128], index: 2, kind: output, shape index: {0}]
  %s3 = inlined_call_operand.vmem [shape: f32[1,2,128], index: 3, kind: output, shape index: {1}]
  %4 = xla_tuple %s2, %s3
  %s5 = sld [smem:[#allocation0]]
  $region30: #{graph_triple_conv2d_net.16} parent=0
    _
  %s7 = ssub.s32 1, %s5
  %s8 = scalar_select 0, %s7, %s5
  // Predicated region
  $region2: #{graph_triple_conv2d_net.16} parent=0 // pred_check
    _
  $region3: #{graph_triple_conv2d_net.16} parent=0 // pred_check_branch
    %10 = sbr.rel (0) target = $region5
  $region4: #{graph_triple_conv2d_net.16} parent=0 // pred_region
    _
  $region5: #{graph_triple_conv2d_net.16} parent=0 // pred_fallthru
    _
  // Predicated region
  $region6: #{graph_triple_conv2d_net.16} parent=0 // pred_check
    _
  $region7: #{graph_triple_conv2d_net.16} parent=0 // pred_check_branch
    %12 = sbr.rel (0) target = $region9
  $region8: #{graph_triple_conv2d_net.16} parent=0 // pred_region
    _
  $region9: #{graph_triple_conv2d_net.16} parent=0 // pred_fallthru
    _
  %v13 = vld [vmem:[%s0] sm:$0xff]
  %v14 = vld [vmem:[%s0 + $0x8] sm:$0xff]
  %v15 = vld [vmem:[%s0 + $0x10] sm:$0xff]
  %v16 = vld [vmem:[%s0 + $0x18] sm:$0xff]
  %v17 = vld [vmem:[%s0 + $0x20] sm:$0xff]
  %v18 = vld [vmem:[%s0 + $0x28] sm:$0xff]
  %v19 = vld [vmem:[%s0 + $0x30] sm:$0xff]
  %v20 = vld [vmem:[%s0 + $0x38] sm:$0xff]
  %v21 = vld [vmem:[%s0 + $0x40] sm:$0xff]
  %v22 = vld [vmem:[%s0 + $0x48] sm:$0xff]
  %v23 = vld [vmem:[%s0 + $0x50] sm:$0xff]
  %v24 = vld [vmem:[%s0 + $0x58] sm:$0xff]
  %v25 = vld [vmem:[%s0 + $0x60] sm:$0xff]
  %v26 = vld [vmem:[%s0 + $0x68] sm:$0xff]
  %v27 = vld [vmem:[%s0 + $0x70] sm:$0xff]
  %v28 = vld [vmem:[%s0 + $0x78] sm:$0xff]
  %v29 = vld [vmem:[%s0 + $0x80] sm:$0xff]
  %v30 = vld [vmem:[%s0 + $0x88] sm:$0xff]
  %v31 = vld [vmem:[%s0 + $0x90] sm:$0xff]
  %v32 = vld [vmem:[%s0 + $0x98] sm:$0xff]
  %v33 = vld [vmem:[%s0 + $0xa0] sm:$0xff]
  %v34 = vld [vmem:[%s0 + $0xa8] sm:$0xff]
  %v35 = vld [vmem:[%s0 + $0xb0] sm:$0xff]
  %v36 = vld [vmem:[%s0 + $0xb8] sm:$0xff]
  %v37 = vld [vmem:[%s0 + $0xc0] sm:$0xff]
  %v38 = vld [vmem:[%s0 + $0xc8] sm:$0xff]
  %v39 = vld [vmem:[%s0 + $0xd0] sm:$0xff]
  %v40 = vld [vmem:[%s0 + $0xd8] sm:$0xff]
  %v41 = vld [vmem:[%s0 + $0xe0] sm:$0xff]
  %v42 = vld [vmem:[%s0 + $0xe8] sm:$0xff]
  %v43 = vld [vmem:[%s0 + $0xf0] sm:$0xff]
  %v44 = vld [vmem:[%s0 + $0xf8] sm:$0xff]
  %v45 = vld [vmem:[%s0 + $0x100] sm:$0xff]
  %v46 = vld [vmem:[%s0 + $0x108] sm:$0xff]
  %v47 = vld [vmem:[%s0 + $0x110] sm:$0xff]
  %v48 = vld [vmem:[%s0 + $0x118] sm:$0xff]
  %v49 = vld [vmem:[%s0 + $0x120] sm:$0xff]
  %v50 = vld [vmem:[%s0 + $0x128] sm:$0xff]
  %v51 = vld [vmem:[%s0 + $0x130] sm:$0xff]
  %v52 = vld [vmem:[%s0 + $0x138] sm:$0xff]
  %v53 = vld [vmem:[%s0 + $0x140] sm:$0xff]
  %v54 = vld [vmem:[%s0 + $0x148] sm:$0xff]
  %v55 = vld [vmem:[%s0 + $0x150] sm:$0xff]
  %v56 = vld [vmem:[%s0 + $0x158] sm:$0xff]
  %v57 = vld [vmem:[%s0 + $0x160] sm:$0xff]
  %v58 = vld [vmem:[%s0 + $0x168] sm:$0xff]
  %v59 = vld [vmem:[%s0 + $0x170] sm:$0xff]
  %v60 = vld [vmem:[%s0 + $0x178] sm:$0xff]
  %v61 = vld [vmem:[%s0 + $0x180] sm:$0xff]
  %v62 = vld [vmem:[%s0 + $0x188] sm:$0xff]
  %v63 = vld [vmem:[%s0 + $0x190] sm:$0xff]
  %v64 = vld [vmem:[%s0 + $0x198] sm:$0xff]
  %v65 = vld [vmem:[%s0 + $0x1a0] sm:$0xff]
  %v66 = vld [vmem:[%s0 + $0x1a8] sm:$0xff]
  %v67 = vld [vmem:[%s0 + $0x1b0] sm:$0xff]
  %v68 = vld [vmem:[%s0 + $0x1b8] sm:$0xff]
  %v69 = vld [vmem:[%s1] sm:$0xf]
  %v70 = vld [vmem:[%s1 + $0x4] sm:$0xf]
  %v71 = vld [vmem:[%s1 + $0x8] sm:$0xf]
  %v72 = vld [vmem:[%s1 + $0xc] sm:$0xf]
  %v73 = vld [vmem:[%s1 + $0x10] sm:$0xf]
  %v74 = vld [vmem:[%s1 + $0x14] sm:$0xf]
  %v75 = vld [vmem:[%s1 + $0x18] sm:$0xf]
  %v76 = vld [vmem:[%s1 + $0x1c] sm:$0xf]
  %v77 = vld [vmem:[%s1 + $0x20] sm:$0xf]
  %v78 = vld [vmem:[%s1 + $0x24] sm:$0xf]
  %v79 = vld [vmem:[%s1 + $0x28] sm:$0xf]
  %v80 = vld [vmem:[%s1 + $0x2c] sm:$0xf]
  %v81 = vld [vmem:[%s1 + $0x30] sm:$0xf]
  %v82 = vld [vmem:[%s1 + $0x34] sm:$0xf]
  %v83 = vld [vmem:[%s1 + $0x38] sm:$0xf]
  %v84 = vld [vmem:[%s1 + $0x3c] sm:$0xf]
  %v85 = vld [vmem:[%s1 + $0x40] sm:$0xf]
  %v86 = vld [vmem:[%s1 + $0x44] sm:$0xf]
  %v87 = vld [vmem:[%s1 + $0x48] sm:$0xf]
  %v88 = vld [vmem:[%s1 + $0x4c] sm:$0xf]
  %v89 = vld [vmem:[%s1 + $0x50] sm:$0xf]
  %v90 = vld [vmem:[%s1 + $0x54] sm:$0xf]
  %v91 = vld [vmem:[%s1 + $0x58] sm:$0xf]
  %v92 = vld [vmem:[%s1 + $0x5c] sm:$0xf]
  %v93 = vld [vmem:[%s1 + $0x60] sm:$0xf]
  %v94 = vld [vmem:[%s1 + $0x64] sm:$0xf]
  %v95 = vld [vmem:[%s1 + $0x68] sm:$0xf]
  %v96 = vld [vmem:[%s1 + $0x6c] sm:$0xf]
  %v97 = vld [vmem:[%s1 + $0x70] sm:$0xf]
  %v98 = vld [vmem:[%s1 + $0x74] sm:$0xf]
  %v99 = vld [vmem:[%s1 + $0x78] sm:$0xf]
  %v100 = vld [vmem:[%s1 + $0x7c] sm:$0xf]
  %v157 = vunpack.c.l.b16 %v13
  %v158 = vunpack.c.h.b16 %v13
  %v159 = vunpack.c.l.b16 %v14
  %v160 = vunpack.c.h.b16 %v14
  %v161 = vunpack.c.l.b16 %v15
  %v162 = vunpack.c.h.b16 %v15
  %v163 = vunpack.c.l.b16 %v16
  %v164 = vunpack.c.h.b16 %v16
  %v165 = vunpack.c.l.b16 %v17
  %v166 = vunpack.c.h.b16 %v17
  %v167 = vunpack.c.l.b16 %v18
  %v168 = vunpack.c.h.b16 %v18
  %v169 = vunpack.c.l.b16 %v19
  %v170 = vunpack.c.h.b16 %v19
  %v171 = vunpack.c.l.b16 %v20
  %v172 = vunpack.c.h.b16 %v20
  %v173 = vunpack.c.l.b16 %v21
  %v174 = vunpack.c.h.b16 %v21
  %v175 = vunpack.c.l.b16 %v22
  %v176 = vunpack.c.h.b16 %v22
  %v177 = vunpack.c.l.b16 %v23
  %v178 = vunpack.c.h.b16 %v23
  %v179 = vunpack.c.l.b16 %v24
  %v180 = vunpack.c.h.b16 %v24
  %v181 = vunpack.c.l.b16 %v25
  %v182 = vunpack.c.h.b16 %v25
  %v183 = vunpack.c.l.b16 %v26
  %v184 = vunpack.c.h.b16 %v26
  %v185 = vunpack.c.l.b16 %v27
  %v186 = vunpack.c.h.b16 %v27
  %v187 = vunpack.c.l.b16 %v28
  %v188 = vunpack.c.h.b16 %v28
  %v189 = vunpack.c.l.b16 %v29
  %v190 = vunpack.c.h.b16 %v29
  %v191 = vunpack.c.l.b16 %v30
  %v192 = vunpack.c.h.b16 %v30
  %v193 = vunpack.c.l.b16 %v31
  %v194 = vunpack.c.h.b16 %v31
  %v195 = vunpack.c.l.b16 %v32
  %v196 = vunpack.c.h.b16 %v32
  %v197 = vunpack.c.l.b16 %v33
  %v198 = vunpack.c.h.b16 %v33
  %v199 = vunpack.c.l.b16 %v34
  %v200 = vunpack.c.h.b16 %v34
  %v201 = vunpack.c.l.b16 %v35
  %v202 = vunpack.c.h.b16 %v35
  %v203 = vunpack.c.l.b16 %v36
  %v204 = vunpack.c.h.b16 %v36
  %v205 = vunpack.c.l.b16 %v37
  %v206 = vunpack.c.h.b16 %v37
  %v207 = vunpack.c.l.b16 %v38
  %v208 = vunpack.c.h.b16 %v38
  %v209 = vunpack.c.l.b16 %v39
  %v210 = vunpack.c.h.b16 %v39
  %v211 = vunpack.c.l.b16 %v40
  %v212 = vunpack.c.h.b16 %v40
  %v213 = vunpack.c.l.b16 %v41
  %v214 = vunpack.c.h.b16 %v41
  %v215 = vunpack.c.l.b16 %v42
  %v216 = vunpack.c.h.b16 %v42
  %v217 = vunpack.c.l.b16 %v43
  %v218 = vunpack.c.h.b16 %v43
  %v219 = vunpack.c.l.b16 %v44
  %v220 = vunpack.c.h.b16 %v44
  %v221 = vunpack.c.l.b16 %v45
  %v222 = vunpack.c.h.b16 %v45
  %v223 = vunpack.c.l.b16 %v46
  %v224 = vunpack.c.h.b16 %v46
  %v225 = vunpack.c.l.b16 %v47
  %v226 = vunpack.c.h.b16 %v47
  %v227 = vunpack.c.l.b16 %v48
  %v228 = vunpack.c.h.b16 %v48
  %v229 = vunpack.c.l.b16 %v49
  %v230 = vunpack.c.h.b16 %v49
  %v231 = vunpack.c.l.b16 %v50
  %v232 = vunpack.c.h.b16 %v50
  %v233 = vunpack.c.l.b16 %v51
  %v234 = vunpack.c.h.b16 %v51
  %v235 = vunpack.c.l.b16 %v52
  %v236 = vunpack.c.h.b16 %v52
  %v237 = vunpack.c.l.b16 %v53
  %v238 = vunpack.c.h.b16 %v53
  %v239 = vunpack.c.l.b16 %v54
  %v240 = vunpack.c.h.b16 %v54
  %v241 = vunpack.c.l.b16 %v55
  %v242 = vunpack.c.h.b16 %v55
  %v243 = vunpack.c.l.b16 %v56
  %v244 = vunpack.c.h.b16 %v56
  %v245 = vunpack.c.l.b16 %v57
  %v246 = vunpack.c.h.b16 %v57
  %v247 = vunpack.c.l.b16 %v58
  %v248 = vunpack.c.h.b16 %v58
  %v249 = vunpack.c.l.b16 %v59
  %v250 = vunpack.c.h.b16 %v59
  %v251 = vunpack.c.l.b16 %v60
  %v252 = vunpack.c.h.b16 %v60
  %v253 = vunpack.c.l.b16 %v61
  %v254 = vunpack.c.h.b16 %v61
  %v255 = vunpack.c.l.b16 %v62
  %v256 = vunpack.c.h.b16 %v62
  %v257 = vunpack.c.l.b16 %v63
  %v258 = vunpack.c.h.b16 %v63
  %v259 = vunpack.c.l.b16 %v64
  %v260 = vunpack.c.h.b16 %v64
  %v261 = vunpack.c.l.b16 %v65
  %v262 = vunpack.c.h.b16 %v65
  %v263 = vunpack.c.l.b16 %v66
  %v264 = vunpack.c.h.b16 %v66
  %v265 = vunpack.c.l.b16 %v67
  %v266 = vunpack.c.h.b16 %v67
  %v267 = vunpack.c.l.b16 %v68
  %v268 = vunpack.c.h.b16 %v68
  %v269 = vpack.c.b16 %v159, %v157
  %v270 = vpack.c.b16 %v160, %v158
  %v271 = vpack.c.b16 %v163, %v161
  %v272 = vpack.c.b16 %v164, %v162
  %v273 = vpack.c.b16 %v167, %v165
  %v274 = vpack.c.b16 %v168, %v166
  %v275 = vpack.c.b16 %v171, %v169
  %v276 = vpack.c.b16 %v172, %v170
  %v277 = vpack.c.b16 %v175, %v173
  %v278 = vpack.c.b16 %v176, %v174
  %v279 = vpack.c.b16 %v179, %v177
  %v280 = vpack.c.b16 %v180, %v178
  %v281 = vpack.c.b16 %v183, %v181
  %v282 = vpack.c.b16 %v184, %v182
  %v283 = vpack.c.b16 %v187, %v185
  %v284 = vpack.c.b16 %v188, %v186
  %v285 = vpack.c.b16 %v191, %v189
  %v286 = vpack.c.b16 %v192, %v190
  %v287 = vpack.c.b16 %v195, %v193
  %v288 = vpack.c.b16 %v196, %v194
  %v289 = vpack.c.b16 %v199, %v197
  %v290 = vpack.c.b16 %v200, %v198
  %v291 = vpack.c.b16 %v203, %v201
  %v292 = vpack.c.b16 %v204, %v202
  %v293 = vpack.c.b16 %v207, %v205
  %v294 = vpack.c.b16 %v208, %v206
  %v295 = vpack.c.b16 %v211, %v209
  %v296 = vpack.c.b16 %v212, %v210
  %v297 = vpack.c.b16 %v215, %v213
  %v298 = vpack.c.b16 %v216, %v214
  %v299 = vpack.c.b16 %v219, %v217
  %v300 = vpack.c.b16 %v220, %v218
  %v301 = vpack.c.b16 %v223, %v221
  %v302 = vpack.c.b16 %v224, %v222
  %v303 = vpack.c.b16 %v227, %v225
  %v304 = vpack.c.b16 %v228, %v226
  %v305 = vpack.c.b16 %v231, %v229
  %v306 = vpack.c.b16 %v232, %v230
  %v307 = vpack.c.b16 %v235, %v233
  %v308 = vpack.c.b16 %v236, %v234
  %v309 = vpack.c.b16 %v239, %v237
  %v310 = vpack.c.b16 %v240, %v238
  %v311 = vpack.c.b16 %v243, %v241
  %v312 = vpack.c.b16 %v244, %v242
  %v313 = vpack.c.b16 %v247, %v245
  %v314 = vpack.c.b16 %v248, %v246
  %v315 = vpack.c.b16 %v251, %v249
  %v316 = vpack.c.b16 %v252, %v250
  %v317 = vpack.c.b16 %v255, %v253
  %v318 = vpack.c.b16 %v256, %v254
  %v319 = vpack.c.b16 %v259, %v257
  %v320 = vpack.c.b16 %v260, %v258
  %v321 = vpack.c.b16 %v263, %v261
  %v322 = vpack.c.b16 %v264, %v262
  %v323 = vpack.c.b16 %v267, %v265
  %v324 = vpack.c.b16 %v268, %v266
  %v413 = vunpack.c.l.b16 %v69
  %v414 = vunpack.c.l.b16 %v70
  %v415 = vunpack.c.l.b16 %v71
  %v416 = vunpack.c.l.b16 %v72
  %v417 = vunpack.c.l.b16 %v73
  %v418 = vunpack.c.l.b16 %v74
  %v419 = vunpack.c.l.b16 %v75
  %v420 = vunpack.c.l.b16 %v76
  %v421 = vunpack.c.l.b16 %v77
  %v422 = vunpack.c.l.b16 %v78
  %v423 = vunpack.c.l.b16 %v79
  %v424 = vunpack.c.l.b16 %v80
  %v425 = vunpack.c.l.b16 %v81
  %v426 = vunpack.c.l.b16 %v82
  %v427 = vunpack.c.l.b16 %v83
  %v428 = vunpack.c.l.b16 %v84
  %v429 = vunpack.c.l.b16 %v85
  %v430 = vunpack.c.l.b16 %v86
  %v431 = vunpack.c.l.b16 %v87
  %v432 = vunpack.c.l.b16 %v88
  %v433 = vunpack.c.l.b16 %v89
  %v434 = vunpack.c.l.b16 %v90
  %v435 = vunpack.c.l.b16 %v91
  %v436 = vunpack.c.l.b16 %v92
  %v437 = vunpack.c.l.b16 %v93
  %v438 = vunpack.c.l.b16 %v94
  %v439 = vunpack.c.l.b16 %v95
  %v440 = vunpack.c.l.b16 %v96
  %v441 = vunpack.c.l.b16 %v97
  %v442 = vunpack.c.l.b16 %v98
  %v443 = vunpack.c.l.b16 %v99
  %v444 = vunpack.c.l.b16 %v100
  %v445 = vpack.c.b16 %v414, %v413
  %v446 = vpack.c.b16 %v416, %v415
  %v447 = vpack.c.b16 %v418, %v417
  %v448 = vpack.c.b16 %v420, %v419
  %v449 = vpack.c.b16 %v422, %v421
  %v450 = vpack.c.b16 %v424, %v423
  %v451 = vpack.c.b16 %v426, %v425
  %v452 = vpack.c.b16 %v428, %v427
  %v453 = vpack.c.b16 %v430, %v429
  %v454 = vpack.c.b16 %v432, %v431
  %v455 = vpack.c.b16 %v434, %v433
  %v456 = vpack.c.b16 %v436, %v435
  %v457 = vpack.c.b16 %v438, %v437
  %v458 = vpack.c.b16 %v440, %v439
  %v459 = vpack.c.b16 %v442, %v441
  %v460 = vpack.c.b16 %v444, %v443
  %477 = vmatpush.bf16.msra.mxu0 %v452
  %478 = vmatpush.bf16.msra.mxu0 %v451
  %479 = vmatpush.bf16.msra.mxu0 %v450
  %480 = vmatpush.bf16.msra.mxu0 %v449
  %481 = vmatpush.bf16.msra.mxu0 %v448
  %482 = vmatpush.bf16.msra.mxu0 %v447
  %483 = vmatpush.bf16.msra.mxu0 %v446
  %484 = vmatpush.bf16.msra.mxu0 %v445
  %485 = vmatmul.bf16.gmra.mxu0 %v269
  %v486 = vpop.f32.mrf.mxu0
  %v487 = vadd.f32 0.0, %v486
  %v488 = vpop.f32.mrf.mxu0
  %v489 = vadd.f32 0.0, %v488
  %490 = vmatmul.bf16.gmra.mxu0 %v271
  %v491 = vpop.f32.mrf.mxu0
  %v492 = vadd.f32 0.0, %v491
  %v493 = vpop.f32.mrf.mxu0
  %v494 = vadd.f32 0.0, %v493
  %495 = vmatmul.bf16.gmra.mxu0 %v273
  %v496 = vpop.f32.mrf.mxu0
  %v497 = vadd.f32 0.0, %v496
  %v498 = vpop.f32.mrf.mxu0
  %v499 = vadd.f32 0.0, %v498
  %500 = vmatmul.bf16.gmra.mxu0 %v275
  %v501 = vpop.f32.mrf.mxu0
  %v502 = vadd.f32 0.0, %v501
  %v503 = vpop.f32.mrf.mxu0
  %v504 = vadd.f32 0.0, %v503
  %505 = vmatmul.bf16.gmra.mxu0 %v277
  %v506 = vpop.f32.mrf.mxu0
  %v507 = vadd.f32 0.0, %v506
  %v508 = vpop.f32.mrf.mxu0
  %v509 = vadd.f32 0.0, %v508
  %510 = vmatmul.bf16.gmra.mxu0 %v279
  %v511 = vpop.f32.mrf.mxu0
  %v512 = vadd.f32 0.0, %v511
  %v513 = vpop.f32.mrf.mxu0
  %v514 = vadd.f32 0.0, %v513
  %515 = vmatmul.bf16.gmra.mxu0 %v281
  %v516 = vpop.f32.mrf.mxu0
  %v517 = vadd.f32 0.0, %v516
  %v518 = vpop.f32.mrf.mxu0
  %v519 = vadd.f32 0.0, %v518
  %520 = vmatmul.bf16.gmra.mxu0 %v283
  %v521 = vpop.f32.mrf.mxu0
  %v522 = vadd.f32 0.0, %v521
  %v523 = vpop.f32.mrf.mxu0
  %v524 = vadd.f32 0.0, %v523
  %525 = vmatmul.bf16.gmra.mxu0 %v285
  %v526 = vpop.f32.mrf.mxu0
  %v527 = vadd.f32 0.0, %v526
  %v528 = vpop.f32.mrf.mxu0
  %v529 = vadd.f32 0.0, %v528
  %530 = vmatmul.bf16.gmra.mxu0 %v287
  %v531 = vpop.f32.mrf.mxu0
  %v532 = vadd.f32 0.0, %v531
  %v533 = vpop.f32.mrf.mxu0
  %v534 = vadd.f32 0.0, %v533
  %535 = vmatmul.bf16.gmra.mxu0 %v289
  %v536 = vpop.f32.mrf.mxu0
  %v537 = vadd.f32 0.0, %v536
  %v538 = vpop.f32.mrf.mxu0
  %v539 = vadd.f32 0.0, %v538
  %540 = vmatmul.bf16.gmra.mxu0 %v291
  %v541 = vpop.f32.mrf.mxu0
  %v542 = vadd.f32 0.0, %v541
  %v543 = vpop.f32.mrf.mxu0
  %v544 = vadd.f32 0.0, %v543
  %545 = vmatmul.bf16.gmra.mxu0 %v293
  %v546 = vpop.f32.mrf.mxu0
  %v547 = vadd.f32 0.0, %v546
  %v548 = vpop.f32.mrf.mxu0
  %v549 = vadd.f32 0.0, %v548
  %550 = vmatmul.bf16.gmra.mxu0 %v295
  %v551 = vpop.f32.mrf.mxu0
  %v552 = vadd.f32 0.0, %v551
  %v553 = vpop.f32.mrf.mxu0
  %v554 = vadd.f32 0.0, %v553
  %555 = vmatmul.bf16.gmra.mxu0 %v297
  %v556 = vpop.f32.mrf.mxu0
  %v557 = vadd.f32 0.0, %v556
  %v558 = vpop.f32.mrf.mxu0
  %v559 = vadd.f32 0.0, %v558
  %560 = vmatmul.bf16.gmra.mxu0 %v299
  %v561 = vpop.f32.mrf.mxu0
  %v562 = vadd.f32 0.0, %v561
  %v563 = vpop.f32.mrf.mxu0
  %v564 = vadd.f32 0.0, %v563
  %565 = vmatmul.bf16.gmra.mxu0 %v301
  %v566 = vpop.f32.mrf.mxu0
  %v567 = vadd.f32 0.0, %v566
  %v568 = vpop.f32.mrf.mxu0
  %v569 = vadd.f32 0.0, %v568
  %570 = vmatmul.bf16.gmra.mxu0 %v303
  %v571 = vpop.f32.mrf.mxu0
  %v572 = vadd.f32 0.0, %v571
  %v573 = vpop.f32.mrf.mxu0
  %v574 = vadd.f32 0.0, %v573
  %575 = vmatmul.bf16.gmra.mxu0 %v305
  %v576 = vpop.f32.mrf.mxu0
  %v577 = vadd.f32 0.0, %v576
  %v578 = vpop.f32.mrf.mxu0
  %v579 = vadd.f32 0.0, %v578
  %580 = vmatmul.bf16.gmra.mxu0 %v307
  %v581 = vpop.f32.mrf.mxu0
  %v582 = vadd.f32 0.0, %v581
  %v583 = vpop.f32.mrf.mxu0
  %v584 = vadd.f32 0.0, %v583
  %585 = vmatmul.bf16.gmra.mxu0 %v309
  %v586 = vpop.f32.mrf.mxu0
  %v587 = vadd.f32 0.0, %v586
  %v588 = vpop.f32.mrf.mxu0
  %v589 = vadd.f32 0.0, %v588
  %590 = vmatmul.bf16.gmra.mxu0 %v311
  %v591 = vpop.f32.mrf.mxu0
  %v592 = vadd.f32 0.0, %v591
  %v593 = vpop.f32.mrf.mxu0
  %v594 = vadd.f32 0.0, %v593
  %595 = vmatmul.bf16.gmra.mxu0 %v313
  %v596 = vpop.f32.mrf.mxu0
  %v597 = vadd.f32 0.0, %v596
  %v598 = vpop.f32.mrf.mxu0
  %v599 = vadd.f32 0.0, %v598
  %600 = vmatmul.bf16.gmra.mxu0 %v315
  %v601 = vpop.f32.mrf.mxu0
  %v602 = vadd.f32 0.0, %v601
  %v603 = vpop.f32.mrf.mxu0
  %v604 = vadd.f32 0.0, %v603
  %605 = vmatmul.bf16.gmra.mxu0 %v317
  %v606 = vpop.f32.mrf.mxu0
  %v607 = vadd.f32 0.0, %v606
  %v608 = vpop.f32.mrf.mxu0
  %v609 = vadd.f32 0.0, %v608
  %610 = vmatmul.bf16.gmra.mxu0 %v319
  %v611 = vpop.f32.mrf.mxu0
  %v612 = vadd.f32 0.0, %v611
  %v613 = vpop.f32.mrf.mxu0
  %v614 = vadd.f32 0.0, %v613
  %615 = vmatmul.bf16.gmra.mxu0 %v321
  %v616 = vpop.f32.mrf.mxu0
  %v617 = vadd.f32 0.0, %v616
  %v618 = vpop.f32.mrf.mxu0
  %v619 = vadd.f32 0.0, %v618
  %620 = vmatmul.bf16.gmra.mxu0 %v323
  %v621 = vpop.f32.mrf.mxu0
  %v622 = vadd.f32 0.0, %v621
  %v623 = vpop.f32.mrf.mxu0
  %v624 = vadd.f32 0.0, %v623
  %625 = vdwg.mxu0
  %626 = vmatpush.bf16.msra.mxu0 %v460
  %627 = vmatpush.bf16.msra.mxu0 %v459
  %628 = vmatpush.bf16.msra.mxu0 %v458
  %629 = vmatpush.bf16.msra.mxu0 %v457
  %630 = vmatpush.bf16.msra.mxu0 %v456
  %631 = vmatpush.bf16.msra.mxu0 %v455
  %632 = vmatpush.bf16.msra.mxu0 %v454
  %633 = vmatpush.bf16.msra.mxu0 %v453
  %634 = vmatmul.bf16.gmra.mxu0 %v270
  %v635 = vpop.f32.mrf.mxu0
  %v636 = vadd.f32 %v487, %v635
  %v637 = vpop.f32.mrf.mxu0
  %v638 = vadd.f32 %v489, %v637
  %639 = vmatmul.bf16.gmra.mxu0 %v272
  %v640 = vpop.f32.mrf.mxu0
  %v641 = vadd.f32 %v492, %v640
  %v642 = vpop.f32.mrf.mxu0
  %v643 = vadd.f32 %v494, %v642
  %644 = vmatmul.bf16.gmra.mxu0 %v274
  %v645 = vpop.f32.mrf.mxu0
  %v646 = vadd.f32 %v497, %v645
  %v647 = vpop.f32.mrf.mxu0
  %v648 = vadd.f32 %v499, %v647
  %649 = vmatmul.bf16.gmra.mxu0 %v276
  %v650 = vpop.f32.mrf.mxu0
  %v651 = vadd.f32 %v502, %v650
  %v652 = vpop.f32.mrf.mxu0
  %v653 = vadd.f32 %v504, %v652
  %654 = vmatmul.bf16.gmra.mxu0 %v278
  %v655 = vpop.f32.mrf.mxu0
  %v656 = vadd.f32 %v507, %v655
  %v657 = vpop.f32.mrf.mxu0
  %v658 = vadd.f32 %v509, %v657
  %659 = vmatmul.bf16.gmra.mxu0 %v280
  %v660 = vpop.f32.mrf.mxu0
  %v661 = vadd.f32 %v512, %v660
  %v662 = vpop.f32.mrf.mxu0
  %v663 = vadd.f32 %v514, %v662
  %664 = vmatmul.bf16.gmra.mxu0 %v282
  %v665 = vpop.f32.mrf.mxu0
  %v666 = vadd.f32 %v517, %v665
  %v667 = vpop.f32.mrf.mxu0
  %v668 = vadd.f32 %v519, %v667
  %669 = vmatmul.bf16.gmra.mxu0 %v284
  %v670 = vpop.f32.mrf.mxu0
  %v671 = vadd.f32 %v522, %v670
  %v672 = vpop.f32.mrf.mxu0
  %v673 = vadd.f32 %v524, %v672
  %674 = vmatmul.bf16.gmra.mxu0 %v286
  %v675 = vpop.f32.mrf.mxu0
  %v676 = vadd.f32 %v527, %v675
  %v677 = vpop.f32.mrf.mxu0
  %v678 = vadd.f32 %v529, %v677
  %679 = vmatmul.bf16.gmra.mxu0 %v288
  %v680 = vpop.f32.mrf.mxu0
  %v681 = vadd.f32 %v532, %v680
  %v682 = vpop.f32.mrf.mxu0
  %v683 = vadd.f32 %v534, %v682
  %684 = vmatmul.bf16.gmra.mxu0 %v290
  %v685 = vpop.f32.mrf.mxu0
  %v686 = vadd.f32 %v537, %v685
  %v687 = vpop.f32.mrf.mxu0
  %v688 = vadd.f32 %v539, %v687
  %689 = vmatmul.bf16.gmra.mxu0 %v292
  %v690 = vpop.f32.mrf.mxu0
  %v691 = vadd.f32 %v542, %v690
  %v692 = vpop.f32.mrf.mxu0
  %v693 = vadd.f32 %v544, %v692
  %694 = vmatmul.bf16.gmra.mxu0 %v294
  %v695 = vpop.f32.mrf.mxu0
  %v696 = vadd.f32 %v547, %v695
  %v697 = vpop.f32.mrf.mxu0
  %v698 = vadd.f32 %v549, %v697
  %699 = vmatmul.bf16.gmra.mxu0 %v296
  %v700 = vpop.f32.mrf.mxu0
  %v701 = vadd.f32 %v552, %v700
  %v702 = vpop.f32.mrf.mxu0
  %v703 = vadd.f32 %v554, %v702
  %704 = vmatmul.bf16.gmra.mxu0 %v298
  %v705 = vpop.f32.mrf.mxu0
  %v706 = vadd.f32 %v557, %v705
  %v707 = vpop.f32.mrf.mxu0
  %v708 = vadd.f32 %v559, %v707
  %709 = vmatmul.bf16.gmra.mxu0 %v300
  %v710 = vpop.f32.mrf.mxu0
  %v711 = vadd.f32 %v562, %v710
  %v712 = vpop.f32.mrf.mxu0
  %v713 = vadd.f32 %v564, %v712
  %714 = vmatmul.bf16.gmra.mxu0 %v302
  %v715 = vpop.f32.mrf.mxu0
  %v716 = vadd.f32 %v567, %v715
  %v717 = vpop.f32.mrf.mxu0
  %v718 = vadd.f32 %v569, %v717
  %719 = vmatmul.bf16.gmra.mxu0 %v304
  %v720 = vpop.f32.mrf.mxu0
  %v721 = vadd.f32 %v572, %v720
  %v722 = vpop.f32.mrf.mxu0
  %v723 = vadd.f32 %v574, %v722
  %724 = vmatmul.bf16.gmra.mxu0 %v306
  %v725 = vpop.f32.mrf.mxu0
  %v726 = vadd.f32 %v577, %v725
  %v727 = vpop.f32.mrf.mxu0
  %v728 = vadd.f32 %v579, %v727
  %729 = vmatmul.bf16.gmra.mxu0 %v308
  %v730 = vpop.f32.mrf.mxu0
  %v731 = vadd.f32 %v582, %v730
  %v732 = vpop.f32.mrf.mxu0
  %v733 = vadd.f32 %v584, %v732
  %734 = vmatmul.bf16.gmra.mxu0 %v310
  %v735 = vpop.f32.mrf.mxu0
  %v736 = vadd.f32 %v587, %v735
  %v737 = vpop.f32.mrf.mxu0
  %v738 = vadd.f32 %v589, %v737
  %739 = vmatmul.bf16.gmra.mxu0 %v312
  %v740 = vpop.f32.mrf.mxu0
  %v741 = vadd.f32 %v592, %v740
  %v742 = vpop.f32.mrf.mxu0
  %v743 = vadd.f32 %v594, %v742
  %744 = vmatmul.bf16.gmra.mxu0 %v314
  %v745 = vpop.f32.mrf.mxu0
  %v746 = vadd.f32 %v597, %v745
  %v747 = vpop.f32.mrf.mxu0
  %v748 = vadd.f32 %v599, %v747
  %749 = vmatmul.bf16.gmra.mxu0 %v316
  %v750 = vpop.f32.mrf.mxu0
  %v751 = vadd.f32 %v602, %v750
  %v752 = vpop.f32.mrf.mxu0
  %v753 = vadd.f32 %v604, %v752
  %754 = vmatmul.bf16.gmra.mxu0 %v318
  %v755 = vpop.f32.mrf.mxu0
  %v756 = vadd.f32 %v607, %v755
  %v757 = vpop.f32.mrf.mxu0
  %v758 = vadd.f32 %v609, %v757
  %759 = vmatmul.bf16.gmra.mxu0 %v320
  %v760 = vpop.f32.mrf.mxu0
  %v761 = vadd.f32 %v612, %v760
  %v762 = vpop.f32.mrf.mxu0
  %v763 = vadd.f32 %v614, %v762
  %764 = vmatmul.bf16.gmra.mxu0 %v322
  %v765 = vpop.f32.mrf.mxu0
  %v766 = vadd.f32 %v617, %v765
  %v767 = vpop.f32.mrf.mxu0
  %v768 = vadd.f32 %v619, %v767
  %769 = vmatmul.bf16.gmra.mxu0 %v324
  %v770 = vpop.f32.mrf.mxu0
  %v771 = vadd.f32 %v622, %v770
  %v772 = vpop.f32.mrf.mxu0
  %v773 = vadd.f32 %v624, %v772
  %774 = vdwg.mxu0
  %v775 = vpack.c.bf16 %v636, %v636
  %v776 = vpack.c.bf16 %v638, %v638
  %v777 = vpack.c.bf16 %v641, %v641
  %v778 = vpack.c.bf16 %v643, %v643
  %v779 = vpack.c.bf16 %v646, %v646
  %v780 = vpack.c.bf16 %v648, %v648
  %v781 = vpack.c.bf16 %v651, %v651
  %v782 = vpack.c.bf16 %v653, %v653
  %v783 = vpack.c.bf16 %v656, %v656
  %v784 = vpack.c.bf16 %v658, %v658
  %v785 = vpack.c.bf16 %v661, %v661
  %v786 = vpack.c.bf16 %v663, %v663
  %v787 = vpack.c.bf16 %v666, %v666
  %v788 = vpack.c.bf16 %v668, %v668
  %v789 = vpack.c.bf16 %v671, %v671
  %v790 = vpack.c.bf16 %v673, %v673
  %v791 = vpack.c.bf16 %v676, %v676
  %v792 = vpack.c.bf16 %v678, %v678
  %v793 = vpack.c.bf16 %v681, %v681
  %v794 = vpack.c.bf16 %v683, %v683
  %v795 = vpack.c.bf16 %v686, %v686
  %v796 = vpack.c.bf16 %v688, %v688
  %v797 = vpack.c.bf16 %v691, %v691
  %v798 = vpack.c.bf16 %v693, %v693
  %v799 = vpack.c.bf16 %v696, %v696
  %v800 = vpack.c.bf16 %v698, %v698
  %v801 = vpack.c.bf16 %v701, %v701
  %v802 = vpack.c.bf16 %v703, %v703
  %v803 = vpack.c.bf16 %v706, %v706
  %v804 = vpack.c.bf16 %v708, %v708
  %v805 = vpack.c.bf16 %v711, %v711
  %v806 = vpack.c.bf16 %v713, %v713
  %v807 = vpack.c.bf16 %v716, %v716
  %v808 = vpack.c.bf16 %v718, %v718
  %v809 = vpack.c.bf16 %v721, %v721
  %v810 = vpack.c.bf16 %v723, %v723
  %v811 = vpack.c.bf16 %v726, %v726
  %v812 = vpack.c.bf16 %v728, %v728
  %v813 = vpack.c.bf16 %v731, %v731
  %v814 = vpack.c.bf16 %v733, %v733
  %v815 = vpack.c.bf16 %v736, %v736
  %v816 = vpack.c.bf16 %v738, %v738
  %v817 = vpack.c.bf16 %v741, %v741
  %v818 = vpack.c.bf16 %v743, %v743
  %v819 = vpack.c.bf16 %v746, %v746
  %v820 = vpack.c.bf16 %v748, %v748
  %v821 = vpack.c.bf16 %v751, %v751
  %v822 = vpack.c.bf16 %v753, %v753
  %v823 = vpack.c.bf16 %v756, %v756
  %v824 = vpack.c.bf16 %v758, %v758
  %v825 = vpack.c.bf16 %v761, %v761
  %v826 = vpack.c.bf16 %v763, %v763
  %v827 = vpack.c.bf16 %v766, %v766
  %v828 = vpack.c.bf16 %v768, %v768
  %v829 = vpack.c.bf16 %v771, %v771
  %v830 = vpack.c.bf16 %v773, %v773
  %831 = vst [vmem:[%s2] sm:$0xf] %v775
  %832 = vst [vmem:[%s2 + $0x4] sm:$0xf] %v776
  %833 = vst [vmem:[%s2 + $0x8] sm:$0xf] %v777
  %834 = vst [vmem:[%s2 + $0xc] sm:$0xf] %v778
  %835 = vst [vmem:[%s2 + $0x10] sm:$0xf] %v779
  %836 = vst [vmem:[%s2 + $0x14] sm:$0xf] %v780
  %837 = vst [vmem:[%s2 + $0x18] sm:$0xf] %v781
  %838 = vst [vmem:[%s2 + $0x1c] sm:$0xf] %v782
  %839 = vst [vmem:[%s2 + $0x20] sm:$0xf] %v783
  %840 = vst [vmem:[%s2 + $0x24] sm:$0xf] %v784
  %841 = vst [vmem:[%s2 + $0x28] sm:$0xf] %v785
  %842 = vst [vmem:[%s2 + $0x2c] sm:$0xf] %v786
  %843 = vst [vmem:[%s2 + $0x30] sm:$0xf] %v787
  %844 = vst [vmem:[%s2 + $0x34] sm:$0xf] %v788
  %845 = vst [vmem:[%s2 + $0x38] sm:$0xf] %v789
  %846 = vst [vmem:[%s2 + $0x3c] sm:$0xf] %v790
  %847 = vst [vmem:[%s2 + $0x40] sm:$0xf] %v791
  %848 = vst [vmem:[%s2 + $0x44] sm:$0xf] %v792
  %849 = vst [vmem:[%s2 + $0x48] sm:$0xf] %v793
  %850 = vst [vmem:[%s2 + $0x4c] sm:$0xf] %v794
  %851 = vst [vmem:[%s2 + $0x50] sm:$0xf] %v795
  %852 = vst [vmem:[%s2 + $0x54] sm:$0xf] %v796
  %853 = vst [vmem:[%s2 + $0x58] sm:$0xf] %v797
  %854 = vst [vmem:[%s2 + $0x5c] sm:$0xf] %v798
  %855 = vst [vmem:[%s2 + $0x60] sm:$0xf] %v799
  %856 = vst [vmem:[%s2 + $0x64] sm:$0xf] %v800
  %857 = vst [vmem:[%s2 + $0x68] sm:$0xf] %v801
  %858 = vst [vmem:[%s2 + $0x6c] sm:$0xf] %v802
  %859 = vst [vmem:[%s2 + $0x70] sm:$0xf] %v803
  %860 = vst [vmem:[%s2 + $0x74] sm:$0xf] %v804
  %861 = vst [vmem:[%s2 + $0x78] sm:$0xf] %v805
  %862 = vst [vmem:[%s2 + $0x7c] sm:$0xf] %v806
  %863 = vst [vmem:[%s2 + $0x80] sm:$0xf] %v807
  %864 = vst [vmem:[%s2 + $0x84] sm:$0xf] %v808
  %865 = vst [vmem:[%s2 + $0x88] sm:$0xf] %v809
  %866 = vst [vmem:[%s2 + $0x8c] sm:$0xf] %v810
  %867 = vst [vmem:[%s2 + $0x90] sm:$0xf] %v811
  %868 = vst [vmem:[%s2 + $0x94] sm:$0xf] %v812
  %869 = vst [vmem:[%s2 + $0x98] sm:$0xf] %v813
  %870 = vst [vmem:[%s2 + $0x9c] sm:$0xf] %v814
  %871 = vst [vmem:[%s2 + $0xa0] sm:$0xf] %v815
  %872 = vst [vmem:[%s2 + $0xa4] sm:$0xf] %v816
  %873 = vst [vmem:[%s2 + $0xa8] sm:$0xf] %v817
  %874 = vst [vmem:[%s2 + $0xac] sm:$0xf] %v818
  %875 = vst [vmem:[%s2 + $0xb0] sm:$0xf] %v819
  %876 = vst [vmem:[%s2 + $0xb4] sm:$0xf] %v820
  %877 = vst [vmem:[%s2 + $0xb8] sm:$0xf] %v821
  %878 = vst [vmem:[%s2 + $0xbc] sm:$0xf] %v822
  %879 = vst [vmem:[%s2 + $0xc0] sm:$0xf] %v823
  %880 = vst [vmem:[%s2 + $0xc4] sm:$0xf] %v824
  %881 = vst [vmem:[%s2 + $0xc8] sm:$0xf] %v825
  %882 = vst [vmem:[%s2 + $0xcc] sm:$0xf] %v826
  %883 = vst [vmem:[%s2 + $0xd0] sm:$0xf] %v827
  %884 = vst [vmem:[%s2 + $0xd4] sm:$0xf] %v828
  %885 = vst [vmem:[%s2 + $0xd8] sm:$0xf] %v829
  %886 = vst [vmem:[%s2 + $0xdc] sm:$0xf] %v830
  %p887 = scmp.eq.s32.totalorder 0, 0
  // Predicated region
  $region10: #{graph_triple_conv2d_net.16} parent=0 // pred_check
    %p888 = pneg %p887
  $region11: #{graph_triple_conv2d_net.16} parent=0 // pred_check_branch
    %890 = sbr.rel (%p888) target = $region13
  $region12: #{graph_triple_conv2d_net.16} parent=0 // pred_region
    %891 = vst [vmem:[%s3] sm:$0x3] 0.0
  $region13: #{graph_triple_conv2d_net.16} parent=0 // pred_fallthru
    _
  %v892 = vadd.f32 %v636, %v638
  %v893 = vadd.f32 %v892, %v641
  %v894 = vadd.f32 %v893, %v643
  %v895 = vadd.f32 %v894, %v646
  %v896 = vadd.f32 %v895, %v648
  %v897 = vadd.f32 %v896, %v651
  %v898 = vadd.f32 %v897, %v653
  %v899 = vadd.f32 %v898, %v656
  %v900 = vadd.f32 %v899, %v658
  %v901 = vadd.f32 %v900, %v661
  %v902 = vadd.f32 %v901, %v663
  %v903 = vadd.f32 %v902, %v666
  %v904 = vadd.f32 %v903, %v668
  %v905 = vadd.f32 %v904, %v671
  %v906 = vadd.f32 %v905, %v673
  %v907 = vadd.f32 %v906, %v676
  %v908 = vadd.f32 %v907, %v678
  %v909 = vadd.f32 %v908, %v681
  %v910 = vadd.f32 %v909, %v683
  %v911 = vadd.f32 %v910, %v686
  %v912 = vadd.f32 %v911, %v688
  %v913 = vadd.f32 %v912, %v691
  %v914 = vadd.f32 %v913, %v693
  %v915 = vadd.f32 %v914, %v696
  %v916 = vadd.f32 %v915, %v698
  %v917 = vadd.f32 %v916, %v701
  %v918 = vadd.f32 %v917, %v703
  %v919 = vadd.f32 %v918, %v706
  %v920 = vadd.f32 %v919, %v708
  %v921 = vadd.f32 %v920, %v711
  %v922 = vadd.f32 %v921, %v713
  %v923 = vadd.f32 %v922, %v716
  %v924 = vadd.f32 %v923, %v718
  %v925 = vadd.f32 %v924, %v721
  %v926 = vadd.f32 %v925, %v723
  %v927 = vadd.f32 %v926, %v726
  %v928 = vadd.f32 %v927, %v728
  %v929 = vadd.f32 %v928, %v731
  %v930 = vadd.f32 %v929, %v733
  %v931 = vadd.f32 %v930, %v736
  %v932 = vadd.f32 %v931, %v738
  %v933 = vadd.f32 %v932, %v741
  %v934 = vadd.f32 %v933, %v743
  %v935 = vadd.f32 %v934, %v746
  %v936 = vadd.f32 %v935, %v748
  %v937 = vadd.f32 %v936, %v751
  %v938 = vadd.f32 %v937, %v753
  %v939 = vadd.f32 %v938, %v756
  %v940 = vadd.f32 %v939, %v758
  %v941 = vadd.f32 %v940, %v761
  %v942 = vadd.f32 %v941, %v763
  %v943 = vadd.f32 %v942, %v766
  %v944 = vadd.f32 %v943, %v768
  %v945 = vadd.f32 %v944, %v771
  %v946 = vadd.f32 %v945, %v773
  %v947 = vrot.slane %v946, 4
  %v948 = vadd.f32 %v946, %v947
  %v949 = vrot.slane %v948, 2
  %v950 = vadd.f32 %v948, %v949
  %v951 = vrot.slane %v950, 1
  %v952 = vadd.f32 %v950, %v951
  %v953 = vmul.f32 %v636, %v636
  %v954 = vmul.f32 %v638, %v638
  %v955 = vmul.f32 %v641, %v641
  %v956 = vmul.f32 %v643, %v643
  %v957 = vmul.f32 %v646, %v646
  %v958 = vmul.f32 %v648, %v648
  %v959 = vmul.f32 %v651, %v651
  %v960 = vmul.f32 %v653, %v653
  %v961 = vmul.f32 %v656, %v656
  %v962 = vmul.f32 %v658, %v658
  %v963 = vmul.f32 %v661, %v661
  %v964 = vmul.f32 %v663, %v663
  %v965 = vmul.f32 %v666, %v666
  %v966 = vmul.f32 %v668, %v668
  %v967 = vmul.f32 %v671, %v671
  %v968 = vmul.f32 %v673, %v673
  %v969 = vmul.f32 %v676, %v676
  %v970 = vmul.f32 %v678, %v678
  %v971 = vmul.f32 %v681, %v681
  %v972 = vmul.f32 %v683, %v683
  %v973 = vmul.f32 %v686, %v686
  %v974 = vmul.f32 %v688, %v688
  %v975 = vmul.f32 %v691, %v691
  %v976 = vmul.f32 %v693, %v693
  %v977 = vmul.f32 %v696, %v696
  %v978 = vmul.f32 %v698, %v698
  %v979 = vmul.f32 %v701, %v701
  %v980 = vmul.f32 %v703, %v703
  %v981 = vmul.f32 %v706, %v706
  %v982 = vmul.f32 %v708, %v708
  %v983 = vmul.f32 %v711, %v711
  %v984 = vmul.f32 %v713, %v713
  %v985 = vmul.f32 %v716, %v716
  %v986 = vmul.f32 %v718, %v718
  %v987 = vmul.f32 %v721, %v721
  %v988 = vmul.f32 %v723, %v723
  %v989 = vmul.f32 %v726, %v726
  %v990 = vmul.f32 %v728, %v728
  %v991 = vmul.f32 %v731, %v731
  %v992 = vmul.f32 %v733, %v733
  %v993 = vmul.f32 %v736, %v736
  %v994 = vmul.f32 %v738, %v738
  %v995 = vmul.f32 %v741, %v741
  %v996 = vmul.f32 %v743, %v743
  %v997 = vmul.f32 %v746, %v746
  %v998 = vmul.f32 %v748, %v748
  %v999 = vmul.f32 %v751, %v751
  %v1000 = vmul.f32 %v753, %v753
  %v1001 = vmul.f32 %v756, %v756
  %v1002 = vmul.f32 %v758, %v758
  %v1003 = vmul.f32 %v761, %v761
  %v1004 = vmul.f32 %v763, %v763
  %v1005 = vmul.f32 %v766, %v766
  %v1006 = vmul.f32 %v768, %v768
  %v1007 = vmul.f32 %v771, %v771
  %v1008 = vmul.f32 %v773, %v773
  %v1009 = vadd.f32 %v953, %v954
  %v1010 = vadd.f32 %v1009, %v955
  %v1011 = vadd.f32 %v1010, %v956
  %v1012 = vadd.f32 %v1011, %v957
  %v1013 = vadd.f32 %v1012, %v958
  %v1014 = vadd.f32 %v1013, %v959
  %v1015 = vadd.f32 %v1014, %v960
  %v1016 = vadd.f32 %v1015, %v961
  %v1017 = vadd.f32 %v1016, %v962
  %v1018 = vadd.f32 %v1017, %v963
  %v1019 = vadd.f32 %v1018, %v964
  %v1020 = vadd.f32 %v1019, %v965
  %v1021 = vadd.f32 %v1020, %v966
  %v1022 = vadd.f32 %v1021, %v967
  %v1023 = vadd.f32 %v1022, %v968
  %v1024 = vadd.f32 %v1023, %v969
  %v1025 = vadd.f32 %v1024, %v970
  %v1026 = vadd.f32 %v1025, %v971
  %v1027 = vadd.f32 %v1026, %v972
  %v1028 = vadd.f32 %v1027, %v973
  %v1029 = vadd.f32 %v1028, %v974
  %v1030 = vadd.f32 %v1029, %v975
  %v1031 = vadd.f32 %v1030, %v976
  %v1032 = vadd.f32 %v1031, %v977
  %v1033 = vadd.f32 %v1032, %v978
  %v1034 = vadd.f32 %v1033, %v979
  %v1035 = vadd.f32 %v1034, %v980
  %v1036 = vadd.f32 %v1035, %v981
  %v1037 = vadd.f32 %v1036, %v982
  %v1038 = vadd.f32 %v1037, %v983
  %v1039 = vadd.f32 %v1038, %v984
  %v1040 = vadd.f32 %v1039, %v985
  %v1041 = vadd.f32 %v1040, %v986
  %v1042 = vadd.f32 %v1041, %v987
  %v1043 = vadd.f32 %v1042, %v988
  %v1044 = vadd.f32 %v1043, %v989
  %v1045 = vadd.f32 %v1044, %v990
  %v1046 = vadd.f32 %v1045, %v991
  %v1047 = vadd.f32 %v1046, %v992
  %v1048 = vadd.f32 %v1047, %v993
  %v1049 = vadd.f32 %v1048, %v994
  %v1050 = vadd.f32 %v1049, %v995
  %v1051 = vadd.f32 %v1050, %v996
  %v1052 = vadd.f32 %v1051, %v997
  %v1053 = vadd.f32 %v1052, %v998
  %v1054 = vadd.f32 %v1053, %v999
  %v1055 = vadd.f32 %v1054, %v1000
  %v1056 = vadd.f32 %v1055, %v1001
  %v1057 = vadd.f32 %v1056, %v1002
  %v1058 = vadd.f32 %v1057, %v1003
  %v1059 = vadd.f32 %v1058, %v1004
  %v1060 = vadd.f32 %v1059, %v1005
  %v1061 = vadd.f32 %v1060, %v1006
  %v1062 = vadd.f32 %v1061, %v1007
  %v1063 = vadd.f32 %v1062, %v1008
  %v1064 = vrot.slane %v1063, 4
  %v1065 = vadd.f32 %v1063, %v1064
  %v1066 = vrot.slane %v1065, 2
  %v1067 = vadd.f32 %v1065, %v1066
  %v1068 = vrot.slane %v1067, 1
  %v1069 = vadd.f32 %v1067, %v1068
  %vm1070 = vcmask 1040384
  %v1071 = vsel %vm1070, %v952, %v1069
  %v1072 = vld [vmem:[%s3] sm:$0x3]
  %v1073 = vadd.f32 %v1072, %v1071
  %1074 = vst [vmem:[%s3] sm:$0x3] %v1073
  // Predicated region
  $region14: #{graph_triple_conv2d_net.16} parent=0 // pred_check
    _
  $region15: #{graph_triple_conv2d_net.16} parent=0 // pred_check_branch
    %1076 = sbr.rel (0) target = $region17
  $region16: #{graph_triple_conv2d_net.16} parent=0 // pred_region
    _
  $region17: #{graph_triple_conv2d_net.16} parent=0 // pred_fallthru
    _
  // Predicated region
  $region18: #{graph_triple_conv2d_net.16} parent=0 // pred_check
    _
  $region19: #{graph_triple_conv2d_net.16} parent=0 // pred_check_branch
    %1078 = sbr.rel (0) target = $region21
  $region20: #{graph_triple_conv2d_net.16} parent=0 // pred_region
    _
  $region21: #{graph_triple_conv2d_net.16} parent=0 // pred_fallthru
    _
  // Predicated region
  $region22: #{graph_triple_conv2d_net.16} parent=0 // pred_check
    _
  $region23: #{graph_triple_conv2d_net.16} parent=0 // pred_check_branch
    %1080 = sbr.rel (0) target = $region25
  $region24: #{graph_triple_conv2d_net.16} parent=0 // pred_region
    _
  $region25: #{graph_triple_conv2d_net.16} parent=0 // pred_fallthru
    _
  // Predicated region
  $region26: #{graph_triple_conv2d_net.16} parent=0 // pred_check
    _
  $region27: #{graph_triple_conv2d_net.16} parent=0 // pred_check_branch
    %1082 = sbr.rel (0) target = $region29
  $region28: #{graph_triple_conv2d_net.16} parent=0 // pred_region
    _
  $region29: #{graph_triple_conv2d_net.16} parent=0 // pred_fallthru
    _

// kernel: graph_triple_conv2d_net.19
$region0: #{graph_triple_conv2d_net.19}
  #allocation0 [shape = 'u32[]', space=smem, size = 0x4, offset = 0x4, fixed_abs, tag = 'smem constant byte address 0x4 - core index']
  #allocation1 [shape = 'u32[72,128]{1,0:T(1,128)}', space=vmem, size = 0x9000, scoped, tag = 'internal scratch']
  %s0 = inlined_call_operand.vmem [shape: bf16[1,448,128], index: 0, kind: input, shape index: {}]
  %s1 = inlined_call_operand.vmem [shape: f32[1,2,128], index: 1, kind: input, shape index: {}]
  %s2 = inlined_call_operand.vmem [shape: f32[1,1,128], index: 2, kind: input, shape index: {}]
  %s3 = inlined_call_operand.vmem [shape: f32[1,1,128], index: 3, kind: input, shape index: {}]
  %s4 = inlined_call_operand.vmem [shape: f32[1,1,128], index: 4, kind: input, shape index: {}]
  %s5 = inlined_call_operand.vmem [shape: bf16[1,448,128], index: 5, kind: output, shape index: {}]
  %s6 = sld [smem:[#allocation0]]
  $region30: #{graph_triple_conv2d_net.19} parent=0
    _
  %s8 = ssub.s32 1, %s6
  %s9 = scalar_select 0, %s8, %s6
  // Predicated region
  $region2: #{graph_triple_conv2d_net.19} parent=0 // pred_check
    _
  $region3: #{graph_triple_conv2d_net.19} parent=0 // pred_check_branch
    %11 = sbr.rel (0) target = $region5
  $region4: #{graph_triple_conv2d_net.19} parent=0 // pred_region
    _
  $region5: #{graph_triple_conv2d_net.19} parent=0 // pred_fallthru
    _
  // Predicated region
  $region6: #{graph_triple_conv2d_net.19} parent=0 // pred_check
    _
  $region7: #{graph_triple_conv2d_net.19} parent=0 // pred_check_branch
    %13 = sbr.rel (0) target = $region9
  $region8: #{graph_triple_conv2d_net.19} parent=0 // pred_region
    _
  $region9: #{graph_triple_conv2d_net.19} parent=0 // pred_fallthru
    _
  // Predicated region
  $region10: #{graph_triple_conv2d_net.19} parent=0 // pred_check
    _
  $region11: #{graph_triple_conv2d_net.19} parent=0 // pred_check_branch
    %15 = sbr.rel (0) target = $region13
  $region12: #{graph_triple_conv2d_net.19} parent=0 // pred_region
    _
  $region13: #{graph_triple_conv2d_net.19} parent=0 // pred_fallthru
    _
  // Predicated region
  $region14: #{graph_triple_conv2d_net.19} parent=0 // pred_check
    _
  $region15: #{graph_triple_conv2d_net.19} parent=0 // pred_check_branch
    %17 = sbr.rel (0) target = $region17
  $region16: #{graph_triple_conv2d_net.19} parent=0 // pred_region
    _
  $region17: #{graph_triple_conv2d_net.19} parent=0 // pred_fallthru
    _
  // Predicated region
  $region18: #{graph_triple_conv2d_net.19} parent=0 // pred_check
    _
  $region19: #{graph_triple_conv2d_net.19} parent=0 // pred_check_branch
    %19 = sbr.rel (0) target = $region21
  $region20: #{graph_triple_conv2d_net.19} parent=0 // pred_region
    _
  $region21: #{graph_triple_conv2d_net.19} parent=0 // pred_fallthru
    _
  %v20 = vld [vmem:[%s0] sm:$0xf]
  %v21 = vld [vmem:[%s0 + $0x4] sm:$0xf]
  %v22 = vld [vmem:[%s0 + $0x8] sm:$0xf]
  %v23 = vld [vmem:[%s0 + $0xc] sm:$0xf]
  %v24 = vld [vmem:[%s0 + $0x10] sm:$0xf]
  %v25 = vld [vmem:[%s0 + $0x14] sm:$0xf]
  %v26 = vld [vmem:[%s0 + $0x18] sm:$0xf]
  %v27 = vld [vmem:[%s0 + $0x1c] sm:$0xf]
  %v28 = vld [vmem:[%s0 + $0x20] sm:$0xf]
  %v29 = vld [vmem:[%s0 + $0x24] sm:$0xf]
  %v30 = vld [vmem:[%s0 + $0x28] sm:$0xf]
  %v31 = vld [vmem:[%s0 + $0x2c] sm:$0xf]
  %v32 = vld [vmem:[%s0 + $0x30] sm:$0xf]
  %v33 = vld [vmem:[%s0 + $0x34] sm:$0xf]
  %v34 = vld [vmem:[%s0 + $0x38] sm:$0xf]
  %v35 = vld [vmem:[%s0 + $0x3c] sm:$0xf]
  %v36 = vld [vmem:[%s0 + $0x40] sm:$0xf]
  %v37 = vld [vmem:[%s0 + $0x44] sm:$0xf]
  %v38 = vld [vmem:[%s0 + $0x48] sm:$0xf]
  %v39 = vld [vmem:[%s0 + $0x4c] sm:$0xf]
  %v40 = vld [vmem:[%s0 + $0x50] sm:$0xf]
  %v41 = vld [vmem:[%s0 + $0x54] sm:$0xf]
  %v42 = vld [vmem:[%s0 + $0x58] sm:$0xf]
  %v43 = vld [vmem:[%s0 + $0x5c] sm:$0xf]
  %v44 = vld [vmem:[%s0 + $0x60] sm:$0xf]
  %v45 = vld [vmem:[%s0 + $0x64] sm:$0xf]
  %v46 = vld [vmem:[%s0 + $0x68] sm:$0xf]
  %v47 = vld [vmem:[%s0 + $0x6c] sm:$0xf]
  %v48 = vld [vmem:[%s0 + $0x70] sm:$0xf]
  %v49 = vld [vmem:[%s0 + $0x74] sm:$0xf]
  %v50 = vld [vmem:[%s0 + $0x78] sm:$0xf]
  %v51 = vld [vmem:[%s0 + $0x7c] sm:$0xf]
  %v52 = vld [vmem:[%s0 + $0x80] sm:$0xf]
  %v53 = vld [vmem:[%s0 + $0x84] sm:$0xf]
  %v54 = vld [vmem:[%s0 + $0x88] sm:$0xf]
  %v55 = vld [vmem:[%s0 + $0x8c] sm:$0xf]
  %v56 = vld [vmem:[%s0 + $0x90] sm:$0xf]
  %v57 = vld [vmem:[%s0 + $0x94] sm:$0xf]
  %v58 = vld [vmem:[%s0 + $0x98] sm:$0xf]
  %v59 = vld [vmem:[%s0 + $0x9c] sm:$0xf]
  %v60 = vld [vmem:[%s0 + $0xa0] sm:$0xf]
  %v61 = vld [vmem:[%s0 + $0xa4] sm:$0xf]
  %v62 = vld [vmem:[%s0 + $0xa8] sm:$0xf]
  %v63 = vld [vmem:[%s0 + $0xac] sm:$0xf]
  %v64 = vld [vmem:[%s0 + $0xb0] sm:$0xf]
  %v65 = vld [vmem:[%s0 + $0xb4] sm:$0xf]
  %v66 = vld [vmem:[%s0 + $0xb8] sm:$0xf]
  %v67 = vld [vmem:[%s0 + $0xbc] sm:$0xf]
  %v68 = vld [vmem:[%s0 + $0xc0] sm:$0xf]
  %v69 = vld [vmem:[%s0 + $0xc4] sm:$0xf]
  %v70 = vld [vmem:[%s0 + $0xc8] sm:$0xf]
  %v71 = vld [vmem:[%s0 + $0xcc] sm:$0xf]
  %v72 = vld [vmem:[%s0 + $0xd0] sm:$0xf]
  %v73 = vld [vmem:[%s0 + $0xd4] sm:$0xf]
  %v74 = vld [vmem:[%s0 + $0xd8] sm:$0xf]
  %v75 = vld [vmem:[%s0 + $0xdc] sm:$0xf]
  %v76 = vunpack.c.l.bf16 %v20
  %v77 = vunpack.c.l.bf16 %v21
  %v78 = vunpack.c.l.bf16 %v22
  %v79 = vunpack.c.l.bf16 %v23
  %v80 = vunpack.c.l.bf16 %v24
  %v81 = vunpack.c.l.bf16 %v25
  %v82 = vunpack.c.l.bf16 %v26
  %v83 = vunpack.c.l.bf16 %v27
  %v84 = vunpack.c.l.bf16 %v28
  %v85 = vunpack.c.l.bf16 %v29
  %v86 = vunpack.c.l.bf16 %v30
  %v87 = vunpack.c.l.bf16 %v31
  %v88 = vunpack.c.l.bf16 %v32
  %v89 = vunpack.c.l.bf16 %v33
  %v90 = vunpack.c.l.bf16 %v34
  %v91 = vunpack.c.l.bf16 %v35
  %v92 = vunpack.c.l.bf16 %v36
  %v93 = vunpack.c.l.bf16 %v37
  %v94 = vunpack.c.l.bf16 %v38
  %v95 = vunpack.c.l.bf16 %v39
  %v96 = vunpack.c.l.bf16 %v40
  %v97 = vunpack.c.l.bf16 %v41
  %v98 = vunpack.c.l.bf16 %v42
  %v99 = vunpack.c.l.bf16 %v43
  %v100 = vunpack.c.l.bf16 %v44
  %v101 = vunpack.c.l.bf16 %v45
  %v102 = vunpack.c.l.bf16 %v46
  %v103 = vunpack.c.l.bf16 %v47
  %v104 = vunpack.c.l.bf16 %v48
  %v105 = vunpack.c.l.bf16 %v49
  %v106 = vunpack.c.l.bf16 %v50
  %v107 = vunpack.c.l.bf16 %v51
  %v108 = vunpack.c.l.bf16 %v52
  %v109 = vunpack.c.l.bf16 %v53
  %v110 = vunpack.c.l.bf16 %v54
  %v111 = vunpack.c.l.bf16 %v55
  %v112 = vunpack.c.l.bf16 %v56
  %v113 = vunpack.c.l.bf16 %v57
  %v114 = vunpack.c.l.bf16 %v58
  %v115 = vunpack.c.l.bf16 %v59
  %v116 = vunpack.c.l.bf16 %v60
  %v117 = vunpack.c.l.bf16 %v61
  %v118 = vunpack.c.l.bf16 %v62
  %v119 = vunpack.c.l.bf16 %v63
  %v120 = vunpack.c.l.bf16 %v64
  %v121 = vunpack.c.l.bf16 %v65
  %v122 = vunpack.c.l.bf16 %v66
  %v123 = vunpack.c.l.bf16 %v67
  %v124 = vunpack.c.l.bf16 %v68
  %v125 = vunpack.c.l.bf16 %v69
  %v126 = vunpack.c.l.bf16 %v70
  %v127 = vunpack.c.l.bf16 %v71
  %v128 = vunpack.c.l.bf16 %v72
  %v129 = vunpack.c.l.bf16 %v73
  %v130 = vunpack.c.l.bf16 %v74
  %v131 = vunpack.c.l.bf16 %v75
  %v132 = vld [vmem:[%s1] sm:$0x3]
  %v133 = vmul.f32 %v132, 0.002232143
  %v134 = vmul.f32 %v133, %v133
  %v136 = vrot.slane %v134, 7
  %v138 = vsub.f32 %v133, %v136
  %v139 = vmax.f32 %v138, 0.0
  %v140 = vld [vmem:[%s2] sm:$0x1]
  %v141 = vadd.f32 %v139, 1e-05
  %v142 = vrsqrt.pop %v141
  %v143 = vmul.f32 %v142, %v141
  %v144 = vmul.f32 %v143, %v142
  %v145 = vmul.f32 0.5, %v144
  %v146 = vsub.f32 1.5, %v145
  %v147 = vmul.f32 %v142, %v146
  %vm148 = vweird.f32 %v141
  %vm149 = vweird.f32 %v142
  %vm150 = vmor %vm148, %vm149
  %v151 = vsel %vm150, %v142, %v147
  %153 = vst [vmem:[#allocation1] sm:$0xff] %v151
  %s154 = scalar_lea.vmem [#allocation1], 1
  %v155 = vld [vmem:[%s154] ss:$9 sm:$0xff]
  %v157 = vmul.f32 %v140, %v155
  %v158 = vld [vmem:[%s3] sm:$0x1]
  %v159 = vmul.f32 %v133, %v157
  %v160 = vsub.f32 %v158, %v159
  %v162 = vperm.slane %v157, 0
  %v164 = vmul.f32 %v76, %v162
  %v165 = vmul.f32 %v77, %v162
  %v166 = vmul.f32 %v78, %v162
  %v167 = vmul.f32 %v79, %v162
  %v168 = vmul.f32 %v80, %v162
  %v169 = vmul.f32 %v81, %v162
  %v170 = vmul.f32 %v82, %v162
  %v171 = vmul.f32 %v83, %v162
  %v172 = vmul.f32 %v84, %v162
  %v173 = vmul.f32 %v85, %v162
  %v174 = vmul.f32 %v86, %v162
  %v175 = vmul.f32 %v87, %v162
  %v176 = vmul.f32 %v88, %v162
  %v177 = vmul.f32 %v89, %v162
  %v178 = vmul.f32 %v90, %v162
  %v179 = vmul.f32 %v91, %v162
  %v180 = vmul.f32 %v92, %v162
  %v181 = vmul.f32 %v93, %v162
  %v182 = vmul.f32 %v94, %v162
  %v183 = vmul.f32 %v95, %v162
  %v184 = vmul.f32 %v96, %v162
  %v185 = vmul.f32 %v97, %v162
  %v186 = vmul.f32 %v98, %v162
  %v187 = vmul.f32 %v99, %v162
  %v188 = vmul.f32 %v100, %v162
  %v189 = vmul.f32 %v101, %v162
  %v190 = vmul.f32 %v102, %v162
  %v191 = vmul.f32 %v103, %v162
  %v192 = vmul.f32 %v104, %v162
  %v193 = vmul.f32 %v105, %v162
  %v194 = vmul.f32 %v106, %v162
  %v195 = vmul.f32 %v107, %v162
  %v196 = vmul.f32 %v108, %v162
  %v197 = vmul.f32 %v109, %v162
  %v198 = vmul.f32 %v110, %v162
  %v199 = vmul.f32 %v111, %v162
  %v200 = vmul.f32 %v112, %v162
  %v201 = vmul.f32 %v113, %v162
  %v202 = vmul.f32 %v114, %v162
  %v203 = vmul.f32 %v115, %v162
  %v204 = vmul.f32 %v116, %v162
  %v205 = vmul.f32 %v117, %v162
  %v206 = vmul.f32 %v118, %v162
  %v207 = vmul.f32 %v119, %v162
  %v208 = vmul.f32 %v120, %v162
  %v209 = vmul.f32 %v121, %v162
  %v210 = vmul.f32 %v122, %v162
  %v211 = vmul.f32 %v123, %v162
  %v212 = vmul.f32 %v124, %v162
  %v213 = vmul.f32 %v125, %v162
  %v214 = vmul.f32 %v126, %v162
  %v215 = vmul.f32 %v127, %v162
  %v216 = vmul.f32 %v128, %v162
  %v217 = vmul.f32 %v129, %v162
  %v218 = vmul.f32 %v130, %v162
  %v219 = vmul.f32 %v131, %v162
  %v221 = vperm.slane %v160, 0
  %v223 = vadd.f32 %v164, %v221
  %v224 = vadd.f32 %v165, %v221
  %v225 = vadd.f32 %v166, %v221
  %v226 = vadd.f32 %v167, %v221
  %v227 = vadd.f32 %v168, %v221
  %v228 = vadd.f32 %v169, %v221
  %v229 = vadd.f32 %v170, %v221
  %v230 = vadd.f32 %v171, %v221
  %v231 = vadd.f32 %v172, %v221
  %v232 = vadd.f32 %v173, %v221
  %v233 = vadd.f32 %v174, %v221
  %v234 = vadd.f32 %v175, %v221
  %v235 = vadd.f32 %v176, %v221
  %v236 = vadd.f32 %v177, %v221
  %v237 = vadd.f32 %v178, %v221
  %v238 = vadd.f32 %v179, %v221
  %v239 = vadd.f32 %v180, %v221
  %v240 = vadd.f32 %v181, %v221
  %v241 = vadd.f32 %v182, %v221
  %v242 = vadd.f32 %v183, %v221
  %v243 = vadd.f32 %v184, %v221
  %v244 = vadd.f32 %v185, %v221
  %v245 = vadd.f32 %v186, %v221
  %v246 = vadd.f32 %v187, %v221
  %v247 = vadd.f32 %v188, %v221
  %v248 = vadd.f32 %v189, %v221
  %v249 = vadd.f32 %v190, %v221
  %v250 = vadd.f32 %v191, %v221
  %v251 = vadd.f32 %v192, %v221
  %v252 = vadd.f32 %v193, %v221
  %v253 = vadd.f32 %v194, %v221
  %v254 = vadd.f32 %v195, %v221
  %v255 = vadd.f32 %v196, %v221
  %v256 = vadd.f32 %v197, %v221
  %v257 = vadd.f32 %v198, %v221
  %v258 = vadd.f32 %v199, %v221
  %v259 = vadd.f32 %v200, %v221
  %v260 = vadd.f32 %v201, %v221
  %v261 = vadd.f32 %v202, %v221
  %v262 = vadd.f32 %v203, %v221
  %v263 = vadd.f32 %v204, %v221
  %v264 = vadd.f32 %v205, %v221
  %v265 = vadd.f32 %v206, %v221
  %v266 = vadd.f32 %v207, %v221
  %v267 = vadd.f32 %v208, %v221
  %v268 = vadd.f32 %v209, %v221
  %v269 = vadd.f32 %v210, %v221
  %v270 = vadd.f32 %v211, %v221
  %v271 = vadd.f32 %v212, %v221
  %v272 = vadd.f32 %v213, %v221
  %v273 = vadd.f32 %v214, %v221
  %v274 = vadd.f32 %v215, %v221
  %v275 = vadd.f32 %v216, %v221
  %v276 = vadd.f32 %v217, %v221
  %v277 = vadd.f32 %v218, %v221
  %v278 = vadd.f32 %v219, %v221
  %vm279 = vcmp.ge.f32.partialorder %v223, 0.0
  %vm280 = vcmp.ge.f32.partialorder %v224, 0.0
  %vm281 = vcmp.ge.f32.partialorder %v225, 0.0
  %vm282 = vcmp.ge.f32.partialorder %v226, 0.0
  %vm283 = vcmp.ge.f32.partialorder %v227, 0.0
  %vm284 = vcmp.ge.f32.partialorder %v228, 0.0
  %vm285 = vcmp.ge.f32.partialorder %v229, 0.0
  %vm286 = vcmp.ge.f32.partialorder %v230, 0.0
  %vm287 = vcmp.ge.f32.partialorder %v231, 0.0
  %vm288 = vcmp.ge.f32.partialorder %v232, 0.0
  %vm289 = vcmp.ge.f32.partialorder %v233, 0.0
  %vm290 = vcmp.ge.f32.partialorder %v234, 0.0
  %vm291 = vcmp.ge.f32.partialorder %v235, 0.0
  %vm292 = vcmp.ge.f32.partialorder %v236, 0.0
  %vm293 = vcmp.ge.f32.partialorder %v237, 0.0
  %vm294 = vcmp.ge.f32.partialorder %v238, 0.0
  %vm295 = vcmp.ge.f32.partialorder %v239, 0.0
  %vm296 = vcmp.ge.f32.partialorder %v240, 0.0
  %vm297 = vcmp.ge.f32.partialorder %v241, 0.0
  %vm298 = vcmp.ge.f32.partialorder %v242, 0.0
  %vm299 = vcmp.ge.f32.partialorder %v243, 0.0
  %vm300 = vcmp.ge.f32.partialorder %v244, 0.0
  %vm301 = vcmp.ge.f32.partialorder %v245, 0.0
  %vm302 = vcmp.ge.f32.partialorder %v246, 0.0
  %vm303 = vcmp.ge.f32.partialorder %v247, 0.0
  %vm304 = vcmp.ge.f32.partialorder %v248, 0.0
  %vm305 = vcmp.ge.f32.partialorder %v249, 0.0
  %vm306 = vcmp.ge.f32.partialorder %v250, 0.0
  %vm307 = vcmp.ge.f32.partialorder %v251, 0.0
  %vm308 = vcmp.ge.f32.partialorder %v252, 0.0
  %vm309 = vcmp.ge.f32.partialorder %v253, 0.0
  %vm310 = vcmp.ge.f32.partialorder %v254, 0.0
  %vm311 = vcmp.ge.f32.partialorder %v255, 0.0
  %vm312 = vcmp.ge.f32.partialorder %v256, 0.0
  %vm313 = vcmp.ge.f32.partialorder %v257, 0.0
  %vm314 = vcmp.ge.f32.partialorder %v258, 0.0
  %vm315 = vcmp.ge.f32.partialorder %v259, 0.0
  %vm316 = vcmp.ge.f32.partialorder %v260, 0.0
  %vm317 = vcmp.ge.f32.partialorder %v261, 0.0
  %vm318 = vcmp.ge.f32.partialorder %v262, 0.0
  %vm319 = vcmp.ge.f32.partialorder %v263, 0.0
  %vm320 = vcmp.ge.f32.partialorder %v264, 0.0
  %vm321 = vcmp.ge.f32.partialorder %v265, 0.0
  %vm322 = vcmp.ge.f32.partialorder %v266, 0.0
  %vm323 = vcmp.ge.f32.partialorder %v267, 0.0
  %vm324 = vcmp.ge.f32.partialorder %v268, 0.0
  %vm325 = vcmp.ge.f32.partialorder %v269, 0.0
  %vm326 = vcmp.ge.f32.partialorder %v270, 0.0
  %vm327 = vcmp.ge.f32.partialorder %v271, 0.0
  %vm328 = vcmp.ge.f32.partialorder %v272, 0.0
  %vm329 = vcmp.ge.f32.partialorder %v273, 0.0
  %vm330 = vcmp.ge.f32.partialorder %v274, 0.0
  %vm331 = vcmp.ge.f32.partialorder %v275, 0.0
  %vm332 = vcmp.ge.f32.partialorder %v276, 0.0
  %vm333 = vcmp.ge.f32.partialorder %v277, 0.0
  %vm334 = vcmp.ge.f32.partialorder %v278, 0.0
  %v335 = vmul.f32 %v223, 0.1
  %v336 = vmul.f32 %v224, 0.1
  %v337 = vmul.f32 %v225, 0.1
  %v338 = vmul.f32 %v226, 0.1
  %v339 = vmul.f32 %v227, 0.1
  %v340 = vmul.f32 %v228, 0.1
  %v341 = vmul.f32 %v229, 0.1
  %v342 = vmul.f32 %v230, 0.1
  %v343 = vmul.f32 %v231, 0.1
  %v344 = vmul.f32 %v232, 0.1
  %v345 = vmul.f32 %v233, 0.1
  %v346 = vmul.f32 %v234, 0.1
  %v347 = vmul.f32 %v235, 0.1
  %v348 = vmul.f32 %v236, 0.1
  %v349 = vmul.f32 %v237, 0.1
  %v350 = vmul.f32 %v238, 0.1
  %v351 = vmul.f32 %v239, 0.1
  %v352 = vmul.f32 %v240, 0.1
  %v353 = vmul.f32 %v241, 0.1
  %v354 = vmul.f32 %v242, 0.1
  %v355 = vmul.f32 %v243, 0.1
  %v356 = vmul.f32 %v244, 0.1
  %v357 = vmul.f32 %v245, 0.1
  %v358 = vmul.f32 %v246, 0.1
  %v359 = vmul.f32 %v247, 0.1
  %v360 = vmul.f32 %v248, 0.1
  %v361 = vmul.f32 %v249, 0.1
  %v362 = vmul.f32 %v250, 0.1
  %v363 = vmul.f32 %v251, 0.1
  %v364 = vmul.f32 %v252, 0.1
  %v365 = vmul.f32 %v253, 0.1
  %v366 = vmul.f32 %v254, 0.1
  %v367 = vmul.f32 %v255, 0.1
  %v368 = vmul.f32 %v256, 0.1
  %v369 = vmul.f32 %v257, 0.1
  %v370 = vmul.f32 %v258, 0.1
  %v371 = vmul.f32 %v259, 0.1
  %v372 = vmul.f32 %v260, 0.1
  %v373 = vmul.f32 %v261, 0.1
  %v374 = vmul.f32 %v262, 0.1
  %v375 = vmul.f32 %v263, 0.1
  %v376 = vmul.f32 %v264, 0.1
  %v377 = vmul.f32 %v265, 0.1
  %v378 = vmul.f32 %v266, 0.1
  %v379 = vmul.f32 %v267, 0.1
  %v380 = vmul.f32 %v268, 0.1
  %v381 = vmul.f32 %v269, 0.1
  %v382 = vmul.f32 %v270, 0.1
  %v383 = vmul.f32 %v271, 0.1
  %v384 = vmul.f32 %v272, 0.1
  %v385 = vmul.f32 %v273, 0.1
  %v386 = vmul.f32 %v274, 0.1
  %v387 = vmul.f32 %v275, 0.1
  %v388 = vmul.f32 %v276, 0.1
  %v389 = vmul.f32 %v277, 0.1
  %v390 = vmul.f32 %v278, 0.1
  %v391 = vsel %vm279, %v223, %v335
  %v392 = vsel %vm280, %v224, %v336
  %v393 = vsel %vm281, %v225, %v337
  %v394 = vsel %vm282, %v226, %v338
  %v395 = vsel %vm283, %v227, %v339
  %v396 = vsel %vm284, %v228, %v340
  %v397 = vsel %vm285, %v229, %v341
  %v398 = vsel %vm286, %v230, %v342
  %v399 = vsel %vm287, %v231, %v343
  %v400 = vsel %vm288, %v232, %v344
  %v401 = vsel %vm289, %v233, %v345
  %v402 = vsel %vm290, %v234, %v346
  %v403 = vsel %vm291, %v235, %v347
  %v404 = vsel %vm292, %v236, %v348
  %v405 = vsel %vm293, %v237, %v349
  %v406 = vsel %vm294, %v238, %v350
  %v407 = vsel %vm295, %v239, %v351
  %v408 = vsel %vm296, %v240, %v352
  %v409 = vsel %vm297, %v241, %v353
  %v410 = vsel %vm298, %v242, %v354
  %v411 = vsel %vm299, %v243, %v355
  %v412 = vsel %vm300, %v244, %v356
  %v413 = vsel %vm301, %v245, %v357
  %v414 = vsel %vm302, %v246, %v358
  %v415 = vsel %vm303, %v247, %v359
  %v416 = vsel %vm304, %v248, %v360
  %v417 = vsel %vm305, %v249, %v361
  %v418 = vsel %vm306, %v250, %v362
  %v419 = vsel %vm307, %v251, %v363
  %v420 = vsel %vm308, %v252, %v364
  %v421 = vsel %vm309, %v253, %v365
  %v422 = vsel %vm310, %v254, %v366
  %v423 = vsel %vm311, %v255, %v367
  %v424 = vsel %vm312, %v256, %v368
  %v425 = vsel %vm313, %v257, %v369
  %v426 = vsel %vm314, %v258, %v370
  %v427 = vsel %vm315, %v259, %v371
  %v428 = vsel %vm316, %v260, %v372
  %v429 = vsel %vm317, %v261, %v373
  %v430 = vsel %vm318, %v262, %v374
  %v431 = vsel %vm319, %v263, %v375
  %v432 = vsel %vm320, %v264, %v376
  %v433 = vsel %vm321, %v265, %v377
  %v434 = vsel %vm322, %v266, %v378
  %v435 = vsel %vm323, %v267, %v379
  %v436 = vsel %vm324, %v268, %v380
  %v437 = vsel %vm325, %v269, %v381
  %v438 = vsel %vm326, %v270, %v382
  %v439 = vsel %vm327, %v271, %v383
  %v440 = vsel %vm328, %v272, %v384
  %v441 = vsel %vm329, %v273, %v385
  %v442 = vsel %vm330, %v274, %v386
  %v443 = vsel %vm331, %v275, %v387
  %v444 = vsel %vm332, %v276, %v388
  %v445 = vsel %vm333, %v277, %v389
  %v446 = vsel %vm334, %v278, %v390
  %v447 = vlaneseq
  %v448 = vand.u32 %v447, 127
  %vm449 = vcmp.ge.s32.totalorder %v448, 16
  %vm450 = vcmp.lt.s32.totalorder %v448, 24
  %vm451 = vmand %vm449, %vm450
  %v452 = vld [vmem:[%s4] sm:$0x1]
  %v454 = vperm.slane %v452, 0
  %v456 = vadd.f32 %v76, %v454
  %v457 = vadd.f32 %v77, %v454
  %v458 = vadd.f32 %v78, %v454
  %v459 = vadd.f32 %v79, %v454
  %v460 = vadd.f32 %v80, %v454
  %v461 = vadd.f32 %v81, %v454
  %v462 = vadd.f32 %v82, %v454
  %v463 = vadd.f32 %v83, %v454
  %v464 = vadd.f32 %v84, %v454
  %v465 = vadd.f32 %v85, %v454
  %v466 = vadd.f32 %v86, %v454
  %v467 = vadd.f32 %v87, %v454
  %v468 = vadd.f32 %v88, %v454
  %v469 = vadd.f32 %v89, %v454
  %v470 = vadd.f32 %v90, %v454
  %v471 = vadd.f32 %v91, %v454
  %v472 = vadd.f32 %v92, %v454
  %v473 = vadd.f32 %v93, %v454
  %v474 = vadd.f32 %v94, %v454
  %v475 = vadd.f32 %v95, %v454
  %v476 = vadd.f32 %v96, %v454
  %v477 = vadd.f32 %v97, %v454
  %v478 = vadd.f32 %v98, %v454
  %v479 = vadd.f32 %v99, %v454
  %v480 = vadd.f32 %v100, %v454
  %v481 = vadd.f32 %v101, %v454
  %v482 = vadd.f32 %v102, %v454
  %v483 = vadd.f32 %v103, %v454
  %v484 = vadd.f32 %v104, %v454
  %v485 = vadd.f32 %v105, %v454
  %v486 = vadd.f32 %v106, %v454
  %v487 = vadd.f32 %v107, %v454
  %v488 = vadd.f32 %v108, %v454
  %v489 = vadd.f32 %v109, %v454
  %v490 = vadd.f32 %v110, %v454
  %v491 = vadd.f32 %v111, %v454
  %v492 = vadd.f32 %v112, %v454
  %v493 = vadd.f32 %v113, %v454
  %v494 = vadd.f32 %v114, %v454
  %v495 = vadd.f32 %v115, %v454
  %v496 = vadd.f32 %v116, %v454
  %v497 = vadd.f32 %v117, %v454
  %v498 = vadd.f32 %v118, %v454
  %v499 = vadd.f32 %v119, %v454
  %v500 = vadd.f32 %v120, %v454
  %v501 = vadd.f32 %v121, %v454
  %v502 = vadd.f32 %v122, %v454
  %v503 = vadd.f32 %v123, %v454
  %v504 = vadd.f32 %v124, %v454
  %v505 = vadd.f32 %v125, %v454
  %v506 = vadd.f32 %v126, %v454
  %v507 = vadd.f32 %v127, %v454
  %v508 = vadd.f32 %v128, %v454
  %v509 = vadd.f32 %v129, %v454
  %v510 = vadd.f32 %v130, %v454
  %v511 = vadd.f32 %v131, %v454
  %v512 = vsel %vm451, 1, 0
  %vm513 = vcmp.eq.s32.totalorder %v512, 1
  %v514 = vsel %vm513, %v391, %v456
  %v515 = vsel %vm513, %v392, %v457
  %v516 = vsel %vm513, %v393, %v458
  %v517 = vsel %vm513, %v394, %v459
  %v518 = vsel %vm513, %v395, %v460
  %v519 = vsel %vm513, %v396, %v461
  %v520 = vsel %vm513, %v397, %v462
  %v521 = vsel %vm513, %v398, %v463
  %v522 = vsel %vm513, %v399, %v464
  %v523 = vsel %vm513, %v400, %v465
  %v524 = vsel %vm513, %v401, %v466
  %v525 = vsel %vm513, %v402, %v467
  %v526 = vsel %vm513, %v403, %v468
  %v527 = vsel %vm513, %v404, %v469
  %v528 = vsel %vm513, %v405, %v470
  %v529 = vsel %vm513, %v406, %v471
  %v530 = vsel %vm513, %v407, %v472
  %v531 = vsel %vm513, %v408, %v473
  %v532 = vsel %vm513, %v409, %v474
  %v533 = vsel %vm513, %v410, %v475
  %v534 = vsel %vm513, %v411, %v476
  %v535 = vsel %vm513, %v412, %v477
  %v536 = vsel %vm513, %v413, %v478
  %v537 = vsel %vm513, %v414, %v479
  %v538 = vsel %vm513, %v415, %v480
  %v539 = vsel %vm513, %v416, %v481
  %v540 = vsel %vm513, %v417, %v482
  %v541 = vsel %vm513, %v418, %v483
  %v542 = vsel %vm513, %v419, %v484
  %v543 = vsel %vm513, %v420, %v485
  %v544 = vsel %vm513, %v421, %v486
  %v545 = vsel %vm513, %v422, %v487
  %v546 = vsel %vm513, %v423, %v488
  %v547 = vsel %vm513, %v424, %v489
  %v548 = vsel %vm513, %v425, %v490
  %v549 = vsel %vm513, %v426, %v491
  %v550 = vsel %vm513, %v427, %v492
  %v551 = vsel %vm513, %v428, %v493
  %v552 = vsel %vm513, %v429, %v494
  %v553 = vsel %vm513, %v430, %v495
  %v554 = vsel %vm513, %v431, %v496
  %v555 = vsel %vm513, %v432, %v497
  %v556 = vsel %vm513, %v433, %v498
  %v557 = vsel %vm513, %v434, %v499
  %v558 = vsel %vm513, %v435, %v500
  %v559 = vsel %vm513, %v436, %v501
  %v560 = vsel %vm513, %v437, %v502
  %v561 = vsel %vm513, %v438, %v503
  %v562 = vsel %vm513, %v439, %v504
  %v563 = vsel %vm513, %v440, %v505
  %v564 = vsel %vm513, %v441, %v506
  %v565 = vsel %vm513, %v442, %v507
  %v566 = vsel %vm513, %v443, %v508
  %v567 = vsel %vm513, %v444, %v509
  %v568 = vsel %vm513, %v445, %v510
  %v569 = vsel %vm513, %v446, %v511
  %v570 = vpack.c.bf16 %v514, %v514
  %v571 = vpack.c.bf16 %v515, %v515
  %v572 = vpack.c.bf16 %v516, %v516
  %v573 = vpack.c.bf16 %v517, %v517
  %v574 = vpack.c.bf16 %v518, %v518
  %v575 = vpack.c.bf16 %v519, %v519
  %v576 = vpack.c.bf16 %v520, %v520
  %v577 = vpack.c.bf16 %v521, %v521
  %v578 = vpack.c.bf16 %v522, %v522
  %v579 = vpack.c.bf16 %v523, %v523
  %v580 = vpack.c.bf16 %v524, %v524
  %v581 = vpack.c.bf16 %v525, %v525
  %v582 = vpack.c.bf16 %v526, %v526
  %v583 = vpack.c.bf16 %v527, %v527
  %v584 = vpack.c.bf16 %v528, %v528
  %v585 = vpack.c.bf16 %v529, %v529
  %v586 = vpack.c.bf16 %v530, %v530
  %v587 = vpack.c.bf16 %v531, %v531
  %v588 = vpack.c.bf16 %v532, %v532
  %v589 = vpack.c.bf16 %v533, %v533
  %v590 = vpack.c.bf16 %v534, %v534
  %v591 = vpack.c.bf16 %v535, %v535
  %v592 = vpack.c.bf16 %v536, %v536
  %v593 = vpack.c.bf16 %v537, %v537
  %v594 = vpack.c.bf16 %v538, %v538
  %v595 = vpack.c.bf16 %v539, %v539
  %v596 = vpack.c.bf16 %v540, %v540
  %v597 = vpack.c.bf16 %v541, %v541
  %v598 = vpack.c.bf16 %v542, %v542
  %v599 = vpack.c.bf16 %v543, %v543
  %v600 = vpack.c.bf16 %v544, %v544
  %v601 = vpack.c.bf16 %v545, %v545
  %v602 = vpack.c.bf16 %v546, %v546
  %v603 = vpack.c.bf16 %v547, %v547
  %v604 = vpack.c.bf16 %v548, %v548
  %v605 = vpack.c.bf16 %v549, %v549
  %v606 = vpack.c.bf16 %v550, %v550
  %v607 = vpack.c.bf16 %v551, %v551
  %v608 = vpack.c.bf16 %v552, %v552
  %v609 = vpack.c.bf16 %v553, %v553
  %v610 = vpack.c.bf16 %v554, %v554
  %v611 = vpack.c.bf16 %v555, %v555
  %v612 = vpack.c.bf16 %v556, %v556
  %v613 = vpack.c.bf16 %v557, %v557
  %v614 = vpack.c.bf16 %v558, %v558
  %v615 = vpack.c.bf16 %v559, %v559
  %v616 = vpack.c.bf16 %v560, %v560
  %v617 = vpack.c.bf16 %v561, %v561
  %v618 = vpack.c.bf16 %v562, %v562
  %v619 = vpack.c.bf16 %v563, %v563
  %v620 = vpack.c.bf16 %v564, %v564
  %v621 = vpack.c.bf16 %v565, %v565
  %v622 = vpack.c.bf16 %v566, %v566
  %v623 = vpack.c.bf16 %v567, %v567
  %v624 = vpack.c.bf16 %v568, %v568
  %v625 = vpack.c.bf16 %v569, %v569
  %626 = vst [vmem:[%s5] sm:$0xf] %v570
  %627 = vst [vmem:[%s5 + $0x4] sm:$0xf] %v571
  %628 = vst [vmem:[%s5 + $0x8] sm:$0xf] %v572
  %629 = vst [vmem:[%s5 + $0xc] sm:$0xf] %v573
  %630 = vst [vmem:[%s5 + $0x10] sm:$0xf] %v574
  %631 = vst [vmem:[%s5 + $0x14] sm:$0xf] %v575
  %632 = vst [vmem:[%s5 + $0x18] sm:$0xf] %v576
  %633 = vst [vmem:[%s5 + $0x1c] sm:$0xf] %v577
  %634 = vst [vmem:[%s5 + $0x20] sm:$0xf] %v578
  %635 = vst [vmem:[%s5 + $0x24] sm:$0xf] %v579
  %636 = vst [vmem:[%s5 + $0x28] sm:$0xf] %v580
  %637 = vst [vmem:[%s5 + $0x2c] sm:$0xf] %v581
  %638 = vst [vmem:[%s5 + $0x30] sm:$0xf] %v582
  %639 = vst [vmem:[%s5 + $0x34] sm:$0xf] %v583
  %640 = vst [vmem:[%s5 + $0x38] sm:$0xf] %v584
  %641 = vst [vmem:[%s5 + $0x3c] sm:$0xf] %v585
  %642 = vst [vmem:[%s5 + $0x40] sm:$0xf] %v586
  %643 = vst [vmem:[%s5 + $0x44] sm:$0xf] %v587
  %644 = vst [vmem:[%s5 + $0x48] sm:$0xf] %v588
  %645 = vst [vmem:[%s5 + $0x4c] sm:$0xf] %v589
  %646 = vst [vmem:[%s5 + $0x50] sm:$0xf] %v590
  %647 = vst [vmem:[%s5 + $0x54] sm:$0xf] %v591
  %648 = vst [vmem:[%s5 + $0x58] sm:$0xf] %v592
  %649 = vst [vmem:[%s5 + $0x5c] sm:$0xf] %v593
  %650 = vst [vmem:[%s5 + $0x60] sm:$0xf] %v594
  %651 = vst [vmem:[%s5 + $0x64] sm:$0xf] %v595
  %652 = vst [vmem:[%s5 + $0x68] sm:$0xf] %v596
  %653 = vst [vmem:[%s5 + $0x6c] sm:$0xf] %v597
  %654 = vst [vmem:[%s5 + $0x70] sm:$0xf] %v598
  %655 = vst [vmem:[%s5 + $0x74] sm:$0xf] %v599
  %656 = vst [vmem:[%s5 + $0x78] sm:$0xf] %v600
  %657 = vst [vmem:[%s5 + $0x7c] sm:$0xf] %v601
  %658 = vst [vmem:[%s5 + $0x80] sm:$0xf] %v602
  %659 = vst [vmem:[%s5 + $0x84] sm:$0xf] %v603
  %660 = vst [vmem:[%s5 + $0x88] sm:$0xf] %v604
  %661 = vst [vmem:[%s5 + $0x8c] sm:$0xf] %v605
  %662 = vst [vmem:[%s5 + $0x90] sm:$0xf] %v606
  %663 = vst [vmem:[%s5 + $0x94] sm:$0xf] %v607
  %664 = vst [vmem:[%s5 + $0x98] sm:$0xf] %v608
  %665 = vst [vmem:[%s5 + $0x9c] sm:$0xf] %v609
  %666 = vst [vmem:[%s5 + $0xa0] sm:$0xf] %v610
  %667 = vst [vmem:[%s5 + $0xa4] sm:$0xf] %v611
  %668 = vst [vmem:[%s5 + $0xa8] sm:$0xf] %v612
  %669 = vst [vmem:[%s5 + $0xac] sm:$0xf] %v613
  %670 = vst [vmem:[%s5 + $0xb0] sm:$0xf] %v614
  %671 = vst [vmem:[%s5 + $0xb4] sm:$0xf] %v615
  %672 = vst [vmem:[%s5 + $0xb8] sm:$0xf] %v616
  %673 = vst [vmem:[%s5 + $0xbc] sm:$0xf] %v617
  %674 = vst [vmem:[%s5 + $0xc0] sm:$0xf] %v618
  %675 = vst [vmem:[%s5 + $0xc4] sm:$0xf] %v619
  %676 = vst [vmem:[%s5 + $0xc8] sm:$0xf] %v620
  %677 = vst [vmem:[%s5 + $0xcc] sm:$0xf] %v621
  %678 = vst [vmem:[%s5 + $0xd0] sm:$0xf] %v622
  %679 = vst [vmem:[%s5 + $0xd4] sm:$0xf] %v623
  %680 = vst [vmem:[%s5 + $0xd8] sm:$0xf] %v624
  %681 = vst [vmem:[%s5 + $0xdc] sm:$0xf] %v625
  // Predicated region
  $region22: #{graph_triple_conv2d_net.19} parent=0 // pred_check
    _
  $region23: #{graph_triple_conv2d_net.19} parent=0 // pred_check_branch
    %683 = sbr.rel (0) target = $region25
  $region24: #{graph_triple_conv2d_net.19} parent=0 // pred_region
    _
  $region25: #{graph_triple_conv2d_net.19} parent=0 // pred_fallthru
    _
  // Predicated region
  $region26: #{graph_triple_conv2d_net.19} parent=0 // pred_check
    _
  $region27: #{graph_triple_conv2d_net.19} parent=0 // pred_check_branch
    %685 = sbr.rel (0) target = $region29
  $region28: #{graph_triple_conv2d_net.19} parent=0 // pred_region
    _
  $region29: #{graph_triple_conv2d_net.19} parent=0 // pred_fallthru
    _

// kernel: graph_triple_conv2d_net.20
$region0: #{graph_triple_conv2d_net.20}
  #allocation0 [shape = 'u32[]', space=smem, size = 0x4, offset = 0x4, fixed_abs, tag = 'smem constant byte address 0x4 - core index']
  #allocation1 [shape = 'u32[72,128]{1,0:T(1,128)}', space=vmem, size = 0x9000, scoped, tag = 'internal scratch']
  %s0 = inlined_call_operand.vmem [shape: bf16[5,7], index: 0, kind: input, shape index: {}]
  %s1 = inlined_call_operand.vmem [shape: bf16[5,7], index: 1, kind: input, shape index: {}]
  %s2 = inlined_call_operand.vmem [shape: bf16[7,1024], index: 2, kind: input, shape index: {}]
  %s3 = inlined_call_operand.vmem [shape: bf16[7,1024], index: 3, kind: input, shape index: {}]
  %s4 = inlined_call_operand.vmem [shape: bf16[5,1024], index: 4, kind: output, shape index: {}]
  %s5 = sld [smem:[#allocation0]]
  $region26: #{graph_triple_conv2d_net.20} parent=0
    _
  %s7 = ssub.s32 1, %s5
  %s8 = scalar_select 0, %s7, %s5
  // Predicated region
  $region2: #{graph_triple_conv2d_net.20} parent=0 // pred_check
    _
  $region3: #{graph_triple_conv2d_net.20} parent=0 // pred_check_branch
    %10 = sbr.rel (0) target = $region5
  $region4: #{graph_triple_conv2d_net.20} parent=0 // pred_region
    _
  $region5: #{graph_triple_conv2d_net.20} parent=0 // pred_fallthru
    _
  // Predicated region
  $region6: #{graph_triple_conv2d_net.20} parent=0 // pred_check
    _
  $region7: #{graph_triple_conv2d_net.20} parent=0 // pred_check_branch
    %12 = sbr.rel (0) target = $region9
  $region8: #{graph_triple_conv2d_net.20} parent=0 // pred_region
    _
  $region9: #{graph_triple_conv2d_net.20} parent=0 // pred_fallthru
    _
  // Predicated region
  $region10: #{graph_triple_conv2d_net.20} parent=0 // pred_check
    _
  $region11: #{graph_triple_conv2d_net.20} parent=0 // pred_check_branch
    %14 = sbr.rel (0) target = $region13
  $region12: #{graph_triple_conv2d_net.20} parent=0 // pred_region
    _
  $region13: #{graph_triple_conv2d_net.20} parent=0 // pred_fallthru
    _
  // Predicated region
  $region14: #{graph_triple_conv2d_net.20} parent=0 // pred_check
    _
  $region15: #{graph_triple_conv2d_net.20} parent=0 // pred_check_branch
    %16 = sbr.rel (0) target = $region17
  $region16: #{graph_triple_conv2d_net.20} parent=0 // pred_region
    _
  $region17: #{graph_triple_conv2d_net.20} parent=0 // pred_fallthru
    _
  %v18 = vld [vmem:[%s0] sm:$0x7]
  %v19 = vld [vmem:[%s1] sm:$0x7]
  %v20 = vld [vmem:[%s2] sm:$0xff]
  %v21 = vld [vmem:[%s2 + $0x8] sm:$0xff]
  %v22 = vld [vmem:[%s2 + $0x10] sm:$0xff]
  %v23 = vld [vmem:[%s2 + $0x18] sm:$0xff]
  %v24 = vld [vmem:[%s3] sm:$0xff]
  %v25 = vld [vmem:[%s3 + $0x8] sm:$0xff]
  %v26 = vld [vmem:[%s3 + $0x10] sm:$0xff]
  %v27 = vld [vmem:[%s3 + $0x18] sm:$0xff]
  %v32 = vunpack.c.l.b16 %v24
  %v33 = vunpack.c.h.b16 %v24
  %v34 = vunpack.c.l.b16 %v25
  %v35 = vunpack.c.h.b16 %v25
  %v36 = vunpack.c.l.b16 %v26
  %v37 = vunpack.c.h.b16 %v26
  %v38 = vunpack.c.l.b16 %v27
  %v39 = vunpack.c.h.b16 %v27
  %v40 = vpack.c.b16 %v32, %v32
  %v41 = vpack.c.b16 %v33, %v33
  %v42 = vpack.c.b16 %v34, %v34
  %v43 = vpack.c.b16 %v35, %v35
  %v44 = vpack.c.b16 %v36, %v36
  %v45 = vpack.c.b16 %v37, %v37
  %v46 = vpack.c.b16 %v38, %v38
  %v47 = vpack.c.b16 %v39, %v39
  %vm48 = vcmask 56320
  %v50 = vsel %vm48, %v19, 0
  %vm52 = vcmask 1042432
  %vm53 = vcmask 1043456
  %v54 = vsel %vm52, 4294967295, 65535
  %v55 = vsel %vm53, %v54, 0
  %v57 = vand.u32 %v40, %v55
  %v60 = vand.u32 %v41, %v55
  %v63 = vand.u32 %v42, %v55
  %v66 = vand.u32 %v43, %v55
  %v69 = vand.u32 %v44, %v55
  %v72 = vand.u32 %v45, %v55
  %v75 = vand.u32 %v46, %v55
  %v78 = vand.u32 %v47, %v55
  %80 = vmatpush.bf16.msra.mxu0 0
  %81 = vmatpush.bf16.msra.mxu0 0
  %82 = vmatpush.bf16.msra.mxu0 0
  %83 = vmatpush.bf16.msra.mxu0 0
  %84 = vmatpush.bf16.msra.mxu0 0
  %85 = vmatpush.bf16.msra.mxu0 0
  %86 = vmatpush.bf16.msra.mxu0 0
  %87 = vmatpush.bf16.msra.mxu0 %v57
  %88 = vmatmul.bf16.gmra.mxu0 %v50
  %v89 = vpop.f32.mrf.mxu0
  %v90 = vadd.f32 0.0, %v89
  %v91 = vpop.f32.mrf.mxu0
  %92 = vdwg.mxu0
  %93 = vmatpush.bf16.msra.mxu0 0
  %94 = vmatpush.bf16.msra.mxu0 0
  %95 = vmatpush.bf16.msra.mxu0 0
  %96 = vmatpush.bf16.msra.mxu0 0
  %97 = vmatpush.bf16.msra.mxu0 0
  %98 = vmatpush.bf16.msra.mxu0 0
  %99 = vmatpush.bf16.msra.mxu0 0
  %100 = vmatpush.bf16.msra.mxu0 %v60
  %101 = vmatmul.bf16.gmra.mxu0 %v50
  %v102 = vpop.f32.mrf.mxu0
  %v103 = vadd.f32 0.0, %v102
  %v104 = vpop.f32.mrf.mxu0
  %105 = vdwg.mxu0
  %106 = vmatpush.bf16.msra.mxu0 0
  %107 = vmatpush.bf16.msra.mxu0 0
  %108 = vmatpush.bf16.msra.mxu0 0
  %109 = vmatpush.bf16.msra.mxu0 0
  %110 = vmatpush.bf16.msra.mxu0 0
  %111 = vmatpush.bf16.msra.mxu0 0
  %112 = vmatpush.bf16.msra.mxu0 0
  %113 = vmatpush.bf16.msra.mxu0 %v63
  %114 = vmatmul.bf16.gmra.mxu0 %v50
  %v115 = vpop.f32.mrf.mxu0
  %v116 = vadd.f32 0.0, %v115
  %v117 = vpop.f32.mrf.mxu0
  %118 = vdwg.mxu0
  %119 = vmatpush.bf16.msra.mxu0 0
  %120 = vmatpush.bf16.msra.mxu0 0
  %121 = vmatpush.bf16.msra.mxu0 0
  %122 = vmatpush.bf16.msra.mxu0 0
  %123 = vmatpush.bf16.msra.mxu0 0
  %124 = vmatpush.bf16.msra.mxu0 0
  %125 = vmatpush.bf16.msra.mxu0 0
  %126 = vmatpush.bf16.msra.mxu0 %v66
  %127 = vmatmul.bf16.gmra.mxu0 %v50
  %v128 = vpop.f32.mrf.mxu0
  %v129 = vadd.f32 0.0, %v128
  %v130 = vpop.f32.mrf.mxu0
  %131 = vdwg.mxu0
  %132 = vmatpush.bf16.msra.mxu0 0
  %133 = vmatpush.bf16.msra.mxu0 0
  %134 = vmatpush.bf16.msra.mxu0 0
  %135 = vmatpush.bf16.msra.mxu0 0
  %136 = vmatpush.bf16.msra.mxu0 0
  %137 = vmatpush.bf16.msra.mxu0 0
  %138 = vmatpush.bf16.msra.mxu0 0
  %139 = vmatpush.bf16.msra.mxu0 %v69
  %140 = vmatmul.bf16.gmra.mxu0 %v50
  %v141 = vpop.f32.mrf.mxu0
  %v142 = vadd.f32 0.0, %v141
  %v143 = vpop.f32.mrf.mxu0
  %144 = vdwg.mxu0
  %145 = vmatpush.bf16.msra.mxu0 0
  %146 = vmatpush.bf16.msra.mxu0 0
  %147 = vmatpush.bf16.msra.mxu0 0
  %148 = vmatpush.bf16.msra.mxu0 0
  %149 = vmatpush.bf16.msra.mxu0 0
  %150 = vmatpush.bf16.msra.mxu0 0
  %151 = vmatpush.bf16.msra.mxu0 0
  %152 = vmatpush.bf16.msra.mxu0 %v72
  %153 = vmatmul.bf16.gmra.mxu0 %v50
  %v154 = vpop.f32.mrf.mxu0
  %v155 = vadd.f32 0.0, %v154
  %v156 = vpop.f32.mrf.mxu0
  %157 = vdwg.mxu0
  %158 = vmatpush.bf16.msra.mxu0 0
  %159 = vmatpush.bf16.msra.mxu0 0
  %160 = vmatpush.bf16.msra.mxu0 0
  %161 = vmatpush.bf16.msra.mxu0 0
  %162 = vmatpush.bf16.msra.mxu0 0
  %163 = vmatpush.bf16.msra.mxu0 0
  %164 = vmatpush.bf16.msra.mxu0 0
  %165 = vmatpush.bf16.msra.mxu0 %v75
  %166 = vmatmul.bf16.gmra.mxu0 %v50
  %v167 = vpop.f32.mrf.mxu0
  %v168 = vadd.f32 0.0, %v167
  %v169 = vpop.f32.mrf.mxu0
  %170 = vdwg.mxu0
  %171 = vmatpush.bf16.msra.mxu0 0
  %172 = vmatpush.bf16.msra.mxu0 0
  %173 = vmatpush.bf16.msra.mxu0 0
  %174 = vmatpush.bf16.msra.mxu0 0
  %175 = vmatpush.bf16.msra.mxu0 0
  %176 = vmatpush.bf16.msra.mxu0 0
  %177 = vmatpush.bf16.msra.mxu0 0
  %178 = vmatpush.bf16.msra.mxu0 %v78
  %179 = vmatmul.bf16.gmra.mxu0 %v50
  %v180 = vpop.f32.mrf.mxu0
  %v181 = vadd.f32 0.0, %v180
  %v182 = vpop.f32.mrf.mxu0
  %183 = vdwg.mxu0
  %v188 = vunpack.c.l.b16 %v20
  %v189 = vunpack.c.h.b16 %v20
  %v190 = vunpack.c.l.b16 %v21
  %v191 = vunpack.c.h.b16 %v21
  %v192 = vunpack.c.l.b16 %v22
  %v193 = vunpack.c.h.b16 %v22
  %v194 = vunpack.c.l.b16 %v23
  %v195 = vunpack.c.h.b16 %v23
  %v196 = vpack.c.b16 %v188, %v188
  %v197 = vpack.c.b16 %v189, %v189
  %v198 = vpack.c.b16 %v190, %v190
  %v199 = vpack.c.b16 %v191, %v191
  %v200 = vpack.c.b16 %v192, %v192
  %v201 = vpack.c.b16 %v193, %v193
  %v202 = vpack.c.b16 %v194, %v194
  %v203 = vpack.c.b16 %v195, %v195
  %v205 = vsel %vm48, %v18, 0
  %v208 = vand.u32 %v196, %v55
  %v211 = vand.u32 %v197, %v55
  %v214 = vand.u32 %v198, %v55
  %v217 = vand.u32 %v199, %v55
  %v220 = vand.u32 %v200, %v55
  %v223 = vand.u32 %v201, %v55
  %v226 = vand.u32 %v202, %v55
  %v229 = vand.u32 %v203, %v55
  %231 = vmatpush.bf16.msra.mxu0 0
  %232 = vmatpush.bf16.msra.mxu0 0
  %233 = vmatpush.bf16.msra.mxu0 0
  %234 = vmatpush.bf16.msra.mxu0 0
  %235 = vmatpush.bf16.msra.mxu0 0
  %236 = vmatpush.bf16.msra.mxu0 0
  %237 = vmatpush.bf16.msra.mxu0 0
  %238 = vmatpush.bf16.msra.mxu0 %v208
  %239 = vmatmul.bf16.gmra.mxu0 %v205
  %v240 = vpop.f32.mrf.mxu0
  %v241 = vadd.f32 %v90, %v240
  %v242 = vpop.f32.mrf.mxu0
  %243 = vdwg.mxu0
  %244 = vmatpush.bf16.msra.mxu0 0
  %245 = vmatpush.bf16.msra.mxu0 0
  %246 = vmatpush.bf16.msra.mxu0 0
  %247 = vmatpush.bf16.msra.mxu0 0
  %248 = vmatpush.bf16.msra.mxu0 0
  %249 = vmatpush.bf16.msra.mxu0 0
  %250 = vmatpush.bf16.msra.mxu0 0
  %251 = vmatpush.bf16.msra.mxu0 %v211
  %252 = vmatmul.bf16.gmra.mxu0 %v205
  %v253 = vpop.f32.mrf.mxu0
  %v254 = vadd.f32 %v103, %v253
  %v255 = vpop.f32.mrf.mxu0
  %256 = vdwg.mxu0
  %257 = vmatpush.bf16.msra.mxu0 0
  %258 = vmatpush.bf16.msra.mxu0 0
  %259 = vmatpush.bf16.msra.mxu0 0
  %260 = vmatpush.bf16.msra.mxu0 0
  %261 = vmatpush.bf16.msra.mxu0 0
  %262 = vmatpush.bf16.msra.mxu0 0
  %263 = vmatpush.bf16.msra.mxu0 0
  %264 = vmatpush.bf16.msra.mxu0 %v214
  %265 = vmatmul.bf16.gmra.mxu0 %v205
  %v266 = vpop.f32.mrf.mxu0
  %v267 = vadd.f32 %v116, %v266
  %v268 = vpop.f32.mrf.mxu0
  %269 = vdwg.mxu0
  %270 = vmatpush.bf16.msra.mxu0 0
  %271 = vmatpush.bf16.msra.mxu0 0
  %272 = vmatpush.bf16.msra.mxu0 0
  %273 = vmatpush.bf16.msra.mxu0 0
  %274 = vmatpush.bf16.msra.mxu0 0
  %275 = vmatpush.bf16.msra.mxu0 0
  %276 = vmatpush.bf16.msra.mxu0 0
  %277 = vmatpush.bf16.msra.mxu0 %v217
  %278 = vmatmul.bf16.gmra.mxu0 %v205
  %v279 = vpop.f32.mrf.mxu0
  %v280 = vadd.f32 %v129, %v279
  %v281 = vpop.f32.mrf.mxu0
  %282 = vdwg.mxu0
  %283 = vmatpush.bf16.msra.mxu0 0
  %284 = vmatpush.bf16.msra.mxu0 0
  %285 = vmatpush.bf16.msra.mxu0 0
  %286 = vmatpush.bf16.msra.mxu0 0
  %287 = vmatpush.bf16.msra.mxu0 0
  %288 = vmatpush.bf16.msra.mxu0 0
  %289 = vmatpush.bf16.msra.mxu0 0
  %290 = vmatpush.bf16.msra.mxu0 %v220
  %291 = vmatmul.bf16.gmra.mxu0 %v205
  %v292 = vpop.f32.mrf.mxu0
  %v293 = vadd.f32 %v142, %v292
  %v294 = vpop.f32.mrf.mxu0
  %295 = vdwg.mxu0
  %296 = vmatpush.bf16.msra.mxu0 0
  %297 = vmatpush.bf16.msra.mxu0 0
  %298 = vmatpush.bf16.msra.mxu0 0
  %299 = vmatpush.bf16.msra.mxu0 0
  %300 = vmatpush.bf16.msra.mxu0 0
  %301 = vmatpush.bf16.msra.mxu0 0
  %302 = vmatpush.bf16.msra.mxu0 0
  %303 = vmatpush.bf16.msra.mxu0 %v223
  %304 = vmatmul.bf16.gmra.mxu0 %v205
  %v305 = vpop.f32.mrf.mxu0
  %v306 = vadd.f32 %v155, %v305
  %v307 = vpop.f32.mrf.mxu0
  %308 = vdwg.mxu0
  %309 = vmatpush.bf16.msra.mxu0 0
  %310 = vmatpush.bf16.msra.mxu0 0
  %311 = vmatpush.bf16.msra.mxu0 0
  %312 = vmatpush.bf16.msra.mxu0 0
  %313 = vmatpush.bf16.msra.mxu0 0
  %314 = vmatpush.bf16.msra.mxu0 0
  %315 = vmatpush.bf16.msra.mxu0 0
  %316 = vmatpush.bf16.msra.mxu0 %v226
  %317 = vmatmul.bf16.gmra.mxu0 %v205
  %v318 = vpop.f32.mrf.mxu0
  %v319 = vadd.f32 %v168, %v318
  %v320 = vpop.f32.mrf.mxu0
  %321 = vdwg.mxu0
  %322 = vmatpush.bf16.msra.mxu0 0
  %323 = vmatpush.bf16.msra.mxu0 0
  %324 = vmatpush.bf16.msra.mxu0 0
  %325 = vmatpush.bf16.msra.mxu0 0
  %326 = vmatpush.bf16.msra.mxu0 0
  %327 = vmatpush.bf16.msra.mxu0 0
  %328 = vmatpush.bf16.msra.mxu0 0
  %329 = vmatpush.bf16.msra.mxu0 %v229
  %330 = vmatmul.bf16.gmra.mxu0 %v205
  %v331 = vpop.f32.mrf.mxu0
  %v332 = vadd.f32 %v181, %v331
  %v333 = vpop.f32.mrf.mxu0
  %334 = vdwg.mxu0
  %v335 = vunpack.c.l.bf16 %v18
  %vm336 = vcmask 53248
  %v337 = vsel %vm336, %v335, 0.0
  %338 = vadd.xlane.f32.xlu0 %v337
  %v339 = vpop.xlane.xlu0 %338
  %v340 = vunpack.c.l.bf16 %v19
  %v341 = vsel %vm336, %v340, 0.0
  %342 = vadd.xlane.f32.xlu0 %v341
  %v343 = vpop.xlane.xlu0 %342
  %v344 = vadd.f32 %v339, %v343
  %v345 = vmax.f32 %v344, 1.0
  %v346 = vrcp.pop %v345
  %v347 = vmul.f32 %v345, %v346
  %v348 = vsub.f32 1.0, %v347
  %v349 = vmul.f32 %v346, %v348
  %v350 = vadd.f32 %v346, %v349
  %vm351 = vweird.f32 %v345
  %vm352 = vweird.f32 %v346
  %vm353 = vmor %vm351, %vm352
  %v354 = vsel %vm353, %v346, %v350
  %v355 = vand.u32 2147483647, %v345
  %vm356 = vcmp.eq.f32.partialorder %v355, 8.507059e+37
  %v357 = vand.u32 %v345, 2147483648
  %v358 = vor.u32 1.1754944e-38, %v357
  %v359 = vsel %vm356, %v358, %v354
  %v360 = vmul.f32 %v241, %v359
  %v361 = vmul.f32 %v254, %v359
  %v362 = vmul.f32 %v267, %v359
  %v363 = vmul.f32 %v280, %v359
  %v364 = vmul.f32 %v293, %v359
  %v365 = vmul.f32 %v306, %v359
  %v366 = vmul.f32 %v319, %v359
  %v367 = vmul.f32 %v332, %v359
  %v368 = vpack.c.bf16 %v361, %v360
  %v369 = vpack.c.bf16 %v363, %v362
  %v370 = vpack.c.bf16 %v365, %v364
  %v371 = vpack.c.bf16 %v367, %v366
  %vm372 = vcmask 1042432
  %vm373 = vsmask.f32 2304
  %vm374 = vmand %vm372, %vm373
  %vm375 = vcmask 1046532
  %vm376 = vsmask.f32 6400
  %vm377 = vmand %vm375, %vm376
  %vm378 = vmor %vm377, %vm374
  %v379 = vld [vmem:[%s4] sm:$0x77]
  %v380 = vsel %vm378, %v368, %v379
  %381 = vst [vmem:[%s4] sm:$0x77] %v380
  %v382 = vld [vmem:[%s4 + $0x8] sm:$0x77]
  %v383 = vsel %vm378, %v369, %v382
  %384 = vst [vmem:[%s4 + $0x8] sm:$0x77] %v383
  %v385 = vld [vmem:[%s4 + $0x10] sm:$0x77]
  %v386 = vsel %vm378, %v370, %v385
  %387 = vst [vmem:[%s4 + $0x10] sm:$0x77] %v386
  %v388 = vld [vmem:[%s4 + $0x18] sm:$0x77]
  %v389 = vsel %vm378, %v371, %v388
  %390 = vst [vmem:[%s4 + $0x18] sm:$0x77] %v389
  // Predicated region
  $region18: #{graph_triple_conv2d_net.20} parent=0 // pred_check
    _
  $region19: #{graph_triple_conv2d_net.20} parent=0 // pred_check_branch
    %392 = sbr.rel (0) target = $region21
  $region20: #{graph_triple_conv2d_net.20} parent=0 // pred_region
    _
  $region21: #{graph_triple_conv2d_net.20} parent=0 // pred_fallthru
    _
  // Predicated region
  $region22: #{graph_triple_conv2d_net.20} parent=0 // pred_check
    _
  $region23: #{graph_triple_conv2d_net.20} parent=0 // pred_check_branch
    %394 = sbr.rel (0) target = $region25
  $region24: #{graph_triple_conv2d_net.20} parent=0 // pred_region
    _
  $region25: #{graph_triple_conv2d_net.20} parent=0 // pred_fallthru
    _

// kernel: graph_triple_conv2d_net.21
$region0: #{graph_triple_conv2d_net.21}
  #allocation0 [shape = 'u32[]', space=smem, size = 0x4, offset = 0x4, fixed_abs, tag = 'smem constant byte address 0x4 - core index']
  #allocation1 [shape = 'u32[72,128]{1,0:T(1,128)}', space=vmem, size = 0x9000, scoped, tag = 'internal scratch']
  %s0 = inlined_call_operand.vmem [shape: bf16[2,320,256], index: 0, kind: input, shape index: {}]
  %s1 = inlined_call_operand.vmem [shape: bf16[2,256,128], index: 1, kind: input, shape index: {}]
  %s2 = inlined_call_operand.vmem [shape: bf16[2,320,128], index: 2, kind: output, shape index: {0}]
  %s3 = inlined_call_operand.vmem [shape: f32[2,2,128], index: 3, kind: output, shape index: {1}]
  %4 = xla_tuple %s2, %s3
  %s5 = sld [smem:[#allocation0]]
  $region53: #{graph_triple_conv2d_net.21} parent=0
    _
  %s7 = ssub.s32 1, %s5
  %s8 = scalar_select 0, %s7, %s5
  loop: start=0, step=1, limit=4
  $region2: #{graph_triple_conv2d_net.21} parent=0 // loop_pre_header
    _
  $region3: #{graph_triple_conv2d_net.21} parent=0 // loop_header
    %s10 = sphi 0, %s14
    %p11 = scmp.ge.s32.totalorder %s10, 4
    %s17 = sphi 0, %s29
    %s18 = sphi 0, %s25
    %s19 = sphi 0, %s17
    %s20 = sphi 0, %s18
    %s21 = sphi 0, %s19
    %s22 = sphi 0, %s20
    %s34 = sphi 0, %s36
    %s37 = sphi 0, %s34
    %s38 = sphi 0, %s37
    %s54 = sphi 0, %s38
    %s60 = sphi 0, %s62
    %s63 = sphi 0, %s60
    %s64 = sphi 0, %s63
    %s80 = sphi 0, %s64
    %s88 = sphi 0, %s90
    %s91 = sphi 0, %s88
    %s92 = sphi 0, %s91
    %s108 = sphi 0, %s92
    %s114 = sphi 0, %s116
    %s117 = sphi 0, %s114
    %s118 = sphi 0, %s117
    %s134 = sphi 0, %s118
  $region4: #{graph_triple_conv2d_net.21} parent=0 // loop_header_branch
    %13 = sbr.rel (%p11) target = $region8
  $region5: #{graph_triple_conv2d_net.21} parent=0 // loop_body
    %s15 = ssub.s32 %s10, 1
    %s16 = ssub.s32 %s10, 2
    %s23 = sadd.s32 1, %s18
    %p24 = scmp.ge.s32.totalorder %s23, 1
    %s25 = scalar_select %p24, 0, %s23
    %s26 = sadd.s32 1, %s17
    %s27 = scalar_select %p24, %s26, %s17
    %p28 = scmp.ge.s32.totalorder %s27, 2
    %s29 = scalar_select %p28, 0, %s27
    %s30 = ssub.s32 %s17, %s29
    %s31 = ssub.s32 %s18, %s25
    %s32 = sor.u32 %s30, %s31
    %p33 = scmp.eq.s32.totalorder %s32, 0
    %s35 = sadd.s32 %s34, 1
    %s36 = scalar_select %p33, %s34, %s35
    %p39 = pneg %p33
    %p40 = scmp.eq.s32.totalorder %s10, 1
    %p41 = por %p39, %p40
    %p42 = scmp.ne.s32.totalorder %s34, %s37
    %p43 = scmp.eq.s32.totalorder %s10, 0
    %p44 = por %p42, %p43
    %p45 = scmp.ne.s32.totalorder %s34, %s37
    %p46 = scmp.eq.s32.totalorder %s15, 1
    %p47 = por %p45, %p46
    %p48 = scmp.ne.s32.totalorder %s37, %s38
    %p49 = scmp.eq.s32.totalorder %s15, 0
    %p50 = por %p48, %p49
    %p51 = scmp.ne.s32.totalorder %s37, %s38
    %p52 = scmp.eq.s32.totalorder %s16, 1
    %p53 = por %p51, %p52
    %p55 = scmp.ne.s32.totalorder %s38, %s54
    %p56 = scmp.eq.s32.totalorder %s16, 0
    %p57 = por %p55, %p56
    %s58 = ssub.s32 %s17, %s29
    %p59 = scmp.eq.s32.totalorder %s58, 0
    %s61 = sadd.s32 %s60, 1
    %s62 = scalar_select %p59, %s60, %s61
    %p65 = pneg %p59
    %p66 = scmp.eq.s32.totalorder %s10, 1
    %p67 = por %p65, %p66
    %p68 = scmp.ne.s32.totalorder %s60, %s63
    %p69 = scmp.eq.s32.totalorder %s10, 0
    %p70 = por %p68, %p69
    %p71 = scmp.ne.s32.totalorder %s60, %s63
    %p72 = scmp.eq.s32.totalorder %s15, 1
    %p73 = por %p71, %p72
    %p74 = scmp.ne.s32.totalorder %s63, %s64
    %p75 = scmp.eq.s32.totalorder %s15, 0
    %p76 = por %p74, %p75
    %p77 = scmp.ne.s32.totalorder %s63, %s64
    %p78 = scmp.eq.s32.totalorder %s16, 1
    %p79 = por %p77, %p78
    %p81 = scmp.ne.s32.totalorder %s64, %s80
    %p82 = scmp.eq.s32.totalorder %s16, 0
    %p83 = por %p81, %p82
    %s84 = ssub.s32 %s17, %s29
    %s85 = ssub.s32 %s18, %s25
    %s86 = sor.u32 %s84, %s85
    %p87 = scmp.eq.s32.totalorder %s86, 0
    %s89 = sadd.s32 %s88, 1
    %s90 = scalar_select %p87, %s88, %s89
    %p93 = pneg %p87
    %p94 = scmp.eq.s32.totalorder %s10, 1
    %p95 = por %p93, %p94
    %p96 = scmp.ne.s32.totalorder %s88, %s91
    %p97 = scmp.eq.s32.totalorder %s10, 0
    %p98 = por %p96, %p97
    %p99 = scmp.ne.s32.totalorder %s88, %s91
    %p100 = scmp.eq.s32.totalorder %s15, 1
    %p101 = por %p99, %p100
    %p102 = scmp.ne.s32.totalorder %s91, %s92
    %p103 = scmp.eq.s32.totalorder %s15, 0
    %p104 = por %p102, %p103
    %p105 = scmp.ne.s32.totalorder %s91, %s92
    %p106 = scmp.eq.s32.totalorder %s16, 1
    %p107 = por %p105, %p106
    %p109 = scmp.ne.s32.totalorder %s92, %s108
    %p110 = scmp.eq.s32.totalorder %s16, 0
    %p111 = por %p109, %p110
    %s112 = ssub.s32 %s17, %s29
    %p113 = scmp.eq.s32.totalorder %s112, 0
    %s115 = sadd.s32 %s114, 1
    %s116 = scalar_select %p113, %s114, %s115
    %p119 = pneg %p113
    %p120 = scmp.eq.s32.totalorder %s10, 1
    %p121 = por %p119, %p120
    %p122 = scmp.ne.s32.totalorder %s114, %s117
    %p123 = scmp.eq.s32.totalorder %s10, 0
    %p124 = por %p122, %p123
    %p125 = scmp.ne.s32.totalorder %s114, %s117
    %p126 = scmp.eq.s32.totalorder %s15, 1
    %p127 = por %p125, %p126
    %p128 = scmp.ne.s32.totalorder %s117, %s118
    %p129 = scmp.eq.s32.totalorder %s15, 0
    %p130 = por %p128, %p129
    %p131 = scmp.ne.s32.totalorder %s117, %s118
    %p132 = scmp.eq.s32.totalorder %s16, 1
    %p133 = por %p131, %p132
    %p135 = scmp.ne.s32.totalorder %s118, %s134
    %p136 = scmp.eq.s32.totalorder %s16, 0
    %p137 = por %p135, %p136
    %p138 = scmp.le.s32.totalorder 1, %s10
    %p139 = scmp.lt.s32.totalorder %s10, 3
    %p140 = pnand %p138, %p139
    %p141 = pneg %p140
    // Predicated region
    $region9: #{graph_triple_conv2d_net.21} parent=5 // pred_check
      _
    $region10: #{graph_triple_conv2d_net.21} parent=5 // pred_check_branch
      %143 = sbr.rel (%p140) target = $region12
    $region11: #{graph_triple_conv2d_net.21} parent=5 // pred_region
      %s144 = ssub.s32 %s10, 1
    $region12: #{graph_triple_conv2d_net.21} parent=5 // pred_fallthru
      _
    %p145 = scmp.lt.s32.totalorder %s10, 2
    // Predicated region
    $region13: #{graph_triple_conv2d_net.21} parent=5 // pred_check
      %p146 = pneg %p145
    $region14: #{graph_triple_conv2d_net.21} parent=5 // pred_check_branch
      %148 = sbr.rel (%p146) target = $region16
    $region15: #{graph_triple_conv2d_net.21} parent=5 // pred_region
      // Predicated region
      $region17: #{graph_triple_conv2d_net.21} parent=15 // pred_check
        %p149 = pneg %p44
      $region18: #{graph_triple_conv2d_net.21} parent=15 // pred_check_branch
        %151 = sbr.rel (%p149) target = $region20
      $region19: #{graph_triple_conv2d_net.21} parent=15 // pred_region
        %s152 = smul.u32 40, %s18
        %p153 = scmp.lt.s32.totalorder %s17, 1
        %s154 = scalar_select %p153, %s17, 1
        %p155 = scmp.lt.s32.totalorder %s152, 39
        %s156 = scalar_select %p155, %s152, 39
        %s157 = smul.addr %s156, 2
        %s158 = smul.addr %s154, 80
        %s159 = sadd.s32 %s157, %s158
        %s160 = smul.addr %s159, 4
        %s161 = scalar_lea.vmem %s0, %s160
        %s162 = smul.u32 40, %s18
      $region20: #{graph_triple_conv2d_net.21} parent=15 // pred_fallthru
        _
      // Predicated region
      $region21: #{graph_triple_conv2d_net.21} parent=15 // pred_check
        %p163 = pneg %p70
      $region22: #{graph_triple_conv2d_net.21} parent=15 // pred_check_branch
        %165 = sbr.rel (%p163) target = $region24
      $region23: #{graph_triple_conv2d_net.21} parent=15 // pred_region
        %p166 = scmp.lt.s32.totalorder %s17, 1
        %s167 = scalar_select %p166, %s17, 1
        %s168 = smul.addr %s167, 32
        %s169 = smul.addr %s168, 4
        %s170 = scalar_lea.vmem %s1, %s169
      $region24: #{graph_triple_conv2d_net.21} parent=15 // pred_fallthru
        _
    $region16: #{graph_triple_conv2d_net.21} parent=5 // pred_fallthru
      _
    %p171 = scmp.le.s32.totalorder 1, %s10
    %p172 = scmp.lt.s32.totalorder %s10, 3
    %p173 = pnand %p171, %p172
    %p174 = pneg %p173
    // Predicated region
    $region25: #{graph_triple_conv2d_net.21} parent=5 // pred_check
      _
    $region26: #{graph_triple_conv2d_net.21} parent=5 // pred_check_branch
      %176 = sbr.rel (%p173) target = $region28
    $region27: #{graph_triple_conv2d_net.21} parent=5 // pred_region
      %s177 = ssub.s32 %s10, 1
      %s178 = smul.u32 40, %s20
      %p179 = scmp.lt.s32.totalorder %s19, 1
      %s180 = scalar_select %p179, %s19, 1
      %p181 = scmp.lt.s32.totalorder %s178, 39
      %s182 = scalar_select %p181, %s178, 39
      %s183 = smul.addr %s182, 2
      %s184 = smul.addr %s180, 80
      %s185 = sadd.s32 %s183, %s184
      %s186 = smul.addr %s185, 4
      %s187 = scalar_lea.vmem %s0, %s186
      %p188 = pneg %p50
      %p189 = pneg %p47
      %p190 = scmp.lt.s32.totalorder %s19, 1
      %s191 = scalar_select %p190, %s19, 1
      %s192 = smul.addr %s191, 32
      %s193 = smul.addr %s192, 4
      %s194 = scalar_lea.vmem %s1, %s193
      %p195 = pneg %p76
      %p196 = pneg %p73
      %p197 = pneg %p104
      %p198 = pneg %p101
      %s199 = smul.u32 40, %s20
      %p200 = scmp.lt.s32.totalorder %s19, 1
      %s201 = scalar_select %p200, %s19, 1
      %p202 = scmp.lt.s32.totalorder %s199, 39
      %s203 = scalar_select %p202, %s199, 39
      %s204 = smul.addr %s201, 40
      %s205 = sadd.s32 %s203, %s204
      %s206 = smul.addr %s205, 4
      %s207 = scalar_lea.vmem %s2, %s206
      %p208 = pneg %p130
      %p209 = pneg %p127
      %p210 = scmp.lt.s32.totalorder %s19, 1
      %s211 = scalar_select %p210, %s19, 1
      %s212 = smul.addr %s211, 2
      %s213 = scalar_lea.vmem %s3, %s212
      %s214 = smul.u32 40, %s20
      %p215 = scmp.lt.s32.totalorder %s19, 1
      %s216 = scalar_select %p215, %s19, 1
      %p217 = scmp.lt.s32.totalorder %s214, 39
      %s218 = scalar_select %p217, %s214, 39
      %s219 = smul.addr %s218, 2
      %s220 = smul.addr %s216, 80
      %s221 = sadd.s32 %s219, %s220
      %s222 = smul.addr %s221, 4
      %s223 = scalar_lea.vmem %s0, %s222
      %s224 = smul.u32 40, %s20
      %p225 = scmp.lt.s32.totalorder %s19, 1
      %s226 = scalar_select %p225, %s19, 1
      %s227 = smul.addr %s226, 32
      %s228 = smul.addr %s227, 4
      %s229 = scalar_lea.vmem %s1, %s228
      %s230 = smul.u32 40, %s20
      %p231 = scmp.lt.s32.totalorder %s19, 1
      %s232 = scalar_select %p231, %s19, 1
      %p233 = scmp.lt.s32.totalorder %s230, 39
      %s234 = scalar_select %p233, %s230, 39
      %s235 = smul.addr %s232, 40
      %s236 = sadd.s32 %s234, %s235
      %s237 = smul.addr %s236, 4
      %s238 = scalar_lea.vmem %s2, %s237
      %s239 = smul.u32 40, %s20
      %p240 = scmp.lt.s32.totalorder %s19, 1
      %s241 = scalar_select %p240, %s19, 1
      %s242 = smul.addr %s241, 2
      %s243 = scalar_lea.vmem %s3, %s242
      %v244 = vld [vmem:[%s223] sm:$0xff]
      %v245 = vld [vmem:[%s223 + $0x8] sm:$0xff]
      %v246 = vld [vmem:[%s223 + $0x10] sm:$0xff]
      %v247 = vld [vmem:[%s223 + $0x18] sm:$0xff]
      %v248 = vld [vmem:[%s223 + $0x20] sm:$0xff]
      %v249 = vld [vmem:[%s223 + $0x28] sm:$0xff]
      %v250 = vld [vmem:[%s223 + $0x30] sm:$0xff]
      %v251 = vld [vmem:[%s223 + $0x38] sm:$0xff]
      %v252 = vld [vmem:[%s223 + $0x40] sm:$0xff]
      %v253 = vld [vmem:[%s223 + $0x48] sm:$0xff]
      %v254 = vld [vmem:[%s223 + $0x50] sm:$0xff]
      %v255 = vld [vmem:[%s223 + $0x58] sm:$0xff]
      %v256 = vld [vmem:[%s223 + $0x60] sm:$0xff]
      %v257 = vld [vmem:[%s223 + $0x68] sm:$0xff]
      %v258 = vld [vmem:[%s223 + $0x70] sm:$0xff]
      %v259 = vld [vmem:[%s223 + $0x78] sm:$0xff]
      %v260 = vld [vmem:[%s223 + $0x80] sm:$0xff]
      %v261 = vld [vmem:[%s223 + $0x88] sm:$0xff]
      %v262 = vld [vmem:[%s223 + $0x90] sm:$0xff]
      %v263 = vld [vmem:[%s223 + $0x98] sm:$0xff]
      %v264 = vld [vmem:[%s223 + $0xa0] sm:$0xff]
      %v265 = vld [vmem:[%s223 + $0xa8] sm:$0xff]
      %v266 = vld [vmem:[%s223 + $0xb0] sm:$0xff]
      %v267 = vld [vmem:[%s223 + $0xb8] sm:$0xff]
      %v268 = vld [vmem:[%s223 + $0xc0] sm:$0xff]
      %v269 = vld [vmem:[%s223 + $0xc8] sm:$0xff]
      %v270 = vld [vmem:[%s223 + $0xd0] sm:$0xff]
      %v271 = vld [vmem:[%s223 + $0xd8] sm:$0xff]
      %v272 = vld [vmem:[%s223 + $0xe0] sm:$0xff]
      %v273 = vld [vmem:[%s223 + $0xe8] sm:$0xff]
      %v274 = vld [vmem:[%s223 + $0xf0] sm:$0xff]
      %v275 = vld [vmem:[%s223 + $0xf8] sm:$0xff]
      %v276 = vld [vmem:[%s223 + $0x100] sm:$0xff]
      %v277 = vld [vmem:[%s223 + $0x108] sm:$0xff]
      %v278 = vld [vmem:[%s223 + $0x110] sm:$0xff]
      %v279 = vld [vmem:[%s223 + $0x118] sm:$0xff]
      %v280 = vld [vmem:[%s223 + $0x120] sm:$0xff]
      %v281 = vld [vmem:[%s223 + $0x128] sm:$0xff]
      %v282 = vld [vmem:[%s223 + $0x130] sm:$0xff]
      %v283 = vld [vmem:[%s223 + $0x138] sm:$0xff]
      %v284 = vld [vmem:[%s229] sm:$0xf]
      %v285 = vld [vmem:[%s229 + $0x4] sm:$0xf]
      %v286 = vld [vmem:[%s229 + $0x8] sm:$0xf]
      %v287 = vld [vmem:[%s229 + $0xc] sm:$0xf]
      %v288 = vld [vmem:[%s229 + $0x10] sm:$0xf]
      %v289 = vld [vmem:[%s229 + $0x14] sm:$0xf]
      %v290 = vld [vmem:[%s229 + $0x18] sm:$0xf]
      %v291 = vld [vmem:[%s229 + $0x1c] sm:$0xf]
      %v292 = vld [vmem:[%s229 + $0x20] sm:$0xf]
      %v293 = vld [vmem:[%s229 + $0x24] sm:$0xf]
      %v294 = vld [vmem:[%s229 + $0x28] sm:$0xf]
      %v295 = vld [vmem:[%s229 + $0x2c] sm:$0xf]
      %v296 = vld [vmem:[%s229 + $0x30] sm:$0xf]
      %v297 = vld [vmem:[%s229 + $0x34] sm:$0xf]
      %v298 = vld [vmem:[%s229 + $0x38] sm:$0xf]
      %v299 = vld [vmem:[%s229 + $0x3c] sm:$0xf]
      %v300 = vld [vmem:[%s229 + $0x40] sm:$0xf]
      %v301 = vld [vmem:[%s229 + $0x44] sm:$0xf]
      %v302 = vld [vmem:[%s229 + $0x48] sm:$0xf]
      %v303 = vld [vmem:[%s229 + $0x4c] sm:$0xf]
      %v304 = vld [vmem:[%s229 + $0x50] sm:$0xf]
      %v305 = vld [vmem:[%s229 + $0x54] sm:$0xf]
      %v306 = vld [vmem:[%s229 + $0x58] sm:$0xf]
      %v307 = vld [vmem:[%s229 + $0x5c] sm:$0xf]
      %v308 = vld [vmem:[%s229 + $0x60] sm:$0xf]
      %v309 = vld [vmem:[%s229 + $0x64] sm:$0xf]
      %v310 = vld [vmem:[%s229 + $0x68] sm:$0xf]
      %v311 = vld [vmem:[%s229 + $0x6c] sm:$0xf]
      %v312 = vld [vmem:[%s229 + $0x70] sm:$0xf]
      %v313 = vld [vmem:[%s229 + $0x74] sm:$0xf]
      %v314 = vld [vmem:[%s229 + $0x78] sm:$0xf]
      %v315 = vld [vmem:[%s229 + $0x7c] sm:$0xf]
      %v356 = vunpack.c.l.b16 %v244
      %v357 = vunpack.c.h.b16 %v244
      %v358 = vunpack.c.l.b16 %v245
      %v359 = vunpack.c.h.b16 %v245
      %v360 = vunpack.c.l.b16 %v246
      %v361 = vunpack.c.h.b16 %v246
      %v362 = vunpack.c.l.b16 %v247
      %v363 = vunpack.c.h.b16 %v247
      %v364 = vunpack.c.l.b16 %v248
      %v365 = vunpack.c.h.b16 %v248
      %v366 = vunpack.c.l.b16 %v249
      %v367 = vunpack.c.h.b16 %v249
      %v368 = vunpack.c.l.b16 %v250
      %v369 = vunpack.c.h.b16 %v250
      %v370 = vunpack.c.l.b16 %v251
      %v371 = vunpack.c.h.b16 %v251
      %v372 = vunpack.c.l.b16 %v252
      %v373 = vunpack.c.h.b16 %v252
      %v374 = vunpack.c.l.b16 %v253
      %v375 = vunpack.c.h.b16 %v253
      %v376 = vunpack.c.l.b16 %v254
      %v377 = vunpack.c.h.b16 %v254
      %v378 = vunpack.c.l.b16 %v255
      %v379 = vunpack.c.h.b16 %v255
      %v380 = vunpack.c.l.b16 %v256
      %v381 = vunpack.c.h.b16 %v256
      %v382 = vunpack.c.l.b16 %v257
      %v383 = vunpack.c.h.b16 %v257
      %v384 = vunpack.c.l.b16 %v258
      %v385 = vunpack.c.h.b16 %v258
      %v386 = vunpack.c.l.b16 %v259
      %v387 = vunpack.c.h.b16 %v259
      %v388 = vunpack.c.l.b16 %v260
      %v389 = vunpack.c.h.b16 %v260
      %v390 = vunpack.c.l.b16 %v261
      %v391 = vunpack.c.h.b16 %v261
      %v392 = vunpack.c.l.b16 %v262
      %v393 = vunpack.c.h.b16 %v262
      %v394 = vunpack.c.l.b16 %v263
      %v395 = vunpack.c.h.b16 %v263
      %v396 = vunpack.c.l.b16 %v264
      %v397 = vunpack.c.h.b16 %v264
      %v398 = vunpack.c.l.b16 %v265
      %v399 = vunpack.c.h.b16 %v265
      %v400 = vunpack.c.l.b16 %v266
      %v401 = vunpack.c.h.b16 %v266
      %v402 = vunpack.c.l.b16 %v267
      %v403 = vunpack.c.h.b16 %v267
      %v404 = vunpack.c.l.b16 %v268
      %v405 = vunpack.c.h.b16 %v268
      %v406 = vunpack.c.l.b16 %v269
      %v407 = vunpack.c.h.b16 %v269
      %v408 = vunpack.c.l.b16 %v270
      %v409 = vunpack.c.h.b16 %v270
      %v410 = vunpack.c.l.b16 %v271
      %v411 = vunpack.c.h.b16 %v271
      %v412 = vunpack.c.l.b16 %v272
      %v413 = vunpack.c.h.b16 %v272
      %v414 = vunpack.c.l.b16 %v273
      %v415 = vunpack.c.h.b16 %v273
      %v416 = vunpack.c.l.b16 %v274
      %v417 = vunpack.c.h.b16 %v274
      %v418 = vunpack.c.l.b16 %v275
      %v419 = vunpack.c.h.b16 %v275
      %v420 = vunpack.c.l.b16 %v276
      %v421 = vunpack.c.h.b16 %v276
      %v422 = vunpack.c.l.b16 %v277
      %v423 = vunpack.c.h.b16 %v277
      %v424 = vunpack.c.l.b16 %v278
      %v425 = vunpack.c.h.b16 %v278
      %v426 = vunpack.c.l.b16 %v279
      %v427 = vunpack.c.h.b16 %v279
      %v428 = vunpack.c.l.b16 %v280
      %v429 = vunpack.c.h.b16 %v280
      %v430 = vunpack.c.l.b16 %v281
      %v431 = vunpack.c.h.b16 %v281
      %v432 = vunpack.c.l.b16 %v282
      %v433 = vunpack.c.h.b16 %v282
      %v434 = vunpack.c.l.b16 %v283
      %v435 = vunpack.c.h.b16 %v283
      %v436 = vpack.c.b16 %v358, %v356
      %v437 = vpack.c.b16 %v359, %v357
      %v438 = vpack.c.b16 %v362, %v360
      %v439 = vpack.c.b16 %v363, %v361
      %v440 = vpack.c.b16 %v366, %v364
      %v441 = vpack.c.b16 %v367, %v365
      %v442 = vpack.c.b16 %v370, %v368
      %v443 = vpack.c.b16 %v371, %v369
      %v444 = vpack.c.b16 %v374, %v372
      %v445 = vpack.c.b16 %v375, %v373
      %v446 = vpack.c.b16 %v378, %v376
      %v447 = vpack.c.b16 %v379, %v377
      %v448 = vpack.c.b16 %v382, %v380
      %v449 = vpack.c.b16 %v383, %v381
      %v450 = vpack.c.b16 %v386, %v384
      %v451 = vpack.c.b16 %v387, %v385
      %v452 = vpack.c.b16 %v390, %v388
      %v453 = vpack.c.b16 %v391, %v389
      %v454 = vpack.c.b16 %v394, %v392
      %v455 = vpack.c.b16 %v395, %v393
      %v456 = vpack.c.b16 %v398, %v396
      %v457 = vpack.c.b16 %v399, %v397
      %v458 = vpack.c.b16 %v402, %v400
      %v459 = vpack.c.b16 %v403, %v401
      %v460 = vpack.c.b16 %v406, %v404
      %v461 = vpack.c.b16 %v407, %v405
      %v462 = vpack.c.b16 %v410, %v408
      %v463 = vpack.c.b16 %v411, %v409
      %v464 = vpack.c.b16 %v414, %v412
      %v465 = vpack.c.b16 %v415, %v413
      %v466 = vpack.c.b16 %v418, %v416
      %v467 = vpack.c.b16 %v419, %v417
      %v468 = vpack.c.b16 %v422, %v420
      %v469 = vpack.c.b16 %v423, %v421
      %v470 = vpack.c.b16 %v426, %v424
      %v471 = vpack.c.b16 %v427, %v425
      %v472 = vpack.c.b16 %v430, %v428
      %v473 = vpack.c.b16 %v431, %v429
      %v474 = vpack.c.b16 %v434, %v432
      %v475 = vpack.c.b16 %v435, %v433
      %v548 = vunpack.c.l.b16 %v284
      %v549 = vunpack.c.l.b16 %v285
      %v550 = vunpack.c.l.b16 %v286
      %v551 = vunpack.c.l.b16 %v287
      %v552 = vunpack.c.l.b16 %v288
      %v553 = vunpack.c.l.b16 %v289
      %v554 = vunpack.c.l.b16 %v290
      %v555 = vunpack.c.l.b16 %v291
      %v556 = vunpack.c.l.b16 %v292
      %v557 = vunpack.c.l.b16 %v293
      %v558 = vunpack.c.l.b16 %v294
      %v559 = vunpack.c.l.b16 %v295
      %v560 = vunpack.c.l.b16 %v296
      %v561 = vunpack.c.l.b16 %v297
      %v562 = vunpack.c.l.b16 %v298
      %v563 = vunpack.c.l.b16 %v299
      %v564 = vunpack.c.l.b16 %v300
      %v565 = vunpack.c.l.b16 %v301
      %v566 = vunpack.c.l.b16 %v302
      %v567 = vunpack.c.l.b16 %v303
      %v568 = vunpack.c.l.b16 %v304
      %v569 = vunpack.c.l.b16 %v305
      %v570 = vunpack.c.l.b16 %v306
      %v571 = vunpack.c.l.b16 %v307
      %v572 = vunpack.c.l.b16 %v308
      %v573 = vunpack.c.l.b16 %v309
      %v574 = vunpack.c.l.b16 %v310
      %v575 = vunpack.c.l.b16 %v311
      %v576 = vunpack.c.l.b16 %v312
      %v577 = vunpack.c.l.b16 %v313
      %v578 = vunpack.c.l.b16 %v314
      %v579 = vunpack.c.l.b16 %v315
      %v580 = vpack.c.b16 %v549, %v548
      %v581 = vpack.c.b16 %v551, %v550
      %v582 = vpack.c.b16 %v553, %v552
      %v583 = vpack.c.b16 %v555, %v554
      %v584 = vpack.c.b16 %v557, %v556
      %v585 = vpack.c.b16 %v559, %v558
      %v586 = vpack.c.b16 %v561, %v560
      %v587 = vpack.c.b16 %v563, %v562
      %v588 = vpack.c.b16 %v565, %v564
      %v589 = vpack.c.b16 %v567, %v566
      %v590 = vpack.c.b16 %v569, %v568
      %v591 = vpack.c.b16 %v571, %v570
      %v592 = vpack.c.b16 %v573, %v572
      %v593 = vpack.c.b16 %v575, %v574
      %v594 = vpack.c.b16 %v577, %v576
      %v595 = vpack.c.b16 %v579, %v578
      %612 = vmatpush.bf16.msra.mxu0 %v587
      %613 = vmatpush.bf16.msra.mxu0 %v586
      %614 = vmatpush.bf16.msra.mxu0 %v585
      %615 = vmatpush.bf16.msra.mxu0 %v584
      %616 = vmatpush.bf16.msra.mxu0 %v583
      %617 = vmatpush.bf16.msra.mxu0 %v582
      %618 = vmatpush.bf16.msra.mxu0 %v581
      %619 = vmatpush.bf16.msra.mxu0 %v580
      %620 = vmatmul.bf16.gmra.mxu0 %v436
      %v621 = vpop.f32.mrf.mxu0
      %v622 = vadd.f32 0.0, %v621
      %v623 = vpop.f32.mrf.mxu0
      %v624 = vadd.f32 0.0, %v623
      %625 = vmatmul.bf16.gmra.mxu0 %v438
      %v626 = vpop.f32.mrf.mxu0
      %v627 = vadd.f32 0.0, %v626
      %v628 = vpop.f32.mrf.mxu0
      %v629 = vadd.f32 0.0, %v628
      %630 = vmatmul.bf16.gmra.mxu0 %v440
      %v631 = vpop.f32.mrf.mxu0
      %v632 = vadd.f32 0.0, %v631
      %v633 = vpop.f32.mrf.mxu0
      %v634 = vadd.f32 0.0, %v633
      %635 = vmatmul.bf16.gmra.mxu0 %v442
      %v636 = vpop.f32.mrf.mxu0
      %v637 = vadd.f32 0.0, %v636
      %v638 = vpop.f32.mrf.mxu0
      %v639 = vadd.f32 0.0, %v638
      %640 = vmatmul.bf16.gmra.mxu0 %v444
      %v641 = vpop.f32.mrf.mxu0
      %v642 = vadd.f32 0.0, %v641
      %v643 = vpop.f32.mrf.mxu0
      %v644 = vadd.f32 0.0, %v643
      %645 = vmatmul.bf16.gmra.mxu0 %v446
      %v646 = vpop.f32.mrf.mxu0
      %v647 = vadd.f32 0.0, %v646
      %v648 = vpop.f32.mrf.mxu0
      %v649 = vadd.f32 0.0, %v648
      %650 = vmatmul.bf16.gmra.mxu0 %v448
      %v651 = vpop.f32.mrf.mxu0
      %v652 = vadd.f32 0.0, %v651
      %v653 = vpop.f32.mrf.mxu0
      %v654 = vadd.f32 0.0, %v653
      %655 = vmatmul.bf16.gmra.mxu0 %v450
      %v656 = vpop.f32.mrf.mxu0
      %v657 = vadd.f32 0.0, %v656
      %v658 = vpop.f32.mrf.mxu0
      %v659 = vadd.f32 0.0, %v658
      %660 = vmatmul.bf16.gmra.mxu0 %v452
      %v661 = vpop.f32.mrf.mxu0
      %v662 = vadd.f32 0.0, %v661
      %v663 = vpop.f32.mrf.mxu0
      %v664 = vadd.f32 0.0, %v663
      %665 = vmatmul.bf16.gmra.mxu0 %v454
      %v666 = vpop.f32.mrf.mxu0
      %v667 = vadd.f32 0.0, %v666
      %v668 = vpop.f32.mrf.mxu0
      %v669 = vadd.f32 0.0, %v668
      %670 = vmatmul.bf16.gmra.mxu0 %v456
      %v671 = vpop.f32.mrf.mxu0
      %v672 = vadd.f32 0.0, %v671
      %v673 = vpop.f32.mrf.mxu0
      %v674 = vadd.f32 0.0, %v673
      %675 = vmatmul.bf16.gmra.mxu0 %v458
      %v676 = vpop.f32.mrf.mxu0
      %v677 = vadd.f32 0.0, %v676
      %v678 = vpop.f32.mrf.mxu0
      %v679 = vadd.f32 0.0, %v678
      %680 = vmatmul.bf16.gmra.mxu0 %v460
      %v681 = vpop.f32.mrf.mxu0
      %v682 = vadd.f32 0.0, %v681
      %v683 = vpop.f32.mrf.mxu0
      %v684 = vadd.f32 0.0, %v683
      %685 = vmatmul.bf16.gmra.mxu0 %v462
      %v686 = vpop.f32.mrf.mxu0
      %v687 = vadd.f32 0.0, %v686
      %v688 = vpop.f32.mrf.mxu0
      %v689 = vadd.f32 0.0, %v688
      %690 = vmatmul.bf16.gmra.mxu0 %v464
      %v691 = vpop.f32.mrf.mxu0
      %v692 = vadd.f32 0.0, %v691
      %v693 = vpop.f32.mrf.mxu0
      %v694 = vadd.f32 0.0, %v693
      %695 = vmatmul.bf16.gmra.mxu0 %v466
      %v696 = vpop.f32.mrf.mxu0
      %v697 = vadd.f32 0.0, %v696
      %v698 = vpop.f32.mrf.mxu0
      %v699 = vadd.f32 0.0, %v698
      %700 = vmatmul.bf16.gmra.mxu0 %v468
      %v701 = vpop.f32.mrf.mxu0
      %v702 = vadd.f32 0.0, %v701
      %v703 = vpop.f32.mrf.mxu0
      %v704 = vadd.f32 0.0, %v703
      %705 = vmatmul.bf16.gmra.mxu0 %v470
      %v706 = vpop.f32.mrf.mxu0
      %v707 = vadd.f32 0.0, %v706
      %v708 = vpop.f32.mrf.mxu0
      %v709 = vadd.f32 0.0, %v708
      %710 = vmatmul.bf16.gmra.mxu0 %v472
      %v711 = vpop.f32.mrf.mxu0
      %v712 = vadd.f32 0.0, %v711
      %v713 = vpop.f32.mrf.mxu0
      %v714 = vadd.f32 0.0, %v713
      %715 = vmatmul.bf16.gmra.mxu0 %v474
      %v716 = vpop.f32.mrf.mxu0
      %v717 = vadd.f32 0.0, %v716
      %v718 = vpop.f32.mrf.mxu0
      %v719 = vadd.f32 0.0, %v718
      %720 = vdwg.mxu0
      %721 = vmatpush.bf16.msra.mxu0 %v595
      %722 = vmatpush.bf16.msra.mxu0 %v594
      %723 = vmatpush.bf16.msra.mxu0 %v593
      %724 = vmatpush.bf16.msra.mxu0 %v592
      %725 = vmatpush.bf16.msra.mxu0 %v591
      %726 = vmatpush.bf16.msra.mxu0 %v590
      %727 = vmatpush.bf16.msra.mxu0 %v589
      %728 = vmatpush.bf16.msra.mxu0 %v588
      %729 = vmatmul.bf16.gmra.mxu0 %v437
      %v730 = vpop.f32.mrf.mxu0
      %v731 = vadd.f32 %v622, %v730
      %v732 = vpop.f32.mrf.mxu0
      %v733 = vadd.f32 %v624, %v732
      %734 = vmatmul.bf16.gmra.mxu0 %v439
      %v735 = vpop.f32.mrf.mxu0
      %v736 = vadd.f32 %v627, %v735
      %v737 = vpop.f32.mrf.mxu0
      %v738 = vadd.f32 %v629, %v737
      %739 = vmatmul.bf16.gmra.mxu0 %v441
      %v740 = vpop.f32.mrf.mxu0
      %v741 = vadd.f32 %v632, %v740
      %v742 = vpop.f32.mrf.mxu0
      %v743 = vadd.f32 %v634, %v742
      %744 = vmatmul.bf16.gmra.mxu0 %v443
      %v745 = vpop.f32.mrf.mxu0
      %v746 = vadd.f32 %v637, %v745
      %v747 = vpop.f32.mrf.mxu0
      %v748 = vadd.f32 %v639, %v747
      %749 = vmatmul.bf16.gmra.mxu0 %v445
      %v750 = vpop.f32.mrf.mxu0
      %v751 = vadd.f32 %v642, %v750
      %v752 = vpop.f32.mrf.mxu0
      %v753 = vadd.f32 %v644, %v752
      %754 = vmatmul.bf16.gmra.mxu0 %v447
      %v755 = vpop.f32.mrf.mxu0
      %v756 = vadd.f32 %v647, %v755
      %v757 = vpop.f32.mrf.mxu0
      %v758 = vadd.f32 %v649, %v757
      %759 = vmatmul.bf16.gmra.mxu0 %v449
      %v760 = vpop.f32.mrf.mxu0
      %v761 = vadd.f32 %v652, %v760
      %v762 = vpop.f32.mrf.mxu0
      %v763 = vadd.f32 %v654, %v762
      %764 = vmatmul.bf16.gmra.mxu0 %v451
      %v765 = vpop.f32.mrf.mxu0
      %v766 = vadd.f32 %v657, %v765
      %v767 = vpop.f32.mrf.mxu0
      %v768 = vadd.f32 %v659, %v767
      %769 = vmatmul.bf16.gmra.mxu0 %v453
      %v770 = vpop.f32.mrf.mxu0
      %v771 = vadd.f32 %v662, %v770
      %v772 = vpop.f32.mrf.mxu0
      %v773 = vadd.f32 %v664, %v772
      %774 = vmatmul.bf16.gmra.mxu0 %v455
      %v775 = vpop.f32.mrf.mxu0
      %v776 = vadd.f32 %v667, %v775
      %v777 = vpop.f32.mrf.mxu0
      %v778 = vadd.f32 %v669, %v777
      %779 = vmatmul.bf16.gmra.mxu0 %v457
      %v780 = vpop.f32.mrf.mxu0
      %v781 = vadd.f32 %v672, %v780
      %v782 = vpop.f32.mrf.mxu0
      %v783 = vadd.f32 %v674, %v782
      %784 = vmatmul.bf16.gmra.mxu0 %v459
      %v785 = vpop.f32.mrf.mxu0
      %v786 = vadd.f32 %v677, %v785
      %v787 = vpop.f32.mrf.mxu0
      %v788 = vadd.f32 %v679, %v787
      %789 = vmatmul.bf16.gmra.mxu0 %v461
      %v790 = vpop.f32.mrf.mxu0
      %v791 = vadd.f32 %v682, %v790
      %v792 = vpop.f32.mrf.mxu0
      %v793 = vadd.f32 %v684, %v792
      %794 = vmatmul.bf16.gmra.mxu0 %v463
      %v795 = vpop.f32.mrf.mxu0
      %v796 = vadd.f32 %v687, %v795
      %v797 = vpop.f32.mrf.mxu0
      %v798 = vadd.f32 %v689, %v797
      %799 = vmatmul.bf16.gmra.mxu0 %v465
      %v800 = vpop.f32.mrf.mxu0
      %v801 = vadd.f32 %v692, %v800
      %v802 = vpop.f32.mrf.mxu0
      %v803 = vadd.f32 %v694, %v802
      %804 = vmatmul.bf16.gmra.mxu0 %v467
      %v805 = vpop.f32.mrf.mxu0
      %v806 = vadd.f32 %v697, %v805
      %v807 = vpop.f32.mrf.mxu0
      %v808 = vadd.f32 %v699, %v807
      %809 = vmatmul.bf16.gmra.mxu0 %v469
      %v810 = vpop.f32.mrf.mxu0
      %v811 = vadd.f32 %v702, %v810
      %v812 = vpop.f32.mrf.mxu0
      %v813 = vadd.f32 %v704, %v812
      %814 = vmatmul.bf16.gmra.mxu0 %v471
      %v815 = vpop.f32.mrf.mxu0
      %v816 = vadd.f32 %v707, %v815
      %v817 = vpop.f32.mrf.mxu0
      %v818 = vadd.f32 %v709, %v817
      %819 = vmatmul.bf16.gmra.mxu0 %v473
      %v820 = vpop.f32.mrf.mxu0
      %v821 = vadd.f32 %v712, %v820
      %v822 = vpop.f32.mrf.mxu0
      %v823 = vadd.f32 %v714, %v822
      %824 = vmatmul.bf16.gmra.mxu0 %v475
      %v825 = vpop.f32.mrf.mxu0
      %v826 = vadd.f32 %v717, %v825
      %v827 = vpop.f32.mrf.mxu0
      %v828 = vadd.f32 %v719, %v827
      %829 = vdwg.mxu0
      %v830 = vpack.c.bf16 %v731, %v731
      %v831 = vpack.c.bf16 %v733, %v733
      %v832 = vpack.c.bf16 %v736, %v736
      %v833 = vpack.c.bf16 %v738, %v738
      %v834 = vpack.c.bf16 %v741, %v741
      %v835 = vpack.c.bf16 %v743, %v743
      %v836 = vpack.c.bf16 %v746, %v746
      %v837 = vpack.c.bf16 %v748, %v748
      %v838 = vpack.c.bf16 %v751, %v751
      %v839 = vpack.c.bf16 %v753, %v753
      %v840 = vpack.c.bf16 %v756, %v756
      %v841 = vpack.c.bf16 %v758, %v758
      %v842 = vpack.c.bf16 %v761, %v761
      %v843 = vpack.c.bf16 %v763, %v763
      %v844 = vpack.c.bf16 %v766, %v766
      %v845 = vpack.c.bf16 %v768, %v768
      %v846 = vpack.c.bf16 %v771, %v771
      %v847 = vpack.c.bf16 %v773, %v773
      %v848 = vpack.c.bf16 %v776, %v776
      %v849 = vpack.c.bf16 %v778, %v778
      %v850 = vpack.c.bf16 %v781, %v781
      %v851 = vpack.c.bf16 %v783, %v783
      %v852 = vpack.c.bf16 %v786, %v786
      %v853 = vpack.c.bf16 %v788, %v788
      %v854 = vpack.c.bf16 %v791, %v791
      %v855 = vpack.c.bf16 %v793, %v793
      %v856 = vpack.c.bf16 %v796, %v796
      %v857 = vpack.c.bf16 %v798, %v798
      %v858 = vpack.c.bf16 %v801, %v801
      %v859 = vpack.c.bf16 %v803, %v803
      %v860 = vpack.c.bf16 %v806, %v806
      %v861 = vpack.c.bf16 %v808, %v808
      %v862 = vpack.c.bf16 %v811, %v811
      %v863 = vpack.c.bf16 %v813, %v813
      %v864 = vpack.c.bf16 %v816, %v816
      %v865 = vpack.c.bf16 %v818, %v818
      %v866 = vpack.c.bf16 %v821, %v821
      %v867 = vpack.c.bf16 %v823, %v823
      %v868 = vpack.c.bf16 %v826, %v826
      %v869 = vpack.c.bf16 %v828, %v828
      %870 = vst [vmem:[%s238] sm:$0xf] %v830
      %871 = vst [vmem:[%s238 + $0x4] sm:$0xf] %v831
      %872 = vst [vmem:[%s238 + $0x8] sm:$0xf] %v832
      %873 = vst [vmem:[%s238 + $0xc] sm:$0xf] %v833
      %874 = vst [vmem:[%s238 + $0x10] sm:$0xf] %v834
      %875 = vst [vmem:[%s238 + $0x14] sm:$0xf] %v835
      %876 = vst [vmem:[%s238 + $0x18] sm:$0xf] %v836
      %877 = vst [vmem:[%s238 + $0x1c] sm:$0xf] %v837
      %878 = vst [vmem:[%s238 + $0x20] sm:$0xf] %v838
      %879 = vst [vmem:[%s238 + $0x24] sm:$0xf] %v839
      %880 = vst [vmem:[%s238 + $0x28] sm:$0xf] %v840
      %881 = vst [vmem:[%s238 + $0x2c] sm:$0xf] %v841
      %882 = vst [vmem:[%s238 + $0x30] sm:$0xf] %v842
      %883 = vst [vmem:[%s238 + $0x34] sm:$0xf] %v843
      %884 = vst [vmem:[%s238 + $0x38] sm:$0xf] %v844
      %885 = vst [vmem:[%s238 + $0x3c] sm:$0xf] %v845
      %886 = vst [vmem:[%s238 + $0x40] sm:$0xf] %v846
      %887 = vst [vmem:[%s238 + $0x44] sm:$0xf] %v847
      %888 = vst [vmem:[%s238 + $0x48] sm:$0xf] %v848
      %889 = vst [vmem:[%s238 + $0x4c] sm:$0xf] %v849
      %890 = vst [vmem:[%s238 + $0x50] sm:$0xf] %v850
      %891 = vst [vmem:[%s238 + $0x54] sm:$0xf] %v851
      %892 = vst [vmem:[%s238 + $0x58] sm:$0xf] %v852
      %893 = vst [vmem:[%s238 + $0x5c] sm:$0xf] %v853
      %894 = vst [vmem:[%s238 + $0x60] sm:$0xf] %v854
      %895 = vst [vmem:[%s238 + $0x64] sm:$0xf] %v855
      %896 = vst [vmem:[%s238 + $0x68] sm:$0xf] %v856
      %897 = vst [vmem:[%s238 + $0x6c] sm:$0xf] %v857
      %898 = vst [vmem:[%s238 + $0x70] sm:$0xf] %v858
      %899 = vst [vmem:[%s238 + $0x74] sm:$0xf] %v859
      %900 = vst [vmem:[%s238 + $0x78] sm:$0xf] %v860
      %901 = vst [vmem:[%s238 + $0x7c] sm:$0xf] %v861
      %902 = vst [vmem:[%s238 + $0x80] sm:$0xf] %v862
      %903 = vst [vmem:[%s238 + $0x84] sm:$0xf] %v863
      %904 = vst [vmem:[%s238 + $0x88] sm:$0xf] %v864
      %905 = vst [vmem:[%s238 + $0x8c] sm:$0xf] %v865
      %906 = vst [vmem:[%s238 + $0x90] sm:$0xf] %v866
      %907 = vst [vmem:[%s238 + $0x94] sm:$0xf] %v867
      %908 = vst [vmem:[%s238 + $0x98] sm:$0xf] %v868
      %909 = vst [vmem:[%s238 + $0x9c] sm:$0xf] %v869
      %p910 = scmp.eq.s32.totalorder %s20, 0
      // Predicated region
      $region29: #{graph_triple_conv2d_net.21} parent=27 // pred_check
        %p911 = pneg %p910
      $region30: #{graph_triple_conv2d_net.21} parent=27 // pred_check_branch
        %913 = sbr.rel (%p911) target = $region32
      $region31: #{graph_triple_conv2d_net.21} parent=27 // pred_region
        %914 = vst [vmem:[%s243] sm:$0x3] 0.0
      $region32: #{graph_triple_conv2d_net.21} parent=27 // pred_fallthru
        _
      %v915 = vadd.f32 %v731, %v733
      %v916 = vadd.f32 %v915, %v736
      %v917 = vadd.f32 %v916, %v738
      %v918 = vadd.f32 %v917, %v741
      %v919 = vadd.f32 %v918, %v743
      %v920 = vadd.f32 %v919, %v746
      %v921 = vadd.f32 %v920, %v748
      %v922 = vadd.f32 %v921, %v751
      %v923 = vadd.f32 %v922, %v753
      %v924 = vadd.f32 %v923, %v756
      %v925 = vadd.f32 %v924, %v758
      %v926 = vadd.f32 %v925, %v761
      %v927 = vadd.f32 %v926, %v763
      %v928 = vadd.f32 %v927, %v766
      %v929 = vadd.f32 %v928, %v768
      %v930 = vadd.f32 %v929, %v771
      %v931 = vadd.f32 %v930, %v773
      %v932 = vadd.f32 %v931, %v776
      %v933 = vadd.f32 %v932, %v778
      %v934 = vadd.f32 %v933, %v781
      %v935 = vadd.f32 %v934, %v783
      %v936 = vadd.f32 %v935, %v786
      %v937 = vadd.f32 %v936, %v788
      %v938 = vadd.f32 %v937, %v791
      %v939 = vadd.f32 %v938, %v793
      %v940 = vadd.f32 %v939, %v796
      %v941 = vadd.f32 %v940, %v798
      %v942 = vadd.f32 %v941, %v801
      %v943 = vadd.f32 %v942, %v803
      %v944 = vadd.f32 %v943, %v806
      %v945 = vadd.f32 %v944, %v808
      %v946 = vadd.f32 %v945, %v811
      %v947 = vadd.f32 %v946, %v813
      %v948 = vadd.f32 %v947, %v816
      %v949 = vadd.f32 %v948, %v818
      %v950 = vadd.f32 %v949, %v821
      %v951 = vadd.f32 %v950, %v823
      %v952 = vadd.f32 %v951, %v826
      %v953 = vadd.f32 %v952, %v828
      %v954 = vrot.slane %v953, 4
      %v955 = vadd.f32 %v953, %v954
      %v956 = vrot.slane %v955, 2
      %v957 = vadd.f32 %v955, %v956
      %v958 = vrot.slane %v957, 1
      %v959 = vadd.f32 %v957, %v958
      %v960 = vmul.f32 %v731, %v731
      %v961 = vmul.f32 %v733, %v733
      %v962 = vmul.f32 %v736, %v736
      %v963 = vmul.f32 %v738, %v738
      %v964 = vmul.f32 %v741, %v741
      %v965 = vmul.f32 %v743, %v743
      %v966 = vmul.f32 %v746, %v746
      %v967 = vmul.f32 %v748, %v748
      %v968 = vmul.f32 %v751, %v751
      %v969 = vmul.f32 %v753, %v753
      %v970 = vmul.f32 %v756, %v756
      %v971 = vmul.f32 %v758, %v758
      %v972 = vmul.f32 %v761, %v761
      %v973 = vmul.f32 %v763, %v763
      %v974 = vmul.f32 %v766, %v766
      %v975 = vmul.f32 %v768, %v768
      %v976 = vmul.f32 %v771, %v771
      %v977 = vmul.f32 %v773, %v773
      %v978 = vmul.f32 %v776, %v776
      %v979 = vmul.f32 %v778, %v778
      %v980 = vmul.f32 %v781, %v781
      %v981 = vmul.f32 %v783, %v783
      %v982 = vmul.f32 %v786, %v786
      %v983 = vmul.f32 %v788, %v788
      %v984 = vmul.f32 %v791, %v791
      %v985 = vmul.f32 %v793, %v793
      %v986 = vmul.f32 %v796, %v796
      %v987 = vmul.f32 %v798, %v798
      %v988 = vmul.f32 %v801, %v801
      %v989 = vmul.f32 %v803, %v803
      %v990 = vmul.f32 %v806, %v806
      %v991 = vmul.f32 %v808, %v808
      %v992 = vmul.f32 %v811, %v811
      %v993 = vmul.f32 %v813, %v813
      %v994 = vmul.f32 %v816, %v816
      %v995 = vmul.f32 %v818, %v818
      %v996 = vmul.f32 %v821, %v821
      %v997 = vmul.f32 %v823, %v823
      %v998 = vmul.f32 %v826, %v826
      %v999 = vmul.f32 %v828, %v828
      %v1000 = vadd.f32 %v960, %v961
      %v1001 = vadd.f32 %v1000, %v962
      %v1002 = vadd.f32 %v1001, %v963
      %v1003 = vadd.f32 %v1002, %v964
      %v1004 = vadd.f32 %v1003, %v965
      %v1005 = vadd.f32 %v1004, %v966
      %v1006 = vadd.f32 %v1005, %v967
      %v1007 = vadd.f32 %v1006, %v968
      %v1008 = vadd.f32 %v1007, %v969
      %v1009 = vadd.f32 %v1008, %v970
      %v1010 = vadd.f32 %v1009, %v971
      %v1011 = vadd.f32 %v1010, %v972
      %v1012 = vadd.f32 %v1011, %v973
      %v1013 = vadd.f32 %v1012, %v974
      %v1014 = vadd.f32 %v1013, %v975
      %v1015 = vadd.f32 %v1014, %v976
      %v1016 = vadd.f32 %v1015, %v977
      %v1017 = vadd.f32 %v1016, %v978
      %v1018 = vadd.f32 %v1017, %v979
      %v1019 = vadd.f32 %v1018, %v980
      %v1020 = vadd.f32 %v1019, %v981
      %v1021 = vadd.f32 %v1020, %v982
      %v1022 = vadd.f32 %v1021, %v983
      %v1023 = vadd.f32 %v1022, %v984
      %v1024 = vadd.f32 %v1023, %v985
      %v1025 = vadd.f32 %v1024, %v986
      %v1026 = vadd.f32 %v1025, %v987
      %v1027 = vadd.f32 %v1026, %v988
      %v1028 = vadd.f32 %v1027, %v989
      %v1029 = vadd.f32 %v1028, %v990
      %v1030 = vadd.f32 %v1029, %v991
      %v1031 = vadd.f32 %v1030, %v992
      %v1032 = vadd.f32 %v1031, %v993
      %v1033 = vadd.f32 %v1032, %v994
      %v1034 = vadd.f32 %v1033, %v995
      %v1035 = vadd.f32 %v1034, %v996
      %v1036 = vadd.f32 %v1035, %v997
      %v1037 = vadd.f32 %v1036, %v998
      %v1038 = vadd.f32 %v1037, %v999
      %v1039 = vrot.slane %v1038, 4
      %v1040 = vadd.f32 %v1038, %v1039
      %v1041 = vrot.slane %v1040, 2
      %v1042 = vadd.f32 %v1040, %v1041
      %v1043 = vrot.slane %v1042, 1
      %v1044 = vadd.f32 %v1042, %v1043
      %vm1045 = vcmask 1040384
      %v1046 = vsel %vm1045, %v959, %v1044
      %v1047 = vld [vmem:[%s243] sm:$0x3]
      %v1048 = vadd.f32 %v1047, %v1046
      %1049 = vst [vmem:[%s243] sm:$0x3] %v1048
      %s1050 = smul.u32 40, %s20
      %p1051 = scmp.lt.s32.totalorder %s19, 1
      %s1052 = scalar_select %p1051, %s19, 1
      %p1053 = scmp.lt.s32.totalorder %s1050, 39
      %s1054 = scalar_select %p1053, %s1050, 39
      %s1055 = smul.addr %s1052, 40
      %s1056 = sadd.s32 %s1054, %s1055
      %s1057 = smul.addr %s1056, 4
      %s1058 = scalar_lea.vmem %s2, %s1057
      %p1059 = scmp.lt.s32.totalorder %s19, 1
      %s1060 = scalar_select %p1059, %s19, 1
      %s1061 = smul.addr %s1060, 2
      %s1062 = scalar_lea.vmem %s3, %s1061
      // Predicated region
      $region33: #{graph_triple_conv2d_net.21} parent=27 // pred_check
        %p1063 = pneg %p101
      $region34: #{graph_triple_conv2d_net.21} parent=27 // pred_check_branch
        %1065 = sbr.rel (%p1063) target = $region36
      $region35: #{graph_triple_conv2d_net.21} parent=27 // pred_region
        %s1066 = smul.u32 40, %s20
      $region36: #{graph_triple_conv2d_net.21} parent=27 // pred_fallthru
        _
      // Predicated region
      $region37: #{graph_triple_conv2d_net.21} parent=27 // pred_check
        %p1067 = pneg %p127
      $region38: #{graph_triple_conv2d_net.21} parent=27 // pred_check_branch
        %1069 = sbr.rel (%p1067) target = $region40
      $region39: #{graph_triple_conv2d_net.21} parent=27 // pred_region
        _
      $region40: #{graph_triple_conv2d_net.21} parent=27 // pred_fallthru
        _
    $region28: #{graph_triple_conv2d_net.21} parent=5 // pred_fallthru
      _
    %p1070 = scmp.le.s32.totalorder 2, %s10
    // Predicated region
    $region41: #{graph_triple_conv2d_net.21} parent=5 // pred_check
      %p1071 = pneg %p1070
    $region42: #{graph_triple_conv2d_net.21} parent=5 // pred_check_branch
      %1073 = sbr.rel (%p1071) target = $region44
    $region43: #{graph_triple_conv2d_net.21} parent=5 // pred_region
      %s1074 = ssub.s32 %s10, 2
      // Predicated region
      $region45: #{graph_triple_conv2d_net.21} parent=43 // pred_check
        %p1075 = pneg %p107
      $region46: #{graph_triple_conv2d_net.21} parent=43 // pred_check_branch
        %1077 = sbr.rel (%p1075) target = $region48
      $region47: #{graph_triple_conv2d_net.21} parent=43 // pred_region
        %s1078 = smul.u32 40, %s22
        %p1079 = scmp.lt.s32.totalorder %s21, 1
        %s1080 = scalar_select %p1079, %s21, 1
        %p1081 = scmp.lt.s32.totalorder %s1078, 39
        %s1082 = scalar_select %p1081, %s1078, 39
        %s1083 = smul.addr %s1080, 40
        %s1084 = sadd.s32 %s1082, %s1083
        %s1085 = smul.addr %s1084, 4
        %s1086 = scalar_lea.vmem %s2, %s1085
      $region48: #{graph_triple_conv2d_net.21} parent=43 // pred_fallthru
        _
      // Predicated region
      $region49: #{graph_triple_conv2d_net.21} parent=43 // pred_check
        %p1087 = pneg %p133
      $region50: #{graph_triple_conv2d_net.21} parent=43 // pred_check_branch
        %1089 = sbr.rel (%p1087) target = $region52
      $region51: #{graph_triple_conv2d_net.21} parent=43 // pred_region
        %p1090 = scmp.lt.s32.totalorder %s21, 1
        %s1091 = scalar_select %p1090, %s21, 1
        %s1092 = smul.addr %s1091, 2
        %s1093 = scalar_lea.vmem %s3, %s1092
      $region52: #{graph_triple_conv2d_net.21} parent=43 // pred_fallthru
        _
    $region44: #{graph_triple_conv2d_net.21} parent=5 // pred_fallthru
      _
  $region6: #{graph_triple_conv2d_net.21} parent=0 // loop_footer
    %s14 = sadd.s32 1, %s10
  $region7: #{graph_triple_conv2d_net.21} parent=0 // loop_footer_branch
    %9 = sbr.rel target = $region3
  $region8: #{graph_triple_conv2d_net.21} parent=0 // loop_exit
    _

// kernel: graph_triple_conv2d_net.23
$region0: #{graph_triple_conv2d_net.23}
  #allocation0 [shape = 'u32[]', space=smem, size = 0x4, offset = 0x4, fixed_abs, tag = 'smem constant byte address 0x4 - core index']
  #allocation1 [shape = 'u32[72,128]{1,0:T(1,128)}', space=vmem, size = 0x9000, scoped, tag = 'internal scratch']
  %s0 = inlined_call_operand.vmem [shape: bf16[2,320,128], index: 0, kind: input, shape index: {}]
  %s1 = inlined_call_operand.vmem [shape: f32[2,2,128], index: 1, kind: input, shape index: {}]
  %s2 = inlined_call_operand.vmem [shape: f32[2,1,128], index: 2, kind: input, shape index: {}]
  %s3 = inlined_call_operand.vmem [shape: f32[2,1,128], index: 3, kind: input, shape index: {}]
  %s4 = inlined_call_operand.vmem [shape: f32[2,1,128], index: 4, kind: input, shape index: {}]
  %s5 = inlined_call_operand.vmem [shape: bf16[2,320,128], index: 5, kind: output, shape index: {}]
  %s6 = sld [smem:[#allocation0]]
  $region53: #{graph_triple_conv2d_net.23} parent=0
    _
  %s8 = ssub.s32 1, %s6
  %s9 = scalar_select 0, %s8, %s6
  loop: start=0, step=1, limit=4
  $region2: #{graph_triple_conv2d_net.23} parent=0 // loop_pre_header
    _
  $region3: #{graph_triple_conv2d_net.23} parent=0 // loop_header
    %s11 = sphi 0, %s15
    %p12 = scmp.ge.s32.totalorder %s11, 4
    %s18 = sphi 0, %s30
    %s19 = sphi 0, %s26
    %s20 = sphi 0, %s18
    %s21 = sphi 0, %s19
    %s22 = sphi 0, %s20
    %s23 = sphi 0, %s21
    %s35 = sphi 0, %s37
    %s38 = sphi 0, %s35
    %s39 = sphi 0, %s38
    %s55 = sphi 0, %s39
    %s61 = sphi 0, %s63
    %s64 = sphi 0, %s61
    %s65 = sphi 0, %s64
    %s81 = sphi 0, %s65
    %s87 = sphi 0, %s89
    %s90 = sphi 0, %s87
    %s91 = sphi 0, %s90
    %s107 = sphi 0, %s91
    %s113 = sphi 0, %s115
    %s116 = sphi 0, %s113
    %s117 = sphi 0, %s116
    %s133 = sphi 0, %s117
    %s139 = sphi 0, %s141
    %s142 = sphi 0, %s139
    %s143 = sphi 0, %s142
    %s159 = sphi 0, %s143
    %s167 = sphi 0, %s169
    %s170 = sphi 0, %s167
    %s171 = sphi 0, %s170
    %s187 = sphi 0, %s171
  $region4: #{graph_triple_conv2d_net.23} parent=0 // loop_header_branch
    %14 = sbr.rel (%p12) target = $region8
  $region5: #{graph_triple_conv2d_net.23} parent=0 // loop_body
    %s16 = ssub.s32 %s11, 1
    %s17 = ssub.s32 %s11, 2
    %s24 = sadd.s32 1, %s19
    %p25 = scmp.ge.s32.totalorder %s24, 1
    %s26 = scalar_select %p25, 0, %s24
    %s27 = sadd.s32 1, %s18
    %s28 = scalar_select %p25, %s27, %s18
    %p29 = scmp.ge.s32.totalorder %s28, 2
    %s30 = scalar_select %p29, 0, %s28
    %s31 = ssub.s32 %s18, %s30
    %s32 = ssub.s32 %s19, %s26
    %s33 = sor.u32 %s31, %s32
    %p34 = scmp.eq.s32.totalorder %s33, 0
    %s36 = sadd.s32 %s35, 1
    %s37 = scalar_select %p34, %s35, %s36
    %p40 = pneg %p34
    %p41 = scmp.eq.s32.totalorder %s11, 1
    %p42 = por %p40, %p41
    %p43 = scmp.ne.s32.totalorder %s35, %s38
    %p44 = scmp.eq.s32.totalorder %s11, 0
    %p45 = por %p43, %p44
    %p46 = scmp.ne.s32.totalorder %s35, %s38
    %p47 = scmp.eq.s32.totalorder %s16, 1
    %p48 = por %p46, %p47
    %p49 = scmp.ne.s32.totalorder %s38, %s39
    %p50 = scmp.eq.s32.totalorder %s16, 0
    %p51 = por %p49, %p50
    %p52 = scmp.ne.s32.totalorder %s38, %s39
    %p53 = scmp.eq.s32.totalorder %s17, 1
    %p54 = por %p52, %p53
    %p56 = scmp.ne.s32.totalorder %s39, %s55
    %p57 = scmp.eq.s32.totalorder %s17, 0
    %p58 = por %p56, %p57
    %s59 = ssub.s32 %s18, %s30
    %p60 = scmp.eq.s32.totalorder %s59, 0
    %s62 = sadd.s32 %s61, 1
    %s63 = scalar_select %p60, %s61, %s62
    %p66 = pneg %p60
    %p67 = scmp.eq.s32.totalorder %s11, 1
    %p68 = por %p66, %p67
    %p69 = scmp.ne.s32.totalorder %s61, %s64
    %p70 = scmp.eq.s32.totalorder %s11, 0
    %p71 = por %p69, %p70
    %p72 = scmp.ne.s32.totalorder %s61, %s64
    %p73 = scmp.eq.s32.totalorder %s16, 1
    %p74 = por %p72, %p73
    %p75 = scmp.ne.s32.totalorder %s64, %s65
    %p76 = scmp.eq.s32.totalorder %s16, 0
    %p77 = por %p75, %p76
    %p78 = scmp.ne.s32.totalorder %s64, %s65
    %p79 = scmp.eq.s32.totalorder %s17, 1
    %p80 = por %p78, %p79
    %p82 = scmp.ne.s32.totalorder %s65, %s81
    %p83 = scmp.eq.s32.totalorder %s17, 0
    %p84 = por %p82, %p83
    %s85 = ssub.s32 %s18, %s30
    %p86 = scmp.eq.s32.totalorder %s85, 0
    %s88 = sadd.s32 %s87, 1
    %s89 = scalar_select %p86, %s87, %s88
    %p92 = pneg %p86
    %p93 = scmp.eq.s32.totalorder %s11, 1
    %p94 = por %p92, %p93
    %p95 = scmp.ne.s32.totalorder %s87, %s90
    %p96 = scmp.eq.s32.totalorder %s11, 0
    %p97 = por %p95, %p96
    %p98 = scmp.ne.s32.totalorder %s87, %s90
    %p99 = scmp.eq.s32.totalorder %s16, 1
    %p100 = por %p98, %p99
    %p101 = scmp.ne.s32.totalorder %s90, %s91
    %p102 = scmp.eq.s32.totalorder %s16, 0
    %p103 = por %p101, %p102
    %p104 = scmp.ne.s32.totalorder %s90, %s91
    %p105 = scmp.eq.s32.totalorder %s17, 1
    %p106 = por %p104, %p105
    %p108 = scmp.ne.s32.totalorder %s91, %s107
    %p109 = scmp.eq.s32.totalorder %s17, 0
    %p110 = por %p108, %p109
    %s111 = ssub.s32 %s18, %s30
    %p112 = scmp.eq.s32.totalorder %s111, 0
    %s114 = sadd.s32 %s113, 1
    %s115 = scalar_select %p112, %s113, %s114
    %p118 = pneg %p112
    %p119 = scmp.eq.s32.totalorder %s11, 1
    %p120 = por %p118, %p119
    %p121 = scmp.ne.s32.totalorder %s113, %s116
    %p122 = scmp.eq.s32.totalorder %s11, 0
    %p123 = por %p121, %p122
    %p124 = scmp.ne.s32.totalorder %s113, %s116
    %p125 = scmp.eq.s32.totalorder %s16, 1
    %p126 = por %p124, %p125
    %p127 = scmp.ne.s32.totalorder %s116, %s117
    %p128 = scmp.eq.s32.totalorder %s16, 0
    %p129 = por %p127, %p128
    %p130 = scmp.ne.s32.totalorder %s116, %s117
    %p131 = scmp.eq.s32.totalorder %s17, 1
    %p132 = por %p130, %p131
    %p134 = scmp.ne.s32.totalorder %s117, %s133
    %p135 = scmp.eq.s32.totalorder %s17, 0
    %p136 = por %p134, %p135
    %s137 = ssub.s32 %s18, %s30
    %p138 = scmp.eq.s32.totalorder %s137, 0
    %s140 = sadd.s32 %s139, 1
    %s141 = scalar_select %p138, %s139, %s140
    %p144 = pneg %p138
    %p145 = scmp.eq.s32.totalorder %s11, 1
    %p146 = por %p144, %p145
    %p147 = scmp.ne.s32.totalorder %s139, %s142
    %p148 = scmp.eq.s32.totalorder %s11, 0
    %p149 = por %p147, %p148
    %p150 = scmp.ne.s32.totalorder %s139, %s142
    %p151 = scmp.eq.s32.totalorder %s16, 1
    %p152 = por %p150, %p151
    %p153 = scmp.ne.s32.totalorder %s142, %s143
    %p154 = scmp.eq.s32.totalorder %s16, 0
    %p155 = por %p153, %p154
    %p156 = scmp.ne.s32.totalorder %s142, %s143
    %p157 = scmp.eq.s32.totalorder %s17, 1
    %p158 = por %p156, %p157
    %p160 = scmp.ne.s32.totalorder %s143, %s159
    %p161 = scmp.eq.s32.totalorder %s17, 0
    %p162 = por %p160, %p161
    %s163 = ssub.s32 %s18, %s30
    %s164 = ssub.s32 %s19, %s26
    %s165 = sor.u32 %s163, %s164
    %p166 = scmp.eq.s32.totalorder %s165, 0
    %s168 = sadd.s32 %s167, 1
    %s169 = scalar_select %p166, %s167, %s168
    %p172 = pneg %p166
    %p173 = scmp.eq.s32.totalorder %s11, 1
    %p174 = por %p172, %p173
    %p175 = scmp.ne.s32.totalorder %s167, %s170
    %p176 = scmp.eq.s32.totalorder %s11, 0
    %p177 = por %p175, %p176
    %p178 = scmp.ne.s32.totalorder %s167, %s170
    %p179 = scmp.eq.s32.totalorder %s16, 1
    %p180 = por %p178, %p179
    %p181 = scmp.ne.s32.totalorder %s170, %s171
    %p182 = scmp.eq.s32.totalorder %s16, 0
    %p183 = por %p181, %p182
    %p184 = scmp.ne.s32.totalorder %s170, %s171
    %p185 = scmp.eq.s32.totalorder %s17, 1
    %p186 = por %p184, %p185
    %p188 = scmp.ne.s32.totalorder %s171, %s187
    %p189 = scmp.eq.s32.totalorder %s17, 0
    %p190 = por %p188, %p189
    %p191 = scmp.le.s32.totalorder 1, %s11
    %p192 = scmp.lt.s32.totalorder %s11, 3
    %p193 = pnand %p191, %p192
    %p194 = pneg %p193
    // Predicated region
    $region9: #{graph_triple_conv2d_net.23} parent=5 // pred_check
      _
    $region10: #{graph_triple_conv2d_net.23} parent=5 // pred_check_branch
      %196 = sbr.rel (%p193) target = $region12
    $region11: #{graph_triple_conv2d_net.23} parent=5 // pred_region
      %s197 = ssub.s32 %s11, 1
    $region12: #{graph_triple_conv2d_net.23} parent=5 // pred_fallthru
      _
    %p198 = scmp.lt.s32.totalorder %s11, 2
    // Predicated region
    $region13: #{graph_triple_conv2d_net.23} parent=5 // pred_check
      %p199 = pneg %p198
    $region14: #{graph_triple_conv2d_net.23} parent=5 // pred_check_branch
      %201 = sbr.rel (%p199) target = $region16
    $region15: #{graph_triple_conv2d_net.23} parent=5 // pred_region
      // Predicated region
      $region17: #{graph_triple_conv2d_net.23} parent=15 // pred_check
        %p202 = pneg %p45
      $region18: #{graph_triple_conv2d_net.23} parent=15 // pred_check_branch
        %204 = sbr.rel (%p202) target = $region20
      $region19: #{graph_triple_conv2d_net.23} parent=15 // pred_region
        %s205 = smul.u32 40, %s19
        %p206 = scmp.lt.s32.totalorder %s18, 1
        %s207 = scalar_select %p206, %s18, 1
        %p208 = scmp.lt.s32.totalorder %s205, 39
        %s209 = scalar_select %p208, %s205, 39
        %s210 = smul.addr %s207, 40
        %s211 = sadd.s32 %s209, %s210
        %s212 = smul.addr %s211, 4
        %s213 = scalar_lea.vmem %s0, %s212
        %s214 = smul.u32 40, %s19
      $region20: #{graph_triple_conv2d_net.23} parent=15 // pred_fallthru
        _
      // Predicated region
      $region21: #{graph_triple_conv2d_net.23} parent=15 // pred_check
        %p215 = pneg %p71
      $region22: #{graph_triple_conv2d_net.23} parent=15 // pred_check_branch
        %217 = sbr.rel (%p215) target = $region24
      $region23: #{graph_triple_conv2d_net.23} parent=15 // pred_region
        %p218 = scmp.lt.s32.totalorder %s18, 1
        %s219 = scalar_select %p218, %s18, 1
        %s220 = smul.addr %s219, 2
        %s221 = scalar_lea.vmem %s1, %s220
      $region24: #{graph_triple_conv2d_net.23} parent=15 // pred_fallthru
        _
      // Predicated region
      $region25: #{graph_triple_conv2d_net.23} parent=15 // pred_check
        %p222 = pneg %p97
      $region26: #{graph_triple_conv2d_net.23} parent=15 // pred_check_branch
        %224 = sbr.rel (%p222) target = $region28
      $region27: #{graph_triple_conv2d_net.23} parent=15 // pred_region
        %p225 = scmp.lt.s32.totalorder %s18, 1
        %s226 = scalar_select %p225, %s18, 1
        %s227 = scalar_lea.vmem %s2, %s226
      $region28: #{graph_triple_conv2d_net.23} parent=15 // pred_fallthru
        _
      // Predicated region
      $region29: #{graph_triple_conv2d_net.23} parent=15 // pred_check
        %p228 = pneg %p123
      $region30: #{graph_triple_conv2d_net.23} parent=15 // pred_check_branch
        %230 = sbr.rel (%p228) target = $region32
      $region31: #{graph_triple_conv2d_net.23} parent=15 // pred_region
        %p231 = scmp.lt.s32.totalorder %s18, 1
        %s232 = scalar_select %p231, %s18, 1
        %s233 = scalar_lea.vmem %s3, %s232
      $region32: #{graph_triple_conv2d_net.23} parent=15 // pred_fallthru
        _
      // Predicated region
      $region33: #{graph_triple_conv2d_net.23} parent=15 // pred_check
        %p234 = pneg %p149
      $region34: #{graph_triple_conv2d_net.23} parent=15 // pred_check_branch
        %236 = sbr.rel (%p234) target = $region36
      $region35: #{graph_triple_conv2d_net.23} parent=15 // pred_region
        %p237 = scmp.lt.s32.totalorder %s18, 1
        %s238 = scalar_select %p237, %s18, 1
        %s239 = scalar_lea.vmem %s4, %s238
      $region36: #{graph_triple_conv2d_net.23} parent=15 // pred_fallthru
        _
    $region16: #{graph_triple_conv2d_net.23} parent=5 // pred_fallthru
      _
    %p240 = scmp.le.s32.totalorder 1, %s11
    %p241 = scmp.lt.s32.totalorder %s11, 3
    %p242 = pnand %p240, %p241
    %p243 = pneg %p242
    // Predicated region
    $region37: #{graph_triple_conv2d_net.23} parent=5 // pred_check
      _
    $region38: #{graph_triple_conv2d_net.23} parent=5 // pred_check_branch
      %245 = sbr.rel (%p242) target = $region40
    $region39: #{graph_triple_conv2d_net.23} parent=5 // pred_region
      %s246 = ssub.s32 %s11, 1
      %s247 = smul.u32 40, %s21
      %p248 = scmp.lt.s32.totalorder %s20, 1
      %s249 = scalar_select %p248, %s20, 1
      %p250 = scmp.lt.s32.totalorder %s247, 39
      %s251 = scalar_select %p250, %s247, 39
      %s252 = smul.addr %s249, 40
      %s253 = sadd.s32 %s251, %s252
      %s254 = smul.addr %s253, 4
      %s255 = scalar_lea.vmem %s0, %s254
      %p256 = pneg %p51
      %p257 = pneg %p48
      %p258 = scmp.lt.s32.totalorder %s20, 1
      %s259 = scalar_select %p258, %s20, 1
      %s260 = smul.addr %s259, 2
      %s261 = scalar_lea.vmem %s1, %s260
      %p262 = pneg %p77
      %p263 = pneg %p74
      %p264 = scmp.lt.s32.totalorder %s20, 1
      %s265 = scalar_select %p264, %s20, 1
      %s266 = scalar_lea.vmem %s2, %s265
      %p267 = pneg %p103
      %p268 = pneg %p100
      %p269 = scmp.lt.s32.totalorder %s20, 1
      %s270 = scalar_select %p269, %s20, 1
      %s271 = scalar_lea.vmem %s3, %s270
      %p272 = pneg %p129
      %p273 = pneg %p126
      %p274 = scmp.lt.s32.totalorder %s20, 1
      %s275 = scalar_select %p274, %s20, 1
      %s276 = scalar_lea.vmem %s4, %s275
      %p277 = pneg %p155
      %p278 = pneg %p152
      %p279 = pneg %p183
      %p280 = pneg %p180
      %s281 = smul.u32 40, %s21
      %p282 = scmp.lt.s32.totalorder %s20, 1
      %s283 = scalar_select %p282, %s20, 1
      %p284 = scmp.lt.s32.totalorder %s281, 39
      %s285 = scalar_select %p284, %s281, 39
      %s286 = smul.addr %s283, 40
      %s287 = sadd.s32 %s285, %s286
      %s288 = smul.addr %s287, 4
      %s289 = scalar_lea.vmem %s5, %s288
      %s290 = smul.u32 40, %s21
      %p291 = scmp.lt.s32.totalorder %s20, 1
      %s292 = scalar_select %p291, %s20, 1
      %p293 = scmp.lt.s32.totalorder %s290, 39
      %s294 = scalar_select %p293, %s290, 39
      %s295 = smul.addr %s292, 40
      %s296 = sadd.s32 %s294, %s295
      %s297 = smul.addr %s296, 4
      %s298 = scalar_lea.vmem %s0, %s297
      %s299 = smul.u32 40, %s21
      %p300 = scmp.lt.s32.totalorder %s20, 1
      %s301 = scalar_select %p300, %s20, 1
      %s302 = smul.addr %s301, 2
      %s303 = scalar_lea.vmem %s1, %s302
      %p304 = scmp.lt.s32.totalorder %s20, 1
      %s305 = scalar_select %p304, %s20, 1
      %s306 = scalar_lea.vmem %s2, %s305
      %p307 = scmp.lt.s32.totalorder %s20, 1
      %s308 = scalar_select %p307, %s20, 1
      %s309 = scalar_lea.vmem %s3, %s308
      %p310 = scmp.lt.s32.totalorder %s20, 1
      %s311 = scalar_select %p310, %s20, 1
      %s312 = scalar_lea.vmem %s4, %s311
      %s313 = smul.u32 40, %s21
      %p314 = scmp.lt.s32.totalorder %s20, 1
      %s315 = scalar_select %p314, %s20, 1
      %p316 = scmp.lt.s32.totalorder %s313, 39
      %s317 = scalar_select %p316, %s313, 39
      %s318 = smul.addr %s315, 40
      %s319 = sadd.s32 %s317, %s318
      %s320 = smul.addr %s319, 4
      %s321 = scalar_lea.vmem %s5, %s320
      %s322 = smul.u32 40, %s21
      %v323 = vld [vmem:[%s298] sm:$0xf]
      %v324 = vld [vmem:[%s298 + $0x4] sm:$0xf]
      %v325 = vld [vmem:[%s298 + $0x8] sm:$0xf]
      %v326 = vld [vmem:[%s298 + $0xc] sm:$0xf]
      %v327 = vld [vmem:[%s298 + $0x10] sm:$0xf]
      %v328 = vld [vmem:[%s298 + $0x14] sm:$0xf]
      %v329 = vld [vmem:[%s298 + $0x18] sm:$0xf]
      %v330 = vld [vmem:[%s298 + $0x1c] sm:$0xf]
      %v331 = vld [vmem:[%s298 + $0x20] sm:$0xf]
      %v332 = vld [vmem:[%s298 + $0x24] sm:$0xf]
      %v333 = vld [vmem:[%s298 + $0x28] sm:$0xf]
      %v334 = vld [vmem:[%s298 + $0x2c] sm:$0xf]
      %v335 = vld [vmem:[%s298 + $0x30] sm:$0xf]
      %v336 = vld [vmem:[%s298 + $0x34] sm:$0xf]
      %v337 = vld [vmem:[%s298 + $0x38] sm:$0xf]
      %v338 = vld [vmem:[%s298 + $0x3c] sm:$0xf]
      %v339 = vld [vmem:[%s298 + $0x40] sm:$0xf]
      %v340 = vld [vmem:[%s298 + $0x44] sm:$0xf]
      %v341 = vld [vmem:[%s298 + $0x48] sm:$0xf]
      %v342 = vld [vmem:[%s298 + $0x4c] sm:$0xf]
      %v343 = vld [vmem:[%s298 + $0x50] sm:$0xf]
      %v344 = vld [vmem:[%s298 + $0x54] sm:$0xf]
      %v345 = vld [vmem:[%s298 + $0x58] sm:$0xf]
      %v346 = vld [vmem:[%s298 + $0x5c] sm:$0xf]
      %v347 = vld [vmem:[%s298 + $0x60] sm:$0xf]
      %v348 = vld [vmem:[%s298 + $0x64] sm:$0xf]
      %v349 = vld [vmem:[%s298 + $0x68] sm:$0xf]
      %v350 = vld [vmem:[%s298 + $0x6c] sm:$0xf]
      %v351 = vld [vmem:[%s298 + $0x70] sm:$0xf]
      %v352 = vld [vmem:[%s298 + $0x74] sm:$0xf]
      %v353 = vld [vmem:[%s298 + $0x78] sm:$0xf]
      %v354 = vld [vmem:[%s298 + $0x7c] sm:$0xf]
      %v355 = vld [vmem:[%s298 + $0x80] sm:$0xf]
      %v356 = vld [vmem:[%s298 + $0x84] sm:$0xf]
      %v357 = vld [vmem:[%s298 + $0x88] sm:$0xf]
      %v358 = vld [vmem:[%s298 + $0x8c] sm:$0xf]
      %v359 = vld [vmem:[%s298 + $0x90] sm:$0xf]
      %v360 = vld [vmem:[%s298 + $0x94] sm:$0xf]
      %v361 = vld [vmem:[%s298 + $0x98] sm:$0xf]
      %v362 = vld [vmem:[%s298 + $0x9c] sm:$0xf]
      %v363 = vunpack.c.l.bf16 %v323
      %v364 = vunpack.c.l.bf16 %v324
      %v365 = vunpack.c.l.bf16 %v325
      %v366 = vunpack.c.l.bf16 %v326
      %v367 = vunpack.c.l.bf16 %v327
      %v368 = vunpack.c.l.bf16 %v328
      %v369 = vunpack.c.l.bf16 %v329
      %v370 = vunpack.c.l.bf16 %v330
      %v371 = vunpack.c.l.bf16 %v331
      %v372 = vunpack.c.l.bf16 %v332
      %v373 = vunpack.c.l.bf16 %v333
      %v374 = vunpack.c.l.bf16 %v334
      %v375 = vunpack.c.l.bf16 %v335
      %v376 = vunpack.c.l.bf16 %v336
      %v377 = vunpack.c.l.bf16 %v337
      %v378 = vunpack.c.l.bf16 %v338
      %v379 = vunpack.c.l.bf16 %v339
      %v380 = vunpack.c.l.bf16 %v340
      %v381 = vunpack.c.l.bf16 %v341
      %v382 = vunpack.c.l.bf16 %v342
      %v383 = vunpack.c.l.bf16 %v343
      %v384 = vunpack.c.l.bf16 %v344
      %v385 = vunpack.c.l.bf16 %v345
      %v386 = vunpack.c.l.bf16 %v346
      %v387 = vunpack.c.l.bf16 %v347
      %v388 = vunpack.c.l.bf16 %v348
      %v389 = vunpack.c.l.bf16 %v349
      %v390 = vunpack.c.l.bf16 %v350
      %v391 = vunpack.c.l.bf16 %v351
      %v392 = vunpack.c.l.bf16 %v352
      %v393 = vunpack.c.l.bf16 %v353
      %v394 = vunpack.c.l.bf16 %v354
      %v395 = vunpack.c.l.bf16 %v355
      %v396 = vunpack.c.l.bf16 %v356
      %v397 = vunpack.c.l.bf16 %v357
      %v398 = vunpack.c.l.bf16 %v358
      %v399 = vunpack.c.l.bf16 %v359
      %v400 = vunpack.c.l.bf16 %v360
      %v401 = vunpack.c.l.bf16 %v361
      %v402 = vunpack.c.l.bf16 %v362
      %v403 = vld [vmem:[%s303] sm:$0x3]
      %v404 = vmul.f32 %v403, 0.003125
      %v405 = vmul.f32 %v404, %v404
      %v407 = vrot.slane %v405, 7
      %v409 = vsub.f32 %v404, %v407
      %v410 = vmax.f32 %v409, 0.0
      %v411 = vld [vmem:[%s306] sm:$0x1]
      %v412 = vadd.f32 %v410, 1e-05
      %v413 = vrsqrt.pop %v412
      %v414 = vmul.f32 %v413, %v412
      %v415 = vmul.f32 %v414, %v413
      %v416 = vmul.f32 0.5, %v415
      %v417 = vsub.f32 1.5, %v416
      %v418 = vmul.f32 %v413, %v417
      %vm419 = vweird.f32 %v412
      %vm420 = vweird.f32 %v413
      %vm421 = vmor %vm419, %vm420
      %v422 = vsel %vm421, %v413, %v418
      %424 = vst [vmem:[#allocation1] sm:$0xff] %v422
      %s425 = scalar_lea.vmem [#allocation1], 1
      %v426 = vld [vmem:[%s425] ss:$9 sm:$0xff]
      %v428 = vmul.f32 %v411, %v426
      %v429 = vld [vmem:[%s309] sm:$0x1]
      %v430 = vmul.f32 %v404, %v428
      %v431 = vsub.f32 %v429, %v430
      %v433 = vperm.slane %v428, 0
      %v435 = vmul.f32 %v363, %v433
      %v436 = vmul.f32 %v364, %v433
      %v437 = vmul.f32 %v365, %v433
      %v438 = vmul.f32 %v366, %v433
      %v439 = vmul.f32 %v367, %v433
      %v440 = vmul.f32 %v368, %v433
      %v441 = vmul.f32 %v369, %v433
      %v442 = vmul.f32 %v370, %v433
      %v443 = vmul.f32 %v371, %v433
      %v444 = vmul.f32 %v372, %v433
      %v445 = vmul.f32 %v373, %v433
      %v446 = vmul.f32 %v374, %v433
      %v447 = vmul.f32 %v375, %v433
      %v448 = vmul.f32 %v376, %v433
      %v449 = vmul.f32 %v377, %v433
      %v450 = vmul.f32 %v378, %v433
      %v451 = vmul.f32 %v379, %v433
      %v452 = vmul.f32 %v380, %v433
      %v453 = vmul.f32 %v381, %v433
      %v454 = vmul.f32 %v382, %v433
      %v455 = vmul.f32 %v383, %v433
      %v456 = vmul.f32 %v384, %v433
      %v457 = vmul.f32 %v385, %v433
      %v458 = vmul.f32 %v386, %v433
      %v459 = vmul.f32 %v387, %v433
      %v460 = vmul.f32 %v388, %v433
      %v461 = vmul.f32 %v389, %v433
      %v462 = vmul.f32 %v390, %v433
      %v463 = vmul.f32 %v391, %v433
      %v464 = vmul.f32 %v392, %v433
      %v465 = vmul.f32 %v393, %v433
      %v466 = vmul.f32 %v394, %v433
      %v467 = vmul.f32 %v395, %v433
      %v468 = vmul.f32 %v396, %v433
      %v469 = vmul.f32 %v397, %v433
      %v470 = vmul.f32 %v398, %v433
      %v471 = vmul.f32 %v399, %v433
      %v472 = vmul.f32 %v400, %v433
      %v473 = vmul.f32 %v401, %v433
      %v474 = vmul.f32 %v402, %v433
      %v476 = vperm.slane %v431, 0
      %v478 = vadd.f32 %v435, %v476
      %v479 = vadd.f32 %v436, %v476
      %v480 = vadd.f32 %v437, %v476
      %v481 = vadd.f32 %v438, %v476
      %v482 = vadd.f32 %v439, %v476
      %v483 = vadd.f32 %v440, %v476
      %v484 = vadd.f32 %v441, %v476
      %v485 = vadd.f32 %v442, %v476
      %v486 = vadd.f32 %v443, %v476
      %v487 = vadd.f32 %v444, %v476
      %v488 = vadd.f32 %v445, %v476
      %v489 = vadd.f32 %v446, %v476
      %v490 = vadd.f32 %v447, %v476
      %v491 = vadd.f32 %v448, %v476
      %v492 = vadd.f32 %v449, %v476
      %v493 = vadd.f32 %v450, %v476
      %v494 = vadd.f32 %v451, %v476
      %v495 = vadd.f32 %v452, %v476
      %v496 = vadd.f32 %v453, %v476
      %v497 = vadd.f32 %v454, %v476
      %v498 = vadd.f32 %v455, %v476
      %v499 = vadd.f32 %v456, %v476
      %v500 = vadd.f32 %v457, %v476
      %v501 = vadd.f32 %v458, %v476
      %v502 = vadd.f32 %v459, %v476
      %v503 = vadd.f32 %v460, %v476
      %v504 = vadd.f32 %v461, %v476
      %v505 = vadd.f32 %v462, %v476
      %v506 = vadd.f32 %v463, %v476
      %v507 = vadd.f32 %v464, %v476
      %v508 = vadd.f32 %v465, %v476
      %v509 = vadd.f32 %v466, %v476
      %v510 = vadd.f32 %v467, %v476
      %v511 = vadd.f32 %v468, %v476
      %v512 = vadd.f32 %v469, %v476
      %v513 = vadd.f32 %v470, %v476
      %v514 = vadd.f32 %v471, %v476
      %v515 = vadd.f32 %v472, %v476
      %v516 = vadd.f32 %v473, %v476
      %v517 = vadd.f32 %v474, %v476
      %vm518 = vcmp.ge.f32.partialorder %v478, 0.0
      %vm519 = vcmp.ge.f32.partialorder %v479, 0.0
      %vm520 = vcmp.ge.f32.partialorder %v480, 0.0
      %vm521 = vcmp.ge.f32.partialorder %v481, 0.0
      %vm522 = vcmp.ge.f32.partialorder %v482, 0.0
      %vm523 = vcmp.ge.f32.partialorder %v483, 0.0
      %vm524 = vcmp.ge.f32.partialorder %v484, 0.0
      %vm525 = vcmp.ge.f32.partialorder %v485, 0.0
      %vm526 = vcmp.ge.f32.partialorder %v486, 0.0
      %vm527 = vcmp.ge.f32.partialorder %v487, 0.0
      %vm528 = vcmp.ge.f32.partialorder %v488, 0.0
      %vm529 = vcmp.ge.f32.partialorder %v489, 0.0
      %vm530 = vcmp.ge.f32.partialorder %v490, 0.0
      %vm531 = vcmp.ge.f32.partialorder %v491, 0.0
      %vm532 = vcmp.ge.f32.partialorder %v492, 0.0
      %vm533 = vcmp.ge.f32.partialorder %v493, 0.0
      %vm534 = vcmp.ge.f32.partialorder %v494, 0.0
      %vm535 = vcmp.ge.f32.partialorder %v495, 0.0
      %vm536 = vcmp.ge.f32.partialorder %v496, 0.0
      %vm537 = vcmp.ge.f32.partialorder %v497, 0.0
      %vm538 = vcmp.ge.f32.partialorder %v498, 0.0
      %vm539 = vcmp.ge.f32.partialorder %v499, 0.0
      %vm540 = vcmp.ge.f32.partialorder %v500, 0.0
      %vm541 = vcmp.ge.f32.partialorder %v501, 0.0
      %vm542 = vcmp.ge.f32.partialorder %v502, 0.0
      %vm543 = vcmp.ge.f32.partialorder %v503, 0.0
      %vm544 = vcmp.ge.f32.partialorder %v504, 0.0
      %vm545 = vcmp.ge.f32.partialorder %v505, 0.0
      %vm546 = vcmp.ge.f32.partialorder %v506, 0.0
      %vm547 = vcmp.ge.f32.partialorder %v507, 0.0
      %vm548 = vcmp.ge.f32.partialorder %v508, 0.0
      %vm549 = vcmp.ge.f32.partialorder %v509, 0.0
      %vm550 = vcmp.ge.f32.partialorder %v510, 0.0
      %vm551 = vcmp.ge.f32.partialorder %v511, 0.0
      %vm552 = vcmp.ge.f32.partialorder %v512, 0.0
      %vm553 = vcmp.ge.f32.partialorder %v513, 0.0
      %vm554 = vcmp.ge.f32.partialorder %v514, 0.0
      %vm555 = vcmp.ge.f32.partialorder %v515, 0.0
      %vm556 = vcmp.ge.f32.partialorder %v516, 0.0
      %vm557 = vcmp.ge.f32.partialorder %v517, 0.0
      %v558 = vmul.f32 %v478, 0.1
      %v559 = vmul.f32 %v479, 0.1
      %v560 = vmul.f32 %v480, 0.1
      %v561 = vmul.f32 %v481, 0.1
      %v562 = vmul.f32 %v482, 0.1
      %v563 = vmul.f32 %v483, 0.1
      %v564 = vmul.f32 %v484, 0.1
      %v565 = vmul.f32 %v485, 0.1
      %v566 = vmul.f32 %v486, 0.1
      %v567 = vmul.f32 %v487, 0.1
      %v568 = vmul.f32 %v488, 0.1
      %v569 = vmul.f32 %v489, 0.1
      %v570 = vmul.f32 %v490, 0.1
      %v571 = vmul.f32 %v491, 0.1
      %v572 = vmul.f32 %v492, 0.1
      %v573 = vmul.f32 %v493, 0.1
      %v574 = vmul.f32 %v494, 0.1
      %v575 = vmul.f32 %v495, 0.1
      %v576 = vmul.f32 %v496, 0.1
      %v577 = vmul.f32 %v497, 0.1
      %v578 = vmul.f32 %v498, 0.1
      %v579 = vmul.f32 %v499, 0.1
      %v580 = vmul.f32 %v500, 0.1
      %v581 = vmul.f32 %v501, 0.1
      %v582 = vmul.f32 %v502, 0.1
      %v583 = vmul.f32 %v503, 0.1
      %v584 = vmul.f32 %v504, 0.1
      %v585 = vmul.f32 %v505, 0.1
      %v586 = vmul.f32 %v506, 0.1
      %v587 = vmul.f32 %v507, 0.1
      %v588 = vmul.f32 %v508, 0.1
      %v589 = vmul.f32 %v509, 0.1
      %v590 = vmul.f32 %v510, 0.1
      %v591 = vmul.f32 %v511, 0.1
      %v592 = vmul.f32 %v512, 0.1
      %v593 = vmul.f32 %v513, 0.1
      %v594 = vmul.f32 %v514, 0.1
      %v595 = vmul.f32 %v515, 0.1
      %v596 = vmul.f32 %v516, 0.1
      %v597 = vmul.f32 %v517, 0.1
      %v598 = vsel %vm518, %v478, %v558
      %v599 = vsel %vm519, %v479, %v559
      %v600 = vsel %vm520, %v480, %v560
      %v601 = vsel %vm521, %v481, %v561
      %v602 = vsel %vm522, %v482, %v562
      %v603 = vsel %vm523, %v483, %v563
      %v604 = vsel %vm524, %v484, %v564
      %v605 = vsel %vm525, %v485, %v565
      %v606 = vsel %vm526, %v486, %v566
      %v607 = vsel %vm527, %v487, %v567
      %v608 = vsel %vm528, %v488, %v568
      %v609 = vsel %vm529, %v489, %v569
      %v610 = vsel %vm530, %v490, %v570
      %v611 = vsel %vm531, %v491, %v571
      %v612 = vsel %vm532, %v492, %v572
      %v613 = vsel %vm533, %v493, %v573
      %v614 = vsel %vm534, %v494, %v574
      %v615 = vsel %vm535, %v495, %v575
      %v616 = vsel %vm536, %v496, %v576
      %v617 = vsel %vm537, %v497, %v577
      %v618 = vsel %vm538, %v498, %v578
      %v619 = vsel %vm539, %v499, %v579
      %v620 = vsel %vm540, %v500, %v580
      %v621 = vsel %vm541, %v501, %v581
      %v622 = vsel %vm542, %v502, %v582
      %v623 = vsel %vm543, %v503, %v583
      %v624 = vsel %vm544, %v504, %v584
      %v625 = vsel %vm545, %v505, %v585
      %v626 = vsel %vm546, %v506, %v586
      %v627 = vsel %vm547, %v507, %v587
      %v628 = vsel %vm548, %v508, %v588
      %v629 = vsel %vm549, %v509, %v589
      %v630 = vsel %vm550, %v510, %v590
      %v631 = vsel %vm551, %v511, %v591
      %v632 = vsel %vm552, %v512, %v592
      %v633 = vsel %vm553, %v513, %v593
      %v634 = vsel %vm554, %v514, %v594
      %v635 = vsel %vm555, %v515, %v595
      %v636 = vsel %vm556, %v516, %v596
      %v637 = vsel %vm557, %v517, %v597
      %v638 = vpack.c.bf16 %v598, %v598
      %v639 = vpack.c.bf16 %v599, %v599
      %v640 = vpack.c.bf16 %v600, %v600
      %v641 = vpack.c.bf16 %v601, %v601
      %v642 = vpack.c.bf16 %v602, %v602
      %v643 = vpack.c.bf16 %v603, %v603
      %v644 = vpack.c.bf16 %v604, %v604
      %v645 = vpack.c.bf16 %v605, %v605
      %v646 = vpack.c.bf16 %v606, %v606
      %v647 = vpack.c.bf16 %v607, %v607
      %v648 = vpack.c.bf16 %v608, %v608
      %v649 = vpack.c.bf16 %v609, %v609
      %v650 = vpack.c.bf16 %v610, %v610
      %v651 = vpack.c.bf16 %v611, %v611
      %v652 = vpack.c.bf16 %v612, %v612
      %v653 = vpack.c.bf16 %v613, %v613
      %v654 = vpack.c.bf16 %v614, %v614
      %v655 = vpack.c.bf16 %v615, %v615
      %v656 = vpack.c.bf16 %v616, %v616
      %v657 = vpack.c.bf16 %v617, %v617
      %v658 = vpack.c.bf16 %v618, %v618
      %v659 = vpack.c.bf16 %v619, %v619
      %v660 = vpack.c.bf16 %v620, %v620
      %v661 = vpack.c.bf16 %v621, %v621
      %v662 = vpack.c.bf16 %v622, %v622
      %v663 = vpack.c.bf16 %v623, %v623
      %v664 = vpack.c.bf16 %v624, %v624
      %v665 = vpack.c.bf16 %v625, %v625
      %v666 = vpack.c.bf16 %v626, %v626
      %v667 = vpack.c.bf16 %v627, %v627
      %v668 = vpack.c.bf16 %v628, %v628
      %v669 = vpack.c.bf16 %v629, %v629
      %v670 = vpack.c.bf16 %v630, %v630
      %v671 = vpack.c.bf16 %v631, %v631
      %v672 = vpack.c.bf16 %v632, %v632
      %v673 = vpack.c.bf16 %v633, %v633
      %v674 = vpack.c.bf16 %v634, %v634
      %v675 = vpack.c.bf16 %v635, %v635
      %v676 = vpack.c.bf16 %v636, %v636
      %v677 = vpack.c.bf16 %v637, %v637
      %678 = vst [vmem:[%s321] sm:$0xf] %v638
      %679 = vst [vmem:[%s321 + $0x4] sm:$0xf] %v639
      %680 = vst [vmem:[%s321 + $0x8] sm:$0xf] %v640
      %681 = vst [vmem:[%s321 + $0xc] sm:$0xf] %v641
      %682 = vst [vmem:[%s321 + $0x10] sm:$0xf] %v642
      %683 = vst [vmem:[%s321 + $0x14] sm:$0xf] %v643
      %684 = vst [vmem:[%s321 + $0x18] sm:$0xf] %v644
      %685 = vst [vmem:[%s321 + $0x1c] sm:$0xf] %v645
      %686 = vst [vmem:[%s321 + $0x20] sm:$0xf] %v646
      %687 = vst [vmem:[%s321 + $0x24] sm:$0xf] %v647
      %688 = vst [vmem:[%s321 + $0x28] sm:$0xf] %v648
      %689 = vst [vmem:[%s321 + $0x2c] sm:$0xf] %v649
      %690 = vst [vmem:[%s321 + $0x30] sm:$0xf] %v650
      %691 = vst [vmem:[%s321 + $0x34] sm:$0xf] %v651
      %692 = vst [vmem:[%s321 + $0x38] sm:$0xf] %v652
      %693 = vst [vmem:[%s321 + $0x3c] sm:$0xf] %v653
      %694 = vst [vmem:[%s321 + $0x40] sm:$0xf] %v654
      %695 = vst [vmem:[%s321 + $0x44] sm:$0xf] %v655
      %696 = vst [vmem:[%s321 + $0x48] sm:$0xf] %v656
      %697 = vst [vmem:[%s321 + $0x4c] sm:$0xf] %v657
      %698 = vst [vmem:[%s321 + $0x50] sm:$0xf] %v658
      %699 = vst [vmem:[%s321 + $0x54] sm:$0xf] %v659
      %700 = vst [vmem:[%s321 + $0x58] sm:$0xf] %v660
      %701 = vst [vmem:[%s321 + $0x5c] sm:$0xf] %v661
      %702 = vst [vmem:[%s321 + $0x60] sm:$0xf] %v662
      %703 = vst [vmem:[%s321 + $0x64] sm:$0xf] %v663
      %704 = vst [vmem:[%s321 + $0x68] sm:$0xf] %v664
      %705 = vst [vmem:[%s321 + $0x6c] sm:$0xf] %v665
      %706 = vst [vmem:[%s321 + $0x70] sm:$0xf] %v666
      %707 = vst [vmem:[%s321 + $0x74] sm:$0xf] %v667
      %708 = vst [vmem:[%s321 + $0x78] sm:$0xf] %v668
      %709 = vst [vmem:[%s321 + $0x7c] sm:$0xf] %v669
      %710 = vst [vmem:[%s321 + $0x80] sm:$0xf] %v670
      %711 = vst [vmem:[%s321 + $0x84] sm:$0xf] %v671
      %712 = vst [vmem:[%s321 + $0x88] sm:$0xf] %v672
      %713 = vst [vmem:[%s321 + $0x8c] sm:$0xf] %v673
      %714 = vst [vmem:[%s321 + $0x90] sm:$0xf] %v674
      %715 = vst [vmem:[%s321 + $0x94] sm:$0xf] %v675
      %716 = vst [vmem:[%s321 + $0x98] sm:$0xf] %v676
      %717 = vst [vmem:[%s321 + $0x9c] sm:$0xf] %v677
      %s718 = smul.u32 40, %s21
      %p719 = scmp.lt.s32.totalorder %s20, 1
      %s720 = scalar_select %p719, %s20, 1
      %p721 = scmp.lt.s32.totalorder %s718, 39
      %s722 = scalar_select %p721, %s718, 39
      %s723 = smul.addr %s720, 40
      %s724 = sadd.s32 %s722, %s723
      %s725 = smul.addr %s724, 4
      %s726 = scalar_lea.vmem %s5, %s725
      // Predicated region
      $region41: #{graph_triple_conv2d_net.23} parent=39 // pred_check
        %p727 = pneg %p180
      $region42: #{graph_triple_conv2d_net.23} parent=39 // pred_check_branch
        %729 = sbr.rel (%p727) target = $region44
      $region43: #{graph_triple_conv2d_net.23} parent=39 // pred_region
        %s730 = smul.u32 40, %s21
      $region44: #{graph_triple_conv2d_net.23} parent=39 // pred_fallthru
        _
    $region40: #{graph_triple_conv2d_net.23} parent=5 // pred_fallthru
      _
    %p731 = scmp.le.s32.totalorder 2, %s11
    // Predicated region
    $region45: #{graph_triple_conv2d_net.23} parent=5 // pred_check
      %p732 = pneg %p731
    $region46: #{graph_triple_conv2d_net.23} parent=5 // pred_check_branch
      %734 = sbr.rel (%p732) target = $region48
    $region47: #{graph_triple_conv2d_net.23} parent=5 // pred_region
      %s735 = ssub.s32 %s11, 2
      // Predicated region
      $region49: #{graph_triple_conv2d_net.23} parent=47 // pred_check
        %p736 = pneg %p186
      $region50: #{graph_triple_conv2d_net.23} parent=47 // pred_check_branch
        %738 = sbr.rel (%p736) target = $region52
      $region51: #{graph_triple_conv2d_net.23} parent=47 // pred_region
        %s739 = smul.u32 40, %s23
        %p740 = scmp.lt.s32.totalorder %s22, 1
        %s741 = scalar_select %p740, %s22, 1
        %p742 = scmp.lt.s32.totalorder %s739, 39
        %s743 = scalar_select %p742, %s739, 39
        %s744 = smul.addr %s741, 40
        %s745 = sadd.s32 %s743, %s744
        %s746 = smul.addr %s745, 4
        %s747 = scalar_lea.vmem %s5, %s746
      $region52: #{graph_triple_conv2d_net.23} parent=47 // pred_fallthru
        _
    $region48: #{graph_triple_conv2d_net.23} parent=5 // pred_fallthru
      _
  $region6: #{graph_triple_conv2d_net.23} parent=0 // loop_footer
    %s15 = sadd.s32 1, %s11
  $region7: #{graph_triple_conv2d_net.23} parent=0 // loop_footer_branch
    %10 = sbr.rel target = $region3
  $region8: #{graph_triple_conv2d_net.23} parent=0 // loop_exit
    _

// kernel: graph_triple_conv2d_net.22
$region0: #{graph_triple_conv2d_net.22}
  #allocation0 [shape = 'u32[]', space=smem, size = 0x4, offset = 0x4, fixed_abs, tag = 'smem constant byte address 0x4 - core index']
  #allocation1 [shape = 'u32[72,128]{1,0:T(1,128)}', space=vmem, size = 0x9000, scoped, tag = 'internal scratch']
  %s0 = inlined_call_operand.vmem [shape: bf16[2,320,128], index: 0, kind: input, shape index: {}]
  %s1 = inlined_call_operand.vmem [shape: f32[2,2,128], index: 1, kind: input, shape index: {}]
  %s2 = inlined_call_operand.vmem [shape: f32[2,1,128], index: 2, kind: input, shape index: {}]
  %s3 = inlined_call_operand.vmem [shape: f32[2,1,128], index: 3, kind: input, shape index: {}]
  %s4 = inlined_call_operand.vmem [shape: bf16[2,128,128], index: 4, kind: input, shape index: {}]
  %s5 = inlined_call_operand.vmem [shape: bf16[2,320,128], index: 5, kind: output, shape index: {0}]
  %s6 = inlined_call_operand.vmem [shape: f32[2,2,128], index: 6, kind: output, shape index: {1}]
  %7 = xla_tuple %s5, %s6
  %s8 = sld [smem:[#allocation0]]
  $region65: #{graph_triple_conv2d_net.22} parent=0
    _
  %s10 = ssub.s32 1, %s8
  %s11 = scalar_select 0, %s10, %s8
  loop: start=0, step=1, limit=4
  $region2: #{graph_triple_conv2d_net.22} parent=0 // loop_pre_header
    _
  $region3: #{graph_triple_conv2d_net.22} parent=0 // loop_header
    %s13 = sphi 0, %s17
    %p14 = scmp.ge.s32.totalorder %s13, 4
    %s20 = sphi 0, %s32
    %s21 = sphi 0, %s28
    %s22 = sphi 0, %s20
    %s23 = sphi 0, %s21
    %s24 = sphi 0, %s22
    %s25 = sphi 0, %s23
    %s37 = sphi 0, %s39
    %s40 = sphi 0, %s37
    %s41 = sphi 0, %s40
    %s57 = sphi 0, %s41
    %s63 = sphi 0, %s65
    %s66 = sphi 0, %s63
    %s67 = sphi 0, %s66
    %s83 = sphi 0, %s67
    %s89 = sphi 0, %s91
    %s92 = sphi 0, %s89
    %s93 = sphi 0, %s92
    %s109 = sphi 0, %s93
    %s115 = sphi 0, %s117
    %s118 = sphi 0, %s115
    %s119 = sphi 0, %s118
    %s135 = sphi 0, %s119
    %s141 = sphi 0, %s143
    %s144 = sphi 0, %s141
    %s145 = sphi 0, %s144
    %s161 = sphi 0, %s145
    %s169 = sphi 0, %s171
    %s172 = sphi 0, %s169
    %s173 = sphi 0, %s172
    %s189 = sphi 0, %s173
    %s195 = sphi 0, %s197
    %s198 = sphi 0, %s195
    %s199 = sphi 0, %s198
    %s215 = sphi 0, %s199
  $region4: #{graph_triple_conv2d_net.22} parent=0 // loop_header_branch
    %16 = sbr.rel (%p14) target = $region8
  $region5: #{graph_triple_conv2d_net.22} parent=0 // loop_body
    %s18 = ssub.s32 %s13, 1
    %s19 = ssub.s32 %s13, 2
    %s26 = sadd.s32 1, %s21
    %p27 = scmp.ge.s32.totalorder %s26, 1
    %s28 = scalar_select %p27, 0, %s26
    %s29 = sadd.s32 1, %s20
    %s30 = scalar_select %p27, %s29, %s20
    %p31 = scmp.ge.s32.totalorder %s30, 2
    %s32 = scalar_select %p31, 0, %s30
    %s33 = ssub.s32 %s20, %s32
    %s34 = ssub.s32 %s21, %s28
    %s35 = sor.u32 %s33, %s34
    %p36 = scmp.eq.s32.totalorder %s35, 0
    %s38 = sadd.s32 %s37, 1
    %s39 = scalar_select %p36, %s37, %s38
    %p42 = pneg %p36
    %p43 = scmp.eq.s32.totalorder %s13, 1
    %p44 = por %p42, %p43
    %p45 = scmp.ne.s32.totalorder %s37, %s40
    %p46 = scmp.eq.s32.totalorder %s13, 0
    %p47 = por %p45, %p46
    %p48 = scmp.ne.s32.totalorder %s37, %s40
    %p49 = scmp.eq.s32.totalorder %s18, 1
    %p50 = por %p48, %p49
    %p51 = scmp.ne.s32.totalorder %s40, %s41
    %p52 = scmp.eq.s32.totalorder %s18, 0
    %p53 = por %p51, %p52
    %p54 = scmp.ne.s32.totalorder %s40, %s41
    %p55 = scmp.eq.s32.totalorder %s19, 1
    %p56 = por %p54, %p55
    %p58 = scmp.ne.s32.totalorder %s41, %s57
    %p59 = scmp.eq.s32.totalorder %s19, 0
    %p60 = por %p58, %p59
    %s61 = ssub.s32 %s20, %s32
    %p62 = scmp.eq.s32.totalorder %s61, 0
    %s64 = sadd.s32 %s63, 1
    %s65 = scalar_select %p62, %s63, %s64
    %p68 = pneg %p62
    %p69 = scmp.eq.s32.totalorder %s13, 1
    %p70 = por %p68, %p69
    %p71 = scmp.ne.s32.totalorder %s63, %s66
    %p72 = scmp.eq.s32.totalorder %s13, 0
    %p73 = por %p71, %p72
    %p74 = scmp.ne.s32.totalorder %s63, %s66
    %p75 = scmp.eq.s32.totalorder %s18, 1
    %p76 = por %p74, %p75
    %p77 = scmp.ne.s32.totalorder %s66, %s67
    %p78 = scmp.eq.s32.totalorder %s18, 0
    %p79 = por %p77, %p78
    %p80 = scmp.ne.s32.totalorder %s66, %s67
    %p81 = scmp.eq.s32.totalorder %s19, 1
    %p82 = por %p80, %p81
    %p84 = scmp.ne.s32.totalorder %s67, %s83
    %p85 = scmp.eq.s32.totalorder %s19, 0
    %p86 = por %p84, %p85
    %s87 = ssub.s32 %s20, %s32
    %p88 = scmp.eq.s32.totalorder %s87, 0
    %s90 = sadd.s32 %s89, 1
    %s91 = scalar_select %p88, %s89, %s90
    %p94 = pneg %p88
    %p95 = scmp.eq.s32.totalorder %s13, 1
    %p96 = por %p94, %p95
    %p97 = scmp.ne.s32.totalorder %s89, %s92
    %p98 = scmp.eq.s32.totalorder %s13, 0
    %p99 = por %p97, %p98
    %p100 = scmp.ne.s32.totalorder %s89, %s92
    %p101 = scmp.eq.s32.totalorder %s18, 1
    %p102 = por %p100, %p101
    %p103 = scmp.ne.s32.totalorder %s92, %s93
    %p104 = scmp.eq.s32.totalorder %s18, 0
    %p105 = por %p103, %p104
    %p106 = scmp.ne.s32.totalorder %s92, %s93
    %p107 = scmp.eq.s32.totalorder %s19, 1
    %p108 = por %p106, %p107
    %p110 = scmp.ne.s32.totalorder %s93, %s109
    %p111 = scmp.eq.s32.totalorder %s19, 0
    %p112 = por %p110, %p111
    %s113 = ssub.s32 %s20, %s32
    %p114 = scmp.eq.s32.totalorder %s113, 0
    %s116 = sadd.s32 %s115, 1
    %s117 = scalar_select %p114, %s115, %s116
    %p120 = pneg %p114
    %p121 = scmp.eq.s32.totalorder %s13, 1
    %p122 = por %p120, %p121
    %p123 = scmp.ne.s32.totalorder %s115, %s118
    %p124 = scmp.eq.s32.totalorder %s13, 0
    %p125 = por %p123, %p124
    %p126 = scmp.ne.s32.totalorder %s115, %s118
    %p127 = scmp.eq.s32.totalorder %s18, 1
    %p128 = por %p126, %p127
    %p129 = scmp.ne.s32.totalorder %s118, %s119
    %p130 = scmp.eq.s32.totalorder %s18, 0
    %p131 = por %p129, %p130
    %p132 = scmp.ne.s32.totalorder %s118, %s119
    %p133 = scmp.eq.s32.totalorder %s19, 1
    %p134 = por %p132, %p133
    %p136 = scmp.ne.s32.totalorder %s119, %s135
    %p137 = scmp.eq.s32.totalorder %s19, 0
    %p138 = por %p136, %p137
    %s139 = ssub.s32 %s20, %s32
    %p140 = scmp.eq.s32.totalorder %s139, 0
    %s142 = sadd.s32 %s141, 1
    %s143 = scalar_select %p140, %s141, %s142
    %p146 = pneg %p140
    %p147 = scmp.eq.s32.totalorder %s13, 1
    %p148 = por %p146, %p147
    %p149 = scmp.ne.s32.totalorder %s141, %s144
    %p150 = scmp.eq.s32.totalorder %s13, 0
    %p151 = por %p149, %p150
    %p152 = scmp.ne.s32.totalorder %s141, %s144
    %p153 = scmp.eq.s32.totalorder %s18, 1
    %p154 = por %p152, %p153
    %p155 = scmp.ne.s32.totalorder %s144, %s145
    %p156 = scmp.eq.s32.totalorder %s18, 0
    %p157 = por %p155, %p156
    %p158 = scmp.ne.s32.totalorder %s144, %s145
    %p159 = scmp.eq.s32.totalorder %s19, 1
    %p160 = por %p158, %p159
    %p162 = scmp.ne.s32.totalorder %s145, %s161
    %p163 = scmp.eq.s32.totalorder %s19, 0
    %p164 = por %p162, %p163
    %s165 = ssub.s32 %s20, %s32
    %s166 = ssub.s32 %s21, %s28
    %s167 = sor.u32 %s165, %s166
    %p168 = scmp.eq.s32.totalorder %s167, 0
    %s170 = sadd.s32 %s169, 1
    %s171 = scalar_select %p168, %s169, %s170
    %p174 = pneg %p168
    %p175 = scmp.eq.s32.totalorder %s13, 1
    %p176 = por %p174, %p175
    %p177 = scmp.ne.s32.totalorder %s169, %s172
    %p178 = scmp.eq.s32.totalorder %s13, 0
    %p179 = por %p177, %p178
    %p180 = scmp.ne.s32.totalorder %s169, %s172
    %p181 = scmp.eq.s32.totalorder %s18, 1
    %p182 = por %p180, %p181
    %p183 = scmp.ne.s32.totalorder %s172, %s173
    %p184 = scmp.eq.s32.totalorder %s18, 0
    %p185 = por %p183, %p184
    %p186 = scmp.ne.s32.totalorder %s172, %s173
    %p187 = scmp.eq.s32.totalorder %s19, 1
    %p188 = por %p186, %p187
    %p190 = scmp.ne.s32.totalorder %s173, %s189
    %p191 = scmp.eq.s32.totalorder %s19, 0
    %p192 = por %p190, %p191
    %s193 = ssub.s32 %s20, %s32
    %p194 = scmp.eq.s32.totalorder %s193, 0
    %s196 = sadd.s32 %s195, 1
    %s197 = scalar_select %p194, %s195, %s196
    %p200 = pneg %p194
    %p201 = scmp.eq.s32.totalorder %s13, 1
    %p202 = por %p200, %p201
    %p203 = scmp.ne.s32.totalorder %s195, %s198
    %p204 = scmp.eq.s32.totalorder %s13, 0
    %p205 = por %p203, %p204
    %p206 = scmp.ne.s32.totalorder %s195, %s198
    %p207 = scmp.eq.s32.totalorder %s18, 1
    %p208 = por %p206, %p207
    %p209 = scmp.ne.s32.totalorder %s198, %s199
    %p210 = scmp.eq.s32.totalorder %s18, 0
    %p211 = por %p209, %p210
    %p212 = scmp.ne.s32.totalorder %s198, %s199
    %p213 = scmp.eq.s32.totalorder %s19, 1
    %p214 = por %p212, %p213
    %p216 = scmp.ne.s32.totalorder %s199, %s215
    %p217 = scmp.eq.s32.totalorder %s19, 0
    %p218 = por %p216, %p217
    %p219 = scmp.le.s32.totalorder 1, %s13
    %p220 = scmp.lt.s32.totalorder %s13, 3
    %p221 = pnand %p219, %p220
    %p222 = pneg %p221
    // Predicated region
    $region9: #{graph_triple_conv2d_net.22} parent=5 // pred_check
      _
    $region10: #{graph_triple_conv2d_net.22} parent=5 // pred_check_branch
      %224 = sbr.rel (%p221) target = $region12
    $region11: #{graph_triple_conv2d_net.22} parent=5 // pred_region
      %s225 = ssub.s32 %s13, 1
    $region12: #{graph_triple_conv2d_net.22} parent=5 // pred_fallthru
      _
    %p226 = scmp.lt.s32.totalorder %s13, 2
    // Predicated region
    $region13: #{graph_triple_conv2d_net.22} parent=5 // pred_check
      %p227 = pneg %p226
    $region14: #{graph_triple_conv2d_net.22} parent=5 // pred_check_branch
      %229 = sbr.rel (%p227) target = $region16
    $region15: #{graph_triple_conv2d_net.22} parent=5 // pred_region
      // Predicated region
      $region17: #{graph_triple_conv2d_net.22} parent=15 // pred_check
        %p230 = pneg %p47
      $region18: #{graph_triple_conv2d_net.22} parent=15 // pred_check_branch
        %232 = sbr.rel (%p230) target = $region20
      $region19: #{graph_triple_conv2d_net.22} parent=15 // pred_region
        %s233 = smul.u32 40, %s21
        %p234 = scmp.lt.s32.totalorder %s20, 1
        %s235 = scalar_select %p234, %s20, 1
        %p236 = scmp.lt.s32.totalorder %s233, 39
        %s237 = scalar_select %p236, %s233, 39
        %s238 = smul.addr %s235, 40
        %s239 = sadd.s32 %s237, %s238
        %s240 = smul.addr %s239, 4
        %s241 = scalar_lea.vmem %s0, %s240
        %s242 = smul.u32 40, %s21
      $region20: #{graph_triple_conv2d_net.22} parent=15 // pred_fallthru
        _
      // Predicated region
      $region21: #{graph_triple_conv2d_net.22} parent=15 // pred_check
        %p243 = pneg %p73
      $region22: #{graph_triple_conv2d_net.22} parent=15 // pred_check_branch
        %245 = sbr.rel (%p243) target = $region24
      $region23: #{graph_triple_conv2d_net.22} parent=15 // pred_region
        %p246 = scmp.lt.s32.totalorder %s20, 1
        %s247 = scalar_select %p246, %s20, 1
        %s248 = smul.addr %s247, 2
        %s249 = scalar_lea.vmem %s1, %s248
      $region24: #{graph_triple_conv2d_net.22} parent=15 // pred_fallthru
        _
      // Predicated region
      $region25: #{graph_triple_conv2d_net.22} parent=15 // pred_check
        %p250 = pneg %p99
      $region26: #{graph_triple_conv2d_net.22} parent=15 // pred_check_branch
        %252 = sbr.rel (%p250) target = $region28
      $region27: #{graph_triple_conv2d_net.22} parent=15 // pred_region
        %p253 = scmp.lt.s32.totalorder %s20, 1
        %s254 = scalar_select %p253, %s20, 1
        %s255 = scalar_lea.vmem %s2, %s254
      $region28: #{graph_triple_conv2d_net.22} parent=15 // pred_fallthru
        _
      // Predicated region
      $region29: #{graph_triple_conv2d_net.22} parent=15 // pred_check
        %p256 = pneg %p125
      $region30: #{graph_triple_conv2d_net.22} parent=15 // pred_check_branch
        %258 = sbr.rel (%p256) target = $region32
      $region31: #{graph_triple_conv2d_net.22} parent=15 // pred_region
        %p259 = scmp.lt.s32.totalorder %s20, 1
        %s260 = scalar_select %p259, %s20, 1
        %s261 = scalar_lea.vmem %s3, %s260
      $region32: #{graph_triple_conv2d_net.22} parent=15 // pred_fallthru
        _
      // Predicated region
      $region33: #{graph_triple_conv2d_net.22} parent=15 // pred_check
        %p262 = pneg %p151
      $region34: #{graph_triple_conv2d_net.22} parent=15 // pred_check_branch
        %264 = sbr.rel (%p262) target = $region36
      $region35: #{graph_triple_conv2d_net.22} parent=15 // pred_region
        %p265 = scmp.lt.s32.totalorder %s20, 1
        %s266 = scalar_select %p265, %s20, 1
        %s267 = smul.addr %s266, 16
        %s268 = smul.addr %s267, 4
        %s269 = scalar_lea.vmem %s4, %s268
      $region36: #{graph_triple_conv2d_net.22} parent=15 // pred_fallthru
        _
    $region16: #{graph_triple_conv2d_net.22} parent=5 // pred_fallthru
      _
    %p270 = scmp.le.s32.totalorder 1, %s13
    %p271 = scmp.lt.s32.totalorder %s13, 3
    %p272 = pnand %p270, %p271
    %p273 = pneg %p272
    // Predicated region
    $region37: #{graph_triple_conv2d_net.22} parent=5 // pred_check
      _
    $region38: #{graph_triple_conv2d_net.22} parent=5 // pred_check_branch
      %275 = sbr.rel (%p272) target = $region40
    $region39: #{graph_triple_conv2d_net.22} parent=5 // pred_region
      %s276 = ssub.s32 %s13, 1
      %s277 = smul.u32 40, %s23
      %p278 = scmp.lt.s32.totalorder %s22, 1
      %s279 = scalar_select %p278, %s22, 1
      %p280 = scmp.lt.s32.totalorder %s277, 39
      %s281 = scalar_select %p280, %s277, 39
      %s282 = smul.addr %s279, 40
      %s283 = sadd.s32 %s281, %s282
      %s284 = smul.addr %s283, 4
      %s285 = scalar_lea.vmem %s0, %s284
      %p286 = pneg %p53
      %p287 = pneg %p50
      %p288 = scmp.lt.s32.totalorder %s22, 1
      %s289 = scalar_select %p288, %s22, 1
      %s290 = smul.addr %s289, 2
      %s291 = scalar_lea.vmem %s1, %s290
      %p292 = pneg %p79
      %p293 = pneg %p76
      %p294 = scmp.lt.s32.totalorder %s22, 1
      %s295 = scalar_select %p294, %s22, 1
      %s296 = scalar_lea.vmem %s2, %s295
      %p297 = pneg %p105
      %p298 = pneg %p102
      %p299 = scmp.lt.s32.totalorder %s22, 1
      %s300 = scalar_select %p299, %s22, 1
      %s301 = scalar_lea.vmem %s3, %s300
      %p302 = pneg %p131
      %p303 = pneg %p128
      %p304 = scmp.lt.s32.totalorder %s22, 1
      %s305 = scalar_select %p304, %s22, 1
      %s306 = smul.addr %s305, 16
      %s307 = smul.addr %s306, 4
      %s308 = scalar_lea.vmem %s4, %s307
      %p309 = pneg %p157
      %p310 = pneg %p154
      %p311 = pneg %p185
      %p312 = pneg %p182
      %s313 = smul.u32 40, %s23
      %p314 = scmp.lt.s32.totalorder %s22, 1
      %s315 = scalar_select %p314, %s22, 1
      %p316 = scmp.lt.s32.totalorder %s313, 39
      %s317 = scalar_select %p316, %s313, 39
      %s318 = smul.addr %s315, 40
      %s319 = sadd.s32 %s317, %s318
      %s320 = smul.addr %s319, 4
      %s321 = scalar_lea.vmem %s5, %s320
      %p322 = pneg %p211
      %p323 = pneg %p208
      %p324 = scmp.lt.s32.totalorder %s22, 1
      %s325 = scalar_select %p324, %s22, 1
      %s326 = smul.addr %s325, 2
      %s327 = scalar_lea.vmem %s6, %s326
      %s328 = smul.u32 40, %s23
      %p329 = scmp.lt.s32.totalorder %s22, 1
      %s330 = scalar_select %p329, %s22, 1
      %p331 = scmp.lt.s32.totalorder %s328, 39
      %s332 = scalar_select %p331, %s328, 39
      %s333 = smul.addr %s330, 40
      %s334 = sadd.s32 %s332, %s333
      %s335 = smul.addr %s334, 4
      %s336 = scalar_lea.vmem %s0, %s335
      %s337 = smul.u32 40, %s23
      %p338 = scmp.lt.s32.totalorder %s22, 1
      %s339 = scalar_select %p338, %s22, 1
      %s340 = smul.addr %s339, 2
      %s341 = scalar_lea.vmem %s1, %s340
      %p342 = scmp.lt.s32.totalorder %s22, 1
      %s343 = scalar_select %p342, %s22, 1
      %s344 = scalar_lea.vmem %s2, %s343
      %p345 = scmp.lt.s32.totalorder %s22, 1
      %s346 = scalar_select %p345, %s22, 1
      %s347 = scalar_lea.vmem %s3, %s346
      %p348 = scmp.lt.s32.totalorder %s22, 1
      %s349 = scalar_select %p348, %s22, 1
      %s350 = smul.addr %s349, 16
      %s351 = smul.addr %s350, 4
      %s352 = scalar_lea.vmem %s4, %s351
      %s353 = smul.u32 40, %s23
      %p354 = scmp.lt.s32.totalorder %s22, 1
      %s355 = scalar_select %p354, %s22, 1
      %p356 = scmp.lt.s32.totalorder %s353, 39
      %s357 = scalar_select %p356, %s353, 39
      %s358 = smul.addr %s355, 40
      %s359 = sadd.s32 %s357, %s358
      %s360 = smul.addr %s359, 4
      %s361 = scalar_lea.vmem %s5, %s360
      %s362 = smul.u32 40, %s23
      %p363 = scmp.lt.s32.totalorder %s22, 1
      %s364 = scalar_select %p363, %s22, 1
      %s365 = smul.addr %s364, 2
      %s366 = scalar_lea.vmem %s6, %s365
      %v367 = vld [vmem:[%s336] sm:$0xf]
      %v368 = vld [vmem:[%s336 + $0x4] sm:$0xf]
      %v369 = vld [vmem:[%s336 + $0x8] sm:$0xf]
      %v370 = vld [vmem:[%s336 + $0xc] sm:$0xf]
      %v371 = vld [vmem:[%s336 + $0x10] sm:$0xf]
      %v372 = vld [vmem:[%s336 + $0x14] sm:$0xf]
      %v373 = vld [vmem:[%s336 + $0x18] sm:$0xf]
      %v374 = vld [vmem:[%s336 + $0x1c] sm:$0xf]
      %v375 = vld [vmem:[%s336 + $0x20] sm:$0xf]
      %v376 = vld [vmem:[%s336 + $0x24] sm:$0xf]
      %v377 = vld [vmem:[%s336 + $0x28] sm:$0xf]
      %v378 = vld [vmem:[%s336 + $0x2c] sm:$0xf]
      %v379 = vld [vmem:[%s336 + $0x30] sm:$0xf]
      %v380 = vld [vmem:[%s336 + $0x34] sm:$0xf]
      %v381 = vld [vmem:[%s336 + $0x38] sm:$0xf]
      %v382 = vld [vmem:[%s336 + $0x3c] sm:$0xf]
      %v383 = vld [vmem:[%s336 + $0x40] sm:$0xf]
      %v384 = vld [vmem:[%s336 + $0x44] sm:$0xf]
      %v385 = vld [vmem:[%s336 + $0x48] sm:$0xf]
      %v386 = vld [vmem:[%s336 + $0x4c] sm:$0xf]
      %v387 = vld [vmem:[%s336 + $0x50] sm:$0xf]
      %v388 = vld [vmem:[%s336 + $0x54] sm:$0xf]
      %v389 = vld [vmem:[%s336 + $0x58] sm:$0xf]
      %v390 = vld [vmem:[%s336 + $0x5c] sm:$0xf]
      %v391 = vld [vmem:[%s336 + $0x60] sm:$0xf]
      %v392 = vld [vmem:[%s336 + $0x64] sm:$0xf]
      %v393 = vld [vmem:[%s336 + $0x68] sm:$0xf]
      %v394 = vld [vmem:[%s336 + $0x6c] sm:$0xf]
      %v395 = vld [vmem:[%s336 + $0x70] sm:$0xf]
      %v396 = vld [vmem:[%s336 + $0x74] sm:$0xf]
      %v397 = vld [vmem:[%s336 + $0x78] sm:$0xf]
      %v398 = vld [vmem:[%s336 + $0x7c] sm:$0xf]
      %v399 = vld [vmem:[%s336 + $0x80] sm:$0xf]
      %v400 = vld [vmem:[%s336 + $0x84] sm:$0xf]
      %v401 = vld [vmem:[%s336 + $0x88] sm:$0xf]
      %v402 = vld [vmem:[%s336 + $0x8c] sm:$0xf]
      %v403 = vld [vmem:[%s336 + $0x90] sm:$0xf]
      %v404 = vld [vmem:[%s336 + $0x94] sm:$0xf]
      %v405 = vld [vmem:[%s336 + $0x98] sm:$0xf]
      %v406 = vld [vmem:[%s336 + $0x9c] sm:$0xf]
      %v407 = vunpack.c.l.bf16 %v367
      %v408 = vunpack.c.l.bf16 %v368
      %v409 = vunpack.c.l.bf16 %v369
      %v410 = vunpack.c.l.bf16 %v370
      %v411 = vunpack.c.l.bf16 %v371
      %v412 = vunpack.c.l.bf16 %v372
      %v413 = vunpack.c.l.bf16 %v373
      %v414 = vunpack.c.l.bf16 %v374
      %v415 = vunpack.c.l.bf16 %v375
      %v416 = vunpack.c.l.bf16 %v376
      %v417 = vunpack.c.l.bf16 %v377
      %v418 = vunpack.c.l.bf16 %v378
      %v419 = vunpack.c.l.bf16 %v379
      %v420 = vunpack.c.l.bf16 %v380
      %v421 = vunpack.c.l.bf16 %v381
      %v422 = vunpack.c.l.bf16 %v382
      %v423 = vunpack.c.l.bf16 %v383
      %v424 = vunpack.c.l.bf16 %v384
      %v425 = vunpack.c.l.bf16 %v385
      %v426 = vunpack.c.l.bf16 %v386
      %v427 = vunpack.c.l.bf16 %v387
      %v428 = vunpack.c.l.bf16 %v388
      %v429 = vunpack.c.l.bf16 %v389
      %v430 = vunpack.c.l.bf16 %v390
      %v431 = vunpack.c.l.bf16 %v391
      %v432 = vunpack.c.l.bf16 %v392
      %v433 = vunpack.c.l.bf16 %v393
      %v434 = vunpack.c.l.bf16 %v394
      %v435 = vunpack.c.l.bf16 %v395
      %v436 = vunpack.c.l.bf16 %v396
      %v437 = vunpack.c.l.bf16 %v397
      %v438 = vunpack.c.l.bf16 %v398
      %v439 = vunpack.c.l.bf16 %v399
      %v440 = vunpack.c.l.bf16 %v400
      %v441 = vunpack.c.l.bf16 %v401
      %v442 = vunpack.c.l.bf16 %v402
      %v443 = vunpack.c.l.bf16 %v403
      %v444 = vunpack.c.l.bf16 %v404
      %v445 = vunpack.c.l.bf16 %v405
      %v446 = vunpack.c.l.bf16 %v406
      %v447 = vld [vmem:[%s341] sm:$0x3]
      %v448 = vmul.f32 %v447, 0.003125
      %v449 = vmul.f32 %v448, %v448
      %v451 = vrot.slane %v449, 7
      %v453 = vsub.f32 %v448, %v451
      %v454 = vmax.f32 %v453, 0.0
      %v455 = vld [vmem:[%s344] sm:$0x1]
      %v456 = vadd.f32 %v454, 1e-05
      %v457 = vrsqrt.pop %v456
      %v458 = vmul.f32 %v457, %v456
      %v459 = vmul.f32 %v458, %v457
      %v460 = vmul.f32 0.5, %v459
      %v461 = vsub.f32 1.5, %v460
      %v462 = vmul.f32 %v457, %v461
      %vm463 = vweird.f32 %v456
      %vm464 = vweird.f32 %v457
      %vm465 = vmor %vm463, %vm464
      %v466 = vsel %vm465, %v457, %v462
      %468 = vst [vmem:[#allocation1] sm:$0xff] %v466
      %s469 = scalar_lea.vmem [#allocation1], 1
      %v470 = vld [vmem:[%s469] ss:$9 sm:$0xff]
      %v472 = vmul.f32 %v455, %v470
      %v473 = vld [vmem:[%s347] sm:$0x1]
      %v474 = vmul.f32 %v448, %v472
      %v475 = vsub.f32 %v473, %v474
      %v477 = vperm.slane %v472, 0
      %v479 = vmul.f32 %v407, %v477
      %v480 = vmul.f32 %v408, %v477
      %v481 = vmul.f32 %v409, %v477
      %v482 = vmul.f32 %v410, %v477
      %v483 = vmul.f32 %v411, %v477
      %v484 = vmul.f32 %v412, %v477
      %v485 = vmul.f32 %v413, %v477
      %v486 = vmul.f32 %v414, %v477
      %v487 = vmul.f32 %v415, %v477
      %v488 = vmul.f32 %v416, %v477
      %v489 = vmul.f32 %v417, %v477
      %v490 = vmul.f32 %v418, %v477
      %v491 = vmul.f32 %v419, %v477
      %v492 = vmul.f32 %v420, %v477
      %v493 = vmul.f32 %v421, %v477
      %v494 = vmul.f32 %v422, %v477
      %v495 = vmul.f32 %v423, %v477
      %v496 = vmul.f32 %v424, %v477
      %v497 = vmul.f32 %v425, %v477
      %v498 = vmul.f32 %v426, %v477
      %v499 = vmul.f32 %v427, %v477
      %v500 = vmul.f32 %v428, %v477
      %v501 = vmul.f32 %v429, %v477
      %v502 = vmul.f32 %v430, %v477
      %v503 = vmul.f32 %v431, %v477
      %v504 = vmul.f32 %v432, %v477
      %v505 = vmul.f32 %v433, %v477
      %v506 = vmul.f32 %v434, %v477
      %v507 = vmul.f32 %v435, %v477
      %v508 = vmul.f32 %v436, %v477
      %v509 = vmul.f32 %v437, %v477
      %v510 = vmul.f32 %v438, %v477
      %v511 = vmul.f32 %v439, %v477
      %v512 = vmul.f32 %v440, %v477
      %v513 = vmul.f32 %v441, %v477
      %v514 = vmul.f32 %v442, %v477
      %v515 = vmul.f32 %v443, %v477
      %v516 = vmul.f32 %v444, %v477
      %v517 = vmul.f32 %v445, %v477
      %v518 = vmul.f32 %v446, %v477
      %v520 = vperm.slane %v475, 0
      %v522 = vadd.f32 %v479, %v520
      %v523 = vadd.f32 %v480, %v520
      %v524 = vadd.f32 %v481, %v520
      %v525 = vadd.f32 %v482, %v520
      %v526 = vadd.f32 %v483, %v520
      %v527 = vadd.f32 %v484, %v520
      %v528 = vadd.f32 %v485, %v520
      %v529 = vadd.f32 %v486, %v520
      %v530 = vadd.f32 %v487, %v520
      %v531 = vadd.f32 %v488, %v520
      %v532 = vadd.f32 %v489, %v520
      %v533 = vadd.f32 %v490, %v520
      %v534 = vadd.f32 %v491, %v520
      %v535 = vadd.f32 %v492, %v520
      %v536 = vadd.f32 %v493, %v520
      %v537 = vadd.f32 %v494, %v520
      %v538 = vadd.f32 %v495, %v520
      %v539 = vadd.f32 %v496, %v520
      %v540 = vadd.f32 %v497, %v520
      %v541 = vadd.f32 %v498, %v520
      %v542 = vadd.f32 %v499, %v520
      %v543 = vadd.f32 %v500, %v520
      %v544 = vadd.f32 %v501, %v520
      %v545 = vadd.f32 %v502, %v520
      %v546 = vadd.f32 %v503, %v520
      %v547 = vadd.f32 %v504, %v520
      %v548 = vadd.f32 %v505, %v520
      %v549 = vadd.f32 %v506, %v520
      %v550 = vadd.f32 %v507, %v520
      %v551 = vadd.f32 %v508, %v520
      %v552 = vadd.f32 %v509, %v520
      %v553 = vadd.f32 %v510, %v520
      %v554 = vadd.f32 %v511, %v520
      %v555 = vadd.f32 %v512, %v520
      %v556 = vadd.f32 %v513, %v520
      %v557 = vadd.f32 %v514, %v520
      %v558 = vadd.f32 %v515, %v520
      %v559 = vadd.f32 %v516, %v520
      %v560 = vadd.f32 %v517, %v520
      %v561 = vadd.f32 %v518, %v520
      %vm562 = vcmp.ge.f32.partialorder %v522, 0.0
      %vm563 = vcmp.ge.f32.partialorder %v523, 0.0
      %vm564 = vcmp.ge.f32.partialorder %v524, 0.0
      %vm565 = vcmp.ge.f32.partialorder %v525, 0.0
      %vm566 = vcmp.ge.f32.partialorder %v526, 0.0
      %vm567 = vcmp.ge.f32.partialorder %v527, 0.0
      %vm568 = vcmp.ge.f32.partialorder %v528, 0.0
      %vm569 = vcmp.ge.f32.partialorder %v529, 0.0
      %vm570 = vcmp.ge.f32.partialorder %v530, 0.0
      %vm571 = vcmp.ge.f32.partialorder %v531, 0.0
      %vm572 = vcmp.ge.f32.partialorder %v532, 0.0
      %vm573 = vcmp.ge.f32.partialorder %v533, 0.0
      %vm574 = vcmp.ge.f32.partialorder %v534, 0.0
      %vm575 = vcmp.ge.f32.partialorder %v535, 0.0
      %vm576 = vcmp.ge.f32.partialorder %v536, 0.0
      %vm577 = vcmp.ge.f32.partialorder %v537, 0.0
      %vm578 = vcmp.ge.f32.partialorder %v538, 0.0
      %vm579 = vcmp.ge.f32.partialorder %v539, 0.0
      %vm580 = vcmp.ge.f32.partialorder %v540, 0.0
      %vm581 = vcmp.ge.f32.partialorder %v541, 0.0
      %vm582 = vcmp.ge.f32.partialorder %v542, 0.0
      %vm583 = vcmp.ge.f32.partialorder %v543, 0.0
      %vm584 = vcmp.ge.f32.partialorder %v544, 0.0
      %vm585 = vcmp.ge.f32.partialorder %v545, 0.0
      %vm586 = vcmp.ge.f32.partialorder %v546, 0.0
      %vm587 = vcmp.ge.f32.partialorder %v547, 0.0
      %vm588 = vcmp.ge.f32.partialorder %v548, 0.0
      %vm589 = vcmp.ge.f32.partialorder %v549, 0.0
      %vm590 = vcmp.ge.f32.partialorder %v550, 0.0
      %vm591 = vcmp.ge.f32.partialorder %v551, 0.0
      %vm592 = vcmp.ge.f32.partialorder %v552, 0.0
      %vm593 = vcmp.ge.f32.partialorder %v553, 0.0
      %vm594 = vcmp.ge.f32.partialorder %v554, 0.0
      %vm595 = vcmp.ge.f32.partialorder %v555, 0.0
      %vm596 = vcmp.ge.f32.partialorder %v556, 0.0
      %vm597 = vcmp.ge.f32.partialorder %v557, 0.0
      %vm598 = vcmp.ge.f32.partialorder %v558, 0.0
      %vm599 = vcmp.ge.f32.partialorder %v559, 0.0
      %vm600 = vcmp.ge.f32.partialorder %v560, 0.0
      %vm601 = vcmp.ge.f32.partialorder %v561, 0.0
      %v602 = vmul.f32 %v522, 0.1
      %v603 = vmul.f32 %v523, 0.1
      %v604 = vmul.f32 %v524, 0.1
      %v605 = vmul.f32 %v525, 0.1
      %v606 = vmul.f32 %v526, 0.1
      %v607 = vmul.f32 %v527, 0.1
      %v608 = vmul.f32 %v528, 0.1
      %v609 = vmul.f32 %v529, 0.1
      %v610 = vmul.f32 %v530, 0.1
      %v611 = vmul.f32 %v531, 0.1
      %v612 = vmul.f32 %v532, 0.1
      %v613 = vmul.f32 %v533, 0.1
      %v614 = vmul.f32 %v534, 0.1
      %v615 = vmul.f32 %v535, 0.1
      %v616 = vmul.f32 %v536, 0.1
      %v617 = vmul.f32 %v537, 0.1
      %v618 = vmul.f32 %v538, 0.1
      %v619 = vmul.f32 %v539, 0.1
      %v620 = vmul.f32 %v540, 0.1
      %v621 = vmul.f32 %v541, 0.1
      %v622 = vmul.f32 %v542, 0.1
      %v623 = vmul.f32 %v543, 0.1
      %v624 = vmul.f32 %v544, 0.1
      %v625 = vmul.f32 %v545, 0.1
      %v626 = vmul.f32 %v546, 0.1
      %v627 = vmul.f32 %v547, 0.1
      %v628 = vmul.f32 %v548, 0.1
      %v629 = vmul.f32 %v549, 0.1
      %v630 = vmul.f32 %v550, 0.1
      %v631 = vmul.f32 %v551, 0.1
      %v632 = vmul.f32 %v552, 0.1
      %v633 = vmul.f32 %v553, 0.1
      %v634 = vmul.f32 %v554, 0.1
      %v635 = vmul.f32 %v555, 0.1
      %v636 = vmul.f32 %v556, 0.1
      %v637 = vmul.f32 %v557, 0.1
      %v638 = vmul.f32 %v558, 0.1
      %v639 = vmul.f32 %v559, 0.1
      %v640 = vmul.f32 %v560, 0.1
      %v641 = vmul.f32 %v561, 0.1
      %v642 = vsel %vm562, %v522, %v602
      %v643 = vsel %vm563, %v523, %v603
      %v644 = vsel %vm564, %v524, %v604
      %v645 = vsel %vm565, %v525, %v605
      %v646 = vsel %vm566, %v526, %v606
      %v647 = vsel %vm567, %v527, %v607
      %v648 = vsel %vm568, %v528, %v608
      %v649 = vsel %vm569, %v529, %v609
      %v650 = vsel %vm570, %v530, %v610
      %v651 = vsel %vm571, %v531, %v611
      %v652 = vsel %vm572, %v532, %v612
      %v653 = vsel %vm573, %v533, %v613
      %v654 = vsel %vm574, %v534, %v614
      %v655 = vsel %vm575, %v535, %v615
      %v656 = vsel %vm576, %v536, %v616
      %v657 = vsel %vm577, %v537, %v617
      %v658 = vsel %vm578, %v538, %v618
      %v659 = vsel %vm579, %v539, %v619
      %v660 = vsel %vm580, %v540, %v620
      %v661 = vsel %vm581, %v541, %v621
      %v662 = vsel %vm582, %v542, %v622
      %v663 = vsel %vm583, %v543, %v623
      %v664 = vsel %vm584, %v544, %v624
      %v665 = vsel %vm585, %v545, %v625
      %v666 = vsel %vm586, %v546, %v626
      %v667 = vsel %vm587, %v547, %v627
      %v668 = vsel %vm588, %v548, %v628
      %v669 = vsel %vm589, %v549, %v629
      %v670 = vsel %vm590, %v550, %v630
      %v671 = vsel %vm591, %v551, %v631
      %v672 = vsel %vm592, %v552, %v632
      %v673 = vsel %vm593, %v553, %v633
      %v674 = vsel %vm594, %v554, %v634
      %v675 = vsel %vm595, %v555, %v635
      %v676 = vsel %vm596, %v556, %v636
      %v677 = vsel %vm597, %v557, %v637
      %v678 = vsel %vm598, %v558, %v638
      %v679 = vsel %vm599, %v559, %v639
      %v680 = vsel %vm600, %v560, %v640
      %v681 = vsel %vm601, %v561, %v641
      %v682 = vpack.c.bf16 %v643, %v642
      %v683 = vpack.c.bf16 %v645, %v644
      %v684 = vpack.c.bf16 %v647, %v646
      %v685 = vpack.c.bf16 %v649, %v648
      %v686 = vpack.c.bf16 %v651, %v650
      %v687 = vpack.c.bf16 %v653, %v652
      %v688 = vpack.c.bf16 %v655, %v654
      %v689 = vpack.c.bf16 %v657, %v656
      %v690 = vpack.c.bf16 %v659, %v658
      %v691 = vpack.c.bf16 %v661, %v660
      %v692 = vpack.c.bf16 %v663, %v662
      %v693 = vpack.c.bf16 %v665, %v664
      %v694 = vpack.c.bf16 %v667, %v666
      %v695 = vpack.c.bf16 %v669, %v668
      %v696 = vpack.c.bf16 %v671, %v670
      %v697 = vpack.c.bf16 %v673, %v672
      %v698 = vpack.c.bf16 %v675, %v674
      %v699 = vpack.c.bf16 %v677, %v676
      %v700 = vpack.c.bf16 %v679, %v678
      %v701 = vpack.c.bf16 %v681, %v680
      %v702 = vld [vmem:[%s352] sm:$0xf]
      %v703 = vld [vmem:[%s352 + $0x4] sm:$0xf]
      %v704 = vld [vmem:[%s352 + $0x8] sm:$0xf]
      %v705 = vld [vmem:[%s352 + $0xc] sm:$0xf]
      %v706 = vld [vmem:[%s352 + $0x10] sm:$0xf]
      %v707 = vld [vmem:[%s352 + $0x14] sm:$0xf]
      %v708 = vld [vmem:[%s352 + $0x18] sm:$0xf]
      %v709 = vld [vmem:[%s352 + $0x1c] sm:$0xf]
      %v710 = vld [vmem:[%s352 + $0x20] sm:$0xf]
      %v711 = vld [vmem:[%s352 + $0x24] sm:$0xf]
      %v712 = vld [vmem:[%s352 + $0x28] sm:$0xf]
      %v713 = vld [vmem:[%s352 + $0x2c] sm:$0xf]
      %v714 = vld [vmem:[%s352 + $0x30] sm:$0xf]
      %v715 = vld [vmem:[%s352 + $0x34] sm:$0xf]
      %v716 = vld [vmem:[%s352 + $0x38] sm:$0xf]
      %v717 = vld [vmem:[%s352 + $0x3c] sm:$0xf]
      %v734 = vunpack.c.l.b16 %v702
      %v735 = vunpack.c.l.b16 %v703
      %v736 = vunpack.c.l.b16 %v704
      %v737 = vunpack.c.l.b16 %v705
      %v738 = vunpack.c.l.b16 %v706
      %v739 = vunpack.c.l.b16 %v707
      %v740 = vunpack.c.l.b16 %v708
      %v741 = vunpack.c.l.b16 %v709
      %v742 = vunpack.c.l.b16 %v710
      %v743 = vunpack.c.l.b16 %v711
      %v744 = vunpack.c.l.b16 %v712
      %v745 = vunpack.c.l.b16 %v713
      %v746 = vunpack.c.l.b16 %v714
      %v747 = vunpack.c.l.b16 %v715
      %v748 = vunpack.c.l.b16 %v716
      %v749 = vunpack.c.l.b16 %v717
      %v750 = vpack.c.b16 %v735, %v734
      %v751 = vpack.c.b16 %v737, %v736
      %v752 = vpack.c.b16 %v739, %v738
      %v753 = vpack.c.b16 %v741, %v740
      %v754 = vpack.c.b16 %v743, %v742
      %v755 = vpack.c.b16 %v745, %v744
      %v756 = vpack.c.b16 %v747, %v746
      %v757 = vpack.c.b16 %v749, %v748
      %766 = vmatpush.bf16.msra.mxu0 %v757
      %767 = vmatpush.bf16.msra.mxu0 %v756
      %768 = vmatpush.bf16.msra.mxu0 %v755
      %769 = vmatpush.bf16.msra.mxu0 %v754
      %770 = vmatpush.bf16.msra.mxu0 %v753
      %771 = vmatpush.bf16.msra.mxu0 %v752
      %772 = vmatpush.bf16.msra.mxu0 %v751
      %773 = vmatpush.bf16.msra.mxu0 %v750
      %774 = vmatmul.bf16.gmra.mxu0 %v682
      %v775 = vpop.f32.mrf.mxu0
      %v776 = vadd.f32 0.0, %v775
      %v777 = vpop.f32.mrf.mxu0
      %v778 = vadd.f32 0.0, %v777
      %779 = vmatmul.bf16.gmra.mxu0 %v683
      %v780 = vpop.f32.mrf.mxu0
      %v781 = vadd.f32 0.0, %v780
      %v782 = vpop.f32.mrf.mxu0
      %v783 = vadd.f32 0.0, %v782
      %784 = vmatmul.bf16.gmra.mxu0 %v684
      %v785 = vpop.f32.mrf.mxu0
      %v786 = vadd.f32 0.0, %v785
      %v787 = vpop.f32.mrf.mxu0
      %v788 = vadd.f32 0.0, %v787
      %789 = vmatmul.bf16.gmra.mxu0 %v685
      %v790 = vpop.f32.mrf.mxu0
      %v791 = vadd.f32 0.0, %v790
      %v792 = vpop.f32.mrf.mxu0
      %v793 = vadd.f32 0.0, %v792
      %794 = vmatmul.bf16.gmra.mxu0 %v686
      %v795 = vpop.f32.mrf.mxu0
      %v796 = vadd.f32 0.0, %v795
      %v797 = vpop.f32.mrf.mxu0
      %v798 = vadd.f32 0.0, %v797
      %799 = vmatmul.bf16.gmra.mxu0 %v687
      %v800 = vpop.f32.mrf.mxu0
      %v801 = vadd.f32 0.0, %v800
      %v802 = vpop.f32.mrf.mxu0
      %v803 = vadd.f32 0.0, %v802
      %804 = vmatmul.bf16.gmra.mxu0 %v688
      %v805 = vpop.f32.mrf.mxu0
      %v806 = vadd.f32 0.0, %v805
      %v807 = vpop.f32.mrf.mxu0
      %v808 = vadd.f32 0.0, %v807
      %809 = vmatmul.bf16.gmra.mxu0 %v689
      %v810 = vpop.f32.mrf.mxu0
      %v811 = vadd.f32 0.0, %v810
      %v812 = vpop.f32.mrf.mxu0
      %v813 = vadd.f32 0.0, %v812
      %814 = vmatmul.bf16.gmra.mxu0 %v690
      %v815 = vpop.f32.mrf.mxu0
      %v816 = vadd.f32 0.0, %v815
      %v817 = vpop.f32.mrf.mxu0
      %v818 = vadd.f32 0.0, %v817
      %819 = vmatmul.bf16.gmra.mxu0 %v691
      %v820 = vpop.f32.mrf.mxu0
      %v821 = vadd.f32 0.0, %v820
      %v822 = vpop.f32.mrf.mxu0
      %v823 = vadd.f32 0.0, %v822
      %824 = vmatmul.bf16.gmra.mxu0 %v692
      %v825 = vpop.f32.mrf.mxu0
      %v826 = vadd.f32 0.0, %v825
      %v827 = vpop.f32.mrf.mxu0
      %v828 = vadd.f32 0.0, %v827
      %829 = vmatmul.bf16.gmra.mxu0 %v693
      %v830 = vpop.f32.mrf.mxu0
      %v831 = vadd.f32 0.0, %v830
      %v832 = vpop.f32.mrf.mxu0
      %v833 = vadd.f32 0.0, %v832
      %834 = vmatmul.bf16.gmra.mxu0 %v694
      %v835 = vpop.f32.mrf.mxu0
      %v836 = vadd.f32 0.0, %v835
      %v837 = vpop.f32.mrf.mxu0
      %v838 = vadd.f32 0.0, %v837
      %839 = vmatmul.bf16.gmra.mxu0 %v695
      %v840 = vpop.f32.mrf.mxu0
      %v841 = vadd.f32 0.0, %v840
      %v842 = vpop.f32.mrf.mxu0
      %v843 = vadd.f32 0.0, %v842
      %844 = vmatmul.bf16.gmra.mxu0 %v696
      %v845 = vpop.f32.mrf.mxu0
      %v846 = vadd.f32 0.0, %v845
      %v847 = vpop.f32.mrf.mxu0
      %v848 = vadd.f32 0.0, %v847
      %849 = vmatmul.bf16.gmra.mxu0 %v697
      %v850 = vpop.f32.mrf.mxu0
      %v851 = vadd.f32 0.0, %v850
      %v852 = vpop.f32.mrf.mxu0
      %v853 = vadd.f32 0.0, %v852
      %854 = vmatmul.bf16.gmra.mxu0 %v698
      %v855 = vpop.f32.mrf.mxu0
      %v856 = vadd.f32 0.0, %v855
      %v857 = vpop.f32.mrf.mxu0
      %v858 = vadd.f32 0.0, %v857
      %859 = vmatmul.bf16.gmra.mxu0 %v699
      %v860 = vpop.f32.mrf.mxu0
      %v861 = vadd.f32 0.0, %v860
      %v862 = vpop.f32.mrf.mxu0
      %v863 = vadd.f32 0.0, %v862
      %864 = vmatmul.bf16.gmra.mxu0 %v700
      %v865 = vpop.f32.mrf.mxu0
      %v866 = vadd.f32 0.0, %v865
      %v867 = vpop.f32.mrf.mxu0
      %v868 = vadd.f32 0.0, %v867
      %869 = vmatmul.bf16.gmra.mxu0 %v701
      %v870 = vpop.f32.mrf.mxu0
      %v871 = vadd.f32 0.0, %v870
      %v872 = vpop.f32.mrf.mxu0
      %v873 = vadd.f32 0.0, %v872
      %874 = vdwg.mxu0
      %v875 = vpack.c.bf16 %v776, %v776
      %v876 = vpack.c.bf16 %v778, %v778
      %v877 = vpack.c.bf16 %v781, %v781
      %v878 = vpack.c.bf16 %v783, %v783
      %v879 = vpack.c.bf16 %v786, %v786
      %v880 = vpack.c.bf16 %v788, %v788
      %v881 = vpack.c.bf16 %v791, %v791
      %v882 = vpack.c.bf16 %v793, %v793
      %v883 = vpack.c.bf16 %v796, %v796
      %v884 = vpack.c.bf16 %v798, %v798
      %v885 = vpack.c.bf16 %v801, %v801
      %v886 = vpack.c.bf16 %v803, %v803
      %v887 = vpack.c.bf16 %v806, %v806
      %v888 = vpack.c.bf16 %v808, %v808
      %v889 = vpack.c.bf16 %v811, %v811
      %v890 = vpack.c.bf16 %v813, %v813
      %v891 = vpack.c.bf16 %v816, %v816
      %v892 = vpack.c.bf16 %v818, %v818
      %v893 = vpack.c.bf16 %v821, %v821
      %v894 = vpack.c.bf16 %v823, %v823
      %v895 = vpack.c.bf16 %v826, %v826
      %v896 = vpack.c.bf16 %v828, %v828
      %v897 = vpack.c.bf16 %v831, %v831
      %v898 = vpack.c.bf16 %v833, %v833
      %v899 = vpack.c.bf16 %v836, %v836
      %v900 = vpack.c.bf16 %v838, %v838
      %v901 = vpack.c.bf16 %v841, %v841
      %v902 = vpack.c.bf16 %v843, %v843
      %v903 = vpack.c.bf16 %v846, %v846
      %v904 = vpack.c.bf16 %v848, %v848
      %v905 = vpack.c.bf16 %v851, %v851
      %v906 = vpack.c.bf16 %v853, %v853
      %v907 = vpack.c.bf16 %v856, %v856
      %v908 = vpack.c.bf16 %v858, %v858
      %v909 = vpack.c.bf16 %v861, %v861
      %v910 = vpack.c.bf16 %v863, %v863
      %v911 = vpack.c.bf16 %v866, %v866
      %v912 = vpack.c.bf16 %v868, %v868
      %v913 = vpack.c.bf16 %v871, %v871
      %v914 = vpack.c.bf16 %v873, %v873
      %915 = vst [vmem:[%s361] sm:$0xf] %v875
      %916 = vst [vmem:[%s361 + $0x4] sm:$0xf] %v876
      %917 = vst [vmem:[%s361 + $0x8] sm:$0xf] %v877
      %918 = vst [vmem:[%s361 + $0xc] sm:$0xf] %v878
      %919 = vst [vmem:[%s361 + $0x10] sm:$0xf] %v879
      %920 = vst [vmem:[%s361 + $0x14] sm:$0xf] %v880
      %921 = vst [vmem:[%s361 + $0x18] sm:$0xf] %v881
      %922 = vst [vmem:[%s361 + $0x1c] sm:$0xf] %v882
      %923 = vst [vmem:[%s361 + $0x20] sm:$0xf] %v883
      %924 = vst [vmem:[%s361 + $0x24] sm:$0xf] %v884
      %925 = vst [vmem:[%s361 + $0x28] sm:$0xf] %v885
      %926 = vst [vmem:[%s361 + $0x2c] sm:$0xf] %v886
      %927 = vst [vmem:[%s361 + $0x30] sm:$0xf] %v887
      %928 = vst [vmem:[%s361 + $0x34] sm:$0xf] %v888
      %929 = vst [vmem:[%s361 + $0x38] sm:$0xf] %v889
      %930 = vst [vmem:[%s361 + $0x3c] sm:$0xf] %v890
      %931 = vst [vmem:[%s361 + $0x40] sm:$0xf] %v891
      %932 = vst [vmem:[%s361 + $0x44] sm:$0xf] %v892
      %933 = vst [vmem:[%s361 + $0x48] sm:$0xf] %v893
      %934 = vst [vmem:[%s361 + $0x4c] sm:$0xf] %v894
      %935 = vst [vmem:[%s361 + $0x50] sm:$0xf] %v895
      %936 = vst [vmem:[%s361 + $0x54] sm:$0xf] %v896
      %937 = vst [vmem:[%s361 + $0x58] sm:$0xf] %v897
      %938 = vst [vmem:[%s361 + $0x5c] sm:$0xf] %v898
      %939 = vst [vmem:[%s361 + $0x60] sm:$0xf] %v899
      %940 = vst [vmem:[%s361 + $0x64] sm:$0xf] %v900
      %941 = vst [vmem:[%s361 + $0x68] sm:$0xf] %v901
      %942 = vst [vmem:[%s361 + $0x6c] sm:$0xf] %v902
      %943 = vst [vmem:[%s361 + $0x70] sm:$0xf] %v903
      %944 = vst [vmem:[%s361 + $0x74] sm:$0xf] %v904
      %945 = vst [vmem:[%s361 + $0x78] sm:$0xf] %v905
      %946 = vst [vmem:[%s361 + $0x7c] sm:$0xf] %v906
      %947 = vst [vmem:[%s361 + $0x80] sm:$0xf] %v907
      %948 = vst [vmem:[%s361 + $0x84] sm:$0xf] %v908
      %949 = vst [vmem:[%s361 + $0x88] sm:$0xf] %v909
      %950 = vst [vmem:[%s361 + $0x8c] sm:$0xf] %v910
      %951 = vst [vmem:[%s361 + $0x90] sm:$0xf] %v911
      %952 = vst [vmem:[%s361 + $0x94] sm:$0xf] %v912
      %953 = vst [vmem:[%s361 + $0x98] sm:$0xf] %v913
      %954 = vst [vmem:[%s361 + $0x9c] sm:$0xf] %v914
      %p955 = scmp.eq.s32.totalorder %s23, 0
      // Predicated region
      $region41: #{graph_triple_conv2d_net.22} parent=39 // pred_check
        %p956 = pneg %p955
      $region42: #{graph_triple_conv2d_net.22} parent=39 // pred_check_branch
        %958 = sbr.rel (%p956) target = $region44
      $region43: #{graph_triple_conv2d_net.22} parent=39 // pred_region
        %959 = vst [vmem:[%s366] sm:$0x3] 0.0
      $region44: #{graph_triple_conv2d_net.22} parent=39 // pred_fallthru
        _
      %v960 = vadd.f32 %v776, %v778
      %v961 = vadd.f32 %v960, %v781
      %v962 = vadd.f32 %v961, %v783
      %v963 = vadd.f32 %v962, %v786
      %v964 = vadd.f32 %v963, %v788
      %v965 = vadd.f32 %v964, %v791
      %v966 = vadd.f32 %v965, %v793
      %v967 = vadd.f32 %v966, %v796
      %v968 = vadd.f32 %v967, %v798
      %v969 = vadd.f32 %v968, %v801
      %v970 = vadd.f32 %v969, %v803
      %v971 = vadd.f32 %v970, %v806
      %v972 = vadd.f32 %v971, %v808
      %v973 = vadd.f32 %v972, %v811
      %v974 = vadd.f32 %v973, %v813
      %v975 = vadd.f32 %v974, %v816
      %v976 = vadd.f32 %v975, %v818
      %v977 = vadd.f32 %v976, %v821
      %v978 = vadd.f32 %v977, %v823
      %v979 = vadd.f32 %v978, %v826
      %v980 = vadd.f32 %v979, %v828
      %v981 = vadd.f32 %v980, %v831
      %v982 = vadd.f32 %v981, %v833
      %v983 = vadd.f32 %v982, %v836
      %v984 = vadd.f32 %v983, %v838
      %v985 = vadd.f32 %v984, %v841
      %v986 = vadd.f32 %v985, %v843
      %v987 = vadd.f32 %v986, %v846
      %v988 = vadd.f32 %v987, %v848
      %v989 = vadd.f32 %v988, %v851
      %v990 = vadd.f32 %v989, %v853
      %v991 = vadd.f32 %v990, %v856
      %v992 = vadd.f32 %v991, %v858
      %v993 = vadd.f32 %v992, %v861
      %v994 = vadd.f32 %v993, %v863
      %v995 = vadd.f32 %v994, %v866
      %v996 = vadd.f32 %v995, %v868
      %v997 = vadd.f32 %v996, %v871
      %v998 = vadd.f32 %v997, %v873
      %v999 = vrot.slane %v998, 4
      %v1000 = vadd.f32 %v998, %v999
      %v1001 = vrot.slane %v1000, 2
      %v1002 = vadd.f32 %v1000, %v1001
      %v1003 = vrot.slane %v1002, 1
      %v1004 = vadd.f32 %v1002, %v1003
      %v1005 = vmul.f32 %v776, %v776
      %v1006 = vmul.f32 %v778, %v778
      %v1007 = vmul.f32 %v781, %v781
      %v1008 = vmul.f32 %v783, %v783
      %v1009 = vmul.f32 %v786, %v786
      %v1010 = vmul.f32 %v788, %v788
      %v1011 = vmul.f32 %v791, %v791
      %v1012 = vmul.f32 %v793, %v793
      %v1013 = vmul.f32 %v796, %v796
      %v1014 = vmul.f32 %v798, %v798
      %v1015 = vmul.f32 %v801, %v801
      %v1016 = vmul.f32 %v803, %v803
      %v1017 = vmul.f32 %v806, %v806
      %v1018 = vmul.f32 %v808, %v808
      %v1019 = vmul.f32 %v811, %v811
      %v1020 = vmul.f32 %v813, %v813
      %v1021 = vmul.f32 %v816, %v816
      %v1022 = vmul.f32 %v818, %v818
      %v1023 = vmul.f32 %v821, %v821
      %v1024 = vmul.f32 %v823, %v823
      %v1025 = vmul.f32 %v826, %v826
      %v1026 = vmul.f32 %v828, %v828
      %v1027 = vmul.f32 %v831, %v831
      %v1028 = vmul.f32 %v833, %v833
      %v1029 = vmul.f32 %v836, %v836
      %v1030 = vmul.f32 %v838, %v838
      %v1031 = vmul.f32 %v841, %v841
      %v1032 = vmul.f32 %v843, %v843
      %v1033 = vmul.f32 %v846, %v846
      %v1034 = vmul.f32 %v848, %v848
      %v1035 = vmul.f32 %v851, %v851
      %v1036 = vmul.f32 %v853, %v853
      %v1037 = vmul.f32 %v856, %v856
      %v1038 = vmul.f32 %v858, %v858
      %v1039 = vmul.f32 %v861, %v861
      %v1040 = vmul.f32 %v863, %v863
      %v1041 = vmul.f32 %v866, %v866
      %v1042 = vmul.f32 %v868, %v868
      %v1043 = vmul.f32 %v871, %v871
      %v1044 = vmul.f32 %v873, %v873
      %v1045 = vadd.f32 %v1005, %v1006
      %v1046 = vadd.f32 %v1045, %v1007
      %v1047 = vadd.f32 %v1046, %v1008
      %v1048 = vadd.f32 %v1047, %v1009
      %v1049 = vadd.f32 %v1048, %v1010
      %v1050 = vadd.f32 %v1049, %v1011
      %v1051 = vadd.f32 %v1050, %v1012
      %v1052 = vadd.f32 %v1051, %v1013
      %v1053 = vadd.f32 %v1052, %v1014
      %v1054 = vadd.f32 %v1053, %v1015
      %v1055 = vadd.f32 %v1054, %v1016
      %v1056 = vadd.f32 %v1055, %v1017
      %v1057 = vadd.f32 %v1056, %v1018
      %v1058 = vadd.f32 %v1057, %v1019
      %v1059 = vadd.f32 %v1058, %v1020
      %v1060 = vadd.f32 %v1059, %v1021
      %v1061 = vadd.f32 %v1060, %v1022
      %v1062 = vadd.f32 %v1061, %v1023
      %v1063 = vadd.f32 %v1062, %v1024
      %v1064 = vadd.f32 %v1063, %v1025
      %v1065 = vadd.f32 %v1064, %v1026
      %v1066 = vadd.f32 %v1065, %v1027
      %v1067 = vadd.f32 %v1066, %v1028
      %v1068 = vadd.f32 %v1067, %v1029
      %v1069 = vadd.f32 %v1068, %v1030
      %v1070 = vadd.f32 %v1069, %v1031
      %v1071 = vadd.f32 %v1070, %v1032
      %v1072 = vadd.f32 %v1071, %v1033
      %v1073 = vadd.f32 %v1072, %v1034
      %v1074 = vadd.f32 %v1073, %v1035
      %v1075 = vadd.f32 %v1074, %v1036
      %v1076 = vadd.f32 %v1075, %v1037
      %v1077 = vadd.f32 %v1076, %v1038
      %v1078 = vadd.f32 %v1077, %v1039
      %v1079 = vadd.f32 %v1078, %v1040
      %v1080 = vadd.f32 %v1079, %v1041
      %v1081 = vadd.f32 %v1080, %v1042
      %v1082 = vadd.f32 %v1081, %v1043
      %v1083 = vadd.f32 %v1082, %v1044
      %v1084 = vrot.slane %v1083, 4
      %v1085 = vadd.f32 %v1083, %v1084
      %v1086 = vrot.slane %v1085, 2
      %v1087 = vadd.f32 %v1085, %v1086
      %v1088 = vrot.slane %v1087, 1
      %v1089 = vadd.f32 %v1087, %v1088
      %vm1090 = vcmask 1040384
      %v1091 = vsel %vm1090, %v1004, %v1089
      %v1092 = vld [vmem:[%s366] sm:$0x3]
      %v1093 = vadd.f32 %v1092, %v1091
      %1094 = vst [vmem:[%s366] sm:$0x3] %v1093
      %s1095 = smul.u32 40, %s23
      %p1096 = scmp.lt.s32.totalorder %s22, 1
      %s1097 = scalar_select %p1096, %s22, 1
      %p1098 = scmp.lt.s32.totalorder %s1095, 39
      %s1099 = scalar_select %p1098, %s1095, 39
      %s1100 = smul.addr %s1097, 40
      %s1101 = sadd.s32 %s1099, %s1100
      %s1102 = smul.addr %s1101, 4
      %s1103 = scalar_lea.vmem %s5, %s1102
      %p1104 = scmp.lt.s32.totalorder %s22, 1
      %s1105 = scalar_select %p1104, %s22, 1
      %s1106 = smul.addr %s1105, 2
      %s1107 = scalar_lea.vmem %s6, %s1106
      // Predicated region
      $region45: #{graph_triple_conv2d_net.22} parent=39 // pred_check
        %p1108 = pneg %p182
      $region46: #{graph_triple_conv2d_net.22} parent=39 // pred_check_branch
        %1110 = sbr.rel (%p1108) target = $region48
      $region47: #{graph_triple_conv2d_net.22} parent=39 // pred_region
        %s1111 = smul.u32 40, %s23
      $region48: #{graph_triple_conv2d_net.22} parent=39 // pred_fallthru
        _
      // Predicated region
      $region49: #{graph_triple_conv2d_net.22} parent=39 // pred_check
        %p1112 = pneg %p208
      $region50: #{graph_triple_conv2d_net.22} parent=39 // pred_check_branch
        %1114 = sbr.rel (%p1112) target = $region52
      $region51: #{graph_triple_conv2d_net.22} parent=39 // pred_region
        _
      $region52: #{graph_triple_conv2d_net.22} parent=39 // pred_fallthru
        _
    $region40: #{graph_triple_conv2d_net.22} parent=5 // pred_fallthru
      _
    %p1115 = scmp.le.s32.totalorder 2, %s13
    // Predicated region
    $region53: #{graph_triple_conv2d_net.22} parent=5 // pred_check
      %p1116 = pneg %p1115
    $region54: #{graph_triple_conv2d_net.22} parent=5 // pred_check_branch
      %1118 = sbr.rel (%p1116) target = $region56
    $region55: #{graph_triple_conv2d_net.22} parent=5 // pred_region
      %s1119 = ssub.s32 %s13, 2
      // Predicated region
      $region57: #{graph_triple_conv2d_net.22} parent=55 // pred_check
        %p1120 = pneg %p188
      $region58: #{graph_triple_conv2d_net.22} parent=55 // pred_check_branch
        %1122 = sbr.rel (%p1120) target = $region60
      $region59: #{graph_triple_conv2d_net.22} parent=55 // pred_region
        %s1123 = smul.u32 40, %s25
        %p1124 = scmp.lt.s32.totalorder %s24, 1
        %s1125 = scalar_select %p1124, %s24, 1
        %p1126 = scmp.lt.s32.totalorder %s1123, 39
        %s1127 = scalar_select %p1126, %s1123, 39
        %s1128 = smul.addr %s1125, 40
        %s1129 = sadd.s32 %s1127, %s1128
        %s1130 = smul.addr %s1129, 4
        %s1131 = scalar_lea.vmem %s5, %s1130
      $region60: #{graph_triple_conv2d_net.22} parent=55 // pred_fallthru
        _
      // Predicated region
      $region61: #{graph_triple_conv2d_net.22} parent=55 // pred_check
        %p1132 = pneg %p214
      $region62: #{graph_triple_conv2d_net.22} parent=55 // pred_check_branch
        %1134 = sbr.rel (%p1132) target = $region64
      $region63: #{graph_triple_conv2d_net.22} parent=55 // pred_region
        %p1135 = scmp.lt.s32.totalorder %s24, 1
        %s1136 = scalar_select %p1135, %s24, 1
        %s1137 = smul.addr %s1136, 2
        %s1138 = scalar_lea.vmem %s6, %s1137
      $region64: #{graph_triple_conv2d_net.22} parent=55 // pred_fallthru
        _
    $region56: #{graph_triple_conv2d_net.22} parent=5 // pred_fallthru
      _
  $region6: #{graph_triple_conv2d_net.22} parent=0 // loop_footer
    %s17 = sadd.s32 1, %s13
  $region7: #{graph_triple_conv2d_net.22} parent=0 // loop_footer_branch
    %12 = sbr.rel target = $region3
  $region8: #{graph_triple_conv2d_net.22} parent=0 // loop_exit
    _

</llo_original>
